<compile_context>
chip_gen: v7x
topology: tpu7x:2x2x1
jax: 0.10.0
libtpu: 0.0.40
codegen_flags: <defaults>
</compile_context>

<pallas_src>
import functools

import jax
import jax.numpy as jnp
from jax.experimental import pallas as pl
from jax.experimental.pallas import tpu as pltpu

_EPS = 1e-5


def _pick_th(h, w, c, budget=2 << 20):
    """Largest row-tile (divisor of h) whose f32 output tile stays <= ~2 MiB."""
    for th in (h, 32, 16, 14, 8, 7, 4, 2, 1):
        if th >= 1 and h % th == 0 and th * w * c * 4 <= budget:
            return th
    return 1


# ----------------------------------------------------------------------------
# Conv 3x3 (pad=1, no bias) with:
#   * optional fused input transform (previous BN affine + ReLU) applied while
#     filling the in-kernel padded VMEM scratch (halo handled in-kernel),
#   * bf16 MXU matmuls with f32 accumulation in a VMEM scratch,
#   * per-batch-element [sum, sum-of-squares] partial stats for training-mode
#     BatchNorm (reduced in JAX afterwards).
# ----------------------------------------------------------------------------
def _conv3x3_kernel(x_ref, w_ref, scale_ref, shift_ref, out_ref, stat_ref,
                    xpad_ref, acc_ref, *, apply_input_affine_relu):
    # x_ref    : (1, H, W, Cin)   full (unpadded) slab for this batch element
    # w_ref    : (3, 3, Cin, Cout) bf16
    # scale_ref: (1, Cin) f32     input-side BN scale (unused if not fused)
    # shift_ref: (1, Cin) f32     input-side BN shift (unused if not fused)
    # out_ref  : (1, TH, W, Cout) one row-tile of the conv output (f32)
    # stat_ref : (1, 2, Cout)     per-batch [sum, sumsq] partial stats (f32)
    # xpad_ref : (H+2, W+2, Cin)  f32 VMEM scratch, zero-padded halo
    # acc_ref  : (TH*W, Cout)     f32 VMEM accumulator
    h_idx = pl.program_id(1)
    h = x_ref.shape[1]
    th = out_ref.shape[1]
    w = out_ref.shape[2]
    cin = x_ref.shape[3]
    cout = out_ref.shape[3]

    # Fill the zero-padded halo scratch once per batch element; fuse the
    # previous layer's BN affine + ReLU into this single pass over the input.
    @pl.when(h_idx == 0)
    def _():
        xin = x_ref[0].astype(jnp.float32)                     # (H, W, Cin)
        if apply_input_affine_relu:
            xin = jnp.maximum(xin * scale_ref[0] + shift_ref[0], 0.0)
        xpad_ref[...] = jnp.zeros_like(xpad_ref)
        xpad_ref[1:h + 1, 1:w + 1, :] = xin

    # 3x3 conv as 9 shifted (TH*W, Cin) x (Cin, Cout) bf16 MXU matmuls,
    # accumulated in an f32 VMEM scratch (written to HBM once per tile).
    acc_ref[...] = jnp.zeros_like(acc_ref)
    for ky in range(3):
        for kx in range(3):
            win = xpad_ref[pl.ds(h_idx * th + ky, th), pl.ds(kx, w), :]
            win = win.reshape(th * w, cin).astype(jnp.bfloat16)
            acc_ref[...] += jnp.dot(win, w_ref[ky, kx],
                                    preferred_element_type=jnp.float32)

    acc = acc_ref[...]
    out_ref[0] = acc.reshape(th, w, cout).astype(out_ref.dtype)

    # Per-batch partial sums for training-mode BatchNorm (batch axis stays
    # race-free and can be 'parallel' for megacore).
    @pl.when(h_idx == 0)
    def _():
        stat_ref[...] = jnp.zeros_like(stat_ref)

    stat_ref[0, 0:1, :] += jnp.sum(acc, axis=0, keepdims=True)
    stat_ref[0, 1:2, :] += jnp.sum(acc * acc, axis=0, keepdims=True)


def conv3x3_bn_stats(x, w_bf16, in_scale, in_shift, *, fuse_input):
    """x: (B, H, W, Cin) f32 NHWC -> (conv_out (B,H,W,Cout) f32, stats (B,2,Cout))."""
    bsz, h, wd, cin = x.shape
    cout = w_bf16.shape[3]
    th = _pick_th(h, wd, cout)
    kernel = functools.partial(_conv3x3_kernel,
                               apply_input_affine_relu=fuse_input)
    return pl.pallas_call(
        kernel,
        out_shape=(
            jax.ShapeDtypeStruct((bsz, h, wd, cout), jnp.float32),
            jax.ShapeDtypeStruct((bsz, 2, cout), jnp.float32),
        ),
        grid=(bsz, h // th),
        in_specs=[
            pl.BlockSpec((1, h, wd, cin), lambda bb, hh: (bb, 0, 0, 0)),
            pl.BlockSpec((3, 3, cin, cout), lambda bb, hh: (0, 0, 0, 0)),
            pl.BlockSpec((1, cin), lambda bb, hh: (0, 0)),
            pl.BlockSpec((1, cin), lambda bb, hh: (0, 0)),
        ],
        out_specs=(
            pl.BlockSpec((1, th, wd, cout), lambda bb, hh: (bb, hh, 0, 0)),
            pl.BlockSpec((1, 2, cout), lambda bb, hh: (bb, 0, 0)),
        ),
        scratch_shapes=[
            pltpu.VMEM((h + 2, wd + 2, cin), jnp.float32),
            pltpu.VMEM((th * wd, cout), jnp.float32),
        ],
        compiler_params=pltpu.CompilerParams(
            dimension_semantics=("parallel", "arbitrary"),
        ),
    )(x, w_bf16, in_scale.reshape(1, cin), in_shift.reshape(1, cin))


def _bn_scale_shift(stats, gamma, beta, n):
    """Training-mode BN: batch statistics over (N, H, W), biased variance."""
    s = jnp.sum(stats, axis=0)                       # (2, C)
    mean = s[0] / n
    # TODO(synk): E[x^2]-E[x]^2 in f32 is cancellation-prone vs. PyTorch's
    # two-pass variance; clamped to >= 0.
    var = jnp.maximum(s[1] / n - mean * mean, 0.0)
    scale = gamma * jax.lax.rsqrt(var + _EPS)
    shift = beta - mean * scale
    return scale, shift


# ----------------------------------------------------------------------------
# Fused BN2-affine + residual add + ReLU
# ----------------------------------------------------------------------------
def _bn_add_relu_kernel(y_ref, id_ref, scale_ref, shift_ref, out_ref):
    out_ref[...] = jnp.maximum(
        y_ref[...] * scale_ref[0] + shift_ref[0] + id_ref[...], 0.0
    ).astype(out_ref.dtype)


def bn_add_relu(y, identity, scale, shift):
    bsz, h, wd, c = y.shape
    th = _pick_th(h, wd, c)
    tile_spec = pl.BlockSpec((1, th, wd, c), lambda bb, hh: (bb, hh, 0, 0))
    vec_spec = pl.BlockSpec((1, c), lambda bb, hh: (0, 0))
    return pl.pallas_call(
        _bn_add_relu_kernel,
        out_shape=jax.ShapeDtypeStruct((bsz, h, wd, c), jnp.float32),
        grid=(bsz, h // th),
        in_specs=[tile_spec, tile_spec, vec_spec, vec_spec],
        out_specs=tile_spec,
        compiler_params=pltpu.CompilerParams(
            dimension_semantics=("parallel", "parallel"),
        ),
    )(y, identity, scale.reshape(1, c), shift.reshape(1, c))


# ----------------------------------------------------------------------------
# BasicBlock forward
# ----------------------------------------------------------------------------
def basic_block_forward(x_nchw, params):
    # TODO(synk): stride > 1 / downsample path of BasicBlock is not implemented
    # (module defaults: stride=1, downsample=None, so identity == x).
    w1, g1, b1, w2, g2, b2 = params
    x = jnp.transpose(x_nchw, (0, 2, 3, 1)).astype(jnp.float32)   # NCHW -> NHWC
    bsz, h, wd, cin = x.shape
    n = float(bsz * h * wd)

    ones = jnp.ones((cin,), jnp.float32)
    zeros = jnp.zeros((cin,), jnp.float32)

    # conv1 (bias=False) + per-batch BN1 partial stats.
    y1, st1 = conv3x3_bn_stats(x, w1.astype(jnp.bfloat16), ones, zeros,
                               fuse_input=False)
    s1, t1 = _bn_scale_shift(st1, g1, b1, n)

    # conv2 with BN1-affine + ReLU fused into its input load.
    y2, st2 = conv3x3_bn_stats(y1, w2.astype(jnp.bfloat16), s1, t1,
                               fuse_input=True)
    s2, t2 = _bn_scale_shift(st2, g2, b2, n)

    # BN2-affine + residual add + ReLU, fused.
    out = bn_add_relu(y2, x, s2, t2)
    return jnp.transpose(out, (0, 3, 1, 2))                      # NHWC -> NCHW


def init_params(key, planes):
    k1, k2 = jax.random.split(key)
    fan_in = planes * 9
    w1 = jax.random.normal(k1, (3, 3, planes, planes), jnp.float32) / jnp.sqrt(
        float(fan_in))
    w2 = jax.random.normal(k2, (3, 3, planes, planes), jnp.float32) / jnp.sqrt(
        float(fan_in))
    g1 = jnp.ones((planes,), jnp.float32)   # PyTorch BN default init
    b1 = jnp.zeros((planes,), jnp.float32)
    g2 = jnp.ones((planes,), jnp.float32)
    b2 = jnp.zeros((planes,), jnp.float32)
    return (w1, g1, b1, w2, g2, b2)


if __name__ == "__main__":
    key = jax.random.PRNGKey(0)
    kx, kp = jax.random.split(key)
    planes = 128          # lane-dense channel count (inplanes == planes)
    x = jax.random.normal(kx, (2, planes, 16, 16), jnp.float32)   # NCHW
    params = init_params(kp, planes)

    fwd = jax.jit(basic_block_forward)
    out = jax.block_until_ready(fwd(x, params))
    assert out.shape == x.shape, out.shape
    assert bool(jnp.all(jnp.isfinite(out)))
    assert bool(jnp.all(out >= 0.0))   # final ReLU
    print("KERNEL_OK")
</pallas_src>

<mosaic_0001>
module attributes {stable_mosaic.version = 11 : i64} {
  func.func @_conv3x3_kernel(%arg0: i32, %arg1: i32, %arg2: memref<1x16x16x128xf32, #tpu.memory_space<vmem>>, %arg3: memref<3x3x128x128xbf16, #tpu.memory_space<vmem>>, %arg4: memref<1x128xf32, #tpu.memory_space<vmem>>, %arg5: memref<1x128xf32, #tpu.memory_space<vmem>>, %arg6: memref<1x16x16x128xf32, #tpu.memory_space<vmem>>, %arg7: memref<1x2x128xf32, #tpu.memory_space<vmem>>, %arg8: memref<18x18x128xf32, #tpu.memory_space<vmem>>, %arg9: memref<256x128xf32, #tpu.memory_space<vmem>>) attributes {dimension_semantics = [#tpu.dimension_semantics<parallel>, #tpu.dimension_semantics<arbitrary>], iteration_bounds = array<i64: 2, 1>, scalar_prefetch = 0 : i64, scratch_operands = 2 : i64, tpu.core_type = #tpu.core_type<tc>, window_params = [{transform_indices = @transform_0, window_bounds = array<i64: 1, 16, 16, 128>}, {pipeline_mode = #tpu.pipeline_mode<synchronous>, transform_indices = @transform_1, window_bounds = array<i64: 3, 3, 128, 128>}, {pipeline_mode = #tpu.pipeline_mode<synchronous>, transform_indices = @transform_2, window_bounds = array<i64: 1, 128>}, {pipeline_mode = #tpu.pipeline_mode<synchronous>, transform_indices = @transform_3, window_bounds = array<i64: 1, 128>}, {transform_indices = @transform_4, window_bounds = array<i64: 1, 16, 16, 128>}, {transform_indices = @transform_5, window_bounds = array<i64: 1, 2, 128>}]} {
    %c0_i32 = arith.constant 0 : i32
    %0 = arith.cmpi eq, %arg1, %c0_i32 : i32
    %1 = arith.extui %0 : i1 to i32
    %c0_i32_0 = arith.constant 0 : i32
    %2 = arith.cmpi ne, %1, %c0_i32_0 : i32
    scf.if %2 {
      %c0_136 = arith.constant 0 : index
      %c0_137 = arith.constant 0 : index
      %c0_138 = arith.constant 0 : index
      %c0_139 = arith.constant 0 : index
      %138 = vector.load %arg2[%c0_136, %c0_137, %c0_138, %c0_139] : memref<1x16x16x128xf32, #tpu.memory_space<vmem>>, vector<1x16x16x128xf32>
      %139 = vector.shape_cast %138 : vector<1x16x16x128xf32> to vector<16x16x128xf32>
      %cst_140 = arith.constant 0.000000e+00 : f32
      %140 = vector.broadcast %cst_140 : f32 to vector<18x18x128xf32>
      %c0_141 = arith.constant 0 : index
      %c0_142 = arith.constant 0 : index
      %c0_143 = arith.constant 0 : index
      %141 = vector.load %arg8[%c0_141, %c0_142, %c0_143] : memref<18x18x128xf32, #tpu.memory_space<vmem>>, vector<18x18x128xf32>
      tpu.vector_store %arg8[%c0_141, %c0_142, %c0_143], %140 {strides = array<i32>} : memref<18x18x128xf32, #tpu.memory_space<vmem>>, vector<18x18x128xf32>,
      %c1_144 = arith.constant 1 : index
      %c1_145 = arith.constant 1 : index
      %c0_146 = arith.constant 0 : index
      %142 = vector.load %arg8[%c1_144, %c1_145, %c0_146] : memref<18x18x128xf32, #tpu.memory_space<vmem>>, vector<16x16x128xf32>
      tpu.vector_store %arg8[%c1_144, %c1_145, %c0_146], %139 {strides = array<i32>} : memref<18x18x128xf32, #tpu.memory_space<vmem>>, vector<16x16x128xf32>,
    } else {
    }
    %cst = arith.constant 0.000000e+00 : f32
    %3 = vector.broadcast %cst : f32 to vector<256x128xf32>
    %c0 = arith.constant 0 : index
    %c0_1 = arith.constant 0 : index
    %4 = vector.load %arg9[%c0, %c0_1] : memref<256x128xf32, #tpu.memory_space<vmem>>, vector<256x128xf32>
    tpu.vector_store %arg9[%c0, %c0_1], %3 {strides = array<i32>} : memref<256x128xf32, #tpu.memory_space<vmem>>, vector<256x128xf32>,
    %c16_i32 = arith.constant 16 : i32
    %5 = arith.muli %arg1, %c16_i32 : i32
    %c0_i32_2 = arith.constant 0 : i32
    %6 = arith.addi %5, %c0_i32_2 : i32
    %7 = arith.index_cast %6 : i32 to index
    %c0_3 = arith.constant 0 : index
    %c0_4 = arith.constant 0 : index
    %8 = vector.load %arg8[%7, %c0_3, %c0_4] : memref<18x18x128xf32, #tpu.memory_space<vmem>>, vector<16x16x128xf32>
    %9 = vector.shape_cast %8 : vector<16x16x128xf32> to vector<256x128xf32>
    %10 = arith.truncf %9 : vector<256x128xf32> to vector<256x128xbf16>
    %c0_5 = arith.constant 0 : index
    %c0_6 = arith.constant 0 : index
    %11 = vector.load %arg9[%c0_5, %c0_6] : memref<256x128xf32, #tpu.memory_space<vmem>>, vector<256x128xf32>
    %c0_7 = arith.constant 0 : index
    %c0_8 = arith.constant 0 : index
    %c0_9 = arith.constant 0 : index
    %c0_10 = arith.constant 0 : index
    %12 = vector.load %arg3[%c0_7, %c0_8, %c0_9, %c0_10] : memref<3x3x128x128xbf16, #tpu.memory_space<vmem>>, vector<1x1x128x128xbf16>
    %13 = vector.shape_cast %12 : vector<1x1x128x128xbf16> to vector<128x128xbf16>
    %cst_11 = arith.constant dense<0.000000e+00> : vector<256x128xf32>
    %14 = tpu.matmul %10, %13, %cst_11 {dimension_numbers = #tpu.dot_dimension_numbers<[1], [0], [0], [1], [0, 0, 1, 1], [], []>} : vector<256x128xbf16>, vector<128x128xbf16>, vector<256x128xf32> -> vector<256x128xf32>
    %15 = arith.addf %11, %14 : vector<256x128xf32>
    %c0_12 = arith.constant 0 : index
    %c0_13 = arith.constant 0 : index
    %16 = vector.load %arg9[%c0_12, %c0_13] : memref<256x128xf32, #tpu.memory_space<vmem>>, vector<256x128xf32>
    tpu.vector_store %arg9[%c0_12, %c0_13], %15 {strides = array<i32>} : memref<256x128xf32, #tpu.memory_space<vmem>>, vector<256x128xf32>,
    %c16_i32_14 = arith.constant 16 : i32
    %17 = arith.muli %arg1, %c16_i32_14 : i32
    %c0_i32_15 = arith.constant 0 : i32
    %18 = arith.addi %17, %c0_i32_15 : i32
    %19 = arith.index_cast %18 : i32 to index
    %c1 = arith.constant 1 : index
    %c0_16 = arith.constant 0 : index
    %20 = vector.load %arg8[%19, %c1, %c0_16] : memref<18x18x128xf32, #tpu.memory_space<vmem>>, vector<16x16x128xf32>
    %21 = vector.shape_cast %20 : vector<16x16x128xf32> to vector<256x128xf32>
    %22 = arith.truncf %21 : vector<256x128xf32> to vector<256x128xbf16>
    %c0_17 = arith.constant 0 : index
    %c0_18 = arith.constant 0 : index
    %23 = vector.load %arg9[%c0_17, %c0_18] : memref<256x128xf32, #tpu.memory_space<vmem>>, vector<256x128xf32>
    %c0_19 = arith.constant 0 : index
    %c1_20 = arith.constant 1 : index
    %c0_21 = arith.constant 0 : index
    %c0_22 = arith.constant 0 : index
    %24 = vector.load %arg3[%c0_19, %c1_20, %c0_21, %c0_22] : memref<3x3x128x128xbf16, #tpu.memory_space<vmem>>, vector<1x1x128x128xbf16>
    %25 = vector.shape_cast %24 : vector<1x1x128x128xbf16> to vector<128x128xbf16>
    %cst_23 = arith.constant dense<0.000000e+00> : vector<256x128xf32>
    %26 = tpu.matmul %22, %25, %cst_23 {dimension_numbers = #tpu.dot_dimension_numbers<[1], [0], [0], [1], [0, 0, 1, 1], [], []>} : vector<256x128xbf16>, vector<128x128xbf16>, vector<256x128xf32> -> vector<256x128xf32>
    %27 = arith.addf %23, %26 : vector<256x128xf32>
    %c0_24 = arith.constant 0 : index
    %c0_25 = arith.constant 0 : index
    %28 = vector.load %arg9[%c0_24, %c0_25] : memref<256x128xf32, #tpu.memory_space<vmem>>, vector<256x128xf32>
    tpu.vector_store %arg9[%c0_24, %c0_25], %27 {strides = array<i32>} : memref<256x128xf32, #tpu.memory_space<vmem>>, vector<256x128xf32>,
    %c16_i32_26 = arith.constant 16 : i32
    %29 = arith.muli %arg1, %c16_i32_26 : i32
    %c0_i32_27 = arith.constant 0 : i32
    %30 = arith.addi %29, %c0_i32_27 : i32
    %31 = arith.index_cast %30 : i32 to index
    %c2 = arith.constant 2 : index
    %c0_28 = arith.constant 0 : index
    %32 = vector.load %arg8[%31, %c2, %c0_28] : memref<18x18x128xf32, #tpu.memory_space<vmem>>, vector<16x16x128xf32>
    %33 = vector.shape_cast %32 : vector<16x16x128xf32> to vector<256x128xf32>
    %34 = arith.truncf %33 : vector<256x128xf32> to vector<256x128xbf16>
    %c0_29 = arith.constant 0 : index
    %c0_30 = arith.constant 0 : index
    %35 = vector.load %arg9[%c0_29, %c0_30] : memref<256x128xf32, #tpu.memory_space<vmem>>, vector<256x128xf32>
    %c0_31 = arith.constant 0 : index
    %c2_32 = arith.constant 2 : index
    %c0_33 = arith.constant 0 : index
    %c0_34 = arith.constant 0 : index
    %36 = vector.load %arg3[%c0_31, %c2_32, %c0_33, %c0_34] : memref<3x3x128x128xbf16, #tpu.memory_space<vmem>>, vector<1x1x128x128xbf16>
    %37 = vector.shape_cast %36 : vector<1x1x128x128xbf16> to vector<128x128xbf16>
    %cst_35 = arith.constant dense<0.000000e+00> : vector<256x128xf32>
    %38 = tpu.matmul %34, %37, %cst_35 {dimension_numbers = #tpu.dot_dimension_numbers<[1], [0], [0], [1], [0, 0, 1, 1], [], []>} : vector<256x128xbf16>, vector<128x128xbf16>, vector<256x128xf32> -> vector<256x128xf32>
    %39 = arith.addf %35, %38 : vector<256x128xf32>
    %c0_36 = arith.constant 0 : index
    %c0_37 = arith.constant 0 : index
    %40 = vector.load %arg9[%c0_36, %c0_37] : memref<256x128xf32, #tpu.memory_space<vmem>>, vector<256x128xf32>
    tpu.vector_store %arg9[%c0_36, %c0_37], %39 {strides = array<i32>} : memref<256x128xf32, #tpu.memory_space<vmem>>, vector<256x128xf32>,
    %c16_i32_38 = arith.constant 16 : i32
    %41 = arith.muli %arg1, %c16_i32_38 : i32
    %c1_i32 = arith.constant 1 : i32
    %42 = arith.addi %41, %c1_i32 : i32
    %43 = arith.index_cast %42 : i32 to index
    %c0_39 = arith.constant 0 : index
    %c0_40 = arith.constant 0 : index
    %44 = vector.load %arg8[%43, %c0_39, %c0_40] : memref<18x18x128xf32, #tpu.memory_space<vmem>>, vector<16x16x128xf32>
    %45 = vector.shape_cast %44 : vector<16x16x128xf32> to vector<256x128xf32>
    %46 = arith.truncf %45 : vector<256x128xf32> to vector<256x128xbf16>
    %c0_41 = arith.constant 0 : index
    %c0_42 = arith.constant 0 : index
    %47 = vector.load %arg9[%c0_41, %c0_42] : memref<256x128xf32, #tpu.memory_space<vmem>>, vector<256x128xf32>
    %c1_43 = arith.constant 1 : index
    %c0_44 = arith.constant 0 : index
    %c0_45 = arith.constant 0 : index
    %c0_46 = arith.constant 0 : index
    %48 = vector.load %arg3[%c1_43, %c0_44, %c0_45, %c0_46] : memref<3x3x128x128xbf16, #tpu.memory_space<vmem>>, vector<1x1x128x128xbf16>
    %49 = vector.shape_cast %48 : vector<1x1x128x128xbf16> to vector<128x128xbf16>
    %cst_47 = arith.constant dense<0.000000e+00> : vector<256x128xf32>
    %50 = tpu.matmul %46, %49, %cst_47 {dimension_numbers = #tpu.dot_dimension_numbers<[1], [0], [0], [1], [0, 0, 1, 1], [], []>} : vector<256x128xbf16>, vector<128x128xbf16>, vector<256x128xf32> -> vector<256x128xf32>
    %51 = arith.addf %47, %50 : vector<256x128xf32>
    %c0_48 = arith.constant 0 : index
    %c0_49 = arith.constant 0 : index
    %52 = vector.load %arg9[%c0_48, %c0_49] : memref<256x128xf32, #tpu.memory_space<vmem>>, vector<256x128xf32>
    tpu.vector_store %arg9[%c0_48, %c0_49], %51 {strides = array<i32>} : memref<256x128xf32, #tpu.memory_space<vmem>>, vector<256x128xf32>,
    %c16_i32_50 = arith.constant 16 : i32
    %53 = arith.muli %arg1, %c16_i32_50 : i32
    %c1_i32_51 = arith.constant 1 : i32
    %54 = arith.addi %53, %c1_i32_51 : i32
    %55 = arith.index_cast %54 : i32 to index
    %c1_52 = arith.constant 1 : index
    %c0_53 = arith.constant 0 : index
    %56 = vector.load %arg8[%55, %c1_52, %c0_53] : memref<18x18x128xf32, #tpu.memory_space<vmem>>, vector<16x16x128xf32>
    %57 = vector.shape_cast %56 : vector<16x16x128xf32> to vector<256x128xf32>
    %58 = arith.truncf %57 : vector<256x128xf32> to vector<256x128xbf16>
    %c0_54 = arith.constant 0 : index
    %c0_55 = arith.constant 0 : index
    %59 = vector.load %arg9[%c0_54, %c0_55] : memref<256x128xf32, #tpu.memory_space<vmem>>, vector<256x128xf32>
    %c1_56 = arith.constant 1 : index
    %c1_57 = arith.constant 1 : index
    %c0_58 = arith.constant 0 : index
    %c0_59 = arith.constant 0 : index
    %60 = vector.load %arg3[%c1_56, %c1_57, %c0_58, %c0_59] : memref<3x3x128x128xbf16, #tpu.memory_space<vmem>>, vector<1x1x128x128xbf16>
    %61 = vector.shape_cast %60 : vector<1x1x128x128xbf16> to vector<128x128xbf16>
    %cst_60 = arith.constant dense<0.000000e+00> : vector<256x128xf32>
    %62 = tpu.matmul %58, %61, %cst_60 {dimension_numbers = #tpu.dot_dimension_numbers<[1], [0], [0], [1], [0, 0, 1, 1], [], []>} : vector<256x128xbf16>, vector<128x128xbf16>, vector<256x128xf32> -> vector<256x128xf32>
    %63 = arith.addf %59, %62 : vector<256x128xf32>
    %c0_61 = arith.constant 0 : index
    %c0_62 = arith.constant 0 : index
    %64 = vector.load %arg9[%c0_61, %c0_62] : memref<256x128xf32, #tpu.memory_space<vmem>>, vector<256x128xf32>
    tpu.vector_store %arg9[%c0_61, %c0_62], %63 {strides = array<i32>} : memref<256x128xf32, #tpu.memory_space<vmem>>, vector<256x128xf32>,
    %c16_i32_63 = arith.constant 16 : i32
    %65 = arith.muli %arg1, %c16_i32_63 : i32
    %c1_i32_64 = arith.constant 1 : i32
    %66 = arith.addi %65, %c1_i32_64 : i32
    %67 = arith.index_cast %66 : i32 to index
    %c2_65 = arith.constant 2 : index
    %c0_66 = arith.constant 0 : index
    %68 = vector.load %arg8[%67, %c2_65, %c0_66] : memref<18x18x128xf32, #tpu.memory_space<vmem>>, vector<16x16x128xf32>
    %69 = vector.shape_cast %68 : vector<16x16x128xf32> to vector<256x128xf32>
    %70 = arith.truncf %69 : vector<256x128xf32> to vector<256x128xbf16>
    %c0_67 = arith.constant 0 : index
    %c0_68 = arith.constant 0 : index
    %71 = vector.load %arg9[%c0_67, %c0_68] : memref<256x128xf32, #tpu.memory_space<vmem>>, vector<256x128xf32>
    %c1_69 = arith.constant 1 : index
    %c2_70 = arith.constant 2 : index
    %c0_71 = arith.constant 0 : index
    %c0_72 = arith.constant 0 : index
    %72 = vector.load %arg3[%c1_69, %c2_70, %c0_71, %c0_72] : memref<3x3x128x128xbf16, #tpu.memory_space<vmem>>, vector<1x1x128x128xbf16>
    %73 = vector.shape_cast %72 : vector<1x1x128x128xbf16> to vector<128x128xbf16>
    %cst_73 = arith.constant dense<0.000000e+00> : vector<256x128xf32>
    %74 = tpu.matmul %70, %73, %cst_73 {dimension_numbers = #tpu.dot_dimension_numbers<[1], [0], [0], [1], [0, 0, 1, 1], [], []>} : vector<256x128xbf16>, vector<128x128xbf16>, vector<256x128xf32> -> vector<256x128xf32>
    %75 = arith.addf %71, %74 : vector<256x128xf32>
    %c0_74 = arith.constant 0 : index
    %c0_75 = arith.constant 0 : index
    %76 = vector.load %arg9[%c0_74, %c0_75] : memref<256x128xf32, #tpu.memory_space<vmem>>, vector<256x128xf32>
    tpu.vector_store %arg9[%c0_74, %c0_75], %75 {strides = array<i32>} : memref<256x128xf32, #tpu.memory_space<vmem>>, vector<256x128xf32>,
    %c16_i32_76 = arith.constant 16 : i32
    %77 = arith.muli %arg1, %c16_i32_76 : i32
    %c2_i32 = arith.constant 2 : i32
    %78 = arith.addi %77, %c2_i32 : i32
    %79 = arith.index_cast %78 : i32 to index
    %c0_77 = arith.constant 0 : index
    %c0_78 = arith.constant 0 : index
    %80 = vector.load %arg8[%79, %c0_77, %c0_78] : memref<18x18x128xf32, #tpu.memory_space<vmem>>, vector<16x16x128xf32>
    %81 = vector.shape_cast %80 : vector<16x16x128xf32> to vector<256x128xf32>
    %82 = arith.truncf %81 : vector<256x128xf32> to vector<256x128xbf16>
    %c0_79 = arith.constant 0 : index
    %c0_80 = arith.constant 0 : index
    %83 = vector.load %arg9[%c0_79, %c0_80] : memref<256x128xf32, #tpu.memory_space<vmem>>, vector<256x128xf32>
    %c2_81 = arith.constant 2 : index
    %c0_82 = arith.constant 0 : index
    %c0_83 = arith.constant 0 : index
    %c0_84 = arith.constant 0 : index
    %84 = vector.load %arg3[%c2_81, %c0_82, %c0_83, %c0_84] : memref<3x3x128x128xbf16, #tpu.memory_space<vmem>>, vector<1x1x128x128xbf16>
    %85 = vector.shape_cast %84 : vector<1x1x128x128xbf16> to vector<128x128xbf16>
    %cst_85 = arith.constant dense<0.000000e+00> : vector<256x128xf32>
    %86 = tpu.matmul %82, %85, %cst_85 {dimension_numbers = #tpu.dot_dimension_numbers<[1], [0], [0], [1], [0, 0, 1, 1], [], []>} : vector<256x128xbf16>, vector<128x128xbf16>, vector<256x128xf32> -> vector<256x128xf32>
    %87 = arith.addf %83, %86 : vector<256x128xf32>
    %c0_86 = arith.constant 0 : index
    %c0_87 = arith.constant 0 : index
    %88 = vector.load %arg9[%c0_86, %c0_87] : memref<256x128xf32, #tpu.memory_space<vmem>>, vector<256x128xf32>
    tpu.vector_store %arg9[%c0_86, %c0_87], %87 {strides = array<i32>} : memref<256x128xf32, #tpu.memory_space<vmem>>, vector<256x128xf32>,
    %c16_i32_88 = arith.constant 16 : i32
    %89 = arith.muli %arg1, %c16_i32_88 : i32
    %c2_i32_89 = arith.constant 2 : i32
    %90 = arith.addi %89, %c2_i32_89 : i32
    %91 = arith.index_cast %90 : i32 to index
    %c1_90 = arith.constant 1 : index
    %c0_91 = arith.constant 0 : index
    %92 = vector.load %arg8[%91, %c1_90, %c0_91] : memref<18x18x128xf32, #tpu.memory_space<vmem>>, vector<16x16x128xf32>
    %93 = vector.shape_cast %92 : vector<16x16x128xf32> to vector<256x128xf32>
    %94 = arith.truncf %93 : vector<256x128xf32> to vector<256x128xbf16>
    %c0_92 = arith.constant 0 : index
    %c0_93 = arith.constant 0 : index
    %95 = vector.load %arg9[%c0_92, %c0_93] : memref<256x128xf32, #tpu.memory_space<vmem>>, vector<256x128xf32>
    %c2_94 = arith.constant 2 : index
    %c1_95 = arith.constant 1 : index
    %c0_96 = arith.constant 0 : index
    %c0_97 = arith.constant 0 : index
    %96 = vector.load %arg3[%c2_94, %c1_95, %c0_96, %c0_97] : memref<3x3x128x128xbf16, #tpu.memory_space<vmem>>, vector<1x1x128x128xbf16>
    %97 = vector.shape_cast %96 : vector<1x1x128x128xbf16> to vector<128x128xbf16>
    %cst_98 = arith.constant dense<0.000000e+00> : vector<256x128xf32>
    %98 = tpu.matmul %94, %97, %cst_98 {dimension_numbers = #tpu.dot_dimension_numbers<[1], [0], [0], [1], [0, 0, 1, 1], [], []>} : vector<256x128xbf16>, vector<128x128xbf16>, vector<256x128xf32> -> vector<256x128xf32>
    %99 = arith.addf %95, %98 : vector<256x128xf32>
    %c0_99 = arith.constant 0 : index
    %c0_100 = arith.constant 0 : index
    %100 = vector.load %arg9[%c0_99, %c0_100] : memref<256x128xf32, #tpu.memory_space<vmem>>, vector<256x128xf32>
    tpu.vector_store %arg9[%c0_99, %c0_100], %99 {strides = array<i32>} : memref<256x128xf32, #tpu.memory_space<vmem>>, vector<256x128xf32>,
    %c16_i32_101 = arith.constant 16 : i32
    %101 = arith.muli %arg1, %c16_i32_101 : i32
    %c2_i32_102 = arith.constant 2 : i32
    %102 = arith.addi %101, %c2_i32_102 : i32
    %103 = arith.index_cast %102 : i32 to index
    %c2_103 = arith.constant 2 : index
    %c0_104 = arith.constant 0 : index
    %104 = vector.load %arg8[%103, %c2_103, %c0_104] : memref<18x18x128xf32, #tpu.memory_space<vmem>>, vector<16x16x128xf32>
    %105 = vector.shape_cast %104 : vector<16x16x128xf32> to vector<256x128xf32>
    %106 = arith.truncf %105 : vector<256x128xf32> to vector<256x128xbf16>
    %c0_105 = arith.constant 0 : index
    %c0_106 = arith.constant 0 : index
    %107 = vector.load %arg9[%c0_105, %c0_106] : memref<256x128xf32, #tpu.memory_space<vmem>>, vector<256x128xf32>
    %c2_107 = arith.constant 2 : index
    %c2_108 = arith.constant 2 : index
    %c0_109 = arith.constant 0 : index
    %c0_110 = arith.constant 0 : index
    %108 = vector.load %arg3[%c2_107, %c2_108, %c0_109, %c0_110] : memref<3x3x128x128xbf16, #tpu.memory_space<vmem>>, vector<1x1x128x128xbf16>
    %109 = vector.shape_cast %108 : vector<1x1x128x128xbf16> to vector<128x128xbf16>
    %cst_111 = arith.constant dense<0.000000e+00> : vector<256x128xf32>
    %110 = tpu.matmul %106, %109, %cst_111 {dimension_numbers = #tpu.dot_dimension_numbers<[1], [0], [0], [1], [0, 0, 1, 1], [], []>} : vector<256x128xbf16>, vector<128x128xbf16>, vector<256x128xf32> -> vector<256x128xf32>
    %111 = arith.addf %107, %110 : vector<256x128xf32>
    %c0_112 = arith.constant 0 : index
    %c0_113 = arith.constant 0 : index
    %112 = vector.load %arg9[%c0_112, %c0_113] : memref<256x128xf32, #tpu.memory_space<vmem>>, vector<256x128xf32>
    tpu.vector_store %arg9[%c0_112, %c0_113], %111 {strides = array<i32>} : memref<256x128xf32, #tpu.memory_space<vmem>>, vector<256x128xf32>,
    %c0_114 = arith.constant 0 : index
    %c0_115 = arith.constant 0 : index
    %113 = vector.load %arg9[%c0_114, %c0_115] : memref<256x128xf32, #tpu.memory_space<vmem>>, vector<256x128xf32>
    %114 = vector.shape_cast %113 : vector<256x128xf32> to vector<16x16x128xf32>
    %c0_116 = arith.constant 0 : index
    %c0_117 = arith.constant 0 : index
    %c0_118 = arith.constant 0 : index
    %c0_119 = arith.constant 0 : index
    %115 = vector.load %arg6[%c0_116, %c0_117, %c0_118, %c0_119] : memref<1x16x16x128xf32, #tpu.memory_space<vmem>>, vector<1x16x16x128xf32>
    %116 = vector.shape_cast %115 : vector<1x16x16x128xf32> to vector<16x16x128xf32>
    %117 = vector.shape_cast %114 : vector<16x16x128xf32> to vector<1x16x16x128xf32>
    tpu.vector_store %arg6[%c0_116, %c0_117, %c0_118, %c0_119], %117 {strides = array<i32>} : memref<1x16x16x128xf32, #tpu.memory_space<vmem>>, vector<1x16x16x128xf32>,
    %c0_i32_120 = arith.constant 0 : i32
    %118 = arith.cmpi eq, %arg1, %c0_i32_120 : i32
    %119 = arith.extui %118 : i1 to i32
    %c0_i32_121 = arith.constant 0 : i32
    %120 = arith.cmpi ne, %119, %c0_i32_121 : i32
    scf.if %120 {
      %cst_136 = arith.constant 0.000000e+00 : f32
      %138 = vector.broadcast %cst_136 : f32 to vector<1x2x128xf32>
      %c0_137 = arith.constant 0 : index
      %c0_138 = arith.constant 0 : index
      %c0_139 = arith.constant 0 : index
      %139 = vector.load %arg7[%c0_137, %c0_138, %c0_139] : memref<1x2x128xf32, #tpu.memory_space<vmem>>, vector<1x2x128xf32>
      tpu.vector_store %arg7[%c0_137, %c0_138, %c0_139], %138 {strides = array<i32>} : memref<1x2x128xf32, #tpu.memory_space<vmem>>, vector<1x2x128xf32>,
    } else {
    }
    %c0_122 = arith.constant 0 : index
    %c0_123 = arith.constant 0 : index
    %c0_124 = arith.constant 0 : index
    %121 = vector.load %arg7[%c0_122, %c0_123, %c0_124] : memref<1x2x128xf32, #tpu.memory_space<vmem>>, vector<1x1x128xf32>
    %122 = vector.shape_cast %121 : vector<1x1x128xf32> to vector<1x128xf32>
    %cst_125 = arith.constant dense<0.000000e+00> : vector<128xf32>
    %123 = vector.multi_reduction <add>, %113, %cst_125 [0] : vector<256x128xf32> to vector<128xf32>
    %124 = vector.shape_cast %123 : vector<128xf32> to vector<1x128xf32>
    %125 = arith.addf %122, %124 : vector<1x128xf32>
    %c0_126 = arith.constant 0 : index
    %c0_127 = arith.constant 0 : index
    %c0_128 = arith.constant 0 : index
    %126 = vector.load %arg7[%c0_126, %c0_127, %c0_128] : memref<1x2x128xf32, #tpu.memory_space<vmem>>, vector<1x1x128xf32>
    %127 = vector.shape_cast %126 : vector<1x1x128xf32> to vector<1x128xf32>
    %128 = vector.shape_cast %125 : vector<1x128xf32> to vector<1x1x128xf32>
    tpu.vector_store %arg7[%c0_126, %c0_127, %c0_128], %128 {strides = array<i32>} : memref<1x2x128xf32, #tpu.memory_space<vmem>>, vector<1x1x128xf32>,
    %c0_129 = arith.constant 0 : index
    %c1_130 = arith.constant 1 : index
    %c0_131 = arith.constant 0 : index
    %129 = vector.load %arg7[%c0_129, %c1_130, %c0_131] : memref<1x2x128xf32, #tpu.memory_space<vmem>>, vector<1x1x128xf32>
    %130 = vector.shape_cast %129 : vector<1x1x128xf32> to vector<1x128xf32>
    %131 = arith.mulf %113, %113 : vector<256x128xf32>
    %cst_132 = arith.constant dense<0.000000e+00> : vector<128xf32>
    %132 = vector.multi_reduction <add>, %131, %cst_132 [0] : vector<256x128xf32> to vector<128xf32>
    %133 = vector.shape_cast %132 : vector<128xf32> to vector<1x128xf32>
    %134 = arith.addf %130, %133 : vector<1x128xf32>
    %c0_133 = arith.constant 0 : index
    %c1_134 = arith.constant 1 : index
    %c0_135 = arith.constant 0 : index
    %135 = vector.load %arg7[%c0_133, %c1_134, %c0_135] : memref<1x2x128xf32, #tpu.memory_space<vmem>>, vector<1x1x128xf32>
    %136 = vector.shape_cast %135 : vector<1x1x128xf32> to vector<1x128xf32>
    %137 = vector.shape_cast %134 : vector<1x128xf32> to vector<1x1x128xf32>
    tpu.vector_store %arg7[%c0_133, %c1_134, %c0_135], %137 {strides = array<i32>} : memref<1x2x128xf32, #tpu.memory_space<vmem>>, vector<1x1x128xf32>,
    return
  }
  func.func @transform_0(%arg0: i32, %arg1: i32) -> (i32, i32, i32, i32) {
    %c0_i32 = arith.constant 0 : i32
    %c0_i32_0 = arith.constant 0 : i32
    %c0_i32_1 = arith.constant 0 : i32
    %c0_i32_2 = arith.constant 0 : i32
    return %arg0, %c0_i32, %c0_i32_0, %c0_i32_1 : i32, i32, i32, i32
  }
  func.func @transform_1(%arg0: i32, %arg1: i32) -> (i32, i32, i32, i32) {
    %c0_i32 = arith.constant 0 : i32
    %c0_i32_0 = arith.constant 0 : i32
    %c0_i32_1 = arith.constant 0 : i32
    %c0_i32_2 = arith.constant 0 : i32
    %c0_i32_3 = arith.constant 0 : i32
    return %c0_i32, %c0_i32_0, %c0_i32_1, %c0_i32_2 : i32, i32, i32, i32
  }
  func.func @transform_2(%arg0: i32, %arg1: i32) -> (i32, i32) {
    %c0_i32 = arith.constant 0 : i32
    %c0_i32_0 = arith.constant 0 : i32
    %c0_i32_1 = arith.constant 0 : i32
    return %c0_i32, %c0_i32_0 : i32, i32
  }
  func.func @transform_3(%arg0: i32, %arg1: i32) -> (i32, i32) {
    %c0_i32 = arith.constant 0 : i32
    %c0_i32_0 = arith.constant 0 : i32
    %c0_i32_1 = arith.constant 0 : i32
    return %c0_i32, %c0_i32_0 : i32, i32
  }
  func.func @transform_4(%arg0: i32, %arg1: i32) -> (i32, i32, i32, i32) {
    %c0_i32 = arith.constant 0 : i32
    %c0_i32_0 = arith.constant 0 : i32
    %c0_i32_1 = arith.constant 0 : i32
    return %arg0, %arg1, %c0_i32, %c0_i32_0 : i32, i32, i32, i32
  }
  func.func @transform_5(%arg0: i32, %arg1: i32) -> (i32, i32, i32) {
    %c0_i32 = arith.constant 0 : i32
    %c0_i32_0 = arith.constant 0 : i32
    %c0_i32_1 = arith.constant 0 : i32
    return %arg0, %c0_i32, %c0_i32_0 : i32, i32, i32
  }
}

module attributes {stable_mosaic.version = 11 : i64} {
  func.func @_conv3x3_kernel(%arg0: i32, %arg1: i32, %arg2: memref<1x16x16x128xf32, #tpu.memory_space<vmem>>, %arg3: memref<3x3x128x128xbf16, #tpu.memory_space<vmem>>, %arg4: memref<1x128xf32, #tpu.memory_space<vmem>>, %arg5: memref<1x128xf32, #tpu.memory_space<vmem>>, %arg6: memref<1x16x16x128xf32, #tpu.memory_space<vmem>>, %arg7: memref<1x2x128xf32, #tpu.memory_space<vmem>>, %arg8: memref<18x18x128xf32, #tpu.memory_space<vmem>>, %arg9: memref<256x128xf32, #tpu.memory_space<vmem>>) attributes {dimension_semantics = [#tpu.dimension_semantics<parallel>, #tpu.dimension_semantics<arbitrary>], iteration_bounds = array<i64: 2, 1>, scalar_prefetch = 0 : i64, scratch_operands = 2 : i64, tpu.core_type = #tpu.core_type<tc>, window_params = [{transform_indices = @transform_0, window_bounds = array<i64: 1, 16, 16, 128>}, {pipeline_mode = #tpu.pipeline_mode<synchronous>, transform_indices = @transform_1, window_bounds = array<i64: 3, 3, 128, 128>}, {pipeline_mode = #tpu.pipeline_mode<synchronous>, transform_indices = @transform_2, window_bounds = array<i64: 1, 128>}, {pipeline_mode = #tpu.pipeline_mode<synchronous>, transform_indices = @transform_3, window_bounds = array<i64: 1, 128>}, {transform_indices = @transform_4, window_bounds = array<i64: 1, 16, 16, 128>}, {transform_indices = @transform_5, window_bounds = array<i64: 1, 2, 128>}]} {
    %c0_i32 = arith.constant 0 : i32
    %0 = arith.cmpi eq, %arg1, %c0_i32 : i32
    %1 = arith.extui %0 : i1 to i32
    %c0_i32_0 = arith.constant 0 : i32
    %2 = arith.cmpi ne, %1, %c0_i32_0 : i32
    scf.if %2 {
      %c0_136 = arith.constant 0 : index
      %c0_137 = arith.constant 0 : index
      %c0_138 = arith.constant 0 : index
      %c0_139 = arith.constant 0 : index
      %138 = vector.load %arg2[%c0_136, %c0_137, %c0_138, %c0_139] : memref<1x16x16x128xf32, #tpu.memory_space<vmem>>, vector<1x16x16x128xf32>
      %139 = vector.shape_cast %138 : vector<1x16x16x128xf32> to vector<16x16x128xf32>
      %c0_140 = arith.constant 0 : index
      %c0_141 = arith.constant 0 : index
      %140 = vector.load %arg4[%c0_140, %c0_141] : memref<1x128xf32, #tpu.memory_space<vmem>>, vector<1x128xf32>
      %141 = vector.shape_cast %140 : vector<1x128xf32> to vector<128xf32>
      %142 = vector.shape_cast %141 : vector<128xf32> to vector<1x1x128xf32>
      %143 = vector.broadcast %142 : vector<1x1x128xf32> to vector<16x16x128xf32>
      %144 = arith.mulf %139, %143 : vector<16x16x128xf32>
      %c0_142 = arith.constant 0 : index
      %c0_143 = arith.constant 0 : index
      %145 = vector.load %arg5[%c0_142, %c0_143] : memref<1x128xf32, #tpu.memory_space<vmem>>, vector<1x128xf32>
      %146 = vector.shape_cast %145 : vector<1x128xf32> to vector<128xf32>
      %147 = vector.shape_cast %146 : vector<128xf32> to vector<1x1x128xf32>
      %148 = vector.broadcast %147 : vector<1x1x128xf32> to vector<16x16x128xf32>
      %149 = arith.addf %144, %148 : vector<16x16x128xf32>
      %cst_144 = arith.constant 0.000000e+00 : f32
      %150 = vector.broadcast %cst_144 : f32 to vector<16x16x128xf32>
      %151 = arith.maximumf %149, %150 : vector<16x16x128xf32>
      %cst_145 = arith.constant 0.000000e+00 : f32
      %152 = vector.broadcast %cst_145 : f32 to vector<18x18x128xf32>
      %c0_146 = arith.constant 0 : index
      %c0_147 = arith.constant 0 : index
      %c0_148 = arith.constant 0 : index
      %153 = vector.load %arg8[%c0_146, %c0_147, %c0_148] : memref<18x18x128xf32, #tpu.memory_space<vmem>>, vector<18x18x128xf32>
      tpu.vector_store %arg8[%c0_146, %c0_147, %c0_148], %152 {strides = array<i32>} : memref<18x18x128xf32, #tpu.memory_space<vmem>>, vector<18x18x128xf32>,
      %c1_149 = arith.constant 1 : index
      %c1_150 = arith.constant 1 : index
      %c0_151 = arith.constant 0 : index
      %154 = vector.load %arg8[%c1_149, %c1_150, %c0_151] : memref<18x18x128xf32, #tpu.memory_space<vmem>>, vector<16x16x128xf32>
      tpu.vector_store %arg8[%c1_149, %c1_150, %c0_151], %151 {strides = array<i32>} : memref<18x18x128xf32, #tpu.memory_space<vmem>>, vector<16x16x128xf32>,
    } else {
    }
    %cst = arith.constant 0.000000e+00 : f32
    %3 = vector.broadcast %cst : f32 to vector<256x128xf32>
    %c0 = arith.constant 0 : index
    %c0_1 = arith.constant 0 : index
    %4 = vector.load %arg9[%c0, %c0_1] : memref<256x128xf32, #tpu.memory_space<vmem>>, vector<256x128xf32>
    tpu.vector_store %arg9[%c0, %c0_1], %3 {strides = array<i32>} : memref<256x128xf32, #tpu.memory_space<vmem>>, vector<256x128xf32>,
    %c16_i32 = arith.constant 16 : i32
    %5 = arith.muli %arg1, %c16_i32 : i32
    %c0_i32_2 = arith.constant 0 : i32
    %6 = arith.addi %5, %c0_i32_2 : i32
    %7 = arith.index_cast %6 : i32 to index
    %c0_3 = arith.constant 0 : index
    %c0_4 = arith.constant 0 : index
    %8 = vector.load %arg8[%7, %c0_3, %c0_4] : memref<18x18x128xf32, #tpu.memory_space<vmem>>, vector<16x16x128xf32>
    %9 = vector.shape_cast %8 : vector<16x16x128xf32> to vector<256x128xf32>
    %10 = arith.truncf %9 : vector<256x128xf32> to vector<256x128xbf16>
    %c0_5 = arith.constant 0 : index
    %c0_6 = arith.constant 0 : index
    %11 = vector.load %arg9[%c0_5, %c0_6] : memref<256x128xf32, #tpu.memory_space<vmem>>, vector<256x128xf32>
    %c0_7 = arith.constant 0 : index
    %c0_8 = arith.constant 0 : index
    %c0_9 = arith.constant 0 : index
    %c0_10 = arith.constant 0 : index
    %12 = vector.load %arg3[%c0_7, %c0_8, %c0_9, %c0_10] : memref<3x3x128x128xbf16, #tpu.memory_space<vmem>>, vector<1x1x128x128xbf16>
    %13 = vector.shape_cast %12 : vector<1x1x128x128xbf16> to vector<128x128xbf16>
    %cst_11 = arith.constant dense<0.000000e+00> : vector<256x128xf32>
    %14 = tpu.matmul %10, %13, %cst_11 {dimension_numbers = #tpu.dot_dimension_numbers<[1], [0], [0], [1], [0, 0, 1, 1], [], []>} : vector<256x128xbf16>, vector<128x128xbf16>, vector<256x128xf32> -> vector<256x128xf32>
    %15 = arith.addf %11, %14 : vector<256x128xf32>
    %c0_12 = arith.constant 0 : index
    %c0_13 = arith.constant 0 : index
    %16 = vector.load %arg9[%c0_12, %c0_13] : memref<256x128xf32, #tpu.memory_space<vmem>>, vector<256x128xf32>
    tpu.vector_store %arg9[%c0_12, %c0_13], %15 {strides = array<i32>} : memref<256x128xf32, #tpu.memory_space<vmem>>, vector<256x128xf32>,
    %c16_i32_14 = arith.constant 16 : i32
    %17 = arith.muli %arg1, %c16_i32_14 : i32
    %c0_i32_15 = arith.constant 0 : i32
    %18 = arith.addi %17, %c0_i32_15 : i32
    %19 = arith.index_cast %18 : i32 to index
    %c1 = arith.constant 1 : index
    %c0_16 = arith.constant 0 : index
    %20 = vector.load %arg8[%19, %c1, %c0_16] : memref<18x18x128xf32, #tpu.memory_space<vmem>>, vector<16x16x128xf32>
    %21 = vector.shape_cast %20 : vector<16x16x128xf32> to vector<256x128xf32>
    %22 = arith.truncf %21 : vector<256x128xf32> to vector<256x128xbf16>
    %c0_17 = arith.constant 0 : index
    %c0_18 = arith.constant 0 : index
    %23 = vector.load %arg9[%c0_17, %c0_18] : memref<256x128xf32, #tpu.memory_space<vmem>>, vector<256x128xf32>
    %c0_19 = arith.constant 0 : index
    %c1_20 = arith.constant 1 : index
    %c0_21 = arith.constant 0 : index
    %c0_22 = arith.constant 0 : index
    %24 = vector.load %arg3[%c0_19, %c1_20, %c0_21, %c0_22] : memref<3x3x128x128xbf16, #tpu.memory_space<vmem>>, vector<1x1x128x128xbf16>
    %25 = vector.shape_cast %24 : vector<1x1x128x128xbf16> to vector<128x128xbf16>
    %cst_23 = arith.constant dense<0.000000e+00> : vector<256x128xf32>
    %26 = tpu.matmul %22, %25, %cst_23 {dimension_numbers = #tpu.dot_dimension_numbers<[1], [0], [0], [1], [0, 0, 1, 1], [], []>} : vector<256x128xbf16>, vector<128x128xbf16>, vector<256x128xf32> -> vector<256x128xf32>
    %27 = arith.addf %23, %26 : vector<256x128xf32>
    %c0_24 = arith.constant 0 : index
    %c0_25 = arith.constant 0 : index
    %28 = vector.load %arg9[%c0_24, %c0_25] : memref<256x128xf32, #tpu.memory_space<vmem>>, vector<256x128xf32>
    tpu.vector_store %arg9[%c0_24, %c0_25], %27 {strides = array<i32>} : memref<256x128xf32, #tpu.memory_space<vmem>>, vector<256x128xf32>,
    %c16_i32_26 = arith.constant 16 : i32
    %29 = arith.muli %arg1, %c16_i32_26 : i32
    %c0_i32_27 = arith.constant 0 : i32
    %30 = arith.addi %29, %c0_i32_27 : i32
    %31 = arith.index_cast %30 : i32 to index
    %c2 = arith.constant 2 : index
    %c0_28 = arith.constant 0 : index
    %32 = vector.load %arg8[%31, %c2, %c0_28] : memref<18x18x128xf32, #tpu.memory_space<vmem>>, vector<16x16x128xf32>
    %33 = vector.shape_cast %32 : vector<16x16x128xf32> to vector<256x128xf32>
    %34 = arith.truncf %33 : vector<256x128xf32> to vector<256x128xbf16>
    %c0_29 = arith.constant 0 : index
    %c0_30 = arith.constant 0 : index
    %35 = vector.load %arg9[%c0_29, %c0_30] : memref<256x128xf32, #tpu.memory_space<vmem>>, vector<256x128xf32>
    %c0_31 = arith.constant 0 : index
    %c2_32 = arith.constant 2 : index
    %c0_33 = arith.constant 0 : index
    %c0_34 = arith.constant 0 : index
    %36 = vector.load %arg3[%c0_31, %c2_32, %c0_33, %c0_34] : memref<3x3x128x128xbf16, #tpu.memory_space<vmem>>, vector<1x1x128x128xbf16>
    %37 = vector.shape_cast %36 : vector<1x1x128x128xbf16> to vector<128x128xbf16>
    %cst_35 = arith.constant dense<0.000000e+00> : vector<256x128xf32>
    %38 = tpu.matmul %34, %37, %cst_35 {dimension_numbers = #tpu.dot_dimension_numbers<[1], [0], [0], [1], [0, 0, 1, 1], [], []>} : vector<256x128xbf16>, vector<128x128xbf16>, vector<256x128xf32> -> vector<256x128xf32>
    %39 = arith.addf %35, %38 : vector<256x128xf32>
    %c0_36 = arith.constant 0 : index
    %c0_37 = arith.constant 0 : index
    %40 = vector.load %arg9[%c0_36, %c0_37] : memref<256x128xf32, #tpu.memory_space<vmem>>, vector<256x128xf32>
    tpu.vector_store %arg9[%c0_36, %c0_37], %39 {strides = array<i32>} : memref<256x128xf32, #tpu.memory_space<vmem>>, vector<256x128xf32>,
    %c16_i32_38 = arith.constant 16 : i32
    %41 = arith.muli %arg1, %c16_i32_38 : i32
    %c1_i32 = arith.constant 1 : i32
    %42 = arith.addi %41, %c1_i32 : i32
    %43 = arith.index_cast %42 : i32 to index
    %c0_39 = arith.constant 0 : index
    %c0_40 = arith.constant 0 : index
    %44 = vector.load %arg8[%43, %c0_39, %c0_40] : memref<18x18x128xf32, #tpu.memory_space<vmem>>, vector<16x16x128xf32>
    %45 = vector.shape_cast %44 : vector<16x16x128xf32> to vector<256x128xf32>
    %46 = arith.truncf %45 : vector<256x128xf32> to vector<256x128xbf16>
    %c0_41 = arith.constant 0 : index
    %c0_42 = arith.constant 0 : index
    %47 = vector.load %arg9[%c0_41, %c0_42] : memref<256x128xf32, #tpu.memory_space<vmem>>, vector<256x128xf32>
    %c1_43 = arith.constant 1 : index
    %c0_44 = arith.constant 0 : index
    %c0_45 = arith.constant 0 : index
    %c0_46 = arith.constant 0 : index
    %48 = vector.load %arg3[%c1_43, %c0_44, %c0_45, %c0_46] : memref<3x3x128x128xbf16, #tpu.memory_space<vmem>>, vector<1x1x128x128xbf16>
    %49 = vector.shape_cast %48 : vector<1x1x128x128xbf16> to vector<128x128xbf16>
    %cst_47 = arith.constant dense<0.000000e+00> : vector<256x128xf32>
    %50 = tpu.matmul %46, %49, %cst_47 {dimension_numbers = #tpu.dot_dimension_numbers<[1], [0], [0], [1], [0, 0, 1, 1], [], []>} : vector<256x128xbf16>, vector<128x128xbf16>, vector<256x128xf32> -> vector<256x128xf32>
    %51 = arith.addf %47, %50 : vector<256x128xf32>
    %c0_48 = arith.constant 0 : index
    %c0_49 = arith.constant 0 : index
    %52 = vector.load %arg9[%c0_48, %c0_49] : memref<256x128xf32, #tpu.memory_space<vmem>>, vector<256x128xf32>
    tpu.vector_store %arg9[%c0_48, %c0_49], %51 {strides = array<i32>} : memref<256x128xf32, #tpu.memory_space<vmem>>, vector<256x128xf32>,
    %c16_i32_50 = arith.constant 16 : i32
    %53 = arith.muli %arg1, %c16_i32_50 : i32
    %c1_i32_51 = arith.constant 1 : i32
    %54 = arith.addi %53, %c1_i32_51 : i32
    %55 = arith.index_cast %54 : i32 to index
    %c1_52 = arith.constant 1 : index
    %c0_53 = arith.constant 0 : index
    %56 = vector.load %arg8[%55, %c1_52, %c0_53] : memref<18x18x128xf32, #tpu.memory_space<vmem>>, vector<16x16x128xf32>
    %57 = vector.shape_cast %56 : vector<16x16x128xf32> to vector<256x128xf32>
    %58 = arith.truncf %57 : vector<256x128xf32> to vector<256x128xbf16>
    %c0_54 = arith.constant 0 : index
    %c0_55 = arith.constant 0 : index
    %59 = vector.load %arg9[%c0_54, %c0_55] : memref<256x128xf32, #tpu.memory_space<vmem>>, vector<256x128xf32>
    %c1_56 = arith.constant 1 : index
    %c1_57 = arith.constant 1 : index
    %c0_58 = arith.constant 0 : index
    %c0_59 = arith.constant 0 : index
    %60 = vector.load %arg3[%c1_56, %c1_57, %c0_58, %c0_59] : memref<3x3x128x128xbf16, #tpu.memory_space<vmem>>, vector<1x1x128x128xbf16>
    %61 = vector.shape_cast %60 : vector<1x1x128x128xbf16> to vector<128x128xbf16>
    %cst_60 = arith.constant dense<0.000000e+00> : vector<256x128xf32>
    %62 = tpu.matmul %58, %61, %cst_60 {dimension_numbers = #tpu.dot_dimension_numbers<[1], [0], [0], [1], [0, 0, 1, 1], [], []>} : vector<256x128xbf16>, vector<128x128xbf16>, vector<256x128xf32> -> vector<256x128xf32>
    %63 = arith.addf %59, %62 : vector<256x128xf32>
    %c0_61 = arith.constant 0 : index
    %c0_62 = arith.constant 0 : index
    %64 = vector.load %arg9[%c0_61, %c0_62] : memref<256x128xf32, #tpu.memory_space<vmem>>, vector<256x128xf32>
    tpu.vector_store %arg9[%c0_61, %c0_62], %63 {strides = array<i32>} : memref<256x128xf32, #tpu.memory_space<vmem>>, vector<256x128xf32>,
    %c16_i32_63 = arith.constant 16 : i32
    %65 = arith.muli %arg1, %c16_i32_63 : i32
    %c1_i32_64 = arith.constant 1 : i32
    %66 = arith.addi %65, %c1_i32_64 : i32
    %67 = arith.index_cast %66 : i32 to index
    %c2_65 = arith.constant 2 : index
    %c0_66 = arith.constant 0 : index
    %68 = vector.load %arg8[%67, %c2_65, %c0_66] : memref<18x18x128xf32, #tpu.memory_space<vmem>>, vector<16x16x128xf32>
    %69 = vector.shape_cast %68 : vector<16x16x128xf32> to vector<256x128xf32>
    %70 = arith.truncf %69 : vector<256x128xf32> to vector<256x128xbf16>
    %c0_67 = arith.constant 0 : index
    %c0_68 = arith.constant 0 : index
    %71 = vector.load %arg9[%c0_67, %c0_68] : memref<256x128xf32, #tpu.memory_space<vmem>>, vector<256x128xf32>
    %c1_69 = arith.constant 1 : index
    %c2_70 = arith.constant 2 : index
    %c0_71 = arith.constant 0 : index
    %c0_72 = arith.constant 0 : index
    %72 = vector.load %arg3[%c1_69, %c2_70, %c0_71, %c0_72] : memref<3x3x128x128xbf16, #tpu.memory_space<vmem>>, vector<1x1x128x128xbf16>
    %73 = vector.shape_cast %72 : vector<1x1x128x128xbf16> to vector<128x128xbf16>
    %cst_73 = arith.constant dense<0.000000e+00> : vector<256x128xf32>
    %74 = tpu.matmul %70, %73, %cst_73 {dimension_numbers = #tpu.dot_dimension_numbers<[1], [0], [0], [1], [0, 0, 1, 1], [], []>} : vector<256x128xbf16>, vector<128x128xbf16>, vector<256x128xf32> -> vector<256x128xf32>
    %75 = arith.addf %71, %74 : vector<256x128xf32>
    %c0_74 = arith.constant 0 : index
    %c0_75 = arith.constant 0 : index
    %76 = vector.load %arg9[%c0_74, %c0_75] : memref<256x128xf32, #tpu.memory_space<vmem>>, vector<256x128xf32>
    tpu.vector_store %arg9[%c0_74, %c0_75], %75 {strides = array<i32>} : memref<256x128xf32, #tpu.memory_space<vmem>>, vector<256x128xf32>,
    %c16_i32_76 = arith.constant 16 : i32
    %77 = arith.muli %arg1, %c16_i32_76 : i32
    %c2_i32 = arith.constant 2 : i32
    %78 = arith.addi %77, %c2_i32 : i32
    %79 = arith.index_cast %78 : i32 to index
    %c0_77 = arith.constant 0 : index
    %c0_78 = arith.constant 0 : index
    %80 = vector.load %arg8[%79, %c0_77, %c0_78] : memref<18x18x128xf32, #tpu.memory_space<vmem>>, vector<16x16x128xf32>
    %81 = vector.shape_cast %80 : vector<16x16x128xf32> to vector<256x128xf32>
    %82 = arith.truncf %81 : vector<256x128xf32> to vector<256x128xbf16>
    %c0_79 = arith.constant 0 : index
    %c0_80 = arith.constant 0 : index
    %83 = vector.load %arg9[%c0_79, %c0_80] : memref<256x128xf32, #tpu.memory_space<vmem>>, vector<256x128xf32>
    %c2_81 = arith.constant 2 : index
    %c0_82 = arith.constant 0 : index
    %c0_83 = arith.constant 0 : index
    %c0_84 = arith.constant 0 : index
    %84 = vector.load %arg3[%c2_81, %c0_82, %c0_83, %c0_84] : memref<3x3x128x128xbf16, #tpu.memory_space<vmem>>, vector<1x1x128x128xbf16>
    %85 = vector.shape_cast %84 : vector<1x1x128x128xbf16> to vector<128x128xbf16>
    %cst_85 = arith.constant dense<0.000000e+00> : vector<256x128xf32>
    %86 = tpu.matmul %82, %85, %cst_85 {dimension_numbers = #tpu.dot_dimension_numbers<[1], [0], [0], [1], [0, 0, 1, 1], [], []>} : vector<256x128xbf16>, vector<128x128xbf16>, vector<256x128xf32> -> vector<256x128xf32>
    %87 = arith.addf %83, %86 : vector<256x128xf32>
    %c0_86 = arith.constant 0 : index
    %c0_87 = arith.constant 0 : index
    %88 = vector.load %arg9[%c0_86, %c0_87] : memref<256x128xf32, #tpu.memory_space<vmem>>, vector<256x128xf32>
    tpu.vector_store %arg9[%c0_86, %c0_87], %87 {strides = array<i32>} : memref<256x128xf32, #tpu.memory_space<vmem>>, vector<256x128xf32>,
    %c16_i32_88 = arith.constant 16 : i32
    %89 = arith.muli %arg1, %c16_i32_88 : i32
    %c2_i32_89 = arith.constant 2 : i32
    %90 = arith.addi %89, %c2_i32_89 : i32
    %91 = arith.index_cast %90 : i32 to index
    %c1_90 = arith.constant 1 : index
    %c0_91 = arith.constant 0 : index
    %92 = vector.load %arg8[%91, %c1_90, %c0_91] : memref<18x18x128xf32, #tpu.memory_space<vmem>>, vector<16x16x128xf32>
    %93 = vector.shape_cast %92 : vector<16x16x128xf32> to vector<256x128xf32>
    %94 = arith.truncf %93 : vector<256x128xf32> to vector<256x128xbf16>
    %c0_92 = arith.constant 0 : index
    %c0_93 = arith.constant 0 : index
    %95 = vector.load %arg9[%c0_92, %c0_93] : memref<256x128xf32, #tpu.memory_space<vmem>>, vector<256x128xf32>
    %c2_94 = arith.constant 2 : index
    %c1_95 = arith.constant 1 : index
    %c0_96 = arith.constant 0 : index
    %c0_97 = arith.constant 0 : index
    %96 = vector.load %arg3[%c2_94, %c1_95, %c0_96, %c0_97] : memref<3x3x128x128xbf16, #tpu.memory_space<vmem>>, vector<1x1x128x128xbf16>
    %97 = vector.shape_cast %96 : vector<1x1x128x128xbf16> to vector<128x128xbf16>
    %cst_98 = arith.constant dense<0.000000e+00> : vector<256x128xf32>
    %98 = tpu.matmul %94, %97, %cst_98 {dimension_numbers = #tpu.dot_dimension_numbers<[1], [0], [0], [1], [0, 0, 1, 1], [], []>} : vector<256x128xbf16>, vector<128x128xbf16>, vector<256x128xf32> -> vector<256x128xf32>
    %99 = arith.addf %95, %98 : vector<256x128xf32>
    %c0_99 = arith.constant 0 : index
    %c0_100 = arith.constant 0 : index
    %100 = vector.load %arg9[%c0_99, %c0_100] : memref<256x128xf32, #tpu.memory_space<vmem>>, vector<256x128xf32>
    tpu.vector_store %arg9[%c0_99, %c0_100], %99 {strides = array<i32>} : memref<256x128xf32, #tpu.memory_space<vmem>>, vector<256x128xf32>,
    %c16_i32_101 = arith.constant 16 : i32
    %101 = arith.muli %arg1, %c16_i32_101 : i32
    %c2_i32_102 = arith.constant 2 : i32
    %102 = arith.addi %101, %c2_i32_102 : i32
    %103 = arith.index_cast %102 : i32 to index
    %c2_103 = arith.constant 2 : index
    %c0_104 = arith.constant 0 : index
    %104 = vector.load %arg8[%103, %c2_103, %c0_104] : memref<18x18x128xf32, #tpu.memory_space<vmem>>, vector<16x16x128xf32>
    %105 = vector.shape_cast %104 : vector<16x16x128xf32> to vector<256x128xf32>
    %106 = arith.truncf %105 : vector<256x128xf32> to vector<256x128xbf16>
    %c0_105 = arith.constant 0 : index
    %c0_106 = arith.constant 0 : index
    %107 = vector.load %arg9[%c0_105, %c0_106] : memref<256x128xf32, #tpu.memory_space<vmem>>, vector<256x128xf32>
    %c2_107 = arith.constant 2 : index
    %c2_108 = arith.constant 2 : index
    %c0_109 = arith.constant 0 : index
    %c0_110 = arith.constant 0 : index
    %108 = vector.load %arg3[%c2_107, %c2_108, %c0_109, %c0_110] : memref<3x3x128x128xbf16, #tpu.memory_space<vmem>>, vector<1x1x128x128xbf16>
    %109 = vector.shape_cast %108 : vector<1x1x128x128xbf16> to vector<128x128xbf16>
    %cst_111 = arith.constant dense<0.000000e+00> : vector<256x128xf32>
    %110 = tpu.matmul %106, %109, %cst_111 {dimension_numbers = #tpu.dot_dimension_numbers<[1], [0], [0], [1], [0, 0, 1, 1], [], []>} : vector<256x128xbf16>, vector<128x128xbf16>, vector<256x128xf32> -> vector<256x128xf32>
    %111 = arith.addf %107, %110 : vector<256x128xf32>
    %c0_112 = arith.constant 0 : index
    %c0_113 = arith.constant 0 : index
    %112 = vector.load %arg9[%c0_112, %c0_113] : memref<256x128xf32, #tpu.memory_space<vmem>>, vector<256x128xf32>
    tpu.vector_store %arg9[%c0_112, %c0_113], %111 {strides = array<i32>} : memref<256x128xf32, #tpu.memory_space<vmem>>, vector<256x128xf32>,
    %c0_114 = arith.constant 0 : index
    %c0_115 = arith.constant 0 : index
    %113 = vector.load %arg9[%c0_114, %c0_115] : memref<256x128xf32, #tpu.memory_space<vmem>>, vector<256x128xf32>
    %114 = vector.shape_cast %113 : vector<256x128xf32> to vector<16x16x128xf32>
    %c0_116 = arith.constant 0 : index
    %c0_117 = arith.constant 0 : index
    %c0_118 = arith.constant 0 : index
    %c0_119 = arith.constant 0 : index
    %115 = vector.load %arg6[%c0_116, %c0_117, %c0_118, %c0_119] : memref<1x16x16x128xf32, #tpu.memory_space<vmem>>, vector<1x16x16x128xf32>
    %116 = vector.shape_cast %115 : vector<1x16x16x128xf32> to vector<16x16x128xf32>
    %117 = vector.shape_cast %114 : vector<16x16x128xf32> to vector<1x16x16x128xf32>
    tpu.vector_store %arg6[%c0_116, %c0_117, %c0_118, %c0_119], %117 {strides = array<i32>} : memref<1x16x16x128xf32, #tpu.memory_space<vmem>>, vector<1x16x16x128xf32>,
    %c0_i32_120 = arith.constant 0 : i32
    %118 = arith.cmpi eq, %arg1, %c0_i32_120 : i32
    %119 = arith.extui %118 : i1 to i32
    %c0_i32_121 = arith.constant 0 : i32
    %120 = arith.cmpi ne, %119, %c0_i32_121 : i32
    scf.if %120 {
      %cst_136 = arith.constant 0.000000e+00 : f32
      %138 = vector.broadcast %cst_136 : f32 to vector<1x2x128xf32>
      %c0_137 = arith.constant 0 : index
      %c0_138 = arith.constant 0 : index
      %c0_139 = arith.constant 0 : index
      %139 = vector.load %arg7[%c0_137, %c0_138, %c0_139] : memref<1x2x128xf32, #tpu.memory_space<vmem>>, vector<1x2x128xf32>
      tpu.vector_store %arg7[%c0_137, %c0_138, %c0_139], %138 {strides = array<i32>} : memref<1x2x128xf32, #tpu.memory_space<vmem>>, vector<1x2x128xf32>,
    } else {
    }
    %c0_122 = arith.constant 0 : index
    %c0_123 = arith.constant 0 : index
    %c0_124 = arith.constant 0 : index
    %121 = vector.load %arg7[%c0_122, %c0_123, %c0_124] : memref<1x2x128xf32, #tpu.memory_space<vmem>>, vector<1x1x128xf32>
    %122 = vector.shape_cast %121 : vector<1x1x128xf32> to vector<1x128xf32>
    %cst_125 = arith.constant dense<0.000000e+00> : vector<128xf32>
    %123 = vector.multi_reduction <add>, %113, %cst_125 [0] : vector<256x128xf32> to vector<128xf32>
    %124 = vector.shape_cast %123 : vector<128xf32> to vector<1x128xf32>
    %125 = arith.addf %122, %124 : vector<1x128xf32>
    %c0_126 = arith.constant 0 : index
    %c0_127 = arith.constant 0 : index
    %c0_128 = arith.constant 0 : index
    %126 = vector.load %arg7[%c0_126, %c0_127, %c0_128] : memref<1x2x128xf32, #tpu.memory_space<vmem>>, vector<1x1x128xf32>
    %127 = vector.shape_cast %126 : vector<1x1x128xf32> to vector<1x128xf32>
    %128 = vector.shape_cast %125 : vector<1x128xf32> to vector<1x1x128xf32>
    tpu.vector_store %arg7[%c0_126, %c0_127, %c0_128], %128 {strides = array<i32>} : memref<1x2x128xf32, #tpu.memory_space<vmem>>, vector<1x1x128xf32>,
    %c0_129 = arith.constant 0 : index
    %c1_130 = arith.constant 1 : index
    %c0_131 = arith.constant 0 : index
    %129 = vector.load %arg7[%c0_129, %c1_130, %c0_131] : memref<1x2x128xf32, #tpu.memory_space<vmem>>, vector<1x1x128xf32>
    %130 = vector.shape_cast %129 : vector<1x1x128xf32> to vector<1x128xf32>
    %131 = arith.mulf %113, %113 : vector<256x128xf32>
    %cst_132 = arith.constant dense<0.000000e+00> : vector<128xf32>
    %132 = vector.multi_reduction <add>, %131, %cst_132 [0] : vector<256x128xf32> to vector<128xf32>
    %133 = vector.shape_cast %132 : vector<128xf32> to vector<1x128xf32>
    %134 = arith.addf %130, %133 : vector<1x128xf32>
    %c0_133 = arith.constant 0 : index
    %c1_134 = arith.constant 1 : index
    %c0_135 = arith.constant 0 : index
    %135 = vector.load %arg7[%c0_133, %c1_134, %c0_135] : memref<1x2x128xf32, #tpu.memory_space<vmem>>, vector<1x1x128xf32>
    %136 = vector.shape_cast %135 : vector<1x1x128xf32> to vector<1x128xf32>
    %137 = vector.shape_cast %134 : vector<1x128xf32> to vector<1x1x128xf32>
    tpu.vector_store %arg7[%c0_133, %c1_134, %c0_135], %137 {strides = array<i32>} : memref<1x2x128xf32, #tpu.memory_space<vmem>>, vector<1x1x128xf32>,
    return
  }
  func.func @transform_0(%arg0: i32, %arg1: i32) -> (i32, i32, i32, i32) {
    %c0_i32 = arith.constant 0 : i32
    %c0_i32_0 = arith.constant 0 : i32
    %c0_i32_1 = arith.constant 0 : i32
    %c0_i32_2 = arith.constant 0 : i32
    return %arg0, %c0_i32, %c0_i32_0, %c0_i32_1 : i32, i32, i32, i32
  }
  func.func @transform_1(%arg0: i32, %arg1: i32) -> (i32, i32, i32, i32) {
    %c0_i32 = arith.constant 0 : i32
    %c0_i32_0 = arith.constant 0 : i32
    %c0_i32_1 = arith.constant 0 : i32
    %c0_i32_2 = arith.constant 0 : i32
    %c0_i32_3 = arith.constant 0 : i32
    return %c0_i32, %c0_i32_0, %c0_i32_1, %c0_i32_2 : i32, i32, i32, i32
  }
  func.func @transform_2(%arg0: i32, %arg1: i32) -> (i32, i32) {
    %c0_i32 = arith.constant 0 : i32
    %c0_i32_0 = arith.constant 0 : i32
    %c0_i32_1 = arith.constant 0 : i32
    return %c0_i32, %c0_i32_0 : i32, i32
  }
  func.func @transform_3(%arg0: i32, %arg1: i32) -> (i32, i32) {
    %c0_i32 = arith.constant 0 : i32
    %c0_i32_0 = arith.constant 0 : i32
    %c0_i32_1 = arith.constant 0 : i32
    return %c0_i32, %c0_i32_0 : i32, i32
  }
  func.func @transform_4(%arg0: i32, %arg1: i32) -> (i32, i32, i32, i32) {
    %c0_i32 = arith.constant 0 : i32
    %c0_i32_0 = arith.constant 0 : i32
    %c0_i32_1 = arith.constant 0 : i32
    return %arg0, %arg1, %c0_i32, %c0_i32_0 : i32, i32, i32, i32
  }
  func.func @transform_5(%arg0: i32, %arg1: i32) -> (i32, i32, i32) {
    %c0_i32 = arith.constant 0 : i32
    %c0_i32_0 = arith.constant 0 : i32
    %c0_i32_1 = arith.constant 0 : i32
    return %arg0, %c0_i32, %c0_i32_0 : i32, i32, i32
  }
}

module attributes {stable_mosaic.version = 11 : i64} {
  func.func @_bn_add_relu_kernel(%arg0: i32, %arg1: i32, %arg2: memref<1x16x16x128xf32, #tpu.memory_space<vmem>>, %arg3: memref<1x16x16x128xf32, #tpu.memory_space<vmem>>, %arg4: memref<1x128xf32, #tpu.memory_space<vmem>>, %arg5: memref<1x128xf32, #tpu.memory_space<vmem>>, %arg6: memref<1x16x16x128xf32, #tpu.memory_space<vmem>>) attributes {dimension_semantics = [#tpu.dimension_semantics<parallel>, #tpu.dimension_semantics<parallel>], iteration_bounds = array<i64: 2, 1>, scalar_prefetch = 0 : i64, scratch_operands = 0 : i64, tpu.core_type = #tpu.core_type<tc>, window_params = [{transform_indices = @transform_0, window_bounds = array<i64: 1, 16, 16, 128>}, {transform_indices = @transform_1, window_bounds = array<i64: 1, 16, 16, 128>}, {pipeline_mode = #tpu.pipeline_mode<synchronous>, transform_indices = @transform_2, window_bounds = array<i64: 1, 128>}, {pipeline_mode = #tpu.pipeline_mode<synchronous>, transform_indices = @transform_3, window_bounds = array<i64: 1, 128>}, {transform_indices = @transform_4, window_bounds = array<i64: 1, 16, 16, 128>}]} {
    %c0 = arith.constant 0 : index
    %c0_0 = arith.constant 0 : index
    %c0_1 = arith.constant 0 : index
    %c0_2 = arith.constant 0 : index
    %0 = vector.load %arg2[%c0, %c0_0, %c0_1, %c0_2] : memref<1x16x16x128xf32, #tpu.memory_space<vmem>>, vector<1x16x16x128xf32>
    %c0_3 = arith.constant 0 : index
    %c0_4 = arith.constant 0 : index
    %1 = vector.load %arg4[%c0_3, %c0_4] : memref<1x128xf32, #tpu.memory_space<vmem>>, vector<1x128xf32>
    %2 = vector.shape_cast %1 : vector<1x128xf32> to vector<128xf32>
    %3 = vector.shape_cast %2 : vector<128xf32> to vector<1x1x1x128xf32>
    %4 = vector.broadcast %3 : vector<1x1x1x128xf32> to vector<1x16x16x128xf32>
    %5 = arith.mulf %0, %4 : vector<1x16x16x128xf32>
    %c0_5 = arith.constant 0 : index
    %c0_6 = arith.constant 0 : index
    %6 = vector.load %arg5[%c0_5, %c0_6] : memref<1x128xf32, #tpu.memory_space<vmem>>, vector<1x128xf32>
    %7 = vector.shape_cast %6 : vector<1x128xf32> to vector<128xf32>
    %8 = vector.shape_cast %7 : vector<128xf32> to vector<1x1x1x128xf32>
    %9 = vector.broadcast %8 : vector<1x1x1x128xf32> to vector<1x16x16x128xf32>
    %10 = arith.addf %5, %9 : vector<1x16x16x128xf32>
    %c0_7 = arith.constant 0 : index
    %c0_8 = arith.constant 0 : index
    %c0_9 = arith.constant 0 : index
    %c0_10 = arith.constant 0 : index
    %11 = vector.load %arg3[%c0_7, %c0_8, %c0_9, %c0_10] : memref<1x16x16x128xf32, #tpu.memory_space<vmem>>, vector<1x16x16x128xf32>
    %12 = arith.addf %10, %11 : vector<1x16x16x128xf32>
    %cst = arith.constant 0.000000e+00 : f32
    %13 = vector.broadcast %cst : f32 to vector<1x16x16x128xf32>
    %14 = arith.maximumf %12, %13 : vector<1x16x16x128xf32>
    %c0_11 = arith.constant 0 : index
    %c0_12 = arith.constant 0 : index
    %c0_13 = arith.constant 0 : index
    %c0_14 = arith.constant 0 : index
    %15 = vector.load %arg6[%c0_11, %c0_12, %c0_13, %c0_14] : memref<1x16x16x128xf32, #tpu.memory_space<vmem>>, vector<1x16x16x128xf32>
    tpu.vector_store %arg6[%c0_11, %c0_12, %c0_13, %c0_14], %14 {strides = array<i32>} : memref<1x16x16x128xf32, #tpu.memory_space<vmem>>, vector<1x16x16x128xf32>,
    return
  }
  func.func @transform_0(%arg0: i32, %arg1: i32) -> (i32, i32, i32, i32) {
    %c0_i32 = arith.constant 0 : i32
    %c0_i32_0 = arith.constant 0 : i32
    %c0_i32_1 = arith.constant 0 : i32
    return %arg0, %arg1, %c0_i32, %c0_i32_0 : i32, i32, i32, i32
  }
  func.func @transform_1(%arg0: i32, %arg1: i32) -> (i32, i32, i32, i32) {
    %c0_i32 = arith.constant 0 : i32
    %c0_i32_0 = arith.constant 0 : i32
    %c0_i32_1 = arith.constant 0 : i32
    return %arg0, %arg1, %c0_i32, %c0_i32_0 : i32, i32, i32, i32
  }
  func.func @transform_2(%arg0: i32, %arg1: i32) -> (i32, i32) {
    %c0_i32 = arith.constant 0 : i32
    %c0_i32_0 = arith.constant 0 : i32
    %c0_i32_1 = arith.constant 0 : i32
    return %c0_i32, %c0_i32_0 : i32, i32
  }
  func.func @transform_3(%arg0: i32, %arg1: i32) -> (i32, i32) {
    %c0_i32 = arith.constant 0 : i32
    %c0_i32_0 = arith.constant 0 : i32
    %c0_i32_1 = arith.constant 0 : i32
    return %c0_i32, %c0_i32_0 : i32, i32
  }
  func.func @transform_4(%arg0: i32, %arg1: i32) -> (i32, i32, i32, i32) {
    %c0_i32 = arith.constant 0 : i32
    %c0_i32_0 = arith.constant 0 : i32
    %c0_i32_1 = arith.constant 0 : i32
    return %arg0, %arg1, %c0_i32, %c0_i32_0 : i32, i32, i32, i32
  }
}

</mosaic_0001>

<llo_original>
// kernel: basic_block_forward.5
$region0: #{basic_block_forward.5}
  #allocation0 [shape = 'u32[]', space=smem, size = 0x4, offset = 0x4, fixed_abs, tag = 'smem constant byte address 0x4 - core index']
  #allocation1 [shape = 'u32[144,128]{1,0:T(1,128)}', space=vmem, size = 0x12000, scoped, tag = 'internal scratch']
  %s0 = inlined_call_operand.vmem [shape: f32[2,16,16,128], index: 0, kind: input, shape index: {}]
  %s1 = inlined_call_operand.vmem [shape: f32[2,16,16,128], index: 1, kind: input, shape index: {}]
  %s2 = inlined_call_operand.vmem [shape: f32[1,128], index: 2, kind: input, shape index: {}]
  %s3 = inlined_call_operand.vmem [shape: f32[1,128], index: 3, kind: input, shape index: {}]
  %s4 = inlined_call_operand.hbm [shape: f32[2,16,16,128], index: 4, kind: output, shape index: {}]
  %s5 = sld [smem:[#allocation0]]
  $region49: #{basic_block_forward.5} parent=0
    _
  %s7 = ssub.s32 1, %s5
  %s8 = scalar_select 0, %s7, %s5
  $region1: #{basic_block_forward.5} parent=0
    #allocation2 [shape = 'u8[262144]{0}', space=vmem, size = 0x40000, scoped, tag = 'output window, operand 0']
    #allocation3 [shape = 's32[2]{0}', space=sflag, size = 0x8, scoped, tag = 'scoped memory for basic_block_forward.5']
    %9 = vsyncpa [#allocation3], 0
    %s10 = scalar_lea.sflag [#allocation3], 1
    %11 = vsyncpa %s10, 0
    loop: start=0, step=1, limit=4
    $region2: #{basic_block_forward.5} parent=1 // loop_pre_header
      _
    $region3: #{basic_block_forward.5} parent=1 // loop_header
      %s13 = sphi 0, %s17
      %p14 = scmp.ge.s32.totalorder %s13, 4
      %s20 = sphi 0, %s32
      %s21 = sphi 0, %s28
      %s22 = sphi 0, %s20
      %s23 = sphi 0, %s21
      %s24 = sphi 0, %s22
      %s25 = sphi 0, %s23
      %s37 = sphi 0, %s39
      %s40 = sphi 0, %s37
      %s41 = sphi 0, %s40
      %s57 = sphi 0, %s41
      %s65 = sphi 0, %s67
      %s68 = sphi 0, %s65
      %s69 = sphi 0, %s68
      %s85 = sphi 0, %s69
      %s89 = sphi 0, %s89
      %s91 = sphi 0, %s89
      %s92 = sphi 0, %s91
      %s106 = sphi 0, %s92
      %s110 = sphi 0, %s110
      %s112 = sphi 0, %s110
      %s113 = sphi 0, %s112
      %s127 = sphi 0, %s113
      %s135 = sphi 0, %s137
      %s138 = sphi 0, %s135
      %s139 = sphi 0, %s138
      %s155 = sphi 0, %s139
    $region4: #{basic_block_forward.5} parent=1 // loop_header_branch
      %16 = sbr.rel (%p14) target = $region8
    $region5: #{basic_block_forward.5} parent=1 // loop_body
      %s18 = ssub.s32 %s13, 1
      %s19 = ssub.s32 %s13, 2
      %s26 = sadd.s32 1, %s21
      %p27 = scmp.ge.s32.totalorder %s26, 1
      %s28 = scalar_select %p27, 0, %s26
      %s29 = sadd.s32 1, %s20
      %s30 = scalar_select %p27, %s29, %s20
      %p31 = scmp.ge.s32.totalorder %s30, 2
      %s32 = scalar_select %p31, 0, %s30
      %s33 = ssub.s32 %s20, %s32
      %s34 = ssub.s32 %s21, %s28
      %s35 = sor.u32 %s33, %s34
      %p36 = scmp.eq.s32.totalorder %s35, 0
      %s38 = sadd.s32 %s37, 1
      %s39 = scalar_select %p36, %s37, %s38
      %p42 = pneg %p36
      %p43 = scmp.eq.s32.totalorder %s13, 1
      %p44 = por %p42, %p43
      %p45 = scmp.ne.s32.totalorder %s37, %s40
      %p46 = scmp.eq.s32.totalorder %s13, 0
      %p47 = por %p45, %p46
      %p48 = scmp.ne.s32.totalorder %s37, %s40
      %p49 = scmp.eq.s32.totalorder %s18, 1
      %p50 = por %p48, %p49
      %p51 = scmp.ne.s32.totalorder %s40, %s41
      %p52 = scmp.eq.s32.totalorder %s18, 0
      %p53 = por %p51, %p52
      %p54 = scmp.ne.s32.totalorder %s40, %s41
      %p55 = scmp.eq.s32.totalorder %s19, 1
      %p56 = por %p54, %p55
      %p58 = scmp.ne.s32.totalorder %s41, %s57
      %p59 = scmp.eq.s32.totalorder %s19, 0
      %p60 = por %p58, %p59
      %s61 = ssub.s32 %s20, %s32
      %s62 = ssub.s32 %s21, %s28
      %s63 = sor.u32 %s61, %s62
      %p64 = scmp.eq.s32.totalorder %s63, 0
      %s66 = sadd.s32 %s65, 1
      %s67 = scalar_select %p64, %s65, %s66
      %p70 = pneg %p64
      %p71 = scmp.eq.s32.totalorder %s13, 1
      %p72 = por %p70, %p71
      %p73 = scmp.ne.s32.totalorder %s65, %s68
      %p74 = scmp.eq.s32.totalorder %s13, 0
      %p75 = por %p73, %p74
      %p76 = scmp.ne.s32.totalorder %s65, %s68
      %p77 = scmp.eq.s32.totalorder %s18, 1
      %p78 = por %p76, %p77
      %p79 = scmp.ne.s32.totalorder %s68, %s69
      %p80 = scmp.eq.s32.totalorder %s18, 0
      %p81 = por %p79, %p80
      %p82 = scmp.ne.s32.totalorder %s68, %s69
      %p83 = scmp.eq.s32.totalorder %s19, 1
      %p84 = por %p82, %p83
      %p86 = scmp.ne.s32.totalorder %s69, %s85
      %p87 = scmp.eq.s32.totalorder %s19, 0
      %p88 = por %p86, %p87
      %s90 = sadd.s32 %s89, 1
      %p93 = scmp.eq.s32.totalorder %s13, 1
      %p94 = scmp.ne.s32.totalorder %s89, %s91
      %p95 = scmp.eq.s32.totalorder %s13, 0
      %p96 = por %p94, %p95
      %p97 = scmp.ne.s32.totalorder %s89, %s91
      %p98 = scmp.eq.s32.totalorder %s18, 1
      %p99 = por %p97, %p98
      %p100 = scmp.ne.s32.totalorder %s91, %s92
      %p101 = scmp.eq.s32.totalorder %s18, 0
      %p102 = por %p100, %p101
      %p103 = scmp.ne.s32.totalorder %s91, %s92
      %p104 = scmp.eq.s32.totalorder %s19, 1
      %p105 = por %p103, %p104
      %p107 = scmp.ne.s32.totalorder %s92, %s106
      %p108 = scmp.eq.s32.totalorder %s19, 0
      %p109 = por %p107, %p108
      %s111 = sadd.s32 %s110, 1
      %p114 = scmp.eq.s32.totalorder %s13, 1
      %p115 = scmp.ne.s32.totalorder %s110, %s112
      %p116 = scmp.eq.s32.totalorder %s13, 0
      %p117 = por %p115, %p116
      %p118 = scmp.ne.s32.totalorder %s110, %s112
      %p119 = scmp.eq.s32.totalorder %s18, 1
      %p120 = por %p118, %p119
      %p121 = scmp.ne.s32.totalorder %s112, %s113
      %p122 = scmp.eq.s32.totalorder %s18, 0
      %p123 = por %p121, %p122
      %p124 = scmp.ne.s32.totalorder %s112, %s113
      %p125 = scmp.eq.s32.totalorder %s19, 1
      %p126 = por %p124, %p125
      %p128 = scmp.ne.s32.totalorder %s113, %s127
      %p129 = scmp.eq.s32.totalorder %s19, 0
      %p130 = por %p128, %p129
      %s131 = ssub.s32 %s20, %s32
      %s132 = ssub.s32 %s21, %s28
      %s133 = sor.u32 %s131, %s132
      %p134 = scmp.eq.s32.totalorder %s133, 0
      %s136 = sadd.s32 %s135, 1
      %s137 = scalar_select %p134, %s135, %s136
      %p140 = pneg %p134
      %p141 = scmp.eq.s32.totalorder %s13, 1
      %p142 = por %p140, %p141
      %p143 = scmp.ne.s32.totalorder %s135, %s138
      %p144 = scmp.eq.s32.totalorder %s13, 0
      %p145 = por %p143, %p144
      %p146 = scmp.ne.s32.totalorder %s135, %s138
      %p147 = scmp.eq.s32.totalorder %s18, 1
      %p148 = por %p146, %p147
      %p149 = scmp.ne.s32.totalorder %s138, %s139
      %p150 = scmp.eq.s32.totalorder %s18, 0
      %p151 = por %p149, %p150
      %p152 = scmp.ne.s32.totalorder %s138, %s139
      %p153 = scmp.eq.s32.totalorder %s19, 1
      %p154 = por %p152, %p153
      %p156 = scmp.ne.s32.totalorder %s139, %s155
      %p157 = scmp.eq.s32.totalorder %s19, 0
      %p158 = por %p156, %p157
      %p159 = scmp.le.s32.totalorder 1, %s13
      %p160 = scmp.lt.s32.totalorder %s13, 3
      %p161 = pnand %p159, %p160
      %p162 = pneg %p161
      // Predicated region
      $region9: #{basic_block_forward.5} parent=5 // pred_check
        _
      $region10: #{basic_block_forward.5} parent=5 // pred_check_branch
        %164 = sbr.rel (%p161) target = $region12
      $region11: #{basic_block_forward.5} parent=5 // pred_region
        %s165 = ssub.s32 %s13, 1
        // Predicated region
        $region13: #{basic_block_forward.5} parent=11 // pred_check
          %p166 = pneg %p102
        $region14: #{basic_block_forward.5} parent=11 // pred_check_branch
          %168 = sbr.rel (%p166) target = $region16
        $region15: #{basic_block_forward.5} parent=11 // pred_region
          _
        $region16: #{basic_block_forward.5} parent=11 // pred_fallthru
          _
        // Predicated region
        $region17: #{basic_block_forward.5} parent=11 // pred_check
          %p169 = pneg %p123
        $region18: #{basic_block_forward.5} parent=11 // pred_check_branch
          %171 = sbr.rel (%p169) target = $region20
        $region19: #{basic_block_forward.5} parent=11 // pred_region
          _
        $region20: #{basic_block_forward.5} parent=11 // pred_fallthru
          _
      $region12: #{basic_block_forward.5} parent=5 // pred_fallthru
        _
      %p172 = scmp.lt.s32.totalorder %s13, 2
      // Predicated region
      $region21: #{basic_block_forward.5} parent=5 // pred_check
        %p173 = pneg %p172
      $region22: #{basic_block_forward.5} parent=5 // pred_check_branch
        %175 = sbr.rel (%p173) target = $region24
      $region23: #{basic_block_forward.5} parent=5 // pred_region
        // Predicated region
        $region25: #{basic_block_forward.5} parent=23 // pred_check
          %p176 = pneg %p47
        $region26: #{basic_block_forward.5} parent=23 // pred_check_branch
          %178 = sbr.rel (%p176) target = $region28
        $region27: #{basic_block_forward.5} parent=23 // pred_region
          %s179 = smul.u32 16, %s21
          %p180 = scmp.lt.s32.totalorder %s20, 1
          %s181 = scalar_select %p180, %s20, 1
          %p182 = scmp.lt.s32.totalorder %s179, 15
          %s183 = scalar_select %p182, %s179, 15
          %s184 = smul.addr %s183, 2
          %s185 = smul.addr %s181, 32
          %s186 = sadd.s32 %s184, %s185
          %s187 = smul.addr %s186, 8
          %s188 = scalar_lea.vmem %s0, %s187
          %s189 = smul.u32 16, %s21
        $region28: #{basic_block_forward.5} parent=23 // pred_fallthru
          _
        // Predicated region
        $region29: #{basic_block_forward.5} parent=23 // pred_check
          %p190 = pneg %p75
        $region30: #{basic_block_forward.5} parent=23 // pred_check_branch
          %192 = sbr.rel (%p190) target = $region32
        $region31: #{basic_block_forward.5} parent=23 // pred_region
          %s193 = smul.u32 16, %s21
          %p194 = scmp.lt.s32.totalorder %s20, 1
          %s195 = scalar_select %p194, %s20, 1
          %p196 = scmp.lt.s32.totalorder %s193, 15
          %s197 = scalar_select %p196, %s193, 15
          %s198 = smul.addr %s197, 2
          %s199 = smul.addr %s195, 32
          %s200 = sadd.s32 %s198, %s199
          %s201 = smul.addr %s200, 8
          %s202 = scalar_lea.vmem %s1, %s201
          %s203 = smul.u32 16, %s21
        $region32: #{basic_block_forward.5} parent=23 // pred_fallthru
          _
      $region24: #{basic_block_forward.5} parent=5 // pred_fallthru
        _
      %p204 = scmp.le.s32.totalorder 1, %s13
      %p205 = scmp.lt.s32.totalorder %s13, 3
      %p206 = pnand %p204, %p205
      %p207 = pneg %p206
      // Predicated region
      $region33: #{basic_block_forward.5} parent=5 // pred_check
        _
      $region34: #{basic_block_forward.5} parent=5 // pred_check_branch
        %209 = sbr.rel (%p206) target = $region36
      $region35: #{basic_block_forward.5} parent=5 // pred_region
        %s210 = ssub.s32 %s13, 1
        %s211 = smul.u32 16, %s23
        %p212 = scmp.lt.s32.totalorder %s22, 1
        %s213 = scalar_select %p212, %s22, 1
        %p214 = scmp.lt.s32.totalorder %s211, 15
        %s215 = scalar_select %p214, %s211, 15
        %s216 = smul.addr %s215, 2
        %s217 = smul.addr %s213, 32
        %s218 = sadd.s32 %s216, %s217
        %s219 = smul.addr %s218, 8
        %s220 = scalar_lea.vmem %s0, %s219
        %p221 = pneg %p53
        %p222 = pneg %p50
        %s223 = smul.u32 16, %s23
        %p224 = scmp.lt.s32.totalorder %s22, 1
        %s225 = scalar_select %p224, %s22, 1
        %p226 = scmp.lt.s32.totalorder %s223, 15
        %s227 = scalar_select %p226, %s223, 15
        %s228 = smul.addr %s227, 2
        %s229 = smul.addr %s225, 32
        %s230 = sadd.s32 %s228, %s229
        %s231 = smul.addr %s230, 8
        %s232 = scalar_lea.vmem %s1, %s231
        %p233 = pneg %p81
        %p234 = pneg %p78
        %p235 = pneg %p102
        %p236 = pneg %p99
        %p237 = pneg %p123
        %p238 = pneg %p120
        %p239 = pneg %p151
        %p240 = pneg %p148
        %s241 = sand.u32 %s138, 1
        %s242 = scalar_lea.sflag [#allocation3], %s241
        %s243 = sand.u32 %s138, 1
        %s244 = smul.addr %s243, 256
        %s245 = scalar_lea.vmem [#allocation2], %s244
        %s246 = smul.u32 16, %s23
        %p247 = scmp.lt.s32.totalorder %s22, 1
        %s248 = scalar_select %p247, %s22, 1
        %p249 = scmp.lt.s32.totalorder %s246, 15
        %s250 = scalar_select %p249, %s246, 15
        %s251 = smul.addr %s250, 2
        %s252 = smul.addr %s248, 32
        %s253 = sadd.s32 %s251, %s252
        %s254 = smul.addr %s253, 8
        %s255 = scalar_lea.vmem %s0, %s254
        %s256 = smul.u32 16, %s23
        %s257 = smul.u32 16, %s23
        %p258 = scmp.lt.s32.totalorder %s22, 1
        %s259 = scalar_select %p258, %s22, 1
        %p260 = scmp.lt.s32.totalorder %s257, 15
        %s261 = scalar_select %p260, %s257, 15
        %s262 = smul.addr %s261, 2
        %s263 = smul.addr %s259, 32
        %s264 = sadd.s32 %s262, %s263
        %s265 = smul.addr %s264, 8
        %s266 = scalar_lea.vmem %s1, %s265
        %s267 = smul.u32 16, %s23
        %s268 = smul.u32 16, %s23
        %v269 = vld [vmem:[%s255] sm:$0xff]
        %v270 = vld [vmem:[%s255 + $0x8] sm:$0xff]
        %v271 = vld [vmem:[%s255 + $0x10] sm:$0xff]
        %v272 = vld [vmem:[%s255 + $0x18] sm:$0xff]
        %v273 = vld [vmem:[%s255 + $0x20] sm:$0xff]
        %v274 = vld [vmem:[%s255 + $0x28] sm:$0xff]
        %v275 = vld [vmem:[%s255 + $0x30] sm:$0xff]
        %v276 = vld [vmem:[%s255 + $0x38] sm:$0xff]
        %v277 = vld [vmem:[%s255 + $0x40] sm:$0xff]
        %v278 = vld [vmem:[%s255 + $0x48] sm:$0xff]
        %v279 = vld [vmem:[%s255 + $0x50] sm:$0xff]
        %v280 = vld [vmem:[%s255 + $0x58] sm:$0xff]
        %v281 = vld [vmem:[%s255 + $0x60] sm:$0xff]
        %v282 = vld [vmem:[%s255 + $0x68] sm:$0xff]
        %v283 = vld [vmem:[%s255 + $0x70] sm:$0xff]
        %v284 = vld [vmem:[%s255 + $0x78] sm:$0xff]
        %v285 = vld [vmem:[%s255 + $0x80] sm:$0xff]
        %v286 = vld [vmem:[%s255 + $0x88] sm:$0xff]
        %v287 = vld [vmem:[%s255 + $0x90] sm:$0xff]
        %v288 = vld [vmem:[%s255 + $0x98] sm:$0xff]
        %v289 = vld [vmem:[%s255 + $0xa0] sm:$0xff]
        %v290 = vld [vmem:[%s255 + $0xa8] sm:$0xff]
        %v291 = vld [vmem:[%s255 + $0xb0] sm:$0xff]
        %v292 = vld [vmem:[%s255 + $0xb8] sm:$0xff]
        %v293 = vld [vmem:[%s255 + $0xc0] sm:$0xff]
        %v294 = vld [vmem:[%s255 + $0xc8] sm:$0xff]
        %v295 = vld [vmem:[%s255 + $0xd0] sm:$0xff]
        %v296 = vld [vmem:[%s255 + $0xd8] sm:$0xff]
        %v297 = vld [vmem:[%s255 + $0xe0] sm:$0xff]
        %v298 = vld [vmem:[%s255 + $0xe8] sm:$0xff]
        %v299 = vld [vmem:[%s255 + $0xf0] sm:$0xff]
        %v300 = vld [vmem:[%s255 + $0xf8] sm:$0xff]
        %v301 = vld [vmem:[%s2] sm:$0x1]
        %v303 = vlaneseq
        %v304 = vshrl.u32 %v303, 7
        %v305 = vsub.s32 0, %v304
        %v306 = vrot.slane %v301, %v305
        %v308 = vmul.f32 %v269, %v306
        %v309 = vmul.f32 %v270, %v306
        %v310 = vmul.f32 %v271, %v306
        %v311 = vmul.f32 %v272, %v306
        %v312 = vmul.f32 %v273, %v306
        %v313 = vmul.f32 %v274, %v306
        %v314 = vmul.f32 %v275, %v306
        %v315 = vmul.f32 %v276, %v306
        %v316 = vmul.f32 %v277, %v306
        %v317 = vmul.f32 %v278, %v306
        %v318 = vmul.f32 %v279, %v306
        %v319 = vmul.f32 %v280, %v306
        %v320 = vmul.f32 %v281, %v306
        %v321 = vmul.f32 %v282, %v306
        %v322 = vmul.f32 %v283, %v306
        %v323 = vmul.f32 %v284, %v306
        %v324 = vmul.f32 %v285, %v306
        %v325 = vmul.f32 %v286, %v306
        %v326 = vmul.f32 %v287, %v306
        %v327 = vmul.f32 %v288, %v306
        %v328 = vmul.f32 %v289, %v306
        %v329 = vmul.f32 %v290, %v306
        %v330 = vmul.f32 %v291, %v306
        %v331 = vmul.f32 %v292, %v306
        %v332 = vmul.f32 %v293, %v306
        %v333 = vmul.f32 %v294, %v306
        %v334 = vmul.f32 %v295, %v306
        %v335 = vmul.f32 %v296, %v306
        %v336 = vmul.f32 %v297, %v306
        %v337 = vmul.f32 %v298, %v306
        %v338 = vmul.f32 %v299, %v306
        %v339 = vmul.f32 %v300, %v306
        %v340 = vld [vmem:[%s3] sm:$0x1]
        %v342 = vlaneseq
        %v343 = vshrl.u32 %v342, 7
        %v344 = vsub.s32 0, %v343
        %v345 = vrot.slane %v340, %v344
        %v347 = vadd.f32 %v308, %v345
        %v348 = vadd.f32 %v309, %v345
        %v349 = vadd.f32 %v310, %v345
        %v350 = vadd.f32 %v311, %v345
        %v351 = vadd.f32 %v312, %v345
        %v352 = vadd.f32 %v313, %v345
        %v353 = vadd.f32 %v314, %v345
        %v354 = vadd.f32 %v315, %v345
        %v355 = vadd.f32 %v316, %v345
        %v356 = vadd.f32 %v317, %v345
        %v357 = vadd.f32 %v318, %v345
        %v358 = vadd.f32 %v319, %v345
        %v359 = vadd.f32 %v320, %v345
        %v360 = vadd.f32 %v321, %v345
        %v361 = vadd.f32 %v322, %v345
        %v362 = vadd.f32 %v323, %v345
        %v363 = vadd.f32 %v324, %v345
        %v364 = vadd.f32 %v325, %v345
        %v365 = vadd.f32 %v326, %v345
        %v366 = vadd.f32 %v327, %v345
        %v367 = vadd.f32 %v328, %v345
        %v368 = vadd.f32 %v329, %v345
        %v369 = vadd.f32 %v330, %v345
        %v370 = vadd.f32 %v331, %v345
        %v371 = vadd.f32 %v332, %v345
        %v372 = vadd.f32 %v333, %v345
        %v373 = vadd.f32 %v334, %v345
        %v374 = vadd.f32 %v335, %v345
        %v375 = vadd.f32 %v336, %v345
        %v376 = vadd.f32 %v337, %v345
        %v377 = vadd.f32 %v338, %v345
        %v378 = vadd.f32 %v339, %v345
        %v379 = vld [vmem:[%s266] sm:$0xff]
        %v380 = vld [vmem:[%s266 + $0x8] sm:$0xff]
        %v381 = vld [vmem:[%s266 + $0x10] sm:$0xff]
        %v382 = vld [vmem:[%s266 + $0x18] sm:$0xff]
        %v383 = vld [vmem:[%s266 + $0x20] sm:$0xff]
        %v384 = vld [vmem:[%s266 + $0x28] sm:$0xff]
        %v385 = vld [vmem:[%s266 + $0x30] sm:$0xff]
        %v386 = vld [vmem:[%s266 + $0x38] sm:$0xff]
        %v387 = vld [vmem:[%s266 + $0x40] sm:$0xff]
        %v388 = vld [vmem:[%s266 + $0x48] sm:$0xff]
        %v389 = vld [vmem:[%s266 + $0x50] sm:$0xff]
        %v390 = vld [vmem:[%s266 + $0x58] sm:$0xff]
        %v391 = vld [vmem:[%s266 + $0x60] sm:$0xff]
        %v392 = vld [vmem:[%s266 + $0x68] sm:$0xff]
        %v393 = vld [vmem:[%s266 + $0x70] sm:$0xff]
        %v394 = vld [vmem:[%s266 + $0x78] sm:$0xff]
        %v395 = vld [vmem:[%s266 + $0x80] sm:$0xff]
        %v396 = vld [vmem:[%s266 + $0x88] sm:$0xff]
        %v397 = vld [vmem:[%s266 + $0x90] sm:$0xff]
        %v398 = vld [vmem:[%s266 + $0x98] sm:$0xff]
        %v399 = vld [vmem:[%s266 + $0xa0] sm:$0xff]
        %v400 = vld [vmem:[%s266 + $0xa8] sm:$0xff]
        %v401 = vld [vmem:[%s266 + $0xb0] sm:$0xff]
        %v402 = vld [vmem:[%s266 + $0xb8] sm:$0xff]
        %v403 = vld [vmem:[%s266 + $0xc0] sm:$0xff]
        %v404 = vld [vmem:[%s266 + $0xc8] sm:$0xff]
        %v405 = vld [vmem:[%s266 + $0xd0] sm:$0xff]
        %v406 = vld [vmem:[%s266 + $0xd8] sm:$0xff]
        %v407 = vld [vmem:[%s266 + $0xe0] sm:$0xff]
        %v408 = vld [vmem:[%s266 + $0xe8] sm:$0xff]
        %v409 = vld [vmem:[%s266 + $0xf0] sm:$0xff]
        %v410 = vld [vmem:[%s266 + $0xf8] sm:$0xff]
        %v411 = vadd.f32 %v347, %v379
        %v412 = vadd.f32 %v348, %v380
        %v413 = vadd.f32 %v349, %v381
        %v414 = vadd.f32 %v350, %v382
        %v415 = vadd.f32 %v351, %v383
        %v416 = vadd.f32 %v352, %v384
        %v417 = vadd.f32 %v353, %v385
        %v418 = vadd.f32 %v354, %v386
        %v419 = vadd.f32 %v355, %v387
        %v420 = vadd.f32 %v356, %v388
        %v421 = vadd.f32 %v357, %v389
        %v422 = vadd.f32 %v358, %v390
        %v423 = vadd.f32 %v359, %v391
        %v424 = vadd.f32 %v360, %v392
        %v425 = vadd.f32 %v361, %v393
        %v426 = vadd.f32 %v362, %v394
        %v427 = vadd.f32 %v363, %v395
        %v428 = vadd.f32 %v364, %v396
        %v429 = vadd.f32 %v365, %v397
        %v430 = vadd.f32 %v366, %v398
        %v431 = vadd.f32 %v367, %v399
        %v432 = vadd.f32 %v368, %v400
        %v433 = vadd.f32 %v369, %v401
        %v434 = vadd.f32 %v370, %v402
        %v435 = vadd.f32 %v371, %v403
        %v436 = vadd.f32 %v372, %v404
        %v437 = vadd.f32 %v373, %v405
        %v438 = vadd.f32 %v374, %v406
        %v439 = vadd.f32 %v375, %v407
        %v440 = vadd.f32 %v376, %v408
        %v441 = vadd.f32 %v377, %v409
        %v442 = vadd.f32 %v378, %v410
        %v443 = vmax.f32 %v411, 0.0
        %v444 = vmax.f32 %v412, 0.0
        %v445 = vmax.f32 %v413, 0.0
        %v446 = vmax.f32 %v414, 0.0
        %v447 = vmax.f32 %v415, 0.0
        %v448 = vmax.f32 %v416, 0.0
        %v449 = vmax.f32 %v417, 0.0
        %v450 = vmax.f32 %v418, 0.0
        %v451 = vmax.f32 %v419, 0.0
        %v452 = vmax.f32 %v420, 0.0
        %v453 = vmax.f32 %v421, 0.0
        %v454 = vmax.f32 %v422, 0.0
        %v455 = vmax.f32 %v423, 0.0
        %v456 = vmax.f32 %v424, 0.0
        %v457 = vmax.f32 %v425, 0.0
        %v458 = vmax.f32 %v426, 0.0
        %v459 = vmax.f32 %v427, 0.0
        %v460 = vmax.f32 %v428, 0.0
        %v461 = vmax.f32 %v429, 0.0
        %v462 = vmax.f32 %v430, 0.0
        %v463 = vmax.f32 %v431, 0.0
        %v464 = vmax.f32 %v432, 0.0
        %v465 = vmax.f32 %v433, 0.0
        %v466 = vmax.f32 %v434, 0.0
        %v467 = vmax.f32 %v435, 0.0
        %v468 = vmax.f32 %v436, 0.0
        %v469 = vmax.f32 %v437, 0.0
        %v470 = vmax.f32 %v438, 0.0
        %v471 = vmax.f32 %v439, 0.0
        %v472 = vmax.f32 %v440, 0.0
        %v473 = vmax.f32 %v441, 0.0
        %v474 = vmax.f32 %v442, 0.0
        %475 = vst [vmem:[%s245] sm:$0xff] %v443
        %476 = vst [vmem:[%s245 + $0x8] sm:$0xff] %v444
        %477 = vst [vmem:[%s245 + $0x10] sm:$0xff] %v445
        %478 = vst [vmem:[%s245 + $0x18] sm:$0xff] %v446
        %479 = vst [vmem:[%s245 + $0x20] sm:$0xff] %v447
        %480 = vst [vmem:[%s245 + $0x28] sm:$0xff] %v448
        %481 = vst [vmem:[%s245 + $0x30] sm:$0xff] %v449
        %482 = vst [vmem:[%s245 + $0x38] sm:$0xff] %v450
        %483 = vst [vmem:[%s245 + $0x40] sm:$0xff] %v451
        %484 = vst [vmem:[%s245 + $0x48] sm:$0xff] %v452
        %485 = vst [vmem:[%s245 + $0x50] sm:$0xff] %v453
        %486 = vst [vmem:[%s245 + $0x58] sm:$0xff] %v454
        %487 = vst [vmem:[%s245 + $0x60] sm:$0xff] %v455
        %488 = vst [vmem:[%s245 + $0x68] sm:$0xff] %v456
        %489 = vst [vmem:[%s245 + $0x70] sm:$0xff] %v457
        %490 = vst [vmem:[%s245 + $0x78] sm:$0xff] %v458
        %491 = vst [vmem:[%s245 + $0x80] sm:$0xff] %v459
        %492 = vst [vmem:[%s245 + $0x88] sm:$0xff] %v460
        %493 = vst [vmem:[%s245 + $0x90] sm:$0xff] %v461
        %494 = vst [vmem:[%s245 + $0x98] sm:$0xff] %v462
        %495 = vst [vmem:[%s245 + $0xa0] sm:$0xff] %v463
        %496 = vst [vmem:[%s245 + $0xa8] sm:$0xff] %v464
        %497 = vst [vmem:[%s245 + $0xb0] sm:$0xff] %v465
        %498 = vst [vmem:[%s245 + $0xb8] sm:$0xff] %v466
        %499 = vst [vmem:[%s245 + $0xc0] sm:$0xff] %v467
        %500 = vst [vmem:[%s245 + $0xc8] sm:$0xff] %v468
        %501 = vst [vmem:[%s245 + $0xd0] sm:$0xff] %v469
        %502 = vst [vmem:[%s245 + $0xd8] sm:$0xff] %v470
        %503 = vst [vmem:[%s245 + $0xe0] sm:$0xff] %v471
        %504 = vst [vmem:[%s245 + $0xe8] sm:$0xff] %v472
        %505 = vst [vmem:[%s245 + $0xf0] sm:$0xff] %v473
        %506 = vst [vmem:[%s245 + $0xf8] sm:$0xff] %v474
        %s507 = sand.u32 %s138, 1
        %s508 = scalar_lea.sflag [#allocation3], %s507
        %s509 = sand.u32 %s138, 1
        %s510 = smul.addr %s509, 256
        %s511 = scalar_lea.vmem [#allocation2], %s510
        // Predicated region
        $region37: #{basic_block_forward.5} parent=35 // pred_check
          %p512 = pneg %p148
        $region38: #{basic_block_forward.5} parent=35 // pred_check_branch
          %514 = sbr.rel (%p512) target = $region40
        $region39: #{basic_block_forward.5} parent=35 // pred_region
          %s515 = smul.u32 16, %s23
          %s517 = ssub.s32 4096, 4096
          %518 = vsyncadd %s508, %s517
          %s519 = smul.addr %s515, 2
          %s520 = smul.addr %s22, 32
          %s521 = sadd.s32 %s519, %s520
          %s522 = smul.addr %s521, 128
          %s523 = scalar_lea.hbm %s4, %s522
          %s524 = sshll.u32 %s511, 4
          %s525 = int_to_ptr.vmem [resolvable:$true] %s524
          %530 = dma.vmem_to_hbm [thread:$0]  %s525, 4096, %s523, %s508, 128, 128, 8
        $region40: #{basic_block_forward.5} parent=35 // pred_fallthru
          _
      $region36: #{basic_block_forward.5} parent=5 // pred_fallthru
        _
      %p531 = scmp.le.s32.totalorder 2, %s13
      // Predicated region
      $region41: #{basic_block_forward.5} parent=5 // pred_check
        %p532 = pneg %p531
      $region42: #{basic_block_forward.5} parent=5 // pred_check_branch
        %534 = sbr.rel (%p532) target = $region44
      $region43: #{basic_block_forward.5} parent=5 // pred_region
        %s535 = ssub.s32 %s13, 2
        // Predicated region
        $region45: #{basic_block_forward.5} parent=43 // pred_check
          %p536 = pneg %p154
        $region46: #{basic_block_forward.5} parent=43 // pred_check_branch
          %538 = sbr.rel (%p536) target = $region48
        $region47: #{basic_block_forward.5} parent=43 // pred_region
          %s539 = sand.u32 %s139, 1
          %s540 = scalar_lea.sflag [#allocation3], %s539
          %s541 = sand.u32 %s139, 1
          %s542 = smul.addr %s541, 256
          %s543 = scalar_lea.vmem [#allocation2], %s542
          %544 = dma.done %s540, 4096
        $region48: #{basic_block_forward.5} parent=43 // pred_fallthru
          _
      $region44: #{basic_block_forward.5} parent=5 // pred_fallthru
        _
    $region6: #{basic_block_forward.5} parent=1 // loop_footer
      %s17 = sadd.s32 1, %s13
    $region7: #{basic_block_forward.5} parent=1 // loop_footer_branch
      %12 = sbr.rel target = $region3
    $region8: #{basic_block_forward.5} parent=1 // loop_exit
      _
    %545 = vsyncpa [#allocation3], 1
    %s546 = scalar_lea.sflag [#allocation3], 1
    %547 = vsyncpa %s546, 1

// kernel: basic_block_forward.3
$region0: #{basic_block_forward.3}
  #allocation0 [shape = 'u32[]', space=smem, size = 0x4, offset = 0x4, fixed_abs, tag = 'smem constant byte address 0x4 - core index']
  #allocation1 [shape = 'u32[144,128]{1,0:T(1,128)}', space=vmem, size = 0x12000, scoped, tag = 'internal scratch']
  #allocation2 [shape = 'f32[18,18,128]{2,1,0:T(8,128)}', space=vmem, size = 0x36000, scoped, tag = 'scratch operand']
  #allocation3 [shape = 'f32[256,128]{1,0:T(8,128)}', space=vmem, size = 0x20000, scoped, tag = 'scratch operand']
  %s0 = inlined_call_operand.vmem [shape: f32[2,16,16,128], index: 0, kind: input, shape index: {}]
  %s1 = inlined_call_operand.vmem [shape: bf16[3,3,128,128], index: 1, kind: input, shape index: {}]
  %s2 = inlined_call_operand.vmem [shape: f32[1,128], index: 2, kind: input, shape index: {}]
  %s3 = inlined_call_operand.vmem [shape: f32[1,128], index: 3, kind: input, shape index: {}]
  %s4 = inlined_call_operand.vmem [shape: f32[2,16,16,128], index: 4, kind: output, shape index: {0}]
  %s5 = inlined_call_operand.vmem [shape: f32[2,2,128], index: 5, kind: output, shape index: {1}]
  %6 = xla_tuple %s4, %s5
  %s7 = sld [smem:[#allocation0]]
  $region65: #{basic_block_forward.3} parent=0
    _
  %s9 = ssub.s32 1, %s7
  %s10 = scalar_select 0, %s9, %s7
  loop: start=0, step=1, limit=4
  $region2: #{basic_block_forward.3} parent=0 // loop_pre_header
    _
  $region3: #{basic_block_forward.3} parent=0 // loop_header
    %s12 = sphi 0, %s16
    %p13 = scmp.ge.s32.totalorder %s12, 4
    %s19 = sphi 0, %s31
    %s20 = sphi 0, %s27
    %s21 = sphi 0, %s19
    %s22 = sphi 0, %s20
    %s23 = sphi 0, %s21
    %s24 = sphi 0, %s22
    %s34 = sphi 0, %s36
    %s37 = sphi 0, %s34
    %s38 = sphi 0, %s37
    %s54 = sphi 0, %s38
    %s58 = sphi 0, %s58
    %s60 = sphi 0, %s58
    %s61 = sphi 0, %s60
    %s75 = sphi 0, %s61
    %s79 = sphi 0, %s79
    %s81 = sphi 0, %s79
    %s82 = sphi 0, %s81
    %s96 = sphi 0, %s82
    %s100 = sphi 0, %s100
    %s102 = sphi 0, %s100
    %s103 = sphi 0, %s102
    %s117 = sphi 0, %s103
    %s125 = sphi 0, %s127
    %s128 = sphi 0, %s125
    %s129 = sphi 0, %s128
    %s145 = sphi 0, %s129
    %s151 = sphi 0, %s153
    %s154 = sphi 0, %s151
    %s155 = sphi 0, %s154
    %s171 = sphi 0, %s155
  $region4: #{basic_block_forward.3} parent=0 // loop_header_branch
    %15 = sbr.rel (%p13) target = $region8
  $region5: #{basic_block_forward.3} parent=0 // loop_body
    %s17 = ssub.s32 %s12, 1
    %s18 = ssub.s32 %s12, 2
    %s25 = sadd.s32 1, %s20
    %p26 = scmp.ge.s32.totalorder %s25, 1
    %s27 = scalar_select %p26, 0, %s25
    %s28 = sadd.s32 1, %s19
    %s29 = scalar_select %p26, %s28, %s19
    %p30 = scmp.ge.s32.totalorder %s29, 2
    %s31 = scalar_select %p30, 0, %s29
    %s32 = ssub.s32 %s19, %s31
    %p33 = scmp.eq.s32.totalorder %s32, 0
    %s35 = sadd.s32 %s34, 1
    %s36 = scalar_select %p33, %s34, %s35
    %p39 = pneg %p33
    %p40 = scmp.eq.s32.totalorder %s12, 1
    %p41 = por %p39, %p40
    %p42 = scmp.ne.s32.totalorder %s34, %s37
    %p43 = scmp.eq.s32.totalorder %s12, 0
    %p44 = por %p42, %p43
    %p45 = scmp.ne.s32.totalorder %s34, %s37
    %p46 = scmp.eq.s32.totalorder %s17, 1
    %p47 = por %p45, %p46
    %p48 = scmp.ne.s32.totalorder %s37, %s38
    %p49 = scmp.eq.s32.totalorder %s17, 0
    %p50 = por %p48, %p49
    %p51 = scmp.ne.s32.totalorder %s37, %s38
    %p52 = scmp.eq.s32.totalorder %s18, 1
    %p53 = por %p51, %p52
    %p55 = scmp.ne.s32.totalorder %s38, %s54
    %p56 = scmp.eq.s32.totalorder %s18, 0
    %p57 = por %p55, %p56
    %s59 = sadd.s32 %s58, 1
    %p62 = scmp.eq.s32.totalorder %s12, 1
    %p63 = scmp.ne.s32.totalorder %s58, %s60
    %p64 = scmp.eq.s32.totalorder %s12, 0
    %p65 = por %p63, %p64
    %p66 = scmp.ne.s32.totalorder %s58, %s60
    %p67 = scmp.eq.s32.totalorder %s17, 1
    %p68 = por %p66, %p67
    %p69 = scmp.ne.s32.totalorder %s60, %s61
    %p70 = scmp.eq.s32.totalorder %s17, 0
    %p71 = por %p69, %p70
    %p72 = scmp.ne.s32.totalorder %s60, %s61
    %p73 = scmp.eq.s32.totalorder %s18, 1
    %p74 = por %p72, %p73
    %p76 = scmp.ne.s32.totalorder %s61, %s75
    %p77 = scmp.eq.s32.totalorder %s18, 0
    %p78 = por %p76, %p77
    %s80 = sadd.s32 %s79, 1
    %p83 = scmp.eq.s32.totalorder %s12, 1
    %p84 = scmp.ne.s32.totalorder %s79, %s81
    %p85 = scmp.eq.s32.totalorder %s12, 0
    %p86 = por %p84, %p85
    %p87 = scmp.ne.s32.totalorder %s79, %s81
    %p88 = scmp.eq.s32.totalorder %s17, 1
    %p89 = por %p87, %p88
    %p90 = scmp.ne.s32.totalorder %s81, %s82
    %p91 = scmp.eq.s32.totalorder %s17, 0
    %p92 = por %p90, %p91
    %p93 = scmp.ne.s32.totalorder %s81, %s82
    %p94 = scmp.eq.s32.totalorder %s18, 1
    %p95 = por %p93, %p94
    %p97 = scmp.ne.s32.totalorder %s82, %s96
    %p98 = scmp.eq.s32.totalorder %s18, 0
    %p99 = por %p97, %p98
    %s101 = sadd.s32 %s100, 1
    %p104 = scmp.eq.s32.totalorder %s12, 1
    %p105 = scmp.ne.s32.totalorder %s100, %s102
    %p106 = scmp.eq.s32.totalorder %s12, 0
    %p107 = por %p105, %p106
    %p108 = scmp.ne.s32.totalorder %s100, %s102
    %p109 = scmp.eq.s32.totalorder %s17, 1
    %p110 = por %p108, %p109
    %p111 = scmp.ne.s32.totalorder %s102, %s103
    %p112 = scmp.eq.s32.totalorder %s17, 0
    %p113 = por %p111, %p112
    %p114 = scmp.ne.s32.totalorder %s102, %s103
    %p115 = scmp.eq.s32.totalorder %s18, 1
    %p116 = por %p114, %p115
    %p118 = scmp.ne.s32.totalorder %s103, %s117
    %p119 = scmp.eq.s32.totalorder %s18, 0
    %p120 = por %p118, %p119
    %s121 = ssub.s32 %s19, %s31
    %s122 = ssub.s32 %s20, %s27
    %s123 = sor.u32 %s121, %s122
    %p124 = scmp.eq.s32.totalorder %s123, 0
    %s126 = sadd.s32 %s125, 1
    %s127 = scalar_select %p124, %s125, %s126
    %p130 = pneg %p124
    %p131 = scmp.eq.s32.totalorder %s12, 1
    %p132 = por %p130, %p131
    %p133 = scmp.ne.s32.totalorder %s125, %s128
    %p134 = scmp.eq.s32.totalorder %s12, 0
    %p135 = por %p133, %p134
    %p136 = scmp.ne.s32.totalorder %s125, %s128
    %p137 = scmp.eq.s32.totalorder %s17, 1
    %p138 = por %p136, %p137
    %p139 = scmp.ne.s32.totalorder %s128, %s129
    %p140 = scmp.eq.s32.totalorder %s17, 0
    %p141 = por %p139, %p140
    %p142 = scmp.ne.s32.totalorder %s128, %s129
    %p143 = scmp.eq.s32.totalorder %s18, 1
    %p144 = por %p142, %p143
    %p146 = scmp.ne.s32.totalorder %s129, %s145
    %p147 = scmp.eq.s32.totalorder %s18, 0
    %p148 = por %p146, %p147
    %s149 = ssub.s32 %s19, %s31
    %p150 = scmp.eq.s32.totalorder %s149, 0
    %s152 = sadd.s32 %s151, 1
    %s153 = scalar_select %p150, %s151, %s152
    %p156 = pneg %p150
    %p157 = scmp.eq.s32.totalorder %s12, 1
    %p158 = por %p156, %p157
    %p159 = scmp.ne.s32.totalorder %s151, %s154
    %p160 = scmp.eq.s32.totalorder %s12, 0
    %p161 = por %p159, %p160
    %p162 = scmp.ne.s32.totalorder %s151, %s154
    %p163 = scmp.eq.s32.totalorder %s17, 1
    %p164 = por %p162, %p163
    %p165 = scmp.ne.s32.totalorder %s154, %s155
    %p166 = scmp.eq.s32.totalorder %s17, 0
    %p167 = por %p165, %p166
    %p168 = scmp.ne.s32.totalorder %s154, %s155
    %p169 = scmp.eq.s32.totalorder %s18, 1
    %p170 = por %p168, %p169
    %p172 = scmp.ne.s32.totalorder %s155, %s171
    %p173 = scmp.eq.s32.totalorder %s18, 0
    %p174 = por %p172, %p173
    %p175 = scmp.le.s32.totalorder 1, %s12
    %p176 = scmp.lt.s32.totalorder %s12, 3
    %p177 = pnand %p175, %p176
    %p178 = pneg %p177
    // Predicated region
    $region9: #{basic_block_forward.3} parent=5 // pred_check
      _
    $region10: #{basic_block_forward.3} parent=5 // pred_check_branch
      %180 = sbr.rel (%p177) target = $region12
    $region11: #{basic_block_forward.3} parent=5 // pred_region
      %s181 = ssub.s32 %s12, 1
      // Predicated region
      $region13: #{basic_block_forward.3} parent=11 // pred_check
        %p182 = pneg %p71
      $region14: #{basic_block_forward.3} parent=11 // pred_check_branch
        %184 = sbr.rel (%p182) target = $region16
      $region15: #{basic_block_forward.3} parent=11 // pred_region
        _
      $region16: #{basic_block_forward.3} parent=11 // pred_fallthru
        _
      // Predicated region
      $region17: #{basic_block_forward.3} parent=11 // pred_check
        %p185 = pneg %p92
      $region18: #{basic_block_forward.3} parent=11 // pred_check_branch
        %187 = sbr.rel (%p185) target = $region20
      $region19: #{basic_block_forward.3} parent=11 // pred_region
        _
      $region20: #{basic_block_forward.3} parent=11 // pred_fallthru
        _
      // Predicated region
      $region21: #{basic_block_forward.3} parent=11 // pred_check
        %p188 = pneg %p113
      $region22: #{basic_block_forward.3} parent=11 // pred_check_branch
        %190 = sbr.rel (%p188) target = $region24
      $region23: #{basic_block_forward.3} parent=11 // pred_region
        _
      $region24: #{basic_block_forward.3} parent=11 // pred_fallthru
        _
    $region12: #{basic_block_forward.3} parent=5 // pred_fallthru
      _
    %p191 = scmp.lt.s32.totalorder %s12, 2
    // Predicated region
    $region25: #{basic_block_forward.3} parent=5 // pred_check
      %p192 = pneg %p191
    $region26: #{basic_block_forward.3} parent=5 // pred_check_branch
      %194 = sbr.rel (%p192) target = $region28
    $region27: #{basic_block_forward.3} parent=5 // pred_region
      // Predicated region
      $region29: #{basic_block_forward.3} parent=27 // pred_check
        %p195 = pneg %p44
      $region30: #{basic_block_forward.3} parent=27 // pred_check_branch
        %197 = sbr.rel (%p195) target = $region32
      $region31: #{basic_block_forward.3} parent=27 // pred_region
        %p198 = scmp.lt.s32.totalorder %s19, 1
        %s199 = scalar_select %p198, %s19, 1
        %s200 = smul.addr %s199, 32
        %s201 = smul.addr %s200, 8
        %s202 = scalar_lea.vmem %s0, %s201
      $region32: #{basic_block_forward.3} parent=27 // pred_fallthru
        _
    $region28: #{basic_block_forward.3} parent=5 // pred_fallthru
      _
    %p203 = scmp.le.s32.totalorder 1, %s12
    %p204 = scmp.lt.s32.totalorder %s12, 3
    %p205 = pnand %p203, %p204
    %p206 = pneg %p205
    // Predicated region
    $region33: #{basic_block_forward.3} parent=5 // pred_check
      _
    $region34: #{basic_block_forward.3} parent=5 // pred_check_branch
      %208 = sbr.rel (%p205) target = $region36
    $region35: #{basic_block_forward.3} parent=5 // pred_region
      %s209 = ssub.s32 %s12, 1
      %p210 = scmp.lt.s32.totalorder %s21, 1
      %s211 = scalar_select %p210, %s21, 1
      %s212 = smul.addr %s211, 32
      %s213 = smul.addr %s212, 8
      %s214 = scalar_lea.vmem %s0, %s213
      %p215 = pneg %p50
      %p216 = pneg %p47
      %p217 = pneg %p71
      %p218 = pneg %p68
      %p219 = pneg %p92
      %p220 = pneg %p89
      %p221 = pneg %p113
      %p222 = pneg %p110
      %p223 = pneg %p141
      %p224 = pneg %p138
      %s225 = smul.u32 16, %s22
      %p226 = scmp.lt.s32.totalorder %s21, 1
      %s227 = scalar_select %p226, %s21, 1
      %p228 = scmp.lt.s32.totalorder %s225, 15
      %s229 = scalar_select %p228, %s225, 15
      %s230 = smul.addr %s229, 2
      %s231 = smul.addr %s227, 32
      %s232 = sadd.s32 %s230, %s231
      %s233 = smul.addr %s232, 8
      %s234 = scalar_lea.vmem %s4, %s233
      %p235 = pneg %p167
      %p236 = pneg %p164
      %p237 = scmp.lt.s32.totalorder %s21, 1
      %s238 = scalar_select %p237, %s21, 1
      %s239 = smul.addr %s238, 2
      %s240 = scalar_lea.vmem %s5, %s239
      %p241 = scmp.lt.s32.totalorder %s21, 1
      %s242 = scalar_select %p241, %s21, 1
      %s243 = smul.addr %s242, 32
      %s244 = smul.addr %s243, 8
      %s245 = scalar_lea.vmem %s0, %s244
      %s246 = smul.u32 16, %s22
      %p247 = scmp.lt.s32.totalorder %s21, 1
      %s248 = scalar_select %p247, %s21, 1
      %p249 = scmp.lt.s32.totalorder %s246, 15
      %s250 = scalar_select %p249, %s246, 15
      %s251 = smul.addr %s250, 2
      %s252 = smul.addr %s248, 32
      %s253 = sadd.s32 %s251, %s252
      %s254 = smul.addr %s253, 8
      %s255 = scalar_lea.vmem %s4, %s254
      %s256 = smul.u32 16, %s22
      %p257 = scmp.lt.s32.totalorder %s21, 1
      %s258 = scalar_select %p257, %s21, 1
      %s259 = smul.addr %s258, 2
      %s260 = scalar_lea.vmem %s5, %s259
      %p262 = scmp.eq.s32.totalorder %s22, 0
      // Predicated region
      $region37: #{basic_block_forward.3} parent=35 // pred_check
        %p263 = pneg %p262
      $region38: #{basic_block_forward.3} parent=35 // pred_check_branch
        %265 = sbr.rel (%p263) target = $region40
      $region39: #{basic_block_forward.3} parent=35 // pred_region
        %v266 = vld [vmem:[%s245] sm:$0xff]
        %v267 = vld [vmem:[%s245 + $0x8] sm:$0xff]
        %v268 = vld [vmem:[%s245 + $0x10] sm:$0xff]
        %v269 = vld [vmem:[%s245 + $0x18] sm:$0xff]
        %v270 = vld [vmem:[%s245 + $0x20] sm:$0xff]
        %v271 = vld [vmem:[%s245 + $0x28] sm:$0xff]
        %v272 = vld [vmem:[%s245 + $0x30] sm:$0xff]
        %v273 = vld [vmem:[%s245 + $0x38] sm:$0xff]
        %v274 = vld [vmem:[%s245 + $0x40] sm:$0xff]
        %v275 = vld [vmem:[%s245 + $0x48] sm:$0xff]
        %v276 = vld [vmem:[%s245 + $0x50] sm:$0xff]
        %v277 = vld [vmem:[%s245 + $0x58] sm:$0xff]
        %v278 = vld [vmem:[%s245 + $0x60] sm:$0xff]
        %v279 = vld [vmem:[%s245 + $0x68] sm:$0xff]
        %v280 = vld [vmem:[%s245 + $0x70] sm:$0xff]
        %v281 = vld [vmem:[%s245 + $0x78] sm:$0xff]
        %v282 = vld [vmem:[%s245 + $0x80] sm:$0xff]
        %v283 = vld [vmem:[%s245 + $0x88] sm:$0xff]
        %v284 = vld [vmem:[%s245 + $0x90] sm:$0xff]
        %v285 = vld [vmem:[%s245 + $0x98] sm:$0xff]
        %v286 = vld [vmem:[%s245 + $0xa0] sm:$0xff]
        %v287 = vld [vmem:[%s245 + $0xa8] sm:$0xff]
        %v288 = vld [vmem:[%s245 + $0xb0] sm:$0xff]
        %v289 = vld [vmem:[%s245 + $0xb8] sm:$0xff]
        %v290 = vld [vmem:[%s245 + $0xc0] sm:$0xff]
        %v291 = vld [vmem:[%s245 + $0xc8] sm:$0xff]
        %v292 = vld [vmem:[%s245 + $0xd0] sm:$0xff]
        %v293 = vld [vmem:[%s245 + $0xd8] sm:$0xff]
        %v294 = vld [vmem:[%s245 + $0xe0] sm:$0xff]
        %v295 = vld [vmem:[%s245 + $0xe8] sm:$0xff]
        %v296 = vld [vmem:[%s245 + $0xf0] sm:$0xff]
        %v297 = vld [vmem:[%s245 + $0xf8] sm:$0xff]
        %298 = vst [vmem:[#allocation2] sm:$0xff] 0.0
        %299 = vst [vmem:[#allocation2 + $0x8] sm:$0xff] 0.0
        %300 = vst [vmem:[#allocation2 + $0x10] sm:$0x3] 0.0
        %301 = vst [vmem:[#allocation2 + $0x18] sm:$0xff] 0.0
        %302 = vst [vmem:[#allocation2 + $0x20] sm:$0xff] 0.0
        %303 = vst [vmem:[#allocation2 + $0x28] sm:$0x3] 0.0
        %304 = vst [vmem:[#allocation2 + $0x30] sm:$0xff] 0.0
        %305 = vst [vmem:[#allocation2 + $0x38] sm:$0xff] 0.0
        %306 = vst [vmem:[#allocation2 + $0x40] sm:$0x3] 0.0
        %307 = vst [vmem:[#allocation2 + $0x48] sm:$0xff] 0.0
        %308 = vst [vmem:[#allocation2 + $0x50] sm:$0xff] 0.0
        %309 = vst [vmem:[#allocation2 + $0x58] sm:$0x3] 0.0
        %310 = vst [vmem:[#allocation2 + $0x60] sm:$0xff] 0.0
        %311 = vst [vmem:[#allocation2 + $0x68] sm:$0xff] 0.0
        %312 = vst [vmem:[#allocation2 + $0x70] sm:$0x3] 0.0
        %313 = vst [vmem:[#allocation2 + $0x78] sm:$0xff] 0.0
        %314 = vst [vmem:[#allocation2 + $0x80] sm:$0xff] 0.0
        %315 = vst [vmem:[#allocation2 + $0x88] sm:$0x3] 0.0
        %316 = vst [vmem:[#allocation2 + $0x90] sm:$0xff] 0.0
        %317 = vst [vmem:[#allocation2 + $0x98] sm:$0xff] 0.0
        %318 = vst [vmem:[#allocation2 + $0xa0] sm:$0x3] 0.0
        %319 = vst [vmem:[#allocation2 + $0xa8] sm:$0xff] 0.0
        %320 = vst [vmem:[#allocation2 + $0xb0] sm:$0xff] 0.0
        %321 = vst [vmem:[#allocation2 + $0xb8] sm:$0x3] 0.0
        %322 = vst [vmem:[#allocation2 + $0xc0] sm:$0xff] 0.0
        %323 = vst [vmem:[#allocation2 + $0xc8] sm:$0xff] 0.0
        %324 = vst [vmem:[#allocation2 + $0xd0] sm:$0x3] 0.0
        %325 = vst [vmem:[#allocation2 + $0xd8] sm:$0xff] 0.0
        %326 = vst [vmem:[#allocation2 + $0xe0] sm:$0xff] 0.0
        %327 = vst [vmem:[#allocation2 + $0xe8] sm:$0x3] 0.0
        %328 = vst [vmem:[#allocation2 + $0xf0] sm:$0xff] 0.0
        %329 = vst [vmem:[#allocation2 + $0xf8] sm:$0xff] 0.0
        %330 = vst [vmem:[#allocation2 + $0x100] sm:$0x3] 0.0
        %331 = vst [vmem:[#allocation2 + $0x108] sm:$0xff] 0.0
        %332 = vst [vmem:[#allocation2 + $0x110] sm:$0xff] 0.0
        %333 = vst [vmem:[#allocation2 + $0x118] sm:$0x3] 0.0
        %334 = vst [vmem:[#allocation2 + $0x120] sm:$0xff] 0.0
        %335 = vst [vmem:[#allocation2 + $0x128] sm:$0xff] 0.0
        %336 = vst [vmem:[#allocation2 + $0x130] sm:$0x3] 0.0
        %337 = vst [vmem:[#allocation2 + $0x138] sm:$0xff] 0.0
        %338 = vst [vmem:[#allocation2 + $0x140] sm:$0xff] 0.0
        %339 = vst [vmem:[#allocation2 + $0x148] sm:$0x3] 0.0
        %340 = vst [vmem:[#allocation2 + $0x150] sm:$0xff] 0.0
        %341 = vst [vmem:[#allocation2 + $0x158] sm:$0xff] 0.0
        %342 = vst [vmem:[#allocation2 + $0x160] sm:$0x3] 0.0
        %343 = vst [vmem:[#allocation2 + $0x168] sm:$0xff] 0.0
        %344 = vst [vmem:[#allocation2 + $0x170] sm:$0xff] 0.0
        %345 = vst [vmem:[#allocation2 + $0x178] sm:$0x3] 0.0
        %346 = vst [vmem:[#allocation2 + $0x180] sm:$0xff] 0.0
        %347 = vst [vmem:[#allocation2 + $0x188] sm:$0xff] 0.0
        %348 = vst [vmem:[#allocation2 + $0x190] sm:$0x3] 0.0
        %349 = vst [vmem:[#allocation2 + $0x198] sm:$0xff] 0.0
        %350 = vst [vmem:[#allocation2 + $0x1a0] sm:$0xff] 0.0
        %351 = vst [vmem:[#allocation2 + $0x1a8] sm:$0x3] 0.0
        %s352 = scalar_lea.vmem [#allocation2], 24
        %353 = vst [vmem:[%s352 + $0x1] sm:$0xff] %v266
        %354 = vst [vmem:[%s352 + $0x9] sm:$0xff] %v267
        %355 = vst [vmem:[%s352 + $0x19] sm:$0xff] %v268
        %356 = vst [vmem:[%s352 + $0x21] sm:$0xff] %v269
        %357 = vst [vmem:[%s352 + $0x31] sm:$0xff] %v270
        %358 = vst [vmem:[%s352 + $0x39] sm:$0xff] %v271
        %359 = vst [vmem:[%s352 + $0x49] sm:$0xff] %v272
        %360 = vst [vmem:[%s352 + $0x51] sm:$0xff] %v273
        %361 = vst [vmem:[%s352 + $0x61] sm:$0xff] %v274
        %362 = vst [vmem:[%s352 + $0x69] sm:$0xff] %v275
        %363 = vst [vmem:[%s352 + $0x79] sm:$0xff] %v276
        %364 = vst [vmem:[%s352 + $0x81] sm:$0xff] %v277
        %365 = vst [vmem:[%s352 + $0x91] sm:$0xff] %v278
        %366 = vst [vmem:[%s352 + $0x99] sm:$0xff] %v279
        %367 = vst [vmem:[%s352 + $0xa9] sm:$0xff] %v280
        %368 = vst [vmem:[%s352 + $0xb1] sm:$0xff] %v281
        %369 = vst [vmem:[%s352 + $0xc1] sm:$0xff] %v282
        %370 = vst [vmem:[%s352 + $0xc9] sm:$0xff] %v283
        %371 = vst [vmem:[%s352 + $0xd9] sm:$0xff] %v284
        %372 = vst [vmem:[%s352 + $0xe1] sm:$0xff] %v285
        %373 = vst [vmem:[%s352 + $0xf1] sm:$0xff] %v286
        %374 = vst [vmem:[%s352 + $0xf9] sm:$0xff] %v287
        %375 = vst [vmem:[%s352 + $0x109] sm:$0xff] %v288
        %376 = vst [vmem:[%s352 + $0x111] sm:$0xff] %v289
        %377 = vst [vmem:[%s352 + $0x121] sm:$0xff] %v290
        %378 = vst [vmem:[%s352 + $0x129] sm:$0xff] %v291
        %379 = vst [vmem:[%s352 + $0x139] sm:$0xff] %v292
        %380 = vst [vmem:[%s352 + $0x141] sm:$0xff] %v293
        %381 = vst [vmem:[%s352 + $0x151] sm:$0xff] %v294
        %382 = vst [vmem:[%s352 + $0x159] sm:$0xff] %v295
        %383 = vst [vmem:[%s352 + $0x169] sm:$0xff] %v296
        %384 = vst [vmem:[%s352 + $0x171] sm:$0xff] %v297
      $region40: #{basic_block_forward.3} parent=35 // pred_fallthru
        _
      %385 = vst [vmem:[#allocation3] sm:$0xff] 0.0
      %386 = vst [vmem:[#allocation3 + $0x8] sm:$0xff] 0.0
      %387 = vst [vmem:[#allocation3 + $0x10] sm:$0xff] 0.0
      %388 = vst [vmem:[#allocation3 + $0x18] sm:$0xff] 0.0
      %389 = vst [vmem:[#allocation3 + $0x20] sm:$0xff] 0.0
      %390 = vst [vmem:[#allocation3 + $0x28] sm:$0xff] 0.0
      %391 = vst [vmem:[#allocation3 + $0x30] sm:$0xff] 0.0
      %392 = vst [vmem:[#allocation3 + $0x38] sm:$0xff] 0.0
      %393 = vst [vmem:[#allocation3 + $0x40] sm:$0xff] 0.0
      %394 = vst [vmem:[#allocation3 + $0x48] sm:$0xff] 0.0
      %395 = vst [vmem:[#allocation3 + $0x50] sm:$0xff] 0.0
      %396 = vst [vmem:[#allocation3 + $0x58] sm:$0xff] 0.0
      %397 = vst [vmem:[#allocation3 + $0x60] sm:$0xff] 0.0
      %398 = vst [vmem:[#allocation3 + $0x68] sm:$0xff] 0.0
      %399 = vst [vmem:[#allocation3 + $0x70] sm:$0xff] 0.0
      %400 = vst [vmem:[#allocation3 + $0x78] sm:$0xff] 0.0
      %401 = vst [vmem:[#allocation3 + $0x80] sm:$0xff] 0.0
      %402 = vst [vmem:[#allocation3 + $0x88] sm:$0xff] 0.0
      %403 = vst [vmem:[#allocation3 + $0x90] sm:$0xff] 0.0
      %404 = vst [vmem:[#allocation3 + $0x98] sm:$0xff] 0.0
      %405 = vst [vmem:[#allocation3 + $0xa0] sm:$0xff] 0.0
      %406 = vst [vmem:[#allocation3 + $0xa8] sm:$0xff] 0.0
      %407 = vst [vmem:[#allocation3 + $0xb0] sm:$0xff] 0.0
      %408 = vst [vmem:[#allocation3 + $0xb8] sm:$0xff] 0.0
      %409 = vst [vmem:[#allocation3 + $0xc0] sm:$0xff] 0.0
      %410 = vst [vmem:[#allocation3 + $0xc8] sm:$0xff] 0.0
      %411 = vst [vmem:[#allocation3 + $0xd0] sm:$0xff] 0.0
      %412 = vst [vmem:[#allocation3 + $0xd8] sm:$0xff] 0.0
      %413 = vst [vmem:[#allocation3 + $0xe0] sm:$0xff] 0.0
      %414 = vst [vmem:[#allocation3 + $0xe8] sm:$0xff] 0.0
      %415 = vst [vmem:[#allocation3 + $0xf0] sm:$0xff] 0.0
      %416 = vst [vmem:[#allocation3 + $0xf8] sm:$0xff] 0.0
      %s417 = smul.u32 %s22, 16
      %s418 = smul.u32 %s417, 24
      %s419 = scalar_lea.vmem [#allocation2], %s418
      %v420 = vld [vmem:[%s419] sm:$0xff]
      %v421 = vld [vmem:[%s419 + $0x8] sm:$0xff]
      %v422 = vld [vmem:[%s419 + $0x18] sm:$0xff]
      %v423 = vld [vmem:[%s419 + $0x20] sm:$0xff]
      %v424 = vld [vmem:[%s419 + $0x30] sm:$0xff]
      %v425 = vld [vmem:[%s419 + $0x38] sm:$0xff]
      %v426 = vld [vmem:[%s419 + $0x48] sm:$0xff]
      %v427 = vld [vmem:[%s419 + $0x50] sm:$0xff]
      %v428 = vld [vmem:[%s419 + $0x60] sm:$0xff]
      %v429 = vld [vmem:[%s419 + $0x68] sm:$0xff]
      %v430 = vld [vmem:[%s419 + $0x78] sm:$0xff]
      %v431 = vld [vmem:[%s419 + $0x80] sm:$0xff]
      %v432 = vld [vmem:[%s419 + $0x90] sm:$0xff]
      %v433 = vld [vmem:[%s419 + $0x98] sm:$0xff]
      %v434 = vld [vmem:[%s419 + $0xa8] sm:$0xff]
      %v435 = vld [vmem:[%s419 + $0xb0] sm:$0xff]
      %v436 = vld [vmem:[%s419 + $0xc0] sm:$0xff]
      %v437 = vld [vmem:[%s419 + $0xc8] sm:$0xff]
      %v438 = vld [vmem:[%s419 + $0xd8] sm:$0xff]
      %v439 = vld [vmem:[%s419 + $0xe0] sm:$0xff]
      %v440 = vld [vmem:[%s419 + $0xf0] sm:$0xff]
      %v441 = vld [vmem:[%s419 + $0xf8] sm:$0xff]
      %v442 = vld [vmem:[%s419 + $0x108] sm:$0xff]
      %v443 = vld [vmem:[%s419 + $0x110] sm:$0xff]
      %v444 = vld [vmem:[%s419 + $0x120] sm:$0xff]
      %v445 = vld [vmem:[%s419 + $0x128] sm:$0xff]
      %v446 = vld [vmem:[%s419 + $0x138] sm:$0xff]
      %v447 = vld [vmem:[%s419 + $0x140] sm:$0xff]
      %v448 = vld [vmem:[%s419 + $0x150] sm:$0xff]
      %v449 = vld [vmem:[%s419 + $0x158] sm:$0xff]
      %v450 = vld [vmem:[%s419 + $0x168] sm:$0xff]
      %v451 = vld [vmem:[%s419 + $0x170] sm:$0xff]
      %v452 = vpack.c.bf16 %v421, %v420
      %v453 = vpack.c.bf16 %v423, %v422
      %v454 = vpack.c.bf16 %v425, %v424
      %v455 = vpack.c.bf16 %v427, %v426
      %v456 = vpack.c.bf16 %v429, %v428
      %v457 = vpack.c.bf16 %v431, %v430
      %v458 = vpack.c.bf16 %v433, %v432
      %v459 = vpack.c.bf16 %v435, %v434
      %v460 = vpack.c.bf16 %v437, %v436
      %v461 = vpack.c.bf16 %v439, %v438
      %v462 = vpack.c.bf16 %v441, %v440
      %v463 = vpack.c.bf16 %v443, %v442
      %v464 = vpack.c.bf16 %v445, %v444
      %v465 = vpack.c.bf16 %v447, %v446
      %v466 = vpack.c.bf16 %v449, %v448
      %v467 = vpack.c.bf16 %v451, %v450
      %v468 = vld [vmem:[#allocation3] sm:$0xff]
      %v469 = vld [vmem:[#allocation3 + $0x8] sm:$0xff]
      %v470 = vld [vmem:[#allocation3 + $0x10] sm:$0xff]
      %v471 = vld [vmem:[#allocation3 + $0x18] sm:$0xff]
      %v472 = vld [vmem:[#allocation3 + $0x20] sm:$0xff]
      %v473 = vld [vmem:[#allocation3 + $0x28] sm:$0xff]
      %v474 = vld [vmem:[#allocation3 + $0x30] sm:$0xff]
      %v475 = vld [vmem:[#allocation3 + $0x38] sm:$0xff]
      %v476 = vld [vmem:[#allocation3 + $0x40] sm:$0xff]
      %v477 = vld [vmem:[#allocation3 + $0x48] sm:$0xff]
      %v478 = vld [vmem:[#allocation3 + $0x50] sm:$0xff]
      %v479 = vld [vmem:[#allocation3 + $0x58] sm:$0xff]
      %v480 = vld [vmem:[#allocation3 + $0x60] sm:$0xff]
      %v481 = vld [vmem:[#allocation3 + $0x68] sm:$0xff]
      %v482 = vld [vmem:[#allocation3 + $0x70] sm:$0xff]
      %v483 = vld [vmem:[#allocation3 + $0x78] sm:$0xff]
      %v484 = vld [vmem:[#allocation3 + $0x80] sm:$0xff]
      %v485 = vld [vmem:[#allocation3 + $0x88] sm:$0xff]
      %v486 = vld [vmem:[#allocation3 + $0x90] sm:$0xff]
      %v487 = vld [vmem:[#allocation3 + $0x98] sm:$0xff]
      %v488 = vld [vmem:[#allocation3 + $0xa0] sm:$0xff]
      %v489 = vld [vmem:[#allocation3 + $0xa8] sm:$0xff]
      %v490 = vld [vmem:[#allocation3 + $0xb0] sm:$0xff]
      %v491 = vld [vmem:[#allocation3 + $0xb8] sm:$0xff]
      %v492 = vld [vmem:[#allocation3 + $0xc0] sm:$0xff]
      %v493 = vld [vmem:[#allocation3 + $0xc8] sm:$0xff]
      %v494 = vld [vmem:[#allocation3 + $0xd0] sm:$0xff]
      %v495 = vld [vmem:[#allocation3 + $0xd8] sm:$0xff]
      %v496 = vld [vmem:[#allocation3 + $0xe0] sm:$0xff]
      %v497 = vld [vmem:[#allocation3 + $0xe8] sm:$0xff]
      %v498 = vld [vmem:[#allocation3 + $0xf0] sm:$0xff]
      %v499 = vld [vmem:[#allocation3 + $0xf8] sm:$0xff]
      %v500 = vld [vmem:[%s1] sm:$0xf]
      %v501 = vld [vmem:[%s1 + $0x4] sm:$0xf]
      %v502 = vld [vmem:[%s1 + $0x8] sm:$0xf]
      %v503 = vld [vmem:[%s1 + $0xc] sm:$0xf]
      %v504 = vld [vmem:[%s1 + $0x10] sm:$0xf]
      %v505 = vld [vmem:[%s1 + $0x14] sm:$0xf]
      %v506 = vld [vmem:[%s1 + $0x18] sm:$0xf]
      %v507 = vld [vmem:[%s1 + $0x1c] sm:$0xf]
      %v508 = vld [vmem:[%s1 + $0x20] sm:$0xf]
      %v509 = vld [vmem:[%s1 + $0x24] sm:$0xf]
      %v510 = vld [vmem:[%s1 + $0x28] sm:$0xf]
      %v511 = vld [vmem:[%s1 + $0x2c] sm:$0xf]
      %v512 = vld [vmem:[%s1 + $0x30] sm:$0xf]
      %v513 = vld [vmem:[%s1 + $0x34] sm:$0xf]
      %v514 = vld [vmem:[%s1 + $0x38] sm:$0xf]
      %v515 = vld [vmem:[%s1 + $0x3c] sm:$0xf]
      %v532 = vunpack.c.l.b16 %v500
      %v533 = vunpack.c.l.b16 %v501
      %v534 = vunpack.c.l.b16 %v502
      %v535 = vunpack.c.l.b16 %v503
      %v536 = vunpack.c.l.b16 %v504
      %v537 = vunpack.c.l.b16 %v505
      %v538 = vunpack.c.l.b16 %v506
      %v539 = vunpack.c.l.b16 %v507
      %v540 = vunpack.c.l.b16 %v508
      %v541 = vunpack.c.l.b16 %v509
      %v542 = vunpack.c.l.b16 %v510
      %v543 = vunpack.c.l.b16 %v511
      %v544 = vunpack.c.l.b16 %v512
      %v545 = vunpack.c.l.b16 %v513
      %v546 = vunpack.c.l.b16 %v514
      %v547 = vunpack.c.l.b16 %v515
      %v548 = vpack.c.b16 %v533, %v532
      %v549 = vpack.c.b16 %v535, %v534
      %v550 = vpack.c.b16 %v537, %v536
      %v551 = vpack.c.b16 %v539, %v538
      %v552 = vpack.c.b16 %v541, %v540
      %v553 = vpack.c.b16 %v543, %v542
      %v554 = vpack.c.b16 %v545, %v544
      %v555 = vpack.c.b16 %v547, %v546
      %564 = vmatprep.subr.bf16.mxu0 0
      %565 = vmatpush1.bf16.msra.mxu0 %v548
      %566 = vmatprep.subr.bf16.mxu0 0
      %567 = vmatpush1.bf16.msra.mxu0 %v549
      %568 = vmatprep.subr.bf16.mxu0 0
      %569 = vmatpush1.bf16.msra.mxu0 %v550
      %570 = vmatprep.subr.bf16.mxu0 0
      %571 = vmatpush1.bf16.msra.mxu0 %v551
      %572 = vmatprep.subr.bf16.mxu0 0
      %573 = vmatpush1.bf16.msra.mxu0 %v552
      %574 = vmatprep.subr.bf16.mxu0 0
      %575 = vmatpush1.bf16.msra.mxu0 %v553
      %576 = vmatprep.subr.bf16.mxu0 0
      %577 = vmatpush1.bf16.msra.mxu0 %v554
      %578 = vmatprep.subr.bf16.mxu0 0
      %579 = vmatpush1.bf16.msra.mxu0 %v555
      %580 = vmatprep.subr.bf16.mxu0 0
      %581 = vmatpush1.bf16.msra.mxu0 0
      %582 = vmatprep.subr.bf16.mxu0 0
      %583 = vmatpush1.bf16.msra.mxu0 0
      %584 = vmatprep.subr.bf16.mxu0 0
      %585 = vmatpush1.bf16.msra.mxu0 0
      %586 = vmatprep.subr.bf16.mxu0 0
      %587 = vmatpush1.bf16.msra.mxu0 0
      %588 = vmatprep.subr.bf16.mxu0 0
      %589 = vmatpush1.bf16.msra.mxu0 0
      %590 = vmatprep.subr.bf16.mxu0 0
      %591 = vmatpush1.bf16.msra.mxu0 0
      %592 = vmatprep.subr.bf16.mxu0 0
      %593 = vmatpush1.bf16.msra.mxu0 0
      %594 = vmatprep.subr.bf16.mxu0 0
      %595 = vmatpush1.bf16.msra.mxu0 0
      %596 = vmatprep.mubr.bf16.mxu0 0
      %597 = vmatmul.mubr.bf16.gmra.mrb[0].mxu0 %v452
      %v598 = vpop.f32.mrb[0].mxu0
      %v599 = vadd.f32 0.0, %v598
      %v600 = vpop.f32.mrb[0].mxu0
      %v601 = vpop.f32.mrb[0].mxu0
      %v602 = vadd.f32 0.0, %v601
      %v603 = vpop.f32.mrb[0].mxu0
      %604 = vmatprep.mubr.bf16.mxu0 0
      %605 = vmatmul.mubr.bf16.gmra.mrb[0].mxu0 %v453
      %v606 = vpop.f32.mrb[0].mxu0
      %v607 = vadd.f32 0.0, %v606
      %v608 = vpop.f32.mrb[0].mxu0
      %v609 = vpop.f32.mrb[0].mxu0
      %v610 = vadd.f32 0.0, %v609
      %v611 = vpop.f32.mrb[0].mxu0
      %612 = vmatprep.mubr.bf16.mxu0 0
      %613 = vmatmul.mubr.bf16.gmra.mrb[0].mxu0 %v454
      %v614 = vpop.f32.mrb[0].mxu0
      %v615 = vadd.f32 0.0, %v614
      %v616 = vpop.f32.mrb[0].mxu0
      %v617 = vpop.f32.mrb[0].mxu0
      %v618 = vadd.f32 0.0, %v617
      %v619 = vpop.f32.mrb[0].mxu0
      %620 = vmatprep.mubr.bf16.mxu0 0
      %621 = vmatmul.mubr.bf16.gmra.mrb[0].mxu0 %v455
      %v622 = vpop.f32.mrb[0].mxu0
      %v623 = vadd.f32 0.0, %v622
      %v624 = vpop.f32.mrb[0].mxu0
      %v625 = vpop.f32.mrb[0].mxu0
      %v626 = vadd.f32 0.0, %v625
      %v627 = vpop.f32.mrb[0].mxu0
      %628 = vmatprep.mubr.bf16.mxu0 0
      %629 = vmatmul.mubr.bf16.gmra.mrb[0].mxu0 %v456
      %v630 = vpop.f32.mrb[0].mxu0
      %v631 = vadd.f32 0.0, %v630
      %v632 = vpop.f32.mrb[0].mxu0
      %v633 = vpop.f32.mrb[0].mxu0
      %v634 = vadd.f32 0.0, %v633
      %v635 = vpop.f32.mrb[0].mxu0
      %636 = vmatprep.mubr.bf16.mxu0 0
      %637 = vmatmul.mubr.bf16.gmra.mrb[0].mxu0 %v457
      %v638 = vpop.f32.mrb[0].mxu0
      %v639 = vadd.f32 0.0, %v638
      %v640 = vpop.f32.mrb[0].mxu0
      %v641 = vpop.f32.mrb[0].mxu0
      %v642 = vadd.f32 0.0, %v641
      %v643 = vpop.f32.mrb[0].mxu0
      %644 = vmatprep.mubr.bf16.mxu0 0
      %645 = vmatmul.mubr.bf16.gmra.mrb[0].mxu0 %v458
      %v646 = vpop.f32.mrb[0].mxu0
      %v647 = vadd.f32 0.0, %v646
      %v648 = vpop.f32.mrb[0].mxu0
      %v649 = vpop.f32.mrb[0].mxu0
      %v650 = vadd.f32 0.0, %v649
      %v651 = vpop.f32.mrb[0].mxu0
      %652 = vmatprep.mubr.bf16.mxu0 0
      %653 = vmatmul.mubr.bf16.gmra.mrb[0].mxu0 %v459
      %v654 = vpop.f32.mrb[0].mxu0
      %v655 = vadd.f32 0.0, %v654
      %v656 = vpop.f32.mrb[0].mxu0
      %v657 = vpop.f32.mrb[0].mxu0
      %v658 = vadd.f32 0.0, %v657
      %v659 = vpop.f32.mrb[0].mxu0
      %660 = vmatprep.mubr.bf16.mxu0 0
      %661 = vmatmul.mubr.bf16.gmra.mrb[0].mxu0 %v460
      %v662 = vpop.f32.mrb[0].mxu0
      %v663 = vadd.f32 0.0, %v662
      %v664 = vpop.f32.mrb[0].mxu0
      %v665 = vpop.f32.mrb[0].mxu0
      %v666 = vadd.f32 0.0, %v665
      %v667 = vpop.f32.mrb[0].mxu0
      %668 = vmatprep.mubr.bf16.mxu0 0
      %669 = vmatmul.mubr.bf16.gmra.mrb[0].mxu0 %v461
      %v670 = vpop.f32.mrb[0].mxu0
      %v671 = vadd.f32 0.0, %v670
      %v672 = vpop.f32.mrb[0].mxu0
      %v673 = vpop.f32.mrb[0].mxu0
      %v674 = vadd.f32 0.0, %v673
      %v675 = vpop.f32.mrb[0].mxu0
      %676 = vmatprep.mubr.bf16.mxu0 0
      %677 = vmatmul.mubr.bf16.gmra.mrb[0].mxu0 %v462
      %v678 = vpop.f32.mrb[0].mxu0
      %v679 = vadd.f32 0.0, %v678
      %v680 = vpop.f32.mrb[0].mxu0
      %v681 = vpop.f32.mrb[0].mxu0
      %v682 = vadd.f32 0.0, %v681
      %v683 = vpop.f32.mrb[0].mxu0
      %684 = vmatprep.mubr.bf16.mxu0 0
      %685 = vmatmul.mubr.bf16.gmra.mrb[0].mxu0 %v463
      %v686 = vpop.f32.mrb[0].mxu0
      %v687 = vadd.f32 0.0, %v686
      %v688 = vpop.f32.mrb[0].mxu0
      %v689 = vpop.f32.mrb[0].mxu0
      %v690 = vadd.f32 0.0, %v689
      %v691 = vpop.f32.mrb[0].mxu0
      %692 = vmatprep.mubr.bf16.mxu0 0
      %693 = vmatmul.mubr.bf16.gmra.mrb[0].mxu0 %v464
      %v694 = vpop.f32.mrb[0].mxu0
      %v695 = vadd.f32 0.0, %v694
      %v696 = vpop.f32.mrb[0].mxu0
      %v697 = vpop.f32.mrb[0].mxu0
      %v698 = vadd.f32 0.0, %v697
      %v699 = vpop.f32.mrb[0].mxu0
      %700 = vmatprep.mubr.bf16.mxu0 0
      %701 = vmatmul.mubr.bf16.gmra.mrb[0].mxu0 %v465
      %v702 = vpop.f32.mrb[0].mxu0
      %v703 = vadd.f32 0.0, %v702
      %v704 = vpop.f32.mrb[0].mxu0
      %v705 = vpop.f32.mrb[0].mxu0
      %v706 = vadd.f32 0.0, %v705
      %v707 = vpop.f32.mrb[0].mxu0
      %708 = vmatprep.mubr.bf16.mxu0 0
      %709 = vmatmul.mubr.bf16.gmra.mrb[0].mxu0 %v466
      %v710 = vpop.f32.mrb[0].mxu0
      %v711 = vadd.f32 0.0, %v710
      %v712 = vpop.f32.mrb[0].mxu0
      %v713 = vpop.f32.mrb[0].mxu0
      %v714 = vadd.f32 0.0, %v713
      %v715 = vpop.f32.mrb[0].mxu0
      %716 = vmatprep.mubr.bf16.mxu0 0
      %717 = vmatmul.mubr.bf16.gmra.mrb[0].mxu0 %v467
      %v718 = vpop.f32.mrb[0].mxu0
      %v719 = vadd.f32 0.0, %v718
      %v720 = vpop.f32.mrb[0].mxu0
      %v721 = vpop.f32.mrb[0].mxu0
      %v722 = vadd.f32 0.0, %v721
      %v723 = vpop.f32.mrb[0].mxu0
      %724 = vdwg.mxu0
      %v725 = vadd.f32 %v468, %v599
      %v726 = vadd.f32 %v469, %v602
      %v727 = vadd.f32 %v470, %v607
      %v728 = vadd.f32 %v471, %v610
      %v729 = vadd.f32 %v472, %v615
      %v730 = vadd.f32 %v473, %v618
      %v731 = vadd.f32 %v474, %v623
      %v732 = vadd.f32 %v475, %v626
      %v733 = vadd.f32 %v476, %v631
      %v734 = vadd.f32 %v477, %v634
      %v735 = vadd.f32 %v478, %v639
      %v736 = vadd.f32 %v479, %v642
      %v737 = vadd.f32 %v480, %v647
      %v738 = vadd.f32 %v481, %v650
      %v739 = vadd.f32 %v482, %v655
      %v740 = vadd.f32 %v483, %v658
      %v741 = vadd.f32 %v484, %v663
      %v742 = vadd.f32 %v485, %v666
      %v743 = vadd.f32 %v486, %v671
      %v744 = vadd.f32 %v487, %v674
      %v745 = vadd.f32 %v488, %v679
      %v746 = vadd.f32 %v489, %v682
      %v747 = vadd.f32 %v490, %v687
      %v748 = vadd.f32 %v491, %v690
      %v749 = vadd.f32 %v492, %v695
      %v750 = vadd.f32 %v493, %v698
      %v751 = vadd.f32 %v494, %v703
      %v752 = vadd.f32 %v495, %v706
      %v753 = vadd.f32 %v496, %v711
      %v754 = vadd.f32 %v497, %v714
      %v755 = vadd.f32 %v498, %v719
      %v756 = vadd.f32 %v499, %v722
      %757 = vst [vmem:[#allocation3] sm:$0xff] %v725
      %758 = vst [vmem:[#allocation3 + $0x8] sm:$0xff] %v726
      %759 = vst [vmem:[#allocation3 + $0x10] sm:$0xff] %v727
      %760 = vst [vmem:[#allocation3 + $0x18] sm:$0xff] %v728
      %761 = vst [vmem:[#allocation3 + $0x20] sm:$0xff] %v729
      %762 = vst [vmem:[#allocation3 + $0x28] sm:$0xff] %v730
      %763 = vst [vmem:[#allocation3 + $0x30] sm:$0xff] %v731
      %764 = vst [vmem:[#allocation3 + $0x38] sm:$0xff] %v732
      %765 = vst [vmem:[#allocation3 + $0x40] sm:$0xff] %v733
      %766 = vst [vmem:[#allocation3 + $0x48] sm:$0xff] %v734
      %767 = vst [vmem:[#allocation3 + $0x50] sm:$0xff] %v735
      %768 = vst [vmem:[#allocation3 + $0x58] sm:$0xff] %v736
      %769 = vst [vmem:[#allocation3 + $0x60] sm:$0xff] %v737
      %770 = vst [vmem:[#allocation3 + $0x68] sm:$0xff] %v738
      %771 = vst [vmem:[#allocation3 + $0x70] sm:$0xff] %v739
      %772 = vst [vmem:[#allocation3 + $0x78] sm:$0xff] %v740
      %773 = vst [vmem:[#allocation3 + $0x80] sm:$0xff] %v741
      %774 = vst [vmem:[#allocation3 + $0x88] sm:$0xff] %v742
      %775 = vst [vmem:[#allocation3 + $0x90] sm:$0xff] %v743
      %776 = vst [vmem:[#allocation3 + $0x98] sm:$0xff] %v744
      %777 = vst [vmem:[#allocation3 + $0xa0] sm:$0xff] %v745
      %778 = vst [vmem:[#allocation3 + $0xa8] sm:$0xff] %v746
      %779 = vst [vmem:[#allocation3 + $0xb0] sm:$0xff] %v747
      %780 = vst [vmem:[#allocation3 + $0xb8] sm:$0xff] %v748
      %781 = vst [vmem:[#allocation3 + $0xc0] sm:$0xff] %v749
      %782 = vst [vmem:[#allocation3 + $0xc8] sm:$0xff] %v750
      %783 = vst [vmem:[#allocation3 + $0xd0] sm:$0xff] %v751
      %784 = vst [vmem:[#allocation3 + $0xd8] sm:$0xff] %v752
      %785 = vst [vmem:[#allocation3 + $0xe0] sm:$0xff] %v753
      %786 = vst [vmem:[#allocation3 + $0xe8] sm:$0xff] %v754
      %787 = vst [vmem:[#allocation3 + $0xf0] sm:$0xff] %v755
      %788 = vst [vmem:[#allocation3 + $0xf8] sm:$0xff] %v756
      %v789 = vld [vmem:[%s419 + $0x1] sm:$0xff]
      %v790 = vld [vmem:[%s419 + $0x9] sm:$0xff]
      %v791 = vld [vmem:[%s419 + $0x19] sm:$0xff]
      %v792 = vld [vmem:[%s419 + $0x21] sm:$0xff]
      %v793 = vld [vmem:[%s419 + $0x31] sm:$0xff]
      %v794 = vld [vmem:[%s419 + $0x39] sm:$0xff]
      %v795 = vld [vmem:[%s419 + $0x49] sm:$0xff]
      %v796 = vld [vmem:[%s419 + $0x51] sm:$0xff]
      %v797 = vld [vmem:[%s419 + $0x61] sm:$0xff]
      %v798 = vld [vmem:[%s419 + $0x69] sm:$0xff]
      %v799 = vld [vmem:[%s419 + $0x79] sm:$0xff]
      %v800 = vld [vmem:[%s419 + $0x81] sm:$0xff]
      %v801 = vld [vmem:[%s419 + $0x91] sm:$0xff]
      %v802 = vld [vmem:[%s419 + $0x99] sm:$0xff]
      %v803 = vld [vmem:[%s419 + $0xa9] sm:$0xff]
      %v804 = vld [vmem:[%s419 + $0xb1] sm:$0xff]
      %v805 = vld [vmem:[%s419 + $0xc1] sm:$0xff]
      %v806 = vld [vmem:[%s419 + $0xc9] sm:$0xff]
      %v807 = vld [vmem:[%s419 + $0xd9] sm:$0xff]
      %v808 = vld [vmem:[%s419 + $0xe1] sm:$0xff]
      %v809 = vld [vmem:[%s419 + $0xf1] sm:$0xff]
      %v810 = vld [vmem:[%s419 + $0xf9] sm:$0xff]
      %v811 = vld [vmem:[%s419 + $0x109] sm:$0xff]
      %v812 = vld [vmem:[%s419 + $0x111] sm:$0xff]
      %v813 = vld [vmem:[%s419 + $0x121] sm:$0xff]
      %v814 = vld [vmem:[%s419 + $0x129] sm:$0xff]
      %v815 = vld [vmem:[%s419 + $0x139] sm:$0xff]
      %v816 = vld [vmem:[%s419 + $0x141] sm:$0xff]
      %v817 = vld [vmem:[%s419 + $0x151] sm:$0xff]
      %v818 = vld [vmem:[%s419 + $0x159] sm:$0xff]
      %v819 = vld [vmem:[%s419 + $0x169] sm:$0xff]
      %v820 = vld [vmem:[%s419 + $0x171] sm:$0xff]
      %v821 = vpack.c.bf16 %v790, %v789
      %v822 = vpack.c.bf16 %v792, %v791
      %v823 = vpack.c.bf16 %v794, %v793
      %v824 = vpack.c.bf16 %v796, %v795
      %v825 = vpack.c.bf16 %v798, %v797
      %v826 = vpack.c.bf16 %v800, %v799
      %v827 = vpack.c.bf16 %v802, %v801
      %v828 = vpack.c.bf16 %v804, %v803
      %v829 = vpack.c.bf16 %v806, %v805
      %v830 = vpack.c.bf16 %v808, %v807
      %v831 = vpack.c.bf16 %v810, %v809
      %v832 = vpack.c.bf16 %v812, %v811
      %v833 = vpack.c.bf16 %v814, %v813
      %v834 = vpack.c.bf16 %v816, %v815
      %v835 = vpack.c.bf16 %v818, %v817
      %v836 = vpack.c.bf16 %v820, %v819
      %v837 = vld [vmem:[#allocation3] sm:$0xff]
      %v838 = vld [vmem:[#allocation3 + $0x8] sm:$0xff]
      %v839 = vld [vmem:[#allocation3 + $0x10] sm:$0xff]
      %v840 = vld [vmem:[#allocation3 + $0x18] sm:$0xff]
      %v841 = vld [vmem:[#allocation3 + $0x20] sm:$0xff]
      %v842 = vld [vmem:[#allocation3 + $0x28] sm:$0xff]
      %v843 = vld [vmem:[#allocation3 + $0x30] sm:$0xff]
      %v844 = vld [vmem:[#allocation3 + $0x38] sm:$0xff]
      %v845 = vld [vmem:[#allocation3 + $0x40] sm:$0xff]
      %v846 = vld [vmem:[#allocation3 + $0x48] sm:$0xff]
      %v847 = vld [vmem:[#allocation3 + $0x50] sm:$0xff]
      %v848 = vld [vmem:[#allocation3 + $0x58] sm:$0xff]
      %v849 = vld [vmem:[#allocation3 + $0x60] sm:$0xff]
      %v850 = vld [vmem:[#allocation3 + $0x68] sm:$0xff]
      %v851 = vld [vmem:[#allocation3 + $0x70] sm:$0xff]
      %v852 = vld [vmem:[#allocation3 + $0x78] sm:$0xff]
      %v853 = vld [vmem:[#allocation3 + $0x80] sm:$0xff]
      %v854 = vld [vmem:[#allocation3 + $0x88] sm:$0xff]
      %v855 = vld [vmem:[#allocation3 + $0x90] sm:$0xff]
      %v856 = vld [vmem:[#allocation3 + $0x98] sm:$0xff]
      %v857 = vld [vmem:[#allocation3 + $0xa0] sm:$0xff]
      %v858 = vld [vmem:[#allocation3 + $0xa8] sm:$0xff]
      %v859 = vld [vmem:[#allocation3 + $0xb0] sm:$0xff]
      %v860 = vld [vmem:[#allocation3 + $0xb8] sm:$0xff]
      %v861 = vld [vmem:[#allocation3 + $0xc0] sm:$0xff]
      %v862 = vld [vmem:[#allocation3 + $0xc8] sm:$0xff]
      %v863 = vld [vmem:[#allocation3 + $0xd0] sm:$0xff]
      %v864 = vld [vmem:[#allocation3 + $0xd8] sm:$0xff]
      %v865 = vld [vmem:[#allocation3 + $0xe0] sm:$0xff]
      %v866 = vld [vmem:[#allocation3 + $0xe8] sm:$0xff]
      %v867 = vld [vmem:[#allocation3 + $0xf0] sm:$0xff]
      %v868 = vld [vmem:[#allocation3 + $0xf8] sm:$0xff]
      %s869 = scalar_lea.vmem %s1, 64
      %v870 = vld [vmem:[%s869] sm:$0xf]
      %v871 = vld [vmem:[%s869 + $0x4] sm:$0xf]
      %v872 = vld [vmem:[%s869 + $0x8] sm:$0xf]
      %v873 = vld [vmem:[%s869 + $0xc] sm:$0xf]
      %v874 = vld [vmem:[%s869 + $0x10] sm:$0xf]
      %v875 = vld [vmem:[%s869 + $0x14] sm:$0xf]
      %v876 = vld [vmem:[%s869 + $0x18] sm:$0xf]
      %v877 = vld [vmem:[%s869 + $0x1c] sm:$0xf]
      %v878 = vld [vmem:[%s869 + $0x20] sm:$0xf]
      %v879 = vld [vmem:[%s869 + $0x24] sm:$0xf]
      %v880 = vld [vmem:[%s869 + $0x28] sm:$0xf]
      %v881 = vld [vmem:[%s869 + $0x2c] sm:$0xf]
      %v882 = vld [vmem:[%s869 + $0x30] sm:$0xf]
      %v883 = vld [vmem:[%s869 + $0x34] sm:$0xf]
      %v884 = vld [vmem:[%s869 + $0x38] sm:$0xf]
      %v885 = vld [vmem:[%s869 + $0x3c] sm:$0xf]
      %v902 = vunpack.c.l.b16 %v870
      %v903 = vunpack.c.l.b16 %v871
      %v904 = vunpack.c.l.b16 %v872
      %v905 = vunpack.c.l.b16 %v873
      %v906 = vunpack.c.l.b16 %v874
      %v907 = vunpack.c.l.b16 %v875
      %v908 = vunpack.c.l.b16 %v876
      %v909 = vunpack.c.l.b16 %v877
      %v910 = vunpack.c.l.b16 %v878
      %v911 = vunpack.c.l.b16 %v879
      %v912 = vunpack.c.l.b16 %v880
      %v913 = vunpack.c.l.b16 %v881
      %v914 = vunpack.c.l.b16 %v882
      %v915 = vunpack.c.l.b16 %v883
      %v916 = vunpack.c.l.b16 %v884
      %v917 = vunpack.c.l.b16 %v885
      %v918 = vpack.c.b16 %v903, %v902
      %v919 = vpack.c.b16 %v905, %v904
      %v920 = vpack.c.b16 %v907, %v906
      %v921 = vpack.c.b16 %v909, %v908
      %v922 = vpack.c.b16 %v911, %v910
      %v923 = vpack.c.b16 %v913, %v912
      %v924 = vpack.c.b16 %v915, %v914
      %v925 = vpack.c.b16 %v917, %v916
      %934 = vmatprep.subr.bf16.mxu0 0
      %935 = vmatpush1.bf16.msra.mxu0 %v918
      %936 = vmatprep.subr.bf16.mxu0 0
      %937 = vmatpush1.bf16.msra.mxu0 %v919
      %938 = vmatprep.subr.bf16.mxu0 0
      %939 = vmatpush1.bf16.msra.mxu0 %v920
      %940 = vmatprep.subr.bf16.mxu0 0
      %941 = vmatpush1.bf16.msra.mxu0 %v921
      %942 = vmatprep.subr.bf16.mxu0 0
      %943 = vmatpush1.bf16.msra.mxu0 %v922
      %944 = vmatprep.subr.bf16.mxu0 0
      %945 = vmatpush1.bf16.msra.mxu0 %v923
      %946 = vmatprep.subr.bf16.mxu0 0
      %947 = vmatpush1.bf16.msra.mxu0 %v924
      %948 = vmatprep.subr.bf16.mxu0 0
      %949 = vmatpush1.bf16.msra.mxu0 %v925
      %950 = vmatprep.subr.bf16.mxu0 0
      %951 = vmatpush1.bf16.msra.mxu0 0
      %952 = vmatprep.subr.bf16.mxu0 0
      %953 = vmatpush1.bf16.msra.mxu0 0
      %954 = vmatprep.subr.bf16.mxu0 0
      %955 = vmatpush1.bf16.msra.mxu0 0
      %956 = vmatprep.subr.bf16.mxu0 0
      %957 = vmatpush1.bf16.msra.mxu0 0
      %958 = vmatprep.subr.bf16.mxu0 0
      %959 = vmatpush1.bf16.msra.mxu0 0
      %960 = vmatprep.subr.bf16.mxu0 0
      %961 = vmatpush1.bf16.msra.mxu0 0
      %962 = vmatprep.subr.bf16.mxu0 0
      %963 = vmatpush1.bf16.msra.mxu0 0
      %964 = vmatprep.subr.bf16.mxu0 0
      %965 = vmatpush1.bf16.msra.mxu0 0
      %966 = vmatprep.mubr.bf16.mxu0 0
      %967 = vmatmul.mubr.bf16.gmra.mrb[0].mxu0 %v821
      %v968 = vpop.f32.mrb[0].mxu0
      %v969 = vadd.f32 0.0, %v968
      %v970 = vpop.f32.mrb[0].mxu0
      %v971 = vpop.f32.mrb[0].mxu0
      %v972 = vadd.f32 0.0, %v971
      %v973 = vpop.f32.mrb[0].mxu0
      %974 = vmatprep.mubr.bf16.mxu0 0
      %975 = vmatmul.mubr.bf16.gmra.mrb[0].mxu0 %v822
      %v976 = vpop.f32.mrb[0].mxu0
      %v977 = vadd.f32 0.0, %v976
      %v978 = vpop.f32.mrb[0].mxu0
      %v979 = vpop.f32.mrb[0].mxu0
      %v980 = vadd.f32 0.0, %v979
      %v981 = vpop.f32.mrb[0].mxu0
      %982 = vmatprep.mubr.bf16.mxu0 0
      %983 = vmatmul.mubr.bf16.gmra.mrb[0].mxu0 %v823
      %v984 = vpop.f32.mrb[0].mxu0
      %v985 = vadd.f32 0.0, %v984
      %v986 = vpop.f32.mrb[0].mxu0
      %v987 = vpop.f32.mrb[0].mxu0
      %v988 = vadd.f32 0.0, %v987
      %v989 = vpop.f32.mrb[0].mxu0
      %990 = vmatprep.mubr.bf16.mxu0 0
      %991 = vmatmul.mubr.bf16.gmra.mrb[0].mxu0 %v824
      %v992 = vpop.f32.mrb[0].mxu0
      %v993 = vadd.f32 0.0, %v992
      %v994 = vpop.f32.mrb[0].mxu0
      %v995 = vpop.f32.mrb[0].mxu0
      %v996 = vadd.f32 0.0, %v995
      %v997 = vpop.f32.mrb[0].mxu0
      %998 = vmatprep.mubr.bf16.mxu0 0
      %999 = vmatmul.mubr.bf16.gmra.mrb[0].mxu0 %v825
      %v1000 = vpop.f32.mrb[0].mxu0
      %v1001 = vadd.f32 0.0, %v1000
      %v1002 = vpop.f32.mrb[0].mxu0
      %v1003 = vpop.f32.mrb[0].mxu0
      %v1004 = vadd.f32 0.0, %v1003
      %v1005 = vpop.f32.mrb[0].mxu0
      %1006 = vmatprep.mubr.bf16.mxu0 0
      %1007 = vmatmul.mubr.bf16.gmra.mrb[0].mxu0 %v826
      %v1008 = vpop.f32.mrb[0].mxu0
      %v1009 = vadd.f32 0.0, %v1008
      %v1010 = vpop.f32.mrb[0].mxu0
      %v1011 = vpop.f32.mrb[0].mxu0
      %v1012 = vadd.f32 0.0, %v1011
      %v1013 = vpop.f32.mrb[0].mxu0
      %1014 = vmatprep.mubr.bf16.mxu0 0
      %1015 = vmatmul.mubr.bf16.gmra.mrb[0].mxu0 %v827
      %v1016 = vpop.f32.mrb[0].mxu0
      %v1017 = vadd.f32 0.0, %v1016
      %v1018 = vpop.f32.mrb[0].mxu0
      %v1019 = vpop.f32.mrb[0].mxu0
      %v1020 = vadd.f32 0.0, %v1019
      %v1021 = vpop.f32.mrb[0].mxu0
      %1022 = vmatprep.mubr.bf16.mxu0 0
      %1023 = vmatmul.mubr.bf16.gmra.mrb[0].mxu0 %v828
      %v1024 = vpop.f32.mrb[0].mxu0
      %v1025 = vadd.f32 0.0, %v1024
      %v1026 = vpop.f32.mrb[0].mxu0
      %v1027 = vpop.f32.mrb[0].mxu0
      %v1028 = vadd.f32 0.0, %v1027
      %v1029 = vpop.f32.mrb[0].mxu0
      %1030 = vmatprep.mubr.bf16.mxu0 0
      %1031 = vmatmul.mubr.bf16.gmra.mrb[0].mxu0 %v829
      %v1032 = vpop.f32.mrb[0].mxu0
      %v1033 = vadd.f32 0.0, %v1032
      %v1034 = vpop.f32.mrb[0].mxu0
      %v1035 = vpop.f32.mrb[0].mxu0
      %v1036 = vadd.f32 0.0, %v1035
      %v1037 = vpop.f32.mrb[0].mxu0
      %1038 = vmatprep.mubr.bf16.mxu0 0
      %1039 = vmatmul.mubr.bf16.gmra.mrb[0].mxu0 %v830
      %v1040 = vpop.f32.mrb[0].mxu0
      %v1041 = vadd.f32 0.0, %v1040
      %v1042 = vpop.f32.mrb[0].mxu0
      %v1043 = vpop.f32.mrb[0].mxu0
      %v1044 = vadd.f32 0.0, %v1043
      %v1045 = vpop.f32.mrb[0].mxu0
      %1046 = vmatprep.mubr.bf16.mxu0 0
      %1047 = vmatmul.mubr.bf16.gmra.mrb[0].mxu0 %v831
      %v1048 = vpop.f32.mrb[0].mxu0
      %v1049 = vadd.f32 0.0, %v1048
      %v1050 = vpop.f32.mrb[0].mxu0
      %v1051 = vpop.f32.mrb[0].mxu0
      %v1052 = vadd.f32 0.0, %v1051
      %v1053 = vpop.f32.mrb[0].mxu0
      %1054 = vmatprep.mubr.bf16.mxu0 0
      %1055 = vmatmul.mubr.bf16.gmra.mrb[0].mxu0 %v832
      %v1056 = vpop.f32.mrb[0].mxu0
      %v1057 = vadd.f32 0.0, %v1056
      %v1058 = vpop.f32.mrb[0].mxu0
      %v1059 = vpop.f32.mrb[0].mxu0
      %v1060 = vadd.f32 0.0, %v1059
      %v1061 = vpop.f32.mrb[0].mxu0
      %1062 = vmatprep.mubr.bf16.mxu0 0
      %1063 = vmatmul.mubr.bf16.gmra.mrb[0].mxu0 %v833
      %v1064 = vpop.f32.mrb[0].mxu0
      %v1065 = vadd.f32 0.0, %v1064
      %v1066 = vpop.f32.mrb[0].mxu0
      %v1067 = vpop.f32.mrb[0].mxu0
      %v1068 = vadd.f32 0.0, %v1067
      %v1069 = vpop.f32.mrb[0].mxu0
      %1070 = vmatprep.mubr.bf16.mxu0 0
      %1071 = vmatmul.mubr.bf16.gmra.mrb[0].mxu0 %v834
      %v1072 = vpop.f32.mrb[0].mxu0
      %v1073 = vadd.f32 0.0, %v1072
      %v1074 = vpop.f32.mrb[0].mxu0
      %v1075 = vpop.f32.mrb[0].mxu0
      %v1076 = vadd.f32 0.0, %v1075
      %v1077 = vpop.f32.mrb[0].mxu0
      %1078 = vmatprep.mubr.bf16.mxu0 0
      %1079 = vmatmul.mubr.bf16.gmra.mrb[0].mxu0 %v835
      %v1080 = vpop.f32.mrb[0].mxu0
      %v1081 = vadd.f32 0.0, %v1080
      %v1082 = vpop.f32.mrb[0].mxu0
      %v1083 = vpop.f32.mrb[0].mxu0
      %v1084 = vadd.f32 0.0, %v1083
      %v1085 = vpop.f32.mrb[0].mxu0
      %1086 = vmatprep.mubr.bf16.mxu0 0
      %1087 = vmatmul.mubr.bf16.gmra.mrb[0].mxu0 %v836
      %v1088 = vpop.f32.mrb[0].mxu0
      %v1089 = vadd.f32 0.0, %v1088
      %v1090 = vpop.f32.mrb[0].mxu0
      %v1091 = vpop.f32.mrb[0].mxu0
      %v1092 = vadd.f32 0.0, %v1091
      %v1093 = vpop.f32.mrb[0].mxu0
      %1094 = vdwg.mxu0
      %v1095 = vadd.f32 %v837, %v969
      %v1096 = vadd.f32 %v838, %v972
      %v1097 = vadd.f32 %v839, %v977
      %v1098 = vadd.f32 %v840, %v980
      %v1099 = vadd.f32 %v841, %v985
      %v1100 = vadd.f32 %v842, %v988
      %v1101 = vadd.f32 %v843, %v993
      %v1102 = vadd.f32 %v844, %v996
      %v1103 = vadd.f32 %v845, %v1001
      %v1104 = vadd.f32 %v846, %v1004
      %v1105 = vadd.f32 %v847, %v1009
      %v1106 = vadd.f32 %v848, %v1012
      %v1107 = vadd.f32 %v849, %v1017
      %v1108 = vadd.f32 %v850, %v1020
      %v1109 = vadd.f32 %v851, %v1025
      %v1110 = vadd.f32 %v852, %v1028
      %v1111 = vadd.f32 %v853, %v1033
      %v1112 = vadd.f32 %v854, %v1036
      %v1113 = vadd.f32 %v855, %v1041
      %v1114 = vadd.f32 %v856, %v1044
      %v1115 = vadd.f32 %v857, %v1049
      %v1116 = vadd.f32 %v858, %v1052
      %v1117 = vadd.f32 %v859, %v1057
      %v1118 = vadd.f32 %v860, %v1060
      %v1119 = vadd.f32 %v861, %v1065
      %v1120 = vadd.f32 %v862, %v1068
      %v1121 = vadd.f32 %v863, %v1073
      %v1122 = vadd.f32 %v864, %v1076
      %v1123 = vadd.f32 %v865, %v1081
      %v1124 = vadd.f32 %v866, %v1084
      %v1125 = vadd.f32 %v867, %v1089
      %v1126 = vadd.f32 %v868, %v1092
      %1127 = vst [vmem:[#allocation3] sm:$0xff] %v1095
      %1128 = vst [vmem:[#allocation3 + $0x8] sm:$0xff] %v1096
      %1129 = vst [vmem:[#allocation3 + $0x10] sm:$0xff] %v1097
      %1130 = vst [vmem:[#allocation3 + $0x18] sm:$0xff] %v1098
      %1131 = vst [vmem:[#allocation3 + $0x20] sm:$0xff] %v1099
      %1132 = vst [vmem:[#allocation3 + $0x28] sm:$0xff] %v1100
      %1133 = vst [vmem:[#allocation3 + $0x30] sm:$0xff] %v1101
      %1134 = vst [vmem:[#allocation3 + $0x38] sm:$0xff] %v1102
      %1135 = vst [vmem:[#allocation3 + $0x40] sm:$0xff] %v1103
      %1136 = vst [vmem:[#allocation3 + $0x48] sm:$0xff] %v1104
      %1137 = vst [vmem:[#allocation3 + $0x50] sm:$0xff] %v1105
      %1138 = vst [vmem:[#allocation3 + $0x58] sm:$0xff] %v1106
      %1139 = vst [vmem:[#allocation3 + $0x60] sm:$0xff] %v1107
      %1140 = vst [vmem:[#allocation3 + $0x68] sm:$0xff] %v1108
      %1141 = vst [vmem:[#allocation3 + $0x70] sm:$0xff] %v1109
      %1142 = vst [vmem:[#allocation3 + $0x78] sm:$0xff] %v1110
      %1143 = vst [vmem:[#allocation3 + $0x80] sm:$0xff] %v1111
      %1144 = vst [vmem:[#allocation3 + $0x88] sm:$0xff] %v1112
      %1145 = vst [vmem:[#allocation3 + $0x90] sm:$0xff] %v1113
      %1146 = vst [vmem:[#allocation3 + $0x98] sm:$0xff] %v1114
      %1147 = vst [vmem:[#allocation3 + $0xa0] sm:$0xff] %v1115
      %1148 = vst [vmem:[#allocation3 + $0xa8] sm:$0xff] %v1116
      %1149 = vst [vmem:[#allocation3 + $0xb0] sm:$0xff] %v1117
      %1150 = vst [vmem:[#allocation3 + $0xb8] sm:$0xff] %v1118
      %1151 = vst [vmem:[#allocation3 + $0xc0] sm:$0xff] %v1119
      %1152 = vst [vmem:[#allocation3 + $0xc8] sm:$0xff] %v1120
      %1153 = vst [vmem:[#allocation3 + $0xd0] sm:$0xff] %v1121
      %1154 = vst [vmem:[#allocation3 + $0xd8] sm:$0xff] %v1122
      %1155 = vst [vmem:[#allocation3 + $0xe0] sm:$0xff] %v1123
      %1156 = vst [vmem:[#allocation3 + $0xe8] sm:$0xff] %v1124
      %1157 = vst [vmem:[#allocation3 + $0xf0] sm:$0xff] %v1125
      %1158 = vst [vmem:[#allocation3 + $0xf8] sm:$0xff] %v1126
      %v1159 = vld [vmem:[%s419 + $0x2] sm:$0xff]
      %v1160 = vld [vmem:[%s419 + $0xa] sm:$0xff]
      %v1161 = vld [vmem:[%s419 + $0x1a] sm:$0xff]
      %v1162 = vld [vmem:[%s419 + $0x22] sm:$0xff]
      %v1163 = vld [vmem:[%s419 + $0x32] sm:$0xff]
      %v1164 = vld [vmem:[%s419 + $0x3a] sm:$0xff]
      %v1165 = vld [vmem:[%s419 + $0x4a] sm:$0xff]
      %v1166 = vld [vmem:[%s419 + $0x52] sm:$0xff]
      %v1167 = vld [vmem:[%s419 + $0x62] sm:$0xff]
      %v1168 = vld [vmem:[%s419 + $0x6a] sm:$0xff]
      %v1169 = vld [vmem:[%s419 + $0x7a] sm:$0xff]
      %v1170 = vld [vmem:[%s419 + $0x82] sm:$0xff]
      %v1171 = vld [vmem:[%s419 + $0x92] sm:$0xff]
      %v1172 = vld [vmem:[%s419 + $0x9a] sm:$0xff]
      %v1173 = vld [vmem:[%s419 + $0xaa] sm:$0xff]
      %v1174 = vld [vmem:[%s419 + $0xb2] sm:$0xff]
      %v1175 = vld [vmem:[%s419 + $0xc2] sm:$0xff]
      %v1176 = vld [vmem:[%s419 + $0xca] sm:$0xff]
      %v1177 = vld [vmem:[%s419 + $0xda] sm:$0xff]
      %v1178 = vld [vmem:[%s419 + $0xe2] sm:$0xff]
      %v1179 = vld [vmem:[%s419 + $0xf2] sm:$0xff]
      %v1180 = vld [vmem:[%s419 + $0xfa] sm:$0xff]
      %v1181 = vld [vmem:[%s419 + $0x10a] sm:$0xff]
      %v1182 = vld [vmem:[%s419 + $0x112] sm:$0xff]
      %v1183 = vld [vmem:[%s419 + $0x122] sm:$0xff]
      %v1184 = vld [vmem:[%s419 + $0x12a] sm:$0xff]
      %v1185 = vld [vmem:[%s419 + $0x13a] sm:$0xff]
      %v1186 = vld [vmem:[%s419 + $0x142] sm:$0xff]
      %v1187 = vld [vmem:[%s419 + $0x152] sm:$0xff]
      %v1188 = vld [vmem:[%s419 + $0x15a] sm:$0xff]
      %v1189 = vld [vmem:[%s419 + $0x16a] sm:$0xff]
      %v1190 = vld [vmem:[%s419 + $0x172] sm:$0xff]
      %v1191 = vpack.c.bf16 %v1160, %v1159
      %v1192 = vpack.c.bf16 %v1162, %v1161
      %v1193 = vpack.c.bf16 %v1164, %v1163
      %v1194 = vpack.c.bf16 %v1166, %v1165
      %v1195 = vpack.c.bf16 %v1168, %v1167
      %v1196 = vpack.c.bf16 %v1170, %v1169
      %v1197 = vpack.c.bf16 %v1172, %v1171
      %v1198 = vpack.c.bf16 %v1174, %v1173
      %v1199 = vpack.c.bf16 %v1176, %v1175
      %v1200 = vpack.c.bf16 %v1178, %v1177
      %v1201 = vpack.c.bf16 %v1180, %v1179
      %v1202 = vpack.c.bf16 %v1182, %v1181
      %v1203 = vpack.c.bf16 %v1184, %v1183
      %v1204 = vpack.c.bf16 %v1186, %v1185
      %v1205 = vpack.c.bf16 %v1188, %v1187
      %v1206 = vpack.c.bf16 %v1190, %v1189
      %v1207 = vld [vmem:[#allocation3] sm:$0xff]
      %v1208 = vld [vmem:[#allocation3 + $0x8] sm:$0xff]
      %v1209 = vld [vmem:[#allocation3 + $0x10] sm:$0xff]
      %v1210 = vld [vmem:[#allocation3 + $0x18] sm:$0xff]
      %v1211 = vld [vmem:[#allocation3 + $0x20] sm:$0xff]
      %v1212 = vld [vmem:[#allocation3 + $0x28] sm:$0xff]
      %v1213 = vld [vmem:[#allocation3 + $0x30] sm:$0xff]
      %v1214 = vld [vmem:[#allocation3 + $0x38] sm:$0xff]
      %v1215 = vld [vmem:[#allocation3 + $0x40] sm:$0xff]
      %v1216 = vld [vmem:[#allocation3 + $0x48] sm:$0xff]
      %v1217 = vld [vmem:[#allocation3 + $0x50] sm:$0xff]
      %v1218 = vld [vmem:[#allocation3 + $0x58] sm:$0xff]
      %v1219 = vld [vmem:[#allocation3 + $0x60] sm:$0xff]
      %v1220 = vld [vmem:[#allocation3 + $0x68] sm:$0xff]
      %v1221 = vld [vmem:[#allocation3 + $0x70] sm:$0xff]
      %v1222 = vld [vmem:[#allocation3 + $0x78] sm:$0xff]
      %v1223 = vld [vmem:[#allocation3 + $0x80] sm:$0xff]
      %v1224 = vld [vmem:[#allocation3 + $0x88] sm:$0xff]
      %v1225 = vld [vmem:[#allocation3 + $0x90] sm:$0xff]
      %v1226 = vld [vmem:[#allocation3 + $0x98] sm:$0xff]
      %v1227 = vld [vmem:[#allocation3 + $0xa0] sm:$0xff]
      %v1228 = vld [vmem:[#allocation3 + $0xa8] sm:$0xff]
      %v1229 = vld [vmem:[#allocation3 + $0xb0] sm:$0xff]
      %v1230 = vld [vmem:[#allocation3 + $0xb8] sm:$0xff]
      %v1231 = vld [vmem:[#allocation3 + $0xc0] sm:$0xff]
      %v1232 = vld [vmem:[#allocation3 + $0xc8] sm:$0xff]
      %v1233 = vld [vmem:[#allocation3 + $0xd0] sm:$0xff]
      %v1234 = vld [vmem:[#allocation3 + $0xd8] sm:$0xff]
      %v1235 = vld [vmem:[#allocation3 + $0xe0] sm:$0xff]
      %v1236 = vld [vmem:[#allocation3 + $0xe8] sm:$0xff]
      %v1237 = vld [vmem:[#allocation3 + $0xf0] sm:$0xff]
      %v1238 = vld [vmem:[#allocation3 + $0xf8] sm:$0xff]
      %s1239 = scalar_lea.vmem %s1, 128
      %v1240 = vld [vmem:[%s1239] sm:$0xf]
      %v1241 = vld [vmem:[%s1239 + $0x4] sm:$0xf]
      %v1242 = vld [vmem:[%s1239 + $0x8] sm:$0xf]
      %v1243 = vld [vmem:[%s1239 + $0xc] sm:$0xf]
      %v1244 = vld [vmem:[%s1239 + $0x10] sm:$0xf]
      %v1245 = vld [vmem:[%s1239 + $0x14] sm:$0xf]
      %v1246 = vld [vmem:[%s1239 + $0x18] sm:$0xf]
      %v1247 = vld [vmem:[%s1239 + $0x1c] sm:$0xf]
      %v1248 = vld [vmem:[%s1239 + $0x20] sm:$0xf]
      %v1249 = vld [vmem:[%s1239 + $0x24] sm:$0xf]
      %v1250 = vld [vmem:[%s1239 + $0x28] sm:$0xf]
      %v1251 = vld [vmem:[%s1239 + $0x2c] sm:$0xf]
      %v1252 = vld [vmem:[%s1239 + $0x30] sm:$0xf]
      %v1253 = vld [vmem:[%s1239 + $0x34] sm:$0xf]
      %v1254 = vld [vmem:[%s1239 + $0x38] sm:$0xf]
      %v1255 = vld [vmem:[%s1239 + $0x3c] sm:$0xf]
      %v1272 = vunpack.c.l.b16 %v1240
      %v1273 = vunpack.c.l.b16 %v1241
      %v1274 = vunpack.c.l.b16 %v1242
      %v1275 = vunpack.c.l.b16 %v1243
      %v1276 = vunpack.c.l.b16 %v1244
      %v1277 = vunpack.c.l.b16 %v1245
      %v1278 = vunpack.c.l.b16 %v1246
      %v1279 = vunpack.c.l.b16 %v1247
      %v1280 = vunpack.c.l.b16 %v1248
      %v1281 = vunpack.c.l.b16 %v1249
      %v1282 = vunpack.c.l.b16 %v1250
      %v1283 = vunpack.c.l.b16 %v1251
      %v1284 = vunpack.c.l.b16 %v1252
      %v1285 = vunpack.c.l.b16 %v1253
      %v1286 = vunpack.c.l.b16 %v1254
      %v1287 = vunpack.c.l.b16 %v1255
      %v1288 = vpack.c.b16 %v1273, %v1272
      %v1289 = vpack.c.b16 %v1275, %v1274
      %v1290 = vpack.c.b16 %v1277, %v1276
      %v1291 = vpack.c.b16 %v1279, %v1278
      %v1292 = vpack.c.b16 %v1281, %v1280
      %v1293 = vpack.c.b16 %v1283, %v1282
      %v1294 = vpack.c.b16 %v1285, %v1284
      %v1295 = vpack.c.b16 %v1287, %v1286
      %1304 = vmatprep.subr.bf16.mxu0 0
      %1305 = vmatpush1.bf16.msra.mxu0 %v1288
      %1306 = vmatprep.subr.bf16.mxu0 0
      %1307 = vmatpush1.bf16.msra.mxu0 %v1289
      %1308 = vmatprep.subr.bf16.mxu0 0
      %1309 = vmatpush1.bf16.msra.mxu0 %v1290
      %1310 = vmatprep.subr.bf16.mxu0 0
      %1311 = vmatpush1.bf16.msra.mxu0 %v1291
      %1312 = vmatprep.subr.bf16.mxu0 0
      %1313 = vmatpush1.bf16.msra.mxu0 %v1292
      %1314 = vmatprep.subr.bf16.mxu0 0
      %1315 = vmatpush1.bf16.msra.mxu0 %v1293
      %1316 = vmatprep.subr.bf16.mxu0 0
      %1317 = vmatpush1.bf16.msra.mxu0 %v1294
      %1318 = vmatprep.subr.bf16.mxu0 0
      %1319 = vmatpush1.bf16.msra.mxu0 %v1295
      %1320 = vmatprep.subr.bf16.mxu0 0
      %1321 = vmatpush1.bf16.msra.mxu0 0
      %1322 = vmatprep.subr.bf16.mxu0 0
      %1323 = vmatpush1.bf16.msra.mxu0 0
      %1324 = vmatprep.subr.bf16.mxu0 0
      %1325 = vmatpush1.bf16.msra.mxu0 0
      %1326 = vmatprep.subr.bf16.mxu0 0
      %1327 = vmatpush1.bf16.msra.mxu0 0
      %1328 = vmatprep.subr.bf16.mxu0 0
      %1329 = vmatpush1.bf16.msra.mxu0 0
      %1330 = vmatprep.subr.bf16.mxu0 0
      %1331 = vmatpush1.bf16.msra.mxu0 0
      %1332 = vmatprep.subr.bf16.mxu0 0
      %1333 = vmatpush1.bf16.msra.mxu0 0
      %1334 = vmatprep.subr.bf16.mxu0 0
      %1335 = vmatpush1.bf16.msra.mxu0 0
      %1336 = vmatprep.mubr.bf16.mxu0 0
      %1337 = vmatmul.mubr.bf16.gmra.mrb[0].mxu0 %v1191
      %v1338 = vpop.f32.mrb[0].mxu0
      %v1339 = vadd.f32 0.0, %v1338
      %v1340 = vpop.f32.mrb[0].mxu0
      %v1341 = vpop.f32.mrb[0].mxu0
      %v1342 = vadd.f32 0.0, %v1341
      %v1343 = vpop.f32.mrb[0].mxu0
      %1344 = vmatprep.mubr.bf16.mxu0 0
      %1345 = vmatmul.mubr.bf16.gmra.mrb[0].mxu0 %v1192
      %v1346 = vpop.f32.mrb[0].mxu0
      %v1347 = vadd.f32 0.0, %v1346
      %v1348 = vpop.f32.mrb[0].mxu0
      %v1349 = vpop.f32.mrb[0].mxu0
      %v1350 = vadd.f32 0.0, %v1349
      %v1351 = vpop.f32.mrb[0].mxu0
      %1352 = vmatprep.mubr.bf16.mxu0 0
      %1353 = vmatmul.mubr.bf16.gmra.mrb[0].mxu0 %v1193
      %v1354 = vpop.f32.mrb[0].mxu0
      %v1355 = vadd.f32 0.0, %v1354
      %v1356 = vpop.f32.mrb[0].mxu0
      %v1357 = vpop.f32.mrb[0].mxu0
      %v1358 = vadd.f32 0.0, %v1357
      %v1359 = vpop.f32.mrb[0].mxu0
      %1360 = vmatprep.mubr.bf16.mxu0 0
      %1361 = vmatmul.mubr.bf16.gmra.mrb[0].mxu0 %v1194
      %v1362 = vpop.f32.mrb[0].mxu0
      %v1363 = vadd.f32 0.0, %v1362
      %v1364 = vpop.f32.mrb[0].mxu0
      %v1365 = vpop.f32.mrb[0].mxu0
      %v1366 = vadd.f32 0.0, %v1365
      %v1367 = vpop.f32.mrb[0].mxu0
      %1368 = vmatprep.mubr.bf16.mxu0 0
      %1369 = vmatmul.mubr.bf16.gmra.mrb[0].mxu0 %v1195
      %v1370 = vpop.f32.mrb[0].mxu0
      %v1371 = vadd.f32 0.0, %v1370
      %v1372 = vpop.f32.mrb[0].mxu0
      %v1373 = vpop.f32.mrb[0].mxu0
      %v1374 = vadd.f32 0.0, %v1373
      %v1375 = vpop.f32.mrb[0].mxu0
      %1376 = vmatprep.mubr.bf16.mxu0 0
      %1377 = vmatmul.mubr.bf16.gmra.mrb[0].mxu0 %v1196
      %v1378 = vpop.f32.mrb[0].mxu0
      %v1379 = vadd.f32 0.0, %v1378
      %v1380 = vpop.f32.mrb[0].mxu0
      %v1381 = vpop.f32.mrb[0].mxu0
      %v1382 = vadd.f32 0.0, %v1381
      %v1383 = vpop.f32.mrb[0].mxu0
      %1384 = vmatprep.mubr.bf16.mxu0 0
      %1385 = vmatmul.mubr.bf16.gmra.mrb[0].mxu0 %v1197
      %v1386 = vpop.f32.mrb[0].mxu0
      %v1387 = vadd.f32 0.0, %v1386
      %v1388 = vpop.f32.mrb[0].mxu0
      %v1389 = vpop.f32.mrb[0].mxu0
      %v1390 = vadd.f32 0.0, %v1389
      %v1391 = vpop.f32.mrb[0].mxu0
      %1392 = vmatprep.mubr.bf16.mxu0 0
      %1393 = vmatmul.mubr.bf16.gmra.mrb[0].mxu0 %v1198
      %v1394 = vpop.f32.mrb[0].mxu0
      %v1395 = vadd.f32 0.0, %v1394
      %v1396 = vpop.f32.mrb[0].mxu0
      %v1397 = vpop.f32.mrb[0].mxu0
      %v1398 = vadd.f32 0.0, %v1397
      %v1399 = vpop.f32.mrb[0].mxu0
      %1400 = vmatprep.mubr.bf16.mxu0 0
      %1401 = vmatmul.mubr.bf16.gmra.mrb[0].mxu0 %v1199
      %v1402 = vpop.f32.mrb[0].mxu0
      %v1403 = vadd.f32 0.0, %v1402
      %v1404 = vpop.f32.mrb[0].mxu0
      %v1405 = vpop.f32.mrb[0].mxu0
      %v1406 = vadd.f32 0.0, %v1405
      %v1407 = vpop.f32.mrb[0].mxu0
      %1408 = vmatprep.mubr.bf16.mxu0 0
      %1409 = vmatmul.mubr.bf16.gmra.mrb[0].mxu0 %v1200
      %v1410 = vpop.f32.mrb[0].mxu0
      %v1411 = vadd.f32 0.0, %v1410
      %v1412 = vpop.f32.mrb[0].mxu0
      %v1413 = vpop.f32.mrb[0].mxu0
      %v1414 = vadd.f32 0.0, %v1413
      %v1415 = vpop.f32.mrb[0].mxu0
      %1416 = vmatprep.mubr.bf16.mxu0 0
      %1417 = vmatmul.mubr.bf16.gmra.mrb[0].mxu0 %v1201
      %v1418 = vpop.f32.mrb[0].mxu0
      %v1419 = vadd.f32 0.0, %v1418
      %v1420 = vpop.f32.mrb[0].mxu0
      %v1421 = vpop.f32.mrb[0].mxu0
      %v1422 = vadd.f32 0.0, %v1421
      %v1423 = vpop.f32.mrb[0].mxu0
      %1424 = vmatprep.mubr.bf16.mxu0 0
      %1425 = vmatmul.mubr.bf16.gmra.mrb[0].mxu0 %v1202
      %v1426 = vpop.f32.mrb[0].mxu0
      %v1427 = vadd.f32 0.0, %v1426
      %v1428 = vpop.f32.mrb[0].mxu0
      %v1429 = vpop.f32.mrb[0].mxu0
      %v1430 = vadd.f32 0.0, %v1429
      %v1431 = vpop.f32.mrb[0].mxu0
      %1432 = vmatprep.mubr.bf16.mxu0 0
      %1433 = vmatmul.mubr.bf16.gmra.mrb[0].mxu0 %v1203
      %v1434 = vpop.f32.mrb[0].mxu0
      %v1435 = vadd.f32 0.0, %v1434
      %v1436 = vpop.f32.mrb[0].mxu0
      %v1437 = vpop.f32.mrb[0].mxu0
      %v1438 = vadd.f32 0.0, %v1437
      %v1439 = vpop.f32.mrb[0].mxu0
      %1440 = vmatprep.mubr.bf16.mxu0 0
      %1441 = vmatmul.mubr.bf16.gmra.mrb[0].mxu0 %v1204
      %v1442 = vpop.f32.mrb[0].mxu0
      %v1443 = vadd.f32 0.0, %v1442
      %v1444 = vpop.f32.mrb[0].mxu0
      %v1445 = vpop.f32.mrb[0].mxu0
      %v1446 = vadd.f32 0.0, %v1445
      %v1447 = vpop.f32.mrb[0].mxu0
      %1448 = vmatprep.mubr.bf16.mxu0 0
      %1449 = vmatmul.mubr.bf16.gmra.mrb[0].mxu0 %v1205
      %v1450 = vpop.f32.mrb[0].mxu0
      %v1451 = vadd.f32 0.0, %v1450
      %v1452 = vpop.f32.mrb[0].mxu0
      %v1453 = vpop.f32.mrb[0].mxu0
      %v1454 = vadd.f32 0.0, %v1453
      %v1455 = vpop.f32.mrb[0].mxu0
      %1456 = vmatprep.mubr.bf16.mxu0 0
      %1457 = vmatmul.mubr.bf16.gmra.mrb[0].mxu0 %v1206
      %v1458 = vpop.f32.mrb[0].mxu0
      %v1459 = vadd.f32 0.0, %v1458
      %v1460 = vpop.f32.mrb[0].mxu0
      %v1461 = vpop.f32.mrb[0].mxu0
      %v1462 = vadd.f32 0.0, %v1461
      %v1463 = vpop.f32.mrb[0].mxu0
      %1464 = vdwg.mxu0
      %v1465 = vadd.f32 %v1207, %v1339
      %v1466 = vadd.f32 %v1208, %v1342
      %v1467 = vadd.f32 %v1209, %v1347
      %v1468 = vadd.f32 %v1210, %v1350
      %v1469 = vadd.f32 %v1211, %v1355
      %v1470 = vadd.f32 %v1212, %v1358
      %v1471 = vadd.f32 %v1213, %v1363
      %v1472 = vadd.f32 %v1214, %v1366
      %v1473 = vadd.f32 %v1215, %v1371
      %v1474 = vadd.f32 %v1216, %v1374
      %v1475 = vadd.f32 %v1217, %v1379
      %v1476 = vadd.f32 %v1218, %v1382
      %v1477 = vadd.f32 %v1219, %v1387
      %v1478 = vadd.f32 %v1220, %v1390
      %v1479 = vadd.f32 %v1221, %v1395
      %v1480 = vadd.f32 %v1222, %v1398
      %v1481 = vadd.f32 %v1223, %v1403
      %v1482 = vadd.f32 %v1224, %v1406
      %v1483 = vadd.f32 %v1225, %v1411
      %v1484 = vadd.f32 %v1226, %v1414
      %v1485 = vadd.f32 %v1227, %v1419
      %v1486 = vadd.f32 %v1228, %v1422
      %v1487 = vadd.f32 %v1229, %v1427
      %v1488 = vadd.f32 %v1230, %v1430
      %v1489 = vadd.f32 %v1231, %v1435
      %v1490 = vadd.f32 %v1232, %v1438
      %v1491 = vadd.f32 %v1233, %v1443
      %v1492 = vadd.f32 %v1234, %v1446
      %v1493 = vadd.f32 %v1235, %v1451
      %v1494 = vadd.f32 %v1236, %v1454
      %v1495 = vadd.f32 %v1237, %v1459
      %v1496 = vadd.f32 %v1238, %v1462
      %1497 = vst [vmem:[#allocation3] sm:$0xff] %v1465
      %1498 = vst [vmem:[#allocation3 + $0x8] sm:$0xff] %v1466
      %1499 = vst [vmem:[#allocation3 + $0x10] sm:$0xff] %v1467
      %1500 = vst [vmem:[#allocation3 + $0x18] sm:$0xff] %v1468
      %1501 = vst [vmem:[#allocation3 + $0x20] sm:$0xff] %v1469
      %1502 = vst [vmem:[#allocation3 + $0x28] sm:$0xff] %v1470
      %1503 = vst [vmem:[#allocation3 + $0x30] sm:$0xff] %v1471
      %1504 = vst [vmem:[#allocation3 + $0x38] sm:$0xff] %v1472
      %1505 = vst [vmem:[#allocation3 + $0x40] sm:$0xff] %v1473
      %1506 = vst [vmem:[#allocation3 + $0x48] sm:$0xff] %v1474
      %1507 = vst [vmem:[#allocation3 + $0x50] sm:$0xff] %v1475
      %1508 = vst [vmem:[#allocation3 + $0x58] sm:$0xff] %v1476
      %1509 = vst [vmem:[#allocation3 + $0x60] sm:$0xff] %v1477
      %1510 = vst [vmem:[#allocation3 + $0x68] sm:$0xff] %v1478
      %1511 = vst [vmem:[#allocation3 + $0x70] sm:$0xff] %v1479
      %1512 = vst [vmem:[#allocation3 + $0x78] sm:$0xff] %v1480
      %1513 = vst [vmem:[#allocation3 + $0x80] sm:$0xff] %v1481
      %1514 = vst [vmem:[#allocation3 + $0x88] sm:$0xff] %v1482
      %1515 = vst [vmem:[#allocation3 + $0x90] sm:$0xff] %v1483
      %1516 = vst [vmem:[#allocation3 + $0x98] sm:$0xff] %v1484
      %1517 = vst [vmem:[#allocation3 + $0xa0] sm:$0xff] %v1485
      %1518 = vst [vmem:[#allocation3 + $0xa8] sm:$0xff] %v1486
      %1519 = vst [vmem:[#allocation3 + $0xb0] sm:$0xff] %v1487
      %1520 = vst [vmem:[#allocation3 + $0xb8] sm:$0xff] %v1488
      %1521 = vst [vmem:[#allocation3 + $0xc0] sm:$0xff] %v1489
      %1522 = vst [vmem:[#allocation3 + $0xc8] sm:$0xff] %v1490
      %1523 = vst [vmem:[#allocation3 + $0xd0] sm:$0xff] %v1491
      %1524 = vst [vmem:[#allocation3 + $0xd8] sm:$0xff] %v1492
      %1525 = vst [vmem:[#allocation3 + $0xe0] sm:$0xff] %v1493
      %1526 = vst [vmem:[#allocation3 + $0xe8] sm:$0xff] %v1494
      %1527 = vst [vmem:[#allocation3 + $0xf0] sm:$0xff] %v1495
      %1528 = vst [vmem:[#allocation3 + $0xf8] sm:$0xff] %v1496
      %s1529 = sadd.s32 %s417, 1
      %s1530 = smul.u32 %s1529, 24
      %s1531 = scalar_lea.vmem [#allocation2], %s1530
      %v1532 = vld [vmem:[%s1531] sm:$0xff]
      %v1533 = vld [vmem:[%s1531 + $0x8] sm:$0xff]
      %v1534 = vld [vmem:[%s1531 + $0x18] sm:$0xff]
      %v1535 = vld [vmem:[%s1531 + $0x20] sm:$0xff]
      %v1536 = vld [vmem:[%s1531 + $0x30] sm:$0xff]
      %v1537 = vld [vmem:[%s1531 + $0x38] sm:$0xff]
      %v1538 = vld [vmem:[%s1531 + $0x48] sm:$0xff]
      %v1539 = vld [vmem:[%s1531 + $0x50] sm:$0xff]
      %v1540 = vld [vmem:[%s1531 + $0x60] sm:$0xff]
      %v1541 = vld [vmem:[%s1531 + $0x68] sm:$0xff]
      %v1542 = vld [vmem:[%s1531 + $0x78] sm:$0xff]
      %v1543 = vld [vmem:[%s1531 + $0x80] sm:$0xff]
      %v1544 = vld [vmem:[%s1531 + $0x90] sm:$0xff]
      %v1545 = vld [vmem:[%s1531 + $0x98] sm:$0xff]
      %v1546 = vld [vmem:[%s1531 + $0xa8] sm:$0xff]
      %v1547 = vld [vmem:[%s1531 + $0xb0] sm:$0xff]
      %v1548 = vld [vmem:[%s1531 + $0xc0] sm:$0xff]
      %v1549 = vld [vmem:[%s1531 + $0xc8] sm:$0xff]
      %v1550 = vld [vmem:[%s1531 + $0xd8] sm:$0xff]
      %v1551 = vld [vmem:[%s1531 + $0xe0] sm:$0xff]
      %v1552 = vld [vmem:[%s1531 + $0xf0] sm:$0xff]
      %v1553 = vld [vmem:[%s1531 + $0xf8] sm:$0xff]
      %v1554 = vld [vmem:[%s1531 + $0x108] sm:$0xff]
      %v1555 = vld [vmem:[%s1531 + $0x110] sm:$0xff]
      %v1556 = vld [vmem:[%s1531 + $0x120] sm:$0xff]
      %v1557 = vld [vmem:[%s1531 + $0x128] sm:$0xff]
      %v1558 = vld [vmem:[%s1531 + $0x138] sm:$0xff]
      %v1559 = vld [vmem:[%s1531 + $0x140] sm:$0xff]
      %v1560 = vld [vmem:[%s1531 + $0x150] sm:$0xff]
      %v1561 = vld [vmem:[%s1531 + $0x158] sm:$0xff]
      %v1562 = vld [vmem:[%s1531 + $0x168] sm:$0xff]
      %v1563 = vld [vmem:[%s1531 + $0x170] sm:$0xff]
      %v1564 = vpack.c.bf16 %v1533, %v1532
      %v1565 = vpack.c.bf16 %v1535, %v1534
      %v1566 = vpack.c.bf16 %v1537, %v1536
      %v1567 = vpack.c.bf16 %v1539, %v1538
      %v1568 = vpack.c.bf16 %v1541, %v1540
      %v1569 = vpack.c.bf16 %v1543, %v1542
      %v1570 = vpack.c.bf16 %v1545, %v1544
      %v1571 = vpack.c.bf16 %v1547, %v1546
      %v1572 = vpack.c.bf16 %v1549, %v1548
      %v1573 = vpack.c.bf16 %v1551, %v1550
      %v1574 = vpack.c.bf16 %v1553, %v1552
      %v1575 = vpack.c.bf16 %v1555, %v1554
      %v1576 = vpack.c.bf16 %v1557, %v1556
      %v1577 = vpack.c.bf16 %v1559, %v1558
      %v1578 = vpack.c.bf16 %v1561, %v1560
      %v1579 = vpack.c.bf16 %v1563, %v1562
      %v1580 = vld [vmem:[#allocation3] sm:$0xff]
      %v1581 = vld [vmem:[#allocation3 + $0x8] sm:$0xff]
      %v1582 = vld [vmem:[#allocation3 + $0x10] sm:$0xff]
      %v1583 = vld [vmem:[#allocation3 + $0x18] sm:$0xff]
      %v1584 = vld [vmem:[#allocation3 + $0x20] sm:$0xff]
      %v1585 = vld [vmem:[#allocation3 + $0x28] sm:$0xff]
      %v1586 = vld [vmem:[#allocation3 + $0x30] sm:$0xff]
      %v1587 = vld [vmem:[#allocation3 + $0x38] sm:$0xff]
      %v1588 = vld [vmem:[#allocation3 + $0x40] sm:$0xff]
      %v1589 = vld [vmem:[#allocation3 + $0x48] sm:$0xff]
      %v1590 = vld [vmem:[#allocation3 + $0x50] sm:$0xff]
      %v1591 = vld [vmem:[#allocation3 + $0x58] sm:$0xff]
      %v1592 = vld [vmem:[#allocation3 + $0x60] sm:$0xff]
      %v1593 = vld [vmem:[#allocation3 + $0x68] sm:$0xff]
      %v1594 = vld [vmem:[#allocation3 + $0x70] sm:$0xff]
      %v1595 = vld [vmem:[#allocation3 + $0x78] sm:$0xff]
      %v1596 = vld [vmem:[#allocation3 + $0x80] sm:$0xff]
      %v1597 = vld [vmem:[#allocation3 + $0x88] sm:$0xff]
      %v1598 = vld [vmem:[#allocation3 + $0x90] sm:$0xff]
      %v1599 = vld [vmem:[#allocation3 + $0x98] sm:$0xff]
      %v1600 = vld [vmem:[#allocation3 + $0xa0] sm:$0xff]
      %v1601 = vld [vmem:[#allocation3 + $0xa8] sm:$0xff]
      %v1602 = vld [vmem:[#allocation3 + $0xb0] sm:$0xff]
      %v1603 = vld [vmem:[#allocation3 + $0xb8] sm:$0xff]
      %v1604 = vld [vmem:[#allocation3 + $0xc0] sm:$0xff]
      %v1605 = vld [vmem:[#allocation3 + $0xc8] sm:$0xff]
      %v1606 = vld [vmem:[#allocation3 + $0xd0] sm:$0xff]
      %v1607 = vld [vmem:[#allocation3 + $0xd8] sm:$0xff]
      %v1608 = vld [vmem:[#allocation3 + $0xe0] sm:$0xff]
      %v1609 = vld [vmem:[#allocation3 + $0xe8] sm:$0xff]
      %v1610 = vld [vmem:[#allocation3 + $0xf0] sm:$0xff]
      %v1611 = vld [vmem:[#allocation3 + $0xf8] sm:$0xff]
      %s1612 = scalar_lea.vmem %s1, 192
      %v1613 = vld [vmem:[%s1612] sm:$0xf]
      %v1614 = vld [vmem:[%s1612 + $0x4] sm:$0xf]
      %v1615 = vld [vmem:[%s1612 + $0x8] sm:$0xf]
      %v1616 = vld [vmem:[%s1612 + $0xc] sm:$0xf]
      %v1617 = vld [vmem:[%s1612 + $0x10] sm:$0xf]
      %v1618 = vld [vmem:[%s1612 + $0x14] sm:$0xf]
      %v1619 = vld [vmem:[%s1612 + $0x18] sm:$0xf]
      %v1620 = vld [vmem:[%s1612 + $0x1c] sm:$0xf]
      %v1621 = vld [vmem:[%s1612 + $0x20] sm:$0xf]
      %v1622 = vld [vmem:[%s1612 + $0x24] sm:$0xf]
      %v1623 = vld [vmem:[%s1612 + $0x28] sm:$0xf]
      %v1624 = vld [vmem:[%s1612 + $0x2c] sm:$0xf]
      %v1625 = vld [vmem:[%s1612 + $0x30] sm:$0xf]
      %v1626 = vld [vmem:[%s1612 + $0x34] sm:$0xf]
      %v1627 = vld [vmem:[%s1612 + $0x38] sm:$0xf]
      %v1628 = vld [vmem:[%s1612 + $0x3c] sm:$0xf]
      %v1645 = vunpack.c.l.b16 %v1613
      %v1646 = vunpack.c.l.b16 %v1614
      %v1647 = vunpack.c.l.b16 %v1615
      %v1648 = vunpack.c.l.b16 %v1616
      %v1649 = vunpack.c.l.b16 %v1617
      %v1650 = vunpack.c.l.b16 %v1618
      %v1651 = vunpack.c.l.b16 %v1619
      %v1652 = vunpack.c.l.b16 %v1620
      %v1653 = vunpack.c.l.b16 %v1621
      %v1654 = vunpack.c.l.b16 %v1622
      %v1655 = vunpack.c.l.b16 %v1623
      %v1656 = vunpack.c.l.b16 %v1624
      %v1657 = vunpack.c.l.b16 %v1625
      %v1658 = vunpack.c.l.b16 %v1626
      %v1659 = vunpack.c.l.b16 %v1627
      %v1660 = vunpack.c.l.b16 %v1628
      %v1661 = vpack.c.b16 %v1646, %v1645
      %v1662 = vpack.c.b16 %v1648, %v1647
      %v1663 = vpack.c.b16 %v1650, %v1649
      %v1664 = vpack.c.b16 %v1652, %v1651
      %v1665 = vpack.c.b16 %v1654, %v1653
      %v1666 = vpack.c.b16 %v1656, %v1655
      %v1667 = vpack.c.b16 %v1658, %v1657
      %v1668 = vpack.c.b16 %v1660, %v1659
      %1677 = vmatprep.subr.bf16.mxu0 0
      %1678 = vmatpush1.bf16.msra.mxu0 %v1661
      %1679 = vmatprep.subr.bf16.mxu0 0
      %1680 = vmatpush1.bf16.msra.mxu0 %v1662
      %1681 = vmatprep.subr.bf16.mxu0 0
      %1682 = vmatpush1.bf16.msra.mxu0 %v1663
      %1683 = vmatprep.subr.bf16.mxu0 0
      %1684 = vmatpush1.bf16.msra.mxu0 %v1664
      %1685 = vmatprep.subr.bf16.mxu0 0
      %1686 = vmatpush1.bf16.msra.mxu0 %v1665
      %1687 = vmatprep.subr.bf16.mxu0 0
      %1688 = vmatpush1.bf16.msra.mxu0 %v1666
      %1689 = vmatprep.subr.bf16.mxu0 0
      %1690 = vmatpush1.bf16.msra.mxu0 %v1667
      %1691 = vmatprep.subr.bf16.mxu0 0
      %1692 = vmatpush1.bf16.msra.mxu0 %v1668
      %1693 = vmatprep.subr.bf16.mxu0 0
      %1694 = vmatpush1.bf16.msra.mxu0 0
      %1695 = vmatprep.subr.bf16.mxu0 0
      %1696 = vmatpush1.bf16.msra.mxu0 0
      %1697 = vmatprep.subr.bf16.mxu0 0
      %1698 = vmatpush1.bf16.msra.mxu0 0
      %1699 = vmatprep.subr.bf16.mxu0 0
      %1700 = vmatpush1.bf16.msra.mxu0 0
      %1701 = vmatprep.subr.bf16.mxu0 0
      %1702 = vmatpush1.bf16.msra.mxu0 0
      %1703 = vmatprep.subr.bf16.mxu0 0
      %1704 = vmatpush1.bf16.msra.mxu0 0
      %1705 = vmatprep.subr.bf16.mxu0 0
      %1706 = vmatpush1.bf16.msra.mxu0 0
      %1707 = vmatprep.subr.bf16.mxu0 0
      %1708 = vmatpush1.bf16.msra.mxu0 0
      %1709 = vmatprep.mubr.bf16.mxu0 0
      %1710 = vmatmul.mubr.bf16.gmra.mrb[0].mxu0 %v1564
      %v1711 = vpop.f32.mrb[0].mxu0
      %v1712 = vadd.f32 0.0, %v1711
      %v1713 = vpop.f32.mrb[0].mxu0
      %v1714 = vpop.f32.mrb[0].mxu0
      %v1715 = vadd.f32 0.0, %v1714
      %v1716 = vpop.f32.mrb[0].mxu0
      %1717 = vmatprep.mubr.bf16.mxu0 0
      %1718 = vmatmul.mubr.bf16.gmra.mrb[0].mxu0 %v1565
      %v1719 = vpop.f32.mrb[0].mxu0
      %v1720 = vadd.f32 0.0, %v1719
      %v1721 = vpop.f32.mrb[0].mxu0
      %v1722 = vpop.f32.mrb[0].mxu0
      %v1723 = vadd.f32 0.0, %v1722
      %v1724 = vpop.f32.mrb[0].mxu0
      %1725 = vmatprep.mubr.bf16.mxu0 0
      %1726 = vmatmul.mubr.bf16.gmra.mrb[0].mxu0 %v1566
      %v1727 = vpop.f32.mrb[0].mxu0
      %v1728 = vadd.f32 0.0, %v1727
      %v1729 = vpop.f32.mrb[0].mxu0
      %v1730 = vpop.f32.mrb[0].mxu0
      %v1731 = vadd.f32 0.0, %v1730
      %v1732 = vpop.f32.mrb[0].mxu0
      %1733 = vmatprep.mubr.bf16.mxu0 0
      %1734 = vmatmul.mubr.bf16.gmra.mrb[0].mxu0 %v1567
      %v1735 = vpop.f32.mrb[0].mxu0
      %v1736 = vadd.f32 0.0, %v1735
      %v1737 = vpop.f32.mrb[0].mxu0
      %v1738 = vpop.f32.mrb[0].mxu0
      %v1739 = vadd.f32 0.0, %v1738
      %v1740 = vpop.f32.mrb[0].mxu0
      %1741 = vmatprep.mubr.bf16.mxu0 0
      %1742 = vmatmul.mubr.bf16.gmra.mrb[0].mxu0 %v1568
      %v1743 = vpop.f32.mrb[0].mxu0
      %v1744 = vadd.f32 0.0, %v1743
      %v1745 = vpop.f32.mrb[0].mxu0
      %v1746 = vpop.f32.mrb[0].mxu0
      %v1747 = vadd.f32 0.0, %v1746
      %v1748 = vpop.f32.mrb[0].mxu0
      %1749 = vmatprep.mubr.bf16.mxu0 0
      %1750 = vmatmul.mubr.bf16.gmra.mrb[0].mxu0 %v1569
      %v1751 = vpop.f32.mrb[0].mxu0
      %v1752 = vadd.f32 0.0, %v1751
      %v1753 = vpop.f32.mrb[0].mxu0
      %v1754 = vpop.f32.mrb[0].mxu0
      %v1755 = vadd.f32 0.0, %v1754
      %v1756 = vpop.f32.mrb[0].mxu0
      %1757 = vmatprep.mubr.bf16.mxu0 0
      %1758 = vmatmul.mubr.bf16.gmra.mrb[0].mxu0 %v1570
      %v1759 = vpop.f32.mrb[0].mxu0
      %v1760 = vadd.f32 0.0, %v1759
      %v1761 = vpop.f32.mrb[0].mxu0
      %v1762 = vpop.f32.mrb[0].mxu0
      %v1763 = vadd.f32 0.0, %v1762
      %v1764 = vpop.f32.mrb[0].mxu0
      %1765 = vmatprep.mubr.bf16.mxu0 0
      %1766 = vmatmul.mubr.bf16.gmra.mrb[0].mxu0 %v1571
      %v1767 = vpop.f32.mrb[0].mxu0
      %v1768 = vadd.f32 0.0, %v1767
      %v1769 = vpop.f32.mrb[0].mxu0
      %v1770 = vpop.f32.mrb[0].mxu0
      %v1771 = vadd.f32 0.0, %v1770
      %v1772 = vpop.f32.mrb[0].mxu0
      %1773 = vmatprep.mubr.bf16.mxu0 0
      %1774 = vmatmul.mubr.bf16.gmra.mrb[0].mxu0 %v1572
      %v1775 = vpop.f32.mrb[0].mxu0
      %v1776 = vadd.f32 0.0, %v1775
      %v1777 = vpop.f32.mrb[0].mxu0
      %v1778 = vpop.f32.mrb[0].mxu0
      %v1779 = vadd.f32 0.0, %v1778
      %v1780 = vpop.f32.mrb[0].mxu0
      %1781 = vmatprep.mubr.bf16.mxu0 0
      %1782 = vmatmul.mubr.bf16.gmra.mrb[0].mxu0 %v1573
      %v1783 = vpop.f32.mrb[0].mxu0
      %v1784 = vadd.f32 0.0, %v1783
      %v1785 = vpop.f32.mrb[0].mxu0
      %v1786 = vpop.f32.mrb[0].mxu0
      %v1787 = vadd.f32 0.0, %v1786
      %v1788 = vpop.f32.mrb[0].mxu0
      %1789 = vmatprep.mubr.bf16.mxu0 0
      %1790 = vmatmul.mubr.bf16.gmra.mrb[0].mxu0 %v1574
      %v1791 = vpop.f32.mrb[0].mxu0
      %v1792 = vadd.f32 0.0, %v1791
      %v1793 = vpop.f32.mrb[0].mxu0
      %v1794 = vpop.f32.mrb[0].mxu0
      %v1795 = vadd.f32 0.0, %v1794
      %v1796 = vpop.f32.mrb[0].mxu0
      %1797 = vmatprep.mubr.bf16.mxu0 0
      %1798 = vmatmul.mubr.bf16.gmra.mrb[0].mxu0 %v1575
      %v1799 = vpop.f32.mrb[0].mxu0
      %v1800 = vadd.f32 0.0, %v1799
      %v1801 = vpop.f32.mrb[0].mxu0
      %v1802 = vpop.f32.mrb[0].mxu0
      %v1803 = vadd.f32 0.0, %v1802
      %v1804 = vpop.f32.mrb[0].mxu0
      %1805 = vmatprep.mubr.bf16.mxu0 0
      %1806 = vmatmul.mubr.bf16.gmra.mrb[0].mxu0 %v1576
      %v1807 = vpop.f32.mrb[0].mxu0
      %v1808 = vadd.f32 0.0, %v1807
      %v1809 = vpop.f32.mrb[0].mxu0
      %v1810 = vpop.f32.mrb[0].mxu0
      %v1811 = vadd.f32 0.0, %v1810
      %v1812 = vpop.f32.mrb[0].mxu0
      %1813 = vmatprep.mubr.bf16.mxu0 0
      %1814 = vmatmul.mubr.bf16.gmra.mrb[0].mxu0 %v1577
      %v1815 = vpop.f32.mrb[0].mxu0
      %v1816 = vadd.f32 0.0, %v1815
      %v1817 = vpop.f32.mrb[0].mxu0
      %v1818 = vpop.f32.mrb[0].mxu0
      %v1819 = vadd.f32 0.0, %v1818
      %v1820 = vpop.f32.mrb[0].mxu0
      %1821 = vmatprep.mubr.bf16.mxu0 0
      %1822 = vmatmul.mubr.bf16.gmra.mrb[0].mxu0 %v1578
      %v1823 = vpop.f32.mrb[0].mxu0
      %v1824 = vadd.f32 0.0, %v1823
      %v1825 = vpop.f32.mrb[0].mxu0
      %v1826 = vpop.f32.mrb[0].mxu0
      %v1827 = vadd.f32 0.0, %v1826
      %v1828 = vpop.f32.mrb[0].mxu0
      %1829 = vmatprep.mubr.bf16.mxu0 0
      %1830 = vmatmul.mubr.bf16.gmra.mrb[0].mxu0 %v1579
      %v1831 = vpop.f32.mrb[0].mxu0
      %v1832 = vadd.f32 0.0, %v1831
      %v1833 = vpop.f32.mrb[0].mxu0
      %v1834 = vpop.f32.mrb[0].mxu0
      %v1835 = vadd.f32 0.0, %v1834
      %v1836 = vpop.f32.mrb[0].mxu0
      %1837 = vdwg.mxu0
      %v1838 = vadd.f32 %v1580, %v1712
      %v1839 = vadd.f32 %v1581, %v1715
      %v1840 = vadd.f32 %v1582, %v1720
      %v1841 = vadd.f32 %v1583, %v1723
      %v1842 = vadd.f32 %v1584, %v1728
      %v1843 = vadd.f32 %v1585, %v1731
      %v1844 = vadd.f32 %v1586, %v1736
      %v1845 = vadd.f32 %v1587, %v1739
      %v1846 = vadd.f32 %v1588, %v1744
      %v1847 = vadd.f32 %v1589, %v1747
      %v1848 = vadd.f32 %v1590, %v1752
      %v1849 = vadd.f32 %v1591, %v1755
      %v1850 = vadd.f32 %v1592, %v1760
      %v1851 = vadd.f32 %v1593, %v1763
      %v1852 = vadd.f32 %v1594, %v1768
      %v1853 = vadd.f32 %v1595, %v1771
      %v1854 = vadd.f32 %v1596, %v1776
      %v1855 = vadd.f32 %v1597, %v1779
      %v1856 = vadd.f32 %v1598, %v1784
      %v1857 = vadd.f32 %v1599, %v1787
      %v1858 = vadd.f32 %v1600, %v1792
      %v1859 = vadd.f32 %v1601, %v1795
      %v1860 = vadd.f32 %v1602, %v1800
      %v1861 = vadd.f32 %v1603, %v1803
      %v1862 = vadd.f32 %v1604, %v1808
      %v1863 = vadd.f32 %v1605, %v1811
      %v1864 = vadd.f32 %v1606, %v1816
      %v1865 = vadd.f32 %v1607, %v1819
      %v1866 = vadd.f32 %v1608, %v1824
      %v1867 = vadd.f32 %v1609, %v1827
      %v1868 = vadd.f32 %v1610, %v1832
      %v1869 = vadd.f32 %v1611, %v1835
      %1870 = vst [vmem:[#allocation3] sm:$0xff] %v1838
      %1871 = vst [vmem:[#allocation3 + $0x8] sm:$0xff] %v1839
      %1872 = vst [vmem:[#allocation3 + $0x10] sm:$0xff] %v1840
      %1873 = vst [vmem:[#allocation3 + $0x18] sm:$0xff] %v1841
      %1874 = vst [vmem:[#allocation3 + $0x20] sm:$0xff] %v1842
      %1875 = vst [vmem:[#allocation3 + $0x28] sm:$0xff] %v1843
      %1876 = vst [vmem:[#allocation3 + $0x30] sm:$0xff] %v1844
      %1877 = vst [vmem:[#allocation3 + $0x38] sm:$0xff] %v1845
      %1878 = vst [vmem:[#allocation3 + $0x40] sm:$0xff] %v1846
      %1879 = vst [vmem:[#allocation3 + $0x48] sm:$0xff] %v1847
      %1880 = vst [vmem:[#allocation3 + $0x50] sm:$0xff] %v1848
      %1881 = vst [vmem:[#allocation3 + $0x58] sm:$0xff] %v1849
      %1882 = vst [vmem:[#allocation3 + $0x60] sm:$0xff] %v1850
      %1883 = vst [vmem:[#allocation3 + $0x68] sm:$0xff] %v1851
      %1884 = vst [vmem:[#allocation3 + $0x70] sm:$0xff] %v1852
      %1885 = vst [vmem:[#allocation3 + $0x78] sm:$0xff] %v1853
      %1886 = vst [vmem:[#allocation3 + $0x80] sm:$0xff] %v1854
      %1887 = vst [vmem:[#allocation3 + $0x88] sm:$0xff] %v1855
      %1888 = vst [vmem:[#allocation3 + $0x90] sm:$0xff] %v1856
      %1889 = vst [vmem:[#allocation3 + $0x98] sm:$0xff] %v1857
      %1890 = vst [vmem:[#allocation3 + $0xa0] sm:$0xff] %v1858
      %1891 = vst [vmem:[#allocation3 + $0xa8] sm:$0xff] %v1859
      %1892 = vst [vmem:[#allocation3 + $0xb0] sm:$0xff] %v1860
      %1893 = vst [vmem:[#allocation3 + $0xb8] sm:$0xff] %v1861
      %1894 = vst [vmem:[#allocation3 + $0xc0] sm:$0xff] %v1862
      %1895 = vst [vmem:[#allocation3 + $0xc8] sm:$0xff] %v1863
      %1896 = vst [vmem:[#allocation3 + $0xd0] sm:$0xff] %v1864
      %1897 = vst [vmem:[#allocation3 + $0xd8] sm:$0xff] %v1865
      %1898 = vst [vmem:[#allocation3 + $0xe0] sm:$0xff] %v1866
      %1899 = vst [vmem:[#allocation3 + $0xe8] sm:$0xff] %v1867
      %1900 = vst [vmem:[#allocation3 + $0xf0] sm:$0xff] %v1868
      %1901 = vst [vmem:[#allocation3 + $0xf8] sm:$0xff] %v1869
      %v1902 = vld [vmem:[%s1531 + $0x1] sm:$0xff]
      %v1903 = vld [vmem:[%s1531 + $0x9] sm:$0xff]
      %v1904 = vld [vmem:[%s1531 + $0x19] sm:$0xff]
      %v1905 = vld [vmem:[%s1531 + $0x21] sm:$0xff]
      %v1906 = vld [vmem:[%s1531 + $0x31] sm:$0xff]
      %v1907 = vld [vmem:[%s1531 + $0x39] sm:$0xff]
      %v1908 = vld [vmem:[%s1531 + $0x49] sm:$0xff]
      %v1909 = vld [vmem:[%s1531 + $0x51] sm:$0xff]
      %v1910 = vld [vmem:[%s1531 + $0x61] sm:$0xff]
      %v1911 = vld [vmem:[%s1531 + $0x69] sm:$0xff]
      %v1912 = vld [vmem:[%s1531 + $0x79] sm:$0xff]
      %v1913 = vld [vmem:[%s1531 + $0x81] sm:$0xff]
      %v1914 = vld [vmem:[%s1531 + $0x91] sm:$0xff]
      %v1915 = vld [vmem:[%s1531 + $0x99] sm:$0xff]
      %v1916 = vld [vmem:[%s1531 + $0xa9] sm:$0xff]
      %v1917 = vld [vmem:[%s1531 + $0xb1] sm:$0xff]
      %v1918 = vld [vmem:[%s1531 + $0xc1] sm:$0xff]
      %v1919 = vld [vmem:[%s1531 + $0xc9] sm:$0xff]
      %v1920 = vld [vmem:[%s1531 + $0xd9] sm:$0xff]
      %v1921 = vld [vmem:[%s1531 + $0xe1] sm:$0xff]
      %v1922 = vld [vmem:[%s1531 + $0xf1] sm:$0xff]
      %v1923 = vld [vmem:[%s1531 + $0xf9] sm:$0xff]
      %v1924 = vld [vmem:[%s1531 + $0x109] sm:$0xff]
      %v1925 = vld [vmem:[%s1531 + $0x111] sm:$0xff]
      %v1926 = vld [vmem:[%s1531 + $0x121] sm:$0xff]
      %v1927 = vld [vmem:[%s1531 + $0x129] sm:$0xff]
      %v1928 = vld [vmem:[%s1531 + $0x139] sm:$0xff]
      %v1929 = vld [vmem:[%s1531 + $0x141] sm:$0xff]
      %v1930 = vld [vmem:[%s1531 + $0x151] sm:$0xff]
      %v1931 = vld [vmem:[%s1531 + $0x159] sm:$0xff]
      %v1932 = vld [vmem:[%s1531 + $0x169] sm:$0xff]
      %v1933 = vld [vmem:[%s1531 + $0x171] sm:$0xff]
      %v1934 = vpack.c.bf16 %v1903, %v1902
      %v1935 = vpack.c.bf16 %v1905, %v1904
      %v1936 = vpack.c.bf16 %v1907, %v1906
      %v1937 = vpack.c.bf16 %v1909, %v1908
      %v1938 = vpack.c.bf16 %v1911, %v1910
      %v1939 = vpack.c.bf16 %v1913, %v1912
      %v1940 = vpack.c.bf16 %v1915, %v1914
      %v1941 = vpack.c.bf16 %v1917, %v1916
      %v1942 = vpack.c.bf16 %v1919, %v1918
      %v1943 = vpack.c.bf16 %v1921, %v1920
      %v1944 = vpack.c.bf16 %v1923, %v1922
      %v1945 = vpack.c.bf16 %v1925, %v1924
      %v1946 = vpack.c.bf16 %v1927, %v1926
      %v1947 = vpack.c.bf16 %v1929, %v1928
      %v1948 = vpack.c.bf16 %v1931, %v1930
      %v1949 = vpack.c.bf16 %v1933, %v1932
      %v1950 = vld [vmem:[#allocation3] sm:$0xff]
      %v1951 = vld [vmem:[#allocation3 + $0x8] sm:$0xff]
      %v1952 = vld [vmem:[#allocation3 + $0x10] sm:$0xff]
      %v1953 = vld [vmem:[#allocation3 + $0x18] sm:$0xff]
      %v1954 = vld [vmem:[#allocation3 + $0x20] sm:$0xff]
      %v1955 = vld [vmem:[#allocation3 + $0x28] sm:$0xff]
      %v1956 = vld [vmem:[#allocation3 + $0x30] sm:$0xff]
      %v1957 = vld [vmem:[#allocation3 + $0x38] sm:$0xff]
      %v1958 = vld [vmem:[#allocation3 + $0x40] sm:$0xff]
      %v1959 = vld [vmem:[#allocation3 + $0x48] sm:$0xff]
      %v1960 = vld [vmem:[#allocation3 + $0x50] sm:$0xff]
      %v1961 = vld [vmem:[#allocation3 + $0x58] sm:$0xff]
      %v1962 = vld [vmem:[#allocation3 + $0x60] sm:$0xff]
      %v1963 = vld [vmem:[#allocation3 + $0x68] sm:$0xff]
      %v1964 = vld [vmem:[#allocation3 + $0x70] sm:$0xff]
      %v1965 = vld [vmem:[#allocation3 + $0x78] sm:$0xff]
      %v1966 = vld [vmem:[#allocation3 + $0x80] sm:$0xff]
      %v1967 = vld [vmem:[#allocation3 + $0x88] sm:$0xff]
      %v1968 = vld [vmem:[#allocation3 + $0x90] sm:$0xff]
      %v1969 = vld [vmem:[#allocation3 + $0x98] sm:$0xff]
      %v1970 = vld [vmem:[#allocation3 + $0xa0] sm:$0xff]
      %v1971 = vld [vmem:[#allocation3 + $0xa8] sm:$0xff]
      %v1972 = vld [vmem:[#allocation3 + $0xb0] sm:$0xff]
      %v1973 = vld [vmem:[#allocation3 + $0xb8] sm:$0xff]
      %v1974 = vld [vmem:[#allocation3 + $0xc0] sm:$0xff]
      %v1975 = vld [vmem:[#allocation3 + $0xc8] sm:$0xff]
      %v1976 = vld [vmem:[#allocation3 + $0xd0] sm:$0xff]
      %v1977 = vld [vmem:[#allocation3 + $0xd8] sm:$0xff]
      %v1978 = vld [vmem:[#allocation3 + $0xe0] sm:$0xff]
      %v1979 = vld [vmem:[#allocation3 + $0xe8] sm:$0xff]
      %v1980 = vld [vmem:[#allocation3 + $0xf0] sm:$0xff]
      %v1981 = vld [vmem:[#allocation3 + $0xf8] sm:$0xff]
      %s1982 = scalar_lea.vmem %s1, 256
      %v1983 = vld [vmem:[%s1982] sm:$0xf]
      %v1984 = vld [vmem:[%s1982 + $0x4] sm:$0xf]
      %v1985 = vld [vmem:[%s1982 + $0x8] sm:$0xf]
      %v1986 = vld [vmem:[%s1982 + $0xc] sm:$0xf]
      %v1987 = vld [vmem:[%s1982 + $0x10] sm:$0xf]
      %v1988 = vld [vmem:[%s1982 + $0x14] sm:$0xf]
      %v1989 = vld [vmem:[%s1982 + $0x18] sm:$0xf]
      %v1990 = vld [vmem:[%s1982 + $0x1c] sm:$0xf]
      %v1991 = vld [vmem:[%s1982 + $0x20] sm:$0xf]
      %v1992 = vld [vmem:[%s1982 + $0x24] sm:$0xf]
      %v1993 = vld [vmem:[%s1982 + $0x28] sm:$0xf]
      %v1994 = vld [vmem:[%s1982 + $0x2c] sm:$0xf]
      %v1995 = vld [vmem:[%s1982 + $0x30] sm:$0xf]
      %v1996 = vld [vmem:[%s1982 + $0x34] sm:$0xf]
      %v1997 = vld [vmem:[%s1982 + $0x38] sm:$0xf]
      %v1998 = vld [vmem:[%s1982 + $0x3c] sm:$0xf]
      %v2015 = vunpack.c.l.b16 %v1983
      %v2016 = vunpack.c.l.b16 %v1984
      %v2017 = vunpack.c.l.b16 %v1985
      %v2018 = vunpack.c.l.b16 %v1986
      %v2019 = vunpack.c.l.b16 %v1987
      %v2020 = vunpack.c.l.b16 %v1988
      %v2021 = vunpack.c.l.b16 %v1989
      %v2022 = vunpack.c.l.b16 %v1990
      %v2023 = vunpack.c.l.b16 %v1991
      %v2024 = vunpack.c.l.b16 %v1992
      %v2025 = vunpack.c.l.b16 %v1993
      %v2026 = vunpack.c.l.b16 %v1994
      %v2027 = vunpack.c.l.b16 %v1995
      %v2028 = vunpack.c.l.b16 %v1996
      %v2029 = vunpack.c.l.b16 %v1997
      %v2030 = vunpack.c.l.b16 %v1998
      %v2031 = vpack.c.b16 %v2016, %v2015
      %v2032 = vpack.c.b16 %v2018, %v2017
      %v2033 = vpack.c.b16 %v2020, %v2019
      %v2034 = vpack.c.b16 %v2022, %v2021
      %v2035 = vpack.c.b16 %v2024, %v2023
      %v2036 = vpack.c.b16 %v2026, %v2025
      %v2037 = vpack.c.b16 %v2028, %v2027
      %v2038 = vpack.c.b16 %v2030, %v2029
      %2047 = vmatprep.subr.bf16.mxu0 0
      %2048 = vmatpush1.bf16.msra.mxu0 %v2031
      %2049 = vmatprep.subr.bf16.mxu0 0
      %2050 = vmatpush1.bf16.msra.mxu0 %v2032
      %2051 = vmatprep.subr.bf16.mxu0 0
      %2052 = vmatpush1.bf16.msra.mxu0 %v2033
      %2053 = vmatprep.subr.bf16.mxu0 0
      %2054 = vmatpush1.bf16.msra.mxu0 %v2034
      %2055 = vmatprep.subr.bf16.mxu0 0
      %2056 = vmatpush1.bf16.msra.mxu0 %v2035
      %2057 = vmatprep.subr.bf16.mxu0 0
      %2058 = vmatpush1.bf16.msra.mxu0 %v2036
      %2059 = vmatprep.subr.bf16.mxu0 0
      %2060 = vmatpush1.bf16.msra.mxu0 %v2037
      %2061 = vmatprep.subr.bf16.mxu0 0
      %2062 = vmatpush1.bf16.msra.mxu0 %v2038
      %2063 = vmatprep.subr.bf16.mxu0 0
      %2064 = vmatpush1.bf16.msra.mxu0 0
      %2065 = vmatprep.subr.bf16.mxu0 0
      %2066 = vmatpush1.bf16.msra.mxu0 0
      %2067 = vmatprep.subr.bf16.mxu0 0
      %2068 = vmatpush1.bf16.msra.mxu0 0
      %2069 = vmatprep.subr.bf16.mxu0 0
      %2070 = vmatpush1.bf16.msra.mxu0 0
      %2071 = vmatprep.subr.bf16.mxu0 0
      %2072 = vmatpush1.bf16.msra.mxu0 0
      %2073 = vmatprep.subr.bf16.mxu0 0
      %2074 = vmatpush1.bf16.msra.mxu0 0
      %2075 = vmatprep.subr.bf16.mxu0 0
      %2076 = vmatpush1.bf16.msra.mxu0 0
      %2077 = vmatprep.subr.bf16.mxu0 0
      %2078 = vmatpush1.bf16.msra.mxu0 0
      %2079 = vmatprep.mubr.bf16.mxu0 0
      %2080 = vmatmul.mubr.bf16.gmra.mrb[0].mxu0 %v1934
      %v2081 = vpop.f32.mrb[0].mxu0
      %v2082 = vadd.f32 0.0, %v2081
      %v2083 = vpop.f32.mrb[0].mxu0
      %v2084 = vpop.f32.mrb[0].mxu0
      %v2085 = vadd.f32 0.0, %v2084
      %v2086 = vpop.f32.mrb[0].mxu0
      %2087 = vmatprep.mubr.bf16.mxu0 0
      %2088 = vmatmul.mubr.bf16.gmra.mrb[0].mxu0 %v1935
      %v2089 = vpop.f32.mrb[0].mxu0
      %v2090 = vadd.f32 0.0, %v2089
      %v2091 = vpop.f32.mrb[0].mxu0
      %v2092 = vpop.f32.mrb[0].mxu0
      %v2093 = vadd.f32 0.0, %v2092
      %v2094 = vpop.f32.mrb[0].mxu0
      %2095 = vmatprep.mubr.bf16.mxu0 0
      %2096 = vmatmul.mubr.bf16.gmra.mrb[0].mxu0 %v1936
      %v2097 = vpop.f32.mrb[0].mxu0
      %v2098 = vadd.f32 0.0, %v2097
      %v2099 = vpop.f32.mrb[0].mxu0
      %v2100 = vpop.f32.mrb[0].mxu0
      %v2101 = vadd.f32 0.0, %v2100
      %v2102 = vpop.f32.mrb[0].mxu0
      %2103 = vmatprep.mubr.bf16.mxu0 0
      %2104 = vmatmul.mubr.bf16.gmra.mrb[0].mxu0 %v1937
      %v2105 = vpop.f32.mrb[0].mxu0
      %v2106 = vadd.f32 0.0, %v2105
      %v2107 = vpop.f32.mrb[0].mxu0
      %v2108 = vpop.f32.mrb[0].mxu0
      %v2109 = vadd.f32 0.0, %v2108
      %v2110 = vpop.f32.mrb[0].mxu0
      %2111 = vmatprep.mubr.bf16.mxu0 0
      %2112 = vmatmul.mubr.bf16.gmra.mrb[0].mxu0 %v1938
      %v2113 = vpop.f32.mrb[0].mxu0
      %v2114 = vadd.f32 0.0, %v2113
      %v2115 = vpop.f32.mrb[0].mxu0
      %v2116 = vpop.f32.mrb[0].mxu0
      %v2117 = vadd.f32 0.0, %v2116
      %v2118 = vpop.f32.mrb[0].mxu0
      %2119 = vmatprep.mubr.bf16.mxu0 0
      %2120 = vmatmul.mubr.bf16.gmra.mrb[0].mxu0 %v1939
      %v2121 = vpop.f32.mrb[0].mxu0
      %v2122 = vadd.f32 0.0, %v2121
      %v2123 = vpop.f32.mrb[0].mxu0
      %v2124 = vpop.f32.mrb[0].mxu0
      %v2125 = vadd.f32 0.0, %v2124
      %v2126 = vpop.f32.mrb[0].mxu0
      %2127 = vmatprep.mubr.bf16.mxu0 0
      %2128 = vmatmul.mubr.bf16.gmra.mrb[0].mxu0 %v1940
      %v2129 = vpop.f32.mrb[0].mxu0
      %v2130 = vadd.f32 0.0, %v2129
      %v2131 = vpop.f32.mrb[0].mxu0
      %v2132 = vpop.f32.mrb[0].mxu0
      %v2133 = vadd.f32 0.0, %v2132
      %v2134 = vpop.f32.mrb[0].mxu0
      %2135 = vmatprep.mubr.bf16.mxu0 0
      %2136 = vmatmul.mubr.bf16.gmra.mrb[0].mxu0 %v1941
      %v2137 = vpop.f32.mrb[0].mxu0
      %v2138 = vadd.f32 0.0, %v2137
      %v2139 = vpop.f32.mrb[0].mxu0
      %v2140 = vpop.f32.mrb[0].mxu0
      %v2141 = vadd.f32 0.0, %v2140
      %v2142 = vpop.f32.mrb[0].mxu0
      %2143 = vmatprep.mubr.bf16.mxu0 0
      %2144 = vmatmul.mubr.bf16.gmra.mrb[0].mxu0 %v1942
      %v2145 = vpop.f32.mrb[0].mxu0
      %v2146 = vadd.f32 0.0, %v2145
      %v2147 = vpop.f32.mrb[0].mxu0
      %v2148 = vpop.f32.mrb[0].mxu0
      %v2149 = vadd.f32 0.0, %v2148
      %v2150 = vpop.f32.mrb[0].mxu0
      %2151 = vmatprep.mubr.bf16.mxu0 0
      %2152 = vmatmul.mubr.bf16.gmra.mrb[0].mxu0 %v1943
      %v2153 = vpop.f32.mrb[0].mxu0
      %v2154 = vadd.f32 0.0, %v2153
      %v2155 = vpop.f32.mrb[0].mxu0
      %v2156 = vpop.f32.mrb[0].mxu0
      %v2157 = vadd.f32 0.0, %v2156
      %v2158 = vpop.f32.mrb[0].mxu0
      %2159 = vmatprep.mubr.bf16.mxu0 0
      %2160 = vmatmul.mubr.bf16.gmra.mrb[0].mxu0 %v1944
      %v2161 = vpop.f32.mrb[0].mxu0
      %v2162 = vadd.f32 0.0, %v2161
      %v2163 = vpop.f32.mrb[0].mxu0
      %v2164 = vpop.f32.mrb[0].mxu0
      %v2165 = vadd.f32 0.0, %v2164
      %v2166 = vpop.f32.mrb[0].mxu0
      %2167 = vmatprep.mubr.bf16.mxu0 0
      %2168 = vmatmul.mubr.bf16.gmra.mrb[0].mxu0 %v1945
      %v2169 = vpop.f32.mrb[0].mxu0
      %v2170 = vadd.f32 0.0, %v2169
      %v2171 = vpop.f32.mrb[0].mxu0
      %v2172 = vpop.f32.mrb[0].mxu0
      %v2173 = vadd.f32 0.0, %v2172
      %v2174 = vpop.f32.mrb[0].mxu0
      %2175 = vmatprep.mubr.bf16.mxu0 0
      %2176 = vmatmul.mubr.bf16.gmra.mrb[0].mxu0 %v1946
      %v2177 = vpop.f32.mrb[0].mxu0
      %v2178 = vadd.f32 0.0, %v2177
      %v2179 = vpop.f32.mrb[0].mxu0
      %v2180 = vpop.f32.mrb[0].mxu0
      %v2181 = vadd.f32 0.0, %v2180
      %v2182 = vpop.f32.mrb[0].mxu0
      %2183 = vmatprep.mubr.bf16.mxu0 0
      %2184 = vmatmul.mubr.bf16.gmra.mrb[0].mxu0 %v1947
      %v2185 = vpop.f32.mrb[0].mxu0
      %v2186 = vadd.f32 0.0, %v2185
      %v2187 = vpop.f32.mrb[0].mxu0
      %v2188 = vpop.f32.mrb[0].mxu0
      %v2189 = vadd.f32 0.0, %v2188
      %v2190 = vpop.f32.mrb[0].mxu0
      %2191 = vmatprep.mubr.bf16.mxu0 0
      %2192 = vmatmul.mubr.bf16.gmra.mrb[0].mxu0 %v1948
      %v2193 = vpop.f32.mrb[0].mxu0
      %v2194 = vadd.f32 0.0, %v2193
      %v2195 = vpop.f32.mrb[0].mxu0
      %v2196 = vpop.f32.mrb[0].mxu0
      %v2197 = vadd.f32 0.0, %v2196
      %v2198 = vpop.f32.mrb[0].mxu0
      %2199 = vmatprep.mubr.bf16.mxu0 0
      %2200 = vmatmul.mubr.bf16.gmra.mrb[0].mxu0 %v1949
      %v2201 = vpop.f32.mrb[0].mxu0
      %v2202 = vadd.f32 0.0, %v2201
      %v2203 = vpop.f32.mrb[0].mxu0
      %v2204 = vpop.f32.mrb[0].mxu0
      %v2205 = vadd.f32 0.0, %v2204
      %v2206 = vpop.f32.mrb[0].mxu0
      %2207 = vdwg.mxu0
      %v2208 = vadd.f32 %v1950, %v2082
      %v2209 = vadd.f32 %v1951, %v2085
      %v2210 = vadd.f32 %v1952, %v2090
      %v2211 = vadd.f32 %v1953, %v2093
      %v2212 = vadd.f32 %v1954, %v2098
      %v2213 = vadd.f32 %v1955, %v2101
      %v2214 = vadd.f32 %v1956, %v2106
      %v2215 = vadd.f32 %v1957, %v2109
      %v2216 = vadd.f32 %v1958, %v2114
      %v2217 = vadd.f32 %v1959, %v2117
      %v2218 = vadd.f32 %v1960, %v2122
      %v2219 = vadd.f32 %v1961, %v2125
      %v2220 = vadd.f32 %v1962, %v2130
      %v2221 = vadd.f32 %v1963, %v2133
      %v2222 = vadd.f32 %v1964, %v2138
      %v2223 = vadd.f32 %v1965, %v2141
      %v2224 = vadd.f32 %v1966, %v2146
      %v2225 = vadd.f32 %v1967, %v2149
      %v2226 = vadd.f32 %v1968, %v2154
      %v2227 = vadd.f32 %v1969, %v2157
      %v2228 = vadd.f32 %v1970, %v2162
      %v2229 = vadd.f32 %v1971, %v2165
      %v2230 = vadd.f32 %v1972, %v2170
      %v2231 = vadd.f32 %v1973, %v2173
      %v2232 = vadd.f32 %v1974, %v2178
      %v2233 = vadd.f32 %v1975, %v2181
      %v2234 = vadd.f32 %v1976, %v2186
      %v2235 = vadd.f32 %v1977, %v2189
      %v2236 = vadd.f32 %v1978, %v2194
      %v2237 = vadd.f32 %v1979, %v2197
      %v2238 = vadd.f32 %v1980, %v2202
      %v2239 = vadd.f32 %v1981, %v2205
      %2240 = vst [vmem:[#allocation3] sm:$0xff] %v2208
      %2241 = vst [vmem:[#allocation3 + $0x8] sm:$0xff] %v2209
      %2242 = vst [vmem:[#allocation3 + $0x10] sm:$0xff] %v2210
      %2243 = vst [vmem:[#allocation3 + $0x18] sm:$0xff] %v2211
      %2244 = vst [vmem:[#allocation3 + $0x20] sm:$0xff] %v2212
      %2245 = vst [vmem:[#allocation3 + $0x28] sm:$0xff] %v2213
      %2246 = vst [vmem:[#allocation3 + $0x30] sm:$0xff] %v2214
      %2247 = vst [vmem:[#allocation3 + $0x38] sm:$0xff] %v2215
      %2248 = vst [vmem:[#allocation3 + $0x40] sm:$0xff] %v2216
      %2249 = vst [vmem:[#allocation3 + $0x48] sm:$0xff] %v2217
      %2250 = vst [vmem:[#allocation3 + $0x50] sm:$0xff] %v2218
      %2251 = vst [vmem:[#allocation3 + $0x58] sm:$0xff] %v2219
      %2252 = vst [vmem:[#allocation3 + $0x60] sm:$0xff] %v2220
      %2253 = vst [vmem:[#allocation3 + $0x68] sm:$0xff] %v2221
      %2254 = vst [vmem:[#allocation3 + $0x70] sm:$0xff] %v2222
      %2255 = vst [vmem:[#allocation3 + $0x78] sm:$0xff] %v2223
      %2256 = vst [vmem:[#allocation3 + $0x80] sm:$0xff] %v2224
      %2257 = vst [vmem:[#allocation3 + $0x88] sm:$0xff] %v2225
      %2258 = vst [vmem:[#allocation3 + $0x90] sm:$0xff] %v2226
      %2259 = vst [vmem:[#allocation3 + $0x98] sm:$0xff] %v2227
      %2260 = vst [vmem:[#allocation3 + $0xa0] sm:$0xff] %v2228
      %2261 = vst [vmem:[#allocation3 + $0xa8] sm:$0xff] %v2229
      %2262 = vst [vmem:[#allocation3 + $0xb0] sm:$0xff] %v2230
      %2263 = vst [vmem:[#allocation3 + $0xb8] sm:$0xff] %v2231
      %2264 = vst [vmem:[#allocation3 + $0xc0] sm:$0xff] %v2232
      %2265 = vst [vmem:[#allocation3 + $0xc8] sm:$0xff] %v2233
      %2266 = vst [vmem:[#allocation3 + $0xd0] sm:$0xff] %v2234
      %2267 = vst [vmem:[#allocation3 + $0xd8] sm:$0xff] %v2235
      %2268 = vst [vmem:[#allocation3 + $0xe0] sm:$0xff] %v2236
      %2269 = vst [vmem:[#allocation3 + $0xe8] sm:$0xff] %v2237
      %2270 = vst [vmem:[#allocation3 + $0xf0] sm:$0xff] %v2238
      %2271 = vst [vmem:[#allocation3 + $0xf8] sm:$0xff] %v2239
      %v2272 = vld [vmem:[%s1531 + $0x2] sm:$0xff]
      %v2273 = vld [vmem:[%s1531 + $0xa] sm:$0xff]
      %v2274 = vld [vmem:[%s1531 + $0x1a] sm:$0xff]
      %v2275 = vld [vmem:[%s1531 + $0x22] sm:$0xff]
      %v2276 = vld [vmem:[%s1531 + $0x32] sm:$0xff]
      %v2277 = vld [vmem:[%s1531 + $0x3a] sm:$0xff]
      %v2278 = vld [vmem:[%s1531 + $0x4a] sm:$0xff]
      %v2279 = vld [vmem:[%s1531 + $0x52] sm:$0xff]
      %v2280 = vld [vmem:[%s1531 + $0x62] sm:$0xff]
      %v2281 = vld [vmem:[%s1531 + $0x6a] sm:$0xff]
      %v2282 = vld [vmem:[%s1531 + $0x7a] sm:$0xff]
      %v2283 = vld [vmem:[%s1531 + $0x82] sm:$0xff]
      %v2284 = vld [vmem:[%s1531 + $0x92] sm:$0xff]
      %v2285 = vld [vmem:[%s1531 + $0x9a] sm:$0xff]
      %v2286 = vld [vmem:[%s1531 + $0xaa] sm:$0xff]
      %v2287 = vld [vmem:[%s1531 + $0xb2] sm:$0xff]
      %v2288 = vld [vmem:[%s1531 + $0xc2] sm:$0xff]
      %v2289 = vld [vmem:[%s1531 + $0xca] sm:$0xff]
      %v2290 = vld [vmem:[%s1531 + $0xda] sm:$0xff]
      %v2291 = vld [vmem:[%s1531 + $0xe2] sm:$0xff]
      %v2292 = vld [vmem:[%s1531 + $0xf2] sm:$0xff]
      %v2293 = vld [vmem:[%s1531 + $0xfa] sm:$0xff]
      %v2294 = vld [vmem:[%s1531 + $0x10a] sm:$0xff]
      %v2295 = vld [vmem:[%s1531 + $0x112] sm:$0xff]
      %v2296 = vld [vmem:[%s1531 + $0x122] sm:$0xff]
      %v2297 = vld [vmem:[%s1531 + $0x12a] sm:$0xff]
      %v2298 = vld [vmem:[%s1531 + $0x13a] sm:$0xff]
      %v2299 = vld [vmem:[%s1531 + $0x142] sm:$0xff]
      %v2300 = vld [vmem:[%s1531 + $0x152] sm:$0xff]
      %v2301 = vld [vmem:[%s1531 + $0x15a] sm:$0xff]
      %v2302 = vld [vmem:[%s1531 + $0x16a] sm:$0xff]
      %v2303 = vld [vmem:[%s1531 + $0x172] sm:$0xff]
      %v2304 = vpack.c.bf16 %v2273, %v2272
      %v2305 = vpack.c.bf16 %v2275, %v2274
      %v2306 = vpack.c.bf16 %v2277, %v2276
      %v2307 = vpack.c.bf16 %v2279, %v2278
      %v2308 = vpack.c.bf16 %v2281, %v2280
      %v2309 = vpack.c.bf16 %v2283, %v2282
      %v2310 = vpack.c.bf16 %v2285, %v2284
      %v2311 = vpack.c.bf16 %v2287, %v2286
      %v2312 = vpack.c.bf16 %v2289, %v2288
      %v2313 = vpack.c.bf16 %v2291, %v2290
      %v2314 = vpack.c.bf16 %v2293, %v2292
      %v2315 = vpack.c.bf16 %v2295, %v2294
      %v2316 = vpack.c.bf16 %v2297, %v2296
      %v2317 = vpack.c.bf16 %v2299, %v2298
      %v2318 = vpack.c.bf16 %v2301, %v2300
      %v2319 = vpack.c.bf16 %v2303, %v2302
      %v2320 = vld [vmem:[#allocation3] sm:$0xff]
      %v2321 = vld [vmem:[#allocation3 + $0x8] sm:$0xff]
      %v2322 = vld [vmem:[#allocation3 + $0x10] sm:$0xff]
      %v2323 = vld [vmem:[#allocation3 + $0x18] sm:$0xff]
      %v2324 = vld [vmem:[#allocation3 + $0x20] sm:$0xff]
      %v2325 = vld [vmem:[#allocation3 + $0x28] sm:$0xff]
      %v2326 = vld [vmem:[#allocation3 + $0x30] sm:$0xff]
      %v2327 = vld [vmem:[#allocation3 + $0x38] sm:$0xff]
      %v2328 = vld [vmem:[#allocation3 + $0x40] sm:$0xff]
      %v2329 = vld [vmem:[#allocation3 + $0x48] sm:$0xff]
      %v2330 = vld [vmem:[#allocation3 + $0x50] sm:$0xff]
      %v2331 = vld [vmem:[#allocation3 + $0x58] sm:$0xff]
      %v2332 = vld [vmem:[#allocation3 + $0x60] sm:$0xff]
      %v2333 = vld [vmem:[#allocation3 + $0x68] sm:$0xff]
      %v2334 = vld [vmem:[#allocation3 + $0x70] sm:$0xff]
      %v2335 = vld [vmem:[#allocation3 + $0x78] sm:$0xff]
      %v2336 = vld [vmem:[#allocation3 + $0x80] sm:$0xff]
      %v2337 = vld [vmem:[#allocation3 + $0x88] sm:$0xff]
      %v2338 = vld [vmem:[#allocation3 + $0x90] sm:$0xff]
      %v2339 = vld [vmem:[#allocation3 + $0x98] sm:$0xff]
      %v2340 = vld [vmem:[#allocation3 + $0xa0] sm:$0xff]
      %v2341 = vld [vmem:[#allocation3 + $0xa8] sm:$0xff]
      %v2342 = vld [vmem:[#allocation3 + $0xb0] sm:$0xff]
      %v2343 = vld [vmem:[#allocation3 + $0xb8] sm:$0xff]
      %v2344 = vld [vmem:[#allocation3 + $0xc0] sm:$0xff]
      %v2345 = vld [vmem:[#allocation3 + $0xc8] sm:$0xff]
      %v2346 = vld [vmem:[#allocation3 + $0xd0] sm:$0xff]
      %v2347 = vld [vmem:[#allocation3 + $0xd8] sm:$0xff]
      %v2348 = vld [vmem:[#allocation3 + $0xe0] sm:$0xff]
      %v2349 = vld [vmem:[#allocation3 + $0xe8] sm:$0xff]
      %v2350 = vld [vmem:[#allocation3 + $0xf0] sm:$0xff]
      %v2351 = vld [vmem:[#allocation3 + $0xf8] sm:$0xff]
      %s2352 = scalar_lea.vmem %s1, 320
      %v2353 = vld [vmem:[%s2352] sm:$0xf]
      %v2354 = vld [vmem:[%s2352 + $0x4] sm:$0xf]
      %v2355 = vld [vmem:[%s2352 + $0x8] sm:$0xf]
      %v2356 = vld [vmem:[%s2352 + $0xc] sm:$0xf]
      %v2357 = vld [vmem:[%s2352 + $0x10] sm:$0xf]
      %v2358 = vld [vmem:[%s2352 + $0x14] sm:$0xf]
      %v2359 = vld [vmem:[%s2352 + $0x18] sm:$0xf]
      %v2360 = vld [vmem:[%s2352 + $0x1c] sm:$0xf]
      %v2361 = vld [vmem:[%s2352 + $0x20] sm:$0xf]
      %v2362 = vld [vmem:[%s2352 + $0x24] sm:$0xf]
      %v2363 = vld [vmem:[%s2352 + $0x28] sm:$0xf]
      %v2364 = vld [vmem:[%s2352 + $0x2c] sm:$0xf]
      %v2365 = vld [vmem:[%s2352 + $0x30] sm:$0xf]
      %v2366 = vld [vmem:[%s2352 + $0x34] sm:$0xf]
      %v2367 = vld [vmem:[%s2352 + $0x38] sm:$0xf]
      %v2368 = vld [vmem:[%s2352 + $0x3c] sm:$0xf]
      %v2385 = vunpack.c.l.b16 %v2353
      %v2386 = vunpack.c.l.b16 %v2354
      %v2387 = vunpack.c.l.b16 %v2355
      %v2388 = vunpack.c.l.b16 %v2356
      %v2389 = vunpack.c.l.b16 %v2357
      %v2390 = vunpack.c.l.b16 %v2358
      %v2391 = vunpack.c.l.b16 %v2359
      %v2392 = vunpack.c.l.b16 %v2360
      %v2393 = vunpack.c.l.b16 %v2361
      %v2394 = vunpack.c.l.b16 %v2362
      %v2395 = vunpack.c.l.b16 %v2363
      %v2396 = vunpack.c.l.b16 %v2364
      %v2397 = vunpack.c.l.b16 %v2365
      %v2398 = vunpack.c.l.b16 %v2366
      %v2399 = vunpack.c.l.b16 %v2367
      %v2400 = vunpack.c.l.b16 %v2368
      %v2401 = vpack.c.b16 %v2386, %v2385
      %v2402 = vpack.c.b16 %v2388, %v2387
      %v2403 = vpack.c.b16 %v2390, %v2389
      %v2404 = vpack.c.b16 %v2392, %v2391
      %v2405 = vpack.c.b16 %v2394, %v2393
      %v2406 = vpack.c.b16 %v2396, %v2395
      %v2407 = vpack.c.b16 %v2398, %v2397
      %v2408 = vpack.c.b16 %v2400, %v2399
      %2417 = vmatprep.subr.bf16.mxu0 0
      %2418 = vmatpush1.bf16.msra.mxu0 %v2401
      %2419 = vmatprep.subr.bf16.mxu0 0
      %2420 = vmatpush1.bf16.msra.mxu0 %v2402
      %2421 = vmatprep.subr.bf16.mxu0 0
      %2422 = vmatpush1.bf16.msra.mxu0 %v2403
      %2423 = vmatprep.subr.bf16.mxu0 0
      %2424 = vmatpush1.bf16.msra.mxu0 %v2404
      %2425 = vmatprep.subr.bf16.mxu0 0
      %2426 = vmatpush1.bf16.msra.mxu0 %v2405
      %2427 = vmatprep.subr.bf16.mxu0 0
      %2428 = vmatpush1.bf16.msra.mxu0 %v2406
      %2429 = vmatprep.subr.bf16.mxu0 0
      %2430 = vmatpush1.bf16.msra.mxu0 %v2407
      %2431 = vmatprep.subr.bf16.mxu0 0
      %2432 = vmatpush1.bf16.msra.mxu0 %v2408
      %2433 = vmatprep.subr.bf16.mxu0 0
      %2434 = vmatpush1.bf16.msra.mxu0 0
      %2435 = vmatprep.subr.bf16.mxu0 0
      %2436 = vmatpush1.bf16.msra.mxu0 0
      %2437 = vmatprep.subr.bf16.mxu0 0
      %2438 = vmatpush1.bf16.msra.mxu0 0
      %2439 = vmatprep.subr.bf16.mxu0 0
      %2440 = vmatpush1.bf16.msra.mxu0 0
      %2441 = vmatprep.subr.bf16.mxu0 0
      %2442 = vmatpush1.bf16.msra.mxu0 0
      %2443 = vmatprep.subr.bf16.mxu0 0
      %2444 = vmatpush1.bf16.msra.mxu0 0
      %2445 = vmatprep.subr.bf16.mxu0 0
      %2446 = vmatpush1.bf16.msra.mxu0 0
      %2447 = vmatprep.subr.bf16.mxu0 0
      %2448 = vmatpush1.bf16.msra.mxu0 0
      %2449 = vmatprep.mubr.bf16.mxu0 0
      %2450 = vmatmul.mubr.bf16.gmra.mrb[0].mxu0 %v2304
      %v2451 = vpop.f32.mrb[0].mxu0
      %v2452 = vadd.f32 0.0, %v2451
      %v2453 = vpop.f32.mrb[0].mxu0
      %v2454 = vpop.f32.mrb[0].mxu0
      %v2455 = vadd.f32 0.0, %v2454
      %v2456 = vpop.f32.mrb[0].mxu0
      %2457 = vmatprep.mubr.bf16.mxu0 0
      %2458 = vmatmul.mubr.bf16.gmra.mrb[0].mxu0 %v2305
      %v2459 = vpop.f32.mrb[0].mxu0
      %v2460 = vadd.f32 0.0, %v2459
      %v2461 = vpop.f32.mrb[0].mxu0
      %v2462 = vpop.f32.mrb[0].mxu0
      %v2463 = vadd.f32 0.0, %v2462
      %v2464 = vpop.f32.mrb[0].mxu0
      %2465 = vmatprep.mubr.bf16.mxu0 0
      %2466 = vmatmul.mubr.bf16.gmra.mrb[0].mxu0 %v2306
      %v2467 = vpop.f32.mrb[0].mxu0
      %v2468 = vadd.f32 0.0, %v2467
      %v2469 = vpop.f32.mrb[0].mxu0
      %v2470 = vpop.f32.mrb[0].mxu0
      %v2471 = vadd.f32 0.0, %v2470
      %v2472 = vpop.f32.mrb[0].mxu0
      %2473 = vmatprep.mubr.bf16.mxu0 0
      %2474 = vmatmul.mubr.bf16.gmra.mrb[0].mxu0 %v2307
      %v2475 = vpop.f32.mrb[0].mxu0
      %v2476 = vadd.f32 0.0, %v2475
      %v2477 = vpop.f32.mrb[0].mxu0
      %v2478 = vpop.f32.mrb[0].mxu0
      %v2479 = vadd.f32 0.0, %v2478
      %v2480 = vpop.f32.mrb[0].mxu0
      %2481 = vmatprep.mubr.bf16.mxu0 0
      %2482 = vmatmul.mubr.bf16.gmra.mrb[0].mxu0 %v2308
      %v2483 = vpop.f32.mrb[0].mxu0
      %v2484 = vadd.f32 0.0, %v2483
      %v2485 = vpop.f32.mrb[0].mxu0
      %v2486 = vpop.f32.mrb[0].mxu0
      %v2487 = vadd.f32 0.0, %v2486
      %v2488 = vpop.f32.mrb[0].mxu0
      %2489 = vmatprep.mubr.bf16.mxu0 0
      %2490 = vmatmul.mubr.bf16.gmra.mrb[0].mxu0 %v2309
      %v2491 = vpop.f32.mrb[0].mxu0
      %v2492 = vadd.f32 0.0, %v2491
      %v2493 = vpop.f32.mrb[0].mxu0
      %v2494 = vpop.f32.mrb[0].mxu0
      %v2495 = vadd.f32 0.0, %v2494
      %v2496 = vpop.f32.mrb[0].mxu0
      %2497 = vmatprep.mubr.bf16.mxu0 0
      %2498 = vmatmul.mubr.bf16.gmra.mrb[0].mxu0 %v2310
      %v2499 = vpop.f32.mrb[0].mxu0
      %v2500 = vadd.f32 0.0, %v2499
      %v2501 = vpop.f32.mrb[0].mxu0
      %v2502 = vpop.f32.mrb[0].mxu0
      %v2503 = vadd.f32 0.0, %v2502
      %v2504 = vpop.f32.mrb[0].mxu0
      %2505 = vmatprep.mubr.bf16.mxu0 0
      %2506 = vmatmul.mubr.bf16.gmra.mrb[0].mxu0 %v2311
      %v2507 = vpop.f32.mrb[0].mxu0
      %v2508 = vadd.f32 0.0, %v2507
      %v2509 = vpop.f32.mrb[0].mxu0
      %v2510 = vpop.f32.mrb[0].mxu0
      %v2511 = vadd.f32 0.0, %v2510
      %v2512 = vpop.f32.mrb[0].mxu0
      %2513 = vmatprep.mubr.bf16.mxu0 0
      %2514 = vmatmul.mubr.bf16.gmra.mrb[0].mxu0 %v2312
      %v2515 = vpop.f32.mrb[0].mxu0
      %v2516 = vadd.f32 0.0, %v2515
      %v2517 = vpop.f32.mrb[0].mxu0
      %v2518 = vpop.f32.mrb[0].mxu0
      %v2519 = vadd.f32 0.0, %v2518
      %v2520 = vpop.f32.mrb[0].mxu0
      %2521 = vmatprep.mubr.bf16.mxu0 0
      %2522 = vmatmul.mubr.bf16.gmra.mrb[0].mxu0 %v2313
      %v2523 = vpop.f32.mrb[0].mxu0
      %v2524 = vadd.f32 0.0, %v2523
      %v2525 = vpop.f32.mrb[0].mxu0
      %v2526 = vpop.f32.mrb[0].mxu0
      %v2527 = vadd.f32 0.0, %v2526
      %v2528 = vpop.f32.mrb[0].mxu0
      %2529 = vmatprep.mubr.bf16.mxu0 0
      %2530 = vmatmul.mubr.bf16.gmra.mrb[0].mxu0 %v2314
      %v2531 = vpop.f32.mrb[0].mxu0
      %v2532 = vadd.f32 0.0, %v2531
      %v2533 = vpop.f32.mrb[0].mxu0
      %v2534 = vpop.f32.mrb[0].mxu0
      %v2535 = vadd.f32 0.0, %v2534
      %v2536 = vpop.f32.mrb[0].mxu0
      %2537 = vmatprep.mubr.bf16.mxu0 0
      %2538 = vmatmul.mubr.bf16.gmra.mrb[0].mxu0 %v2315
      %v2539 = vpop.f32.mrb[0].mxu0
      %v2540 = vadd.f32 0.0, %v2539
      %v2541 = vpop.f32.mrb[0].mxu0
      %v2542 = vpop.f32.mrb[0].mxu0
      %v2543 = vadd.f32 0.0, %v2542
      %v2544 = vpop.f32.mrb[0].mxu0
      %2545 = vmatprep.mubr.bf16.mxu0 0
      %2546 = vmatmul.mubr.bf16.gmra.mrb[0].mxu0 %v2316
      %v2547 = vpop.f32.mrb[0].mxu0
      %v2548 = vadd.f32 0.0, %v2547
      %v2549 = vpop.f32.mrb[0].mxu0
      %v2550 = vpop.f32.mrb[0].mxu0
      %v2551 = vadd.f32 0.0, %v2550
      %v2552 = vpop.f32.mrb[0].mxu0
      %2553 = vmatprep.mubr.bf16.mxu0 0
      %2554 = vmatmul.mubr.bf16.gmra.mrb[0].mxu0 %v2317
      %v2555 = vpop.f32.mrb[0].mxu0
      %v2556 = vadd.f32 0.0, %v2555
      %v2557 = vpop.f32.mrb[0].mxu0
      %v2558 = vpop.f32.mrb[0].mxu0
      %v2559 = vadd.f32 0.0, %v2558
      %v2560 = vpop.f32.mrb[0].mxu0
      %2561 = vmatprep.mubr.bf16.mxu0 0
      %2562 = vmatmul.mubr.bf16.gmra.mrb[0].mxu0 %v2318
      %v2563 = vpop.f32.mrb[0].mxu0
      %v2564 = vadd.f32 0.0, %v2563
      %v2565 = vpop.f32.mrb[0].mxu0
      %v2566 = vpop.f32.mrb[0].mxu0
      %v2567 = vadd.f32 0.0, %v2566
      %v2568 = vpop.f32.mrb[0].mxu0
      %2569 = vmatprep.mubr.bf16.mxu0 0
      %2570 = vmatmul.mubr.bf16.gmra.mrb[0].mxu0 %v2319
      %v2571 = vpop.f32.mrb[0].mxu0
      %v2572 = vadd.f32 0.0, %v2571
      %v2573 = vpop.f32.mrb[0].mxu0
      %v2574 = vpop.f32.mrb[0].mxu0
      %v2575 = vadd.f32 0.0, %v2574
      %v2576 = vpop.f32.mrb[0].mxu0
      %2577 = vdwg.mxu0
      %v2578 = vadd.f32 %v2320, %v2452
      %v2579 = vadd.f32 %v2321, %v2455
      %v2580 = vadd.f32 %v2322, %v2460
      %v2581 = vadd.f32 %v2323, %v2463
      %v2582 = vadd.f32 %v2324, %v2468
      %v2583 = vadd.f32 %v2325, %v2471
      %v2584 = vadd.f32 %v2326, %v2476
      %v2585 = vadd.f32 %v2327, %v2479
      %v2586 = vadd.f32 %v2328, %v2484
      %v2587 = vadd.f32 %v2329, %v2487
      %v2588 = vadd.f32 %v2330, %v2492
      %v2589 = vadd.f32 %v2331, %v2495
      %v2590 = vadd.f32 %v2332, %v2500
      %v2591 = vadd.f32 %v2333, %v2503
      %v2592 = vadd.f32 %v2334, %v2508
      %v2593 = vadd.f32 %v2335, %v2511
      %v2594 = vadd.f32 %v2336, %v2516
      %v2595 = vadd.f32 %v2337, %v2519
      %v2596 = vadd.f32 %v2338, %v2524
      %v2597 = vadd.f32 %v2339, %v2527
      %v2598 = vadd.f32 %v2340, %v2532
      %v2599 = vadd.f32 %v2341, %v2535
      %v2600 = vadd.f32 %v2342, %v2540
      %v2601 = vadd.f32 %v2343, %v2543
      %v2602 = vadd.f32 %v2344, %v2548
      %v2603 = vadd.f32 %v2345, %v2551
      %v2604 = vadd.f32 %v2346, %v2556
      %v2605 = vadd.f32 %v2347, %v2559
      %v2606 = vadd.f32 %v2348, %v2564
      %v2607 = vadd.f32 %v2349, %v2567
      %v2608 = vadd.f32 %v2350, %v2572
      %v2609 = vadd.f32 %v2351, %v2575
      %2610 = vst [vmem:[#allocation3] sm:$0xff] %v2578
      %2611 = vst [vmem:[#allocation3 + $0x8] sm:$0xff] %v2579
      %2612 = vst [vmem:[#allocation3 + $0x10] sm:$0xff] %v2580
      %2613 = vst [vmem:[#allocation3 + $0x18] sm:$0xff] %v2581
      %2614 = vst [vmem:[#allocation3 + $0x20] sm:$0xff] %v2582
      %2615 = vst [vmem:[#allocation3 + $0x28] sm:$0xff] %v2583
      %2616 = vst [vmem:[#allocation3 + $0x30] sm:$0xff] %v2584
      %2617 = vst [vmem:[#allocation3 + $0x38] sm:$0xff] %v2585
      %2618 = vst [vmem:[#allocation3 + $0x40] sm:$0xff] %v2586
      %2619 = vst [vmem:[#allocation3 + $0x48] sm:$0xff] %v2587
      %2620 = vst [vmem:[#allocation3 + $0x50] sm:$0xff] %v2588
      %2621 = vst [vmem:[#allocation3 + $0x58] sm:$0xff] %v2589
      %2622 = vst [vmem:[#allocation3 + $0x60] sm:$0xff] %v2590
      %2623 = vst [vmem:[#allocation3 + $0x68] sm:$0xff] %v2591
      %2624 = vst [vmem:[#allocation3 + $0x70] sm:$0xff] %v2592
      %2625 = vst [vmem:[#allocation3 + $0x78] sm:$0xff] %v2593
      %2626 = vst [vmem:[#allocation3 + $0x80] sm:$0xff] %v2594
      %2627 = vst [vmem:[#allocation3 + $0x88] sm:$0xff] %v2595
      %2628 = vst [vmem:[#allocation3 + $0x90] sm:$0xff] %v2596
      %2629 = vst [vmem:[#allocation3 + $0x98] sm:$0xff] %v2597
      %2630 = vst [vmem:[#allocation3 + $0xa0] sm:$0xff] %v2598
      %2631 = vst [vmem:[#allocation3 + $0xa8] sm:$0xff] %v2599
      %2632 = vst [vmem:[#allocation3 + $0xb0] sm:$0xff] %v2600
      %2633 = vst [vmem:[#allocation3 + $0xb8] sm:$0xff] %v2601
      %2634 = vst [vmem:[#allocation3 + $0xc0] sm:$0xff] %v2602
      %2635 = vst [vmem:[#allocation3 + $0xc8] sm:$0xff] %v2603
      %2636 = vst [vmem:[#allocation3 + $0xd0] sm:$0xff] %v2604
      %2637 = vst [vmem:[#allocation3 + $0xd8] sm:$0xff] %v2605
      %2638 = vst [vmem:[#allocation3 + $0xe0] sm:$0xff] %v2606
      %2639 = vst [vmem:[#allocation3 + $0xe8] sm:$0xff] %v2607
      %2640 = vst [vmem:[#allocation3 + $0xf0] sm:$0xff] %v2608
      %2641 = vst [vmem:[#allocation3 + $0xf8] sm:$0xff] %v2609
      %s2642 = sadd.s32 %s417, 2
      %s2643 = smul.u32 %s2642, 24
      %s2644 = scalar_lea.vmem [#allocation2], %s2643
      %v2645 = vld [vmem:[%s2644] sm:$0xff]
      %v2646 = vld [vmem:[%s2644 + $0x8] sm:$0xff]
      %v2647 = vld [vmem:[%s2644 + $0x18] sm:$0xff]
      %v2648 = vld [vmem:[%s2644 + $0x20] sm:$0xff]
      %v2649 = vld [vmem:[%s2644 + $0x30] sm:$0xff]
      %v2650 = vld [vmem:[%s2644 + $0x38] sm:$0xff]
      %v2651 = vld [vmem:[%s2644 + $0x48] sm:$0xff]
      %v2652 = vld [vmem:[%s2644 + $0x50] sm:$0xff]
      %v2653 = vld [vmem:[%s2644 + $0x60] sm:$0xff]
      %v2654 = vld [vmem:[%s2644 + $0x68] sm:$0xff]
      %v2655 = vld [vmem:[%s2644 + $0x78] sm:$0xff]
      %v2656 = vld [vmem:[%s2644 + $0x80] sm:$0xff]
      %v2657 = vld [vmem:[%s2644 + $0x90] sm:$0xff]
      %v2658 = vld [vmem:[%s2644 + $0x98] sm:$0xff]
      %v2659 = vld [vmem:[%s2644 + $0xa8] sm:$0xff]
      %v2660 = vld [vmem:[%s2644 + $0xb0] sm:$0xff]
      %v2661 = vld [vmem:[%s2644 + $0xc0] sm:$0xff]
      %v2662 = vld [vmem:[%s2644 + $0xc8] sm:$0xff]
      %v2663 = vld [vmem:[%s2644 + $0xd8] sm:$0xff]
      %v2664 = vld [vmem:[%s2644 + $0xe0] sm:$0xff]
      %v2665 = vld [vmem:[%s2644 + $0xf0] sm:$0xff]
      %v2666 = vld [vmem:[%s2644 + $0xf8] sm:$0xff]
      %v2667 = vld [vmem:[%s2644 + $0x108] sm:$0xff]
      %v2668 = vld [vmem:[%s2644 + $0x110] sm:$0xff]
      %v2669 = vld [vmem:[%s2644 + $0x120] sm:$0xff]
      %v2670 = vld [vmem:[%s2644 + $0x128] sm:$0xff]
      %v2671 = vld [vmem:[%s2644 + $0x138] sm:$0xff]
      %v2672 = vld [vmem:[%s2644 + $0x140] sm:$0xff]
      %v2673 = vld [vmem:[%s2644 + $0x150] sm:$0xff]
      %v2674 = vld [vmem:[%s2644 + $0x158] sm:$0xff]
      %v2675 = vld [vmem:[%s2644 + $0x168] sm:$0xff]
      %v2676 = vld [vmem:[%s2644 + $0x170] sm:$0xff]
      %v2677 = vpack.c.bf16 %v2646, %v2645
      %v2678 = vpack.c.bf16 %v2648, %v2647
      %v2679 = vpack.c.bf16 %v2650, %v2649
      %v2680 = vpack.c.bf16 %v2652, %v2651
      %v2681 = vpack.c.bf16 %v2654, %v2653
      %v2682 = vpack.c.bf16 %v2656, %v2655
      %v2683 = vpack.c.bf16 %v2658, %v2657
      %v2684 = vpack.c.bf16 %v2660, %v2659
      %v2685 = vpack.c.bf16 %v2662, %v2661
      %v2686 = vpack.c.bf16 %v2664, %v2663
      %v2687 = vpack.c.bf16 %v2666, %v2665
      %v2688 = vpack.c.bf16 %v2668, %v2667
      %v2689 = vpack.c.bf16 %v2670, %v2669
      %v2690 = vpack.c.bf16 %v2672, %v2671
      %v2691 = vpack.c.bf16 %v2674, %v2673
      %v2692 = vpack.c.bf16 %v2676, %v2675
      %v2693 = vld [vmem:[#allocation3] sm:$0xff]
      %v2694 = vld [vmem:[#allocation3 + $0x8] sm:$0xff]
      %v2695 = vld [vmem:[#allocation3 + $0x10] sm:$0xff]
      %v2696 = vld [vmem:[#allocation3 + $0x18] sm:$0xff]
      %v2697 = vld [vmem:[#allocation3 + $0x20] sm:$0xff]
      %v2698 = vld [vmem:[#allocation3 + $0x28] sm:$0xff]
      %v2699 = vld [vmem:[#allocation3 + $0x30] sm:$0xff]
      %v2700 = vld [vmem:[#allocation3 + $0x38] sm:$0xff]
      %v2701 = vld [vmem:[#allocation3 + $0x40] sm:$0xff]
      %v2702 = vld [vmem:[#allocation3 + $0x48] sm:$0xff]
      %v2703 = vld [vmem:[#allocation3 + $0x50] sm:$0xff]
      %v2704 = vld [vmem:[#allocation3 + $0x58] sm:$0xff]
      %v2705 = vld [vmem:[#allocation3 + $0x60] sm:$0xff]
      %v2706 = vld [vmem:[#allocation3 + $0x68] sm:$0xff]
      %v2707 = vld [vmem:[#allocation3 + $0x70] sm:$0xff]
      %v2708 = vld [vmem:[#allocation3 + $0x78] sm:$0xff]
      %v2709 = vld [vmem:[#allocation3 + $0x80] sm:$0xff]
      %v2710 = vld [vmem:[#allocation3 + $0x88] sm:$0xff]
      %v2711 = vld [vmem:[#allocation3 + $0x90] sm:$0xff]
      %v2712 = vld [vmem:[#allocation3 + $0x98] sm:$0xff]
      %v2713 = vld [vmem:[#allocation3 + $0xa0] sm:$0xff]
      %v2714 = vld [vmem:[#allocation3 + $0xa8] sm:$0xff]
      %v2715 = vld [vmem:[#allocation3 + $0xb0] sm:$0xff]
      %v2716 = vld [vmem:[#allocation3 + $0xb8] sm:$0xff]
      %v2717 = vld [vmem:[#allocation3 + $0xc0] sm:$0xff]
      %v2718 = vld [vmem:[#allocation3 + $0xc8] sm:$0xff]
      %v2719 = vld [vmem:[#allocation3 + $0xd0] sm:$0xff]
      %v2720 = vld [vmem:[#allocation3 + $0xd8] sm:$0xff]
      %v2721 = vld [vmem:[#allocation3 + $0xe0] sm:$0xff]
      %v2722 = vld [vmem:[#allocation3 + $0xe8] sm:$0xff]
      %v2723 = vld [vmem:[#allocation3 + $0xf0] sm:$0xff]
      %v2724 = vld [vmem:[#allocation3 + $0xf8] sm:$0xff]
      %s2725 = scalar_lea.vmem %s1, 384
      %v2726 = vld [vmem:[%s2725] sm:$0xf]
      %v2727 = vld [vmem:[%s2725 + $0x4] sm:$0xf]
      %v2728 = vld [vmem:[%s2725 + $0x8] sm:$0xf]
      %v2729 = vld [vmem:[%s2725 + $0xc] sm:$0xf]
      %v2730 = vld [vmem:[%s2725 + $0x10] sm:$0xf]
      %v2731 = vld [vmem:[%s2725 + $0x14] sm:$0xf]
      %v2732 = vld [vmem:[%s2725 + $0x18] sm:$0xf]
      %v2733 = vld [vmem:[%s2725 + $0x1c] sm:$0xf]
      %v2734 = vld [vmem:[%s2725 + $0x20] sm:$0xf]
      %v2735 = vld [vmem:[%s2725 + $0x24] sm:$0xf]
      %v2736 = vld [vmem:[%s2725 + $0x28] sm:$0xf]
      %v2737 = vld [vmem:[%s2725 + $0x2c] sm:$0xf]
      %v2738 = vld [vmem:[%s2725 + $0x30] sm:$0xf]
      %v2739 = vld [vmem:[%s2725 + $0x34] sm:$0xf]
      %v2740 = vld [vmem:[%s2725 + $0x38] sm:$0xf]
      %v2741 = vld [vmem:[%s2725 + $0x3c] sm:$0xf]
      %v2758 = vunpack.c.l.b16 %v2726
      %v2759 = vunpack.c.l.b16 %v2727
      %v2760 = vunpack.c.l.b16 %v2728
      %v2761 = vunpack.c.l.b16 %v2729
      %v2762 = vunpack.c.l.b16 %v2730
      %v2763 = vunpack.c.l.b16 %v2731
      %v2764 = vunpack.c.l.b16 %v2732
      %v2765 = vunpack.c.l.b16 %v2733
      %v2766 = vunpack.c.l.b16 %v2734
      %v2767 = vunpack.c.l.b16 %v2735
      %v2768 = vunpack.c.l.b16 %v2736
      %v2769 = vunpack.c.l.b16 %v2737
      %v2770 = vunpack.c.l.b16 %v2738
      %v2771 = vunpack.c.l.b16 %v2739
      %v2772 = vunpack.c.l.b16 %v2740
      %v2773 = vunpack.c.l.b16 %v2741
      %v2774 = vpack.c.b16 %v2759, %v2758
      %v2775 = vpack.c.b16 %v2761, %v2760
      %v2776 = vpack.c.b16 %v2763, %v2762
      %v2777 = vpack.c.b16 %v2765, %v2764
      %v2778 = vpack.c.b16 %v2767, %v2766
      %v2779 = vpack.c.b16 %v2769, %v2768
      %v2780 = vpack.c.b16 %v2771, %v2770
      %v2781 = vpack.c.b16 %v2773, %v2772
      %2790 = vmatprep.subr.bf16.mxu0 0
      %2791 = vmatpush1.bf16.msra.mxu0 %v2774
      %2792 = vmatprep.subr.bf16.mxu0 0
      %2793 = vmatpush1.bf16.msra.mxu0 %v2775
      %2794 = vmatprep.subr.bf16.mxu0 0
      %2795 = vmatpush1.bf16.msra.mxu0 %v2776
      %2796 = vmatprep.subr.bf16.mxu0 0
      %2797 = vmatpush1.bf16.msra.mxu0 %v2777
      %2798 = vmatprep.subr.bf16.mxu0 0
      %2799 = vmatpush1.bf16.msra.mxu0 %v2778
      %2800 = vmatprep.subr.bf16.mxu0 0
      %2801 = vmatpush1.bf16.msra.mxu0 %v2779
      %2802 = vmatprep.subr.bf16.mxu0 0
      %2803 = vmatpush1.bf16.msra.mxu0 %v2780
      %2804 = vmatprep.subr.bf16.mxu0 0
      %2805 = vmatpush1.bf16.msra.mxu0 %v2781
      %2806 = vmatprep.subr.bf16.mxu0 0
      %2807 = vmatpush1.bf16.msra.mxu0 0
      %2808 = vmatprep.subr.bf16.mxu0 0
      %2809 = vmatpush1.bf16.msra.mxu0 0
      %2810 = vmatprep.subr.bf16.mxu0 0
      %2811 = vmatpush1.bf16.msra.mxu0 0
      %2812 = vmatprep.subr.bf16.mxu0 0
      %2813 = vmatpush1.bf16.msra.mxu0 0
      %2814 = vmatprep.subr.bf16.mxu0 0
      %2815 = vmatpush1.bf16.msra.mxu0 0
      %2816 = vmatprep.subr.bf16.mxu0 0
      %2817 = vmatpush1.bf16.msra.mxu0 0
      %2818 = vmatprep.subr.bf16.mxu0 0
      %2819 = vmatpush1.bf16.msra.mxu0 0
      %2820 = vmatprep.subr.bf16.mxu0 0
      %2821 = vmatpush1.bf16.msra.mxu0 0
      %2822 = vmatprep.mubr.bf16.mxu0 0
      %2823 = vmatmul.mubr.bf16.gmra.mrb[0].mxu0 %v2677
      %v2824 = vpop.f32.mrb[0].mxu0
      %v2825 = vadd.f32 0.0, %v2824
      %v2826 = vpop.f32.mrb[0].mxu0
      %v2827 = vpop.f32.mrb[0].mxu0
      %v2828 = vadd.f32 0.0, %v2827
      %v2829 = vpop.f32.mrb[0].mxu0
      %2830 = vmatprep.mubr.bf16.mxu0 0
      %2831 = vmatmul.mubr.bf16.gmra.mrb[0].mxu0 %v2678
      %v2832 = vpop.f32.mrb[0].mxu0
      %v2833 = vadd.f32 0.0, %v2832
      %v2834 = vpop.f32.mrb[0].mxu0
      %v2835 = vpop.f32.mrb[0].mxu0
      %v2836 = vadd.f32 0.0, %v2835
      %v2837 = vpop.f32.mrb[0].mxu0
      %2838 = vmatprep.mubr.bf16.mxu0 0
      %2839 = vmatmul.mubr.bf16.gmra.mrb[0].mxu0 %v2679
      %v2840 = vpop.f32.mrb[0].mxu0
      %v2841 = vadd.f32 0.0, %v2840
      %v2842 = vpop.f32.mrb[0].mxu0
      %v2843 = vpop.f32.mrb[0].mxu0
      %v2844 = vadd.f32 0.0, %v2843
      %v2845 = vpop.f32.mrb[0].mxu0
      %2846 = vmatprep.mubr.bf16.mxu0 0
      %2847 = vmatmul.mubr.bf16.gmra.mrb[0].mxu0 %v2680
      %v2848 = vpop.f32.mrb[0].mxu0
      %v2849 = vadd.f32 0.0, %v2848
      %v2850 = vpop.f32.mrb[0].mxu0
      %v2851 = vpop.f32.mrb[0].mxu0
      %v2852 = vadd.f32 0.0, %v2851
      %v2853 = vpop.f32.mrb[0].mxu0
      %2854 = vmatprep.mubr.bf16.mxu0 0
      %2855 = vmatmul.mubr.bf16.gmra.mrb[0].mxu0 %v2681
      %v2856 = vpop.f32.mrb[0].mxu0
      %v2857 = vadd.f32 0.0, %v2856
      %v2858 = vpop.f32.mrb[0].mxu0
      %v2859 = vpop.f32.mrb[0].mxu0
      %v2860 = vadd.f32 0.0, %v2859
      %v2861 = vpop.f32.mrb[0].mxu0
      %2862 = vmatprep.mubr.bf16.mxu0 0
      %2863 = vmatmul.mubr.bf16.gmra.mrb[0].mxu0 %v2682
      %v2864 = vpop.f32.mrb[0].mxu0
      %v2865 = vadd.f32 0.0, %v2864
      %v2866 = vpop.f32.mrb[0].mxu0
      %v2867 = vpop.f32.mrb[0].mxu0
      %v2868 = vadd.f32 0.0, %v2867
      %v2869 = vpop.f32.mrb[0].mxu0
      %2870 = vmatprep.mubr.bf16.mxu0 0
      %2871 = vmatmul.mubr.bf16.gmra.mrb[0].mxu0 %v2683
      %v2872 = vpop.f32.mrb[0].mxu0
      %v2873 = vadd.f32 0.0, %v2872
      %v2874 = vpop.f32.mrb[0].mxu0
      %v2875 = vpop.f32.mrb[0].mxu0
      %v2876 = vadd.f32 0.0, %v2875
      %v2877 = vpop.f32.mrb[0].mxu0
      %2878 = vmatprep.mubr.bf16.mxu0 0
      %2879 = vmatmul.mubr.bf16.gmra.mrb[0].mxu0 %v2684
      %v2880 = vpop.f32.mrb[0].mxu0
      %v2881 = vadd.f32 0.0, %v2880
      %v2882 = vpop.f32.mrb[0].mxu0
      %v2883 = vpop.f32.mrb[0].mxu0
      %v2884 = vadd.f32 0.0, %v2883
      %v2885 = vpop.f32.mrb[0].mxu0
      %2886 = vmatprep.mubr.bf16.mxu0 0
      %2887 = vmatmul.mubr.bf16.gmra.mrb[0].mxu0 %v2685
      %v2888 = vpop.f32.mrb[0].mxu0
      %v2889 = vadd.f32 0.0, %v2888
      %v2890 = vpop.f32.mrb[0].mxu0
      %v2891 = vpop.f32.mrb[0].mxu0
      %v2892 = vadd.f32 0.0, %v2891
      %v2893 = vpop.f32.mrb[0].mxu0
      %2894 = vmatprep.mubr.bf16.mxu0 0
      %2895 = vmatmul.mubr.bf16.gmra.mrb[0].mxu0 %v2686
      %v2896 = vpop.f32.mrb[0].mxu0
      %v2897 = vadd.f32 0.0, %v2896
      %v2898 = vpop.f32.mrb[0].mxu0
      %v2899 = vpop.f32.mrb[0].mxu0
      %v2900 = vadd.f32 0.0, %v2899
      %v2901 = vpop.f32.mrb[0].mxu0
      %2902 = vmatprep.mubr.bf16.mxu0 0
      %2903 = vmatmul.mubr.bf16.gmra.mrb[0].mxu0 %v2687
      %v2904 = vpop.f32.mrb[0].mxu0
      %v2905 = vadd.f32 0.0, %v2904
      %v2906 = vpop.f32.mrb[0].mxu0
      %v2907 = vpop.f32.mrb[0].mxu0
      %v2908 = vadd.f32 0.0, %v2907
      %v2909 = vpop.f32.mrb[0].mxu0
      %2910 = vmatprep.mubr.bf16.mxu0 0
      %2911 = vmatmul.mubr.bf16.gmra.mrb[0].mxu0 %v2688
      %v2912 = vpop.f32.mrb[0].mxu0
      %v2913 = vadd.f32 0.0, %v2912
      %v2914 = vpop.f32.mrb[0].mxu0
      %v2915 = vpop.f32.mrb[0].mxu0
      %v2916 = vadd.f32 0.0, %v2915
      %v2917 = vpop.f32.mrb[0].mxu0
      %2918 = vmatprep.mubr.bf16.mxu0 0
      %2919 = vmatmul.mubr.bf16.gmra.mrb[0].mxu0 %v2689
      %v2920 = vpop.f32.mrb[0].mxu0
      %v2921 = vadd.f32 0.0, %v2920
      %v2922 = vpop.f32.mrb[0].mxu0
      %v2923 = vpop.f32.mrb[0].mxu0
      %v2924 = vadd.f32 0.0, %v2923
      %v2925 = vpop.f32.mrb[0].mxu0
      %2926 = vmatprep.mubr.bf16.mxu0 0
      %2927 = vmatmul.mubr.bf16.gmra.mrb[0].mxu0 %v2690
      %v2928 = vpop.f32.mrb[0].mxu0
      %v2929 = vadd.f32 0.0, %v2928
      %v2930 = vpop.f32.mrb[0].mxu0
      %v2931 = vpop.f32.mrb[0].mxu0
      %v2932 = vadd.f32 0.0, %v2931
      %v2933 = vpop.f32.mrb[0].mxu0
      %2934 = vmatprep.mubr.bf16.mxu0 0
      %2935 = vmatmul.mubr.bf16.gmra.mrb[0].mxu0 %v2691
      %v2936 = vpop.f32.mrb[0].mxu0
      %v2937 = vadd.f32 0.0, %v2936
      %v2938 = vpop.f32.mrb[0].mxu0
      %v2939 = vpop.f32.mrb[0].mxu0
      %v2940 = vadd.f32 0.0, %v2939
      %v2941 = vpop.f32.mrb[0].mxu0
      %2942 = vmatprep.mubr.bf16.mxu0 0
      %2943 = vmatmul.mubr.bf16.gmra.mrb[0].mxu0 %v2692
      %v2944 = vpop.f32.mrb[0].mxu0
      %v2945 = vadd.f32 0.0, %v2944
      %v2946 = vpop.f32.mrb[0].mxu0
      %v2947 = vpop.f32.mrb[0].mxu0
      %v2948 = vadd.f32 0.0, %v2947
      %v2949 = vpop.f32.mrb[0].mxu0
      %2950 = vdwg.mxu0
      %v2951 = vadd.f32 %v2693, %v2825
      %v2952 = vadd.f32 %v2694, %v2828
      %v2953 = vadd.f32 %v2695, %v2833
      %v2954 = vadd.f32 %v2696, %v2836
      %v2955 = vadd.f32 %v2697, %v2841
      %v2956 = vadd.f32 %v2698, %v2844
      %v2957 = vadd.f32 %v2699, %v2849
      %v2958 = vadd.f32 %v2700, %v2852
      %v2959 = vadd.f32 %v2701, %v2857
      %v2960 = vadd.f32 %v2702, %v2860
      %v2961 = vadd.f32 %v2703, %v2865
      %v2962 = vadd.f32 %v2704, %v2868
      %v2963 = vadd.f32 %v2705, %v2873
      %v2964 = vadd.f32 %v2706, %v2876
      %v2965 = vadd.f32 %v2707, %v2881
      %v2966 = vadd.f32 %v2708, %v2884
      %v2967 = vadd.f32 %v2709, %v2889
      %v2968 = vadd.f32 %v2710, %v2892
      %v2969 = vadd.f32 %v2711, %v2897
      %v2970 = vadd.f32 %v2712, %v2900
      %v2971 = vadd.f32 %v2713, %v2905
      %v2972 = vadd.f32 %v2714, %v2908
      %v2973 = vadd.f32 %v2715, %v2913
      %v2974 = vadd.f32 %v2716, %v2916
      %v2975 = vadd.f32 %v2717, %v2921
      %v2976 = vadd.f32 %v2718, %v2924
      %v2977 = vadd.f32 %v2719, %v2929
      %v2978 = vadd.f32 %v2720, %v2932
      %v2979 = vadd.f32 %v2721, %v2937
      %v2980 = vadd.f32 %v2722, %v2940
      %v2981 = vadd.f32 %v2723, %v2945
      %v2982 = vadd.f32 %v2724, %v2948
      %2983 = vst [vmem:[#allocation3] sm:$0xff] %v2951
      %2984 = vst [vmem:[#allocation3 + $0x8] sm:$0xff] %v2952
      %2985 = vst [vmem:[#allocation3 + $0x10] sm:$0xff] %v2953
      %2986 = vst [vmem:[#allocation3 + $0x18] sm:$0xff] %v2954
      %2987 = vst [vmem:[#allocation3 + $0x20] sm:$0xff] %v2955
      %2988 = vst [vmem:[#allocation3 + $0x28] sm:$0xff] %v2956
      %2989 = vst [vmem:[#allocation3 + $0x30] sm:$0xff] %v2957
      %2990 = vst [vmem:[#allocation3 + $0x38] sm:$0xff] %v2958
      %2991 = vst [vmem:[#allocation3 + $0x40] sm:$0xff] %v2959
      %2992 = vst [vmem:[#allocation3 + $0x48] sm:$0xff] %v2960
      %2993 = vst [vmem:[#allocation3 + $0x50] sm:$0xff] %v2961
      %2994 = vst [vmem:[#allocation3 + $0x58] sm:$0xff] %v2962
      %2995 = vst [vmem:[#allocation3 + $0x60] sm:$0xff] %v2963
      %2996 = vst [vmem:[#allocation3 + $0x68] sm:$0xff] %v2964
      %2997 = vst [vmem:[#allocation3 + $0x70] sm:$0xff] %v2965
      %2998 = vst [vmem:[#allocation3 + $0x78] sm:$0xff] %v2966
      %2999 = vst [vmem:[#allocation3 + $0x80] sm:$0xff] %v2967
      %3000 = vst [vmem:[#allocation3 + $0x88] sm:$0xff] %v2968
      %3001 = vst [vmem:[#allocation3 + $0x90] sm:$0xff] %v2969
      %3002 = vst [vmem:[#allocation3 + $0x98] sm:$0xff] %v2970
      %3003 = vst [vmem:[#allocation3 + $0xa0] sm:$0xff] %v2971
      %3004 = vst [vmem:[#allocation3 + $0xa8] sm:$0xff] %v2972
      %3005 = vst [vmem:[#allocation3 + $0xb0] sm:$0xff] %v2973
      %3006 = vst [vmem:[#allocation3 + $0xb8] sm:$0xff] %v2974
      %3007 = vst [vmem:[#allocation3 + $0xc0] sm:$0xff] %v2975
      %3008 = vst [vmem:[#allocation3 + $0xc8] sm:$0xff] %v2976
      %3009 = vst [vmem:[#allocation3 + $0xd0] sm:$0xff] %v2977
      %3010 = vst [vmem:[#allocation3 + $0xd8] sm:$0xff] %v2978
      %3011 = vst [vmem:[#allocation3 + $0xe0] sm:$0xff] %v2979
      %3012 = vst [vmem:[#allocation3 + $0xe8] sm:$0xff] %v2980
      %3013 = vst [vmem:[#allocation3 + $0xf0] sm:$0xff] %v2981
      %3014 = vst [vmem:[#allocation3 + $0xf8] sm:$0xff] %v2982
      %v3015 = vld [vmem:[%s2644 + $0x1] sm:$0xff]
      %v3016 = vld [vmem:[%s2644 + $0x9] sm:$0xff]
      %v3017 = vld [vmem:[%s2644 + $0x19] sm:$0xff]
      %v3018 = vld [vmem:[%s2644 + $0x21] sm:$0xff]
      %v3019 = vld [vmem:[%s2644 + $0x31] sm:$0xff]
      %v3020 = vld [vmem:[%s2644 + $0x39] sm:$0xff]
      %v3021 = vld [vmem:[%s2644 + $0x49] sm:$0xff]
      %v3022 = vld [vmem:[%s2644 + $0x51] sm:$0xff]
      %v3023 = vld [vmem:[%s2644 + $0x61] sm:$0xff]
      %v3024 = vld [vmem:[%s2644 + $0x69] sm:$0xff]
      %v3025 = vld [vmem:[%s2644 + $0x79] sm:$0xff]
      %v3026 = vld [vmem:[%s2644 + $0x81] sm:$0xff]
      %v3027 = vld [vmem:[%s2644 + $0x91] sm:$0xff]
      %v3028 = vld [vmem:[%s2644 + $0x99] sm:$0xff]
      %v3029 = vld [vmem:[%s2644 + $0xa9] sm:$0xff]
      %v3030 = vld [vmem:[%s2644 + $0xb1] sm:$0xff]
      %v3031 = vld [vmem:[%s2644 + $0xc1] sm:$0xff]
      %v3032 = vld [vmem:[%s2644 + $0xc9] sm:$0xff]
      %v3033 = vld [vmem:[%s2644 + $0xd9] sm:$0xff]
      %v3034 = vld [vmem:[%s2644 + $0xe1] sm:$0xff]
      %v3035 = vld [vmem:[%s2644 + $0xf1] sm:$0xff]
      %v3036 = vld [vmem:[%s2644 + $0xf9] sm:$0xff]
      %v3037 = vld [vmem:[%s2644 + $0x109] sm:$0xff]
      %v3038 = vld [vmem:[%s2644 + $0x111] sm:$0xff]
      %v3039 = vld [vmem:[%s2644 + $0x121] sm:$0xff]
      %v3040 = vld [vmem:[%s2644 + $0x129] sm:$0xff]
      %v3041 = vld [vmem:[%s2644 + $0x139] sm:$0xff]
      %v3042 = vld [vmem:[%s2644 + $0x141] sm:$0xff]
      %v3043 = vld [vmem:[%s2644 + $0x151] sm:$0xff]
      %v3044 = vld [vmem:[%s2644 + $0x159] sm:$0xff]
      %v3045 = vld [vmem:[%s2644 + $0x169] sm:$0xff]
      %v3046 = vld [vmem:[%s2644 + $0x171] sm:$0xff]
      %v3047 = vpack.c.bf16 %v3016, %v3015
      %v3048 = vpack.c.bf16 %v3018, %v3017
      %v3049 = vpack.c.bf16 %v3020, %v3019
      %v3050 = vpack.c.bf16 %v3022, %v3021
      %v3051 = vpack.c.bf16 %v3024, %v3023
      %v3052 = vpack.c.bf16 %v3026, %v3025
      %v3053 = vpack.c.bf16 %v3028, %v3027
      %v3054 = vpack.c.bf16 %v3030, %v3029
      %v3055 = vpack.c.bf16 %v3032, %v3031
      %v3056 = vpack.c.bf16 %v3034, %v3033
      %v3057 = vpack.c.bf16 %v3036, %v3035
      %v3058 = vpack.c.bf16 %v3038, %v3037
      %v3059 = vpack.c.bf16 %v3040, %v3039
      %v3060 = vpack.c.bf16 %v3042, %v3041
      %v3061 = vpack.c.bf16 %v3044, %v3043
      %v3062 = vpack.c.bf16 %v3046, %v3045
      %v3063 = vld [vmem:[#allocation3] sm:$0xff]
      %v3064 = vld [vmem:[#allocation3 + $0x8] sm:$0xff]
      %v3065 = vld [vmem:[#allocation3 + $0x10] sm:$0xff]
      %v3066 = vld [vmem:[#allocation3 + $0x18] sm:$0xff]
      %v3067 = vld [vmem:[#allocation3 + $0x20] sm:$0xff]
      %v3068 = vld [vmem:[#allocation3 + $0x28] sm:$0xff]
      %v3069 = vld [vmem:[#allocation3 + $0x30] sm:$0xff]
      %v3070 = vld [vmem:[#allocation3 + $0x38] sm:$0xff]
      %v3071 = vld [vmem:[#allocation3 + $0x40] sm:$0xff]
      %v3072 = vld [vmem:[#allocation3 + $0x48] sm:$0xff]
      %v3073 = vld [vmem:[#allocation3 + $0x50] sm:$0xff]
      %v3074 = vld [vmem:[#allocation3 + $0x58] sm:$0xff]
      %v3075 = vld [vmem:[#allocation3 + $0x60] sm:$0xff]
      %v3076 = vld [vmem:[#allocation3 + $0x68] sm:$0xff]
      %v3077 = vld [vmem:[#allocation3 + $0x70] sm:$0xff]
      %v3078 = vld [vmem:[#allocation3 + $0x78] sm:$0xff]
      %v3079 = vld [vmem:[#allocation3 + $0x80] sm:$0xff]
      %v3080 = vld [vmem:[#allocation3 + $0x88] sm:$0xff]
      %v3081 = vld [vmem:[#allocation3 + $0x90] sm:$0xff]
      %v3082 = vld [vmem:[#allocation3 + $0x98] sm:$0xff]
      %v3083 = vld [vmem:[#allocation3 + $0xa0] sm:$0xff]
      %v3084 = vld [vmem:[#allocation3 + $0xa8] sm:$0xff]
      %v3085 = vld [vmem:[#allocation3 + $0xb0] sm:$0xff]
      %v3086 = vld [vmem:[#allocation3 + $0xb8] sm:$0xff]
      %v3087 = vld [vmem:[#allocation3 + $0xc0] sm:$0xff]
      %v3088 = vld [vmem:[#allocation3 + $0xc8] sm:$0xff]
      %v3089 = vld [vmem:[#allocation3 + $0xd0] sm:$0xff]
      %v3090 = vld [vmem:[#allocation3 + $0xd8] sm:$0xff]
      %v3091 = vld [vmem:[#allocation3 + $0xe0] sm:$0xff]
      %v3092 = vld [vmem:[#allocation3 + $0xe8] sm:$0xff]
      %v3093 = vld [vmem:[#allocation3 + $0xf0] sm:$0xff]
      %v3094 = vld [vmem:[#allocation3 + $0xf8] sm:$0xff]
      %s3095 = scalar_lea.vmem %s1, 448
      %v3096 = vld [vmem:[%s3095] sm:$0xf]
      %v3097 = vld [vmem:[%s3095 + $0x4] sm:$0xf]
      %v3098 = vld [vmem:[%s3095 + $0x8] sm:$0xf]
      %v3099 = vld [vmem:[%s3095 + $0xc] sm:$0xf]
      %v3100 = vld [vmem:[%s3095 + $0x10] sm:$0xf]
      %v3101 = vld [vmem:[%s3095 + $0x14] sm:$0xf]
      %v3102 = vld [vmem:[%s3095 + $0x18] sm:$0xf]
      %v3103 = vld [vmem:[%s3095 + $0x1c] sm:$0xf]
      %v3104 = vld [vmem:[%s3095 + $0x20] sm:$0xf]
      %v3105 = vld [vmem:[%s3095 + $0x24] sm:$0xf]
      %v3106 = vld [vmem:[%s3095 + $0x28] sm:$0xf]
      %v3107 = vld [vmem:[%s3095 + $0x2c] sm:$0xf]
      %v3108 = vld [vmem:[%s3095 + $0x30] sm:$0xf]
      %v3109 = vld [vmem:[%s3095 + $0x34] sm:$0xf]
      %v3110 = vld [vmem:[%s3095 + $0x38] sm:$0xf]
      %v3111 = vld [vmem:[%s3095 + $0x3c] sm:$0xf]
      %v3128 = vunpack.c.l.b16 %v3096
      %v3129 = vunpack.c.l.b16 %v3097
      %v3130 = vunpack.c.l.b16 %v3098
      %v3131 = vunpack.c.l.b16 %v3099
      %v3132 = vunpack.c.l.b16 %v3100
      %v3133 = vunpack.c.l.b16 %v3101
      %v3134 = vunpack.c.l.b16 %v3102
      %v3135 = vunpack.c.l.b16 %v3103
      %v3136 = vunpack.c.l.b16 %v3104
      %v3137 = vunpack.c.l.b16 %v3105
      %v3138 = vunpack.c.l.b16 %v3106
      %v3139 = vunpack.c.l.b16 %v3107
      %v3140 = vunpack.c.l.b16 %v3108
      %v3141 = vunpack.c.l.b16 %v3109
      %v3142 = vunpack.c.l.b16 %v3110
      %v3143 = vunpack.c.l.b16 %v3111
      %v3144 = vpack.c.b16 %v3129, %v3128
      %v3145 = vpack.c.b16 %v3131, %v3130
      %v3146 = vpack.c.b16 %v3133, %v3132
      %v3147 = vpack.c.b16 %v3135, %v3134
      %v3148 = vpack.c.b16 %v3137, %v3136
      %v3149 = vpack.c.b16 %v3139, %v3138
      %v3150 = vpack.c.b16 %v3141, %v3140
      %v3151 = vpack.c.b16 %v3143, %v3142
      %3160 = vmatprep.subr.bf16.mxu0 0
      %3161 = vmatpush1.bf16.msra.mxu0 %v3144
      %3162 = vmatprep.subr.bf16.mxu0 0
      %3163 = vmatpush1.bf16.msra.mxu0 %v3145
      %3164 = vmatprep.subr.bf16.mxu0 0
      %3165 = vmatpush1.bf16.msra.mxu0 %v3146
      %3166 = vmatprep.subr.bf16.mxu0 0
      %3167 = vmatpush1.bf16.msra.mxu0 %v3147
      %3168 = vmatprep.subr.bf16.mxu0 0
      %3169 = vmatpush1.bf16.msra.mxu0 %v3148
      %3170 = vmatprep.subr.bf16.mxu0 0
      %3171 = vmatpush1.bf16.msra.mxu0 %v3149
      %3172 = vmatprep.subr.bf16.mxu0 0
      %3173 = vmatpush1.bf16.msra.mxu0 %v3150
      %3174 = vmatprep.subr.bf16.mxu0 0
      %3175 = vmatpush1.bf16.msra.mxu0 %v3151
      %3176 = vmatprep.subr.bf16.mxu0 0
      %3177 = vmatpush1.bf16.msra.mxu0 0
      %3178 = vmatprep.subr.bf16.mxu0 0
      %3179 = vmatpush1.bf16.msra.mxu0 0
      %3180 = vmatprep.subr.bf16.mxu0 0
      %3181 = vmatpush1.bf16.msra.mxu0 0
      %3182 = vmatprep.subr.bf16.mxu0 0
      %3183 = vmatpush1.bf16.msra.mxu0 0
      %3184 = vmatprep.subr.bf16.mxu0 0
      %3185 = vmatpush1.bf16.msra.mxu0 0
      %3186 = vmatprep.subr.bf16.mxu0 0
      %3187 = vmatpush1.bf16.msra.mxu0 0
      %3188 = vmatprep.subr.bf16.mxu0 0
      %3189 = vmatpush1.bf16.msra.mxu0 0
      %3190 = vmatprep.subr.bf16.mxu0 0
      %3191 = vmatpush1.bf16.msra.mxu0 0
      %3192 = vmatprep.mubr.bf16.mxu0 0
      %3193 = vmatmul.mubr.bf16.gmra.mrb[0].mxu0 %v3047
      %v3194 = vpop.f32.mrb[0].mxu0
      %v3195 = vadd.f32 0.0, %v3194
      %v3196 = vpop.f32.mrb[0].mxu0
      %v3197 = vpop.f32.mrb[0].mxu0
      %v3198 = vadd.f32 0.0, %v3197
      %v3199 = vpop.f32.mrb[0].mxu0
      %3200 = vmatprep.mubr.bf16.mxu0 0
      %3201 = vmatmul.mubr.bf16.gmra.mrb[0].mxu0 %v3048
      %v3202 = vpop.f32.mrb[0].mxu0
      %v3203 = vadd.f32 0.0, %v3202
      %v3204 = vpop.f32.mrb[0].mxu0
      %v3205 = vpop.f32.mrb[0].mxu0
      %v3206 = vadd.f32 0.0, %v3205
      %v3207 = vpop.f32.mrb[0].mxu0
      %3208 = vmatprep.mubr.bf16.mxu0 0
      %3209 = vmatmul.mubr.bf16.gmra.mrb[0].mxu0 %v3049
      %v3210 = vpop.f32.mrb[0].mxu0
      %v3211 = vadd.f32 0.0, %v3210
      %v3212 = vpop.f32.mrb[0].mxu0
      %v3213 = vpop.f32.mrb[0].mxu0
      %v3214 = vadd.f32 0.0, %v3213
      %v3215 = vpop.f32.mrb[0].mxu0
      %3216 = vmatprep.mubr.bf16.mxu0 0
      %3217 = vmatmul.mubr.bf16.gmra.mrb[0].mxu0 %v3050
      %v3218 = vpop.f32.mrb[0].mxu0
      %v3219 = vadd.f32 0.0, %v3218
      %v3220 = vpop.f32.mrb[0].mxu0
      %v3221 = vpop.f32.mrb[0].mxu0
      %v3222 = vadd.f32 0.0, %v3221
      %v3223 = vpop.f32.mrb[0].mxu0
      %3224 = vmatprep.mubr.bf16.mxu0 0
      %3225 = vmatmul.mubr.bf16.gmra.mrb[0].mxu0 %v3051
      %v3226 = vpop.f32.mrb[0].mxu0
      %v3227 = vadd.f32 0.0, %v3226
      %v3228 = vpop.f32.mrb[0].mxu0
      %v3229 = vpop.f32.mrb[0].mxu0
      %v3230 = vadd.f32 0.0, %v3229
      %v3231 = vpop.f32.mrb[0].mxu0
      %3232 = vmatprep.mubr.bf16.mxu0 0
      %3233 = vmatmul.mubr.bf16.gmra.mrb[0].mxu0 %v3052
      %v3234 = vpop.f32.mrb[0].mxu0
      %v3235 = vadd.f32 0.0, %v3234
      %v3236 = vpop.f32.mrb[0].mxu0
      %v3237 = vpop.f32.mrb[0].mxu0
      %v3238 = vadd.f32 0.0, %v3237
      %v3239 = vpop.f32.mrb[0].mxu0
      %3240 = vmatprep.mubr.bf16.mxu0 0
      %3241 = vmatmul.mubr.bf16.gmra.mrb[0].mxu0 %v3053
      %v3242 = vpop.f32.mrb[0].mxu0
      %v3243 = vadd.f32 0.0, %v3242
      %v3244 = vpop.f32.mrb[0].mxu0
      %v3245 = vpop.f32.mrb[0].mxu0
      %v3246 = vadd.f32 0.0, %v3245
      %v3247 = vpop.f32.mrb[0].mxu0
      %3248 = vmatprep.mubr.bf16.mxu0 0
      %3249 = vmatmul.mubr.bf16.gmra.mrb[0].mxu0 %v3054
      %v3250 = vpop.f32.mrb[0].mxu0
      %v3251 = vadd.f32 0.0, %v3250
      %v3252 = vpop.f32.mrb[0].mxu0
      %v3253 = vpop.f32.mrb[0].mxu0
      %v3254 = vadd.f32 0.0, %v3253
      %v3255 = vpop.f32.mrb[0].mxu0
      %3256 = vmatprep.mubr.bf16.mxu0 0
      %3257 = vmatmul.mubr.bf16.gmra.mrb[0].mxu0 %v3055
      %v3258 = vpop.f32.mrb[0].mxu0
      %v3259 = vadd.f32 0.0, %v3258
      %v3260 = vpop.f32.mrb[0].mxu0
      %v3261 = vpop.f32.mrb[0].mxu0
      %v3262 = vadd.f32 0.0, %v3261
      %v3263 = vpop.f32.mrb[0].mxu0
      %3264 = vmatprep.mubr.bf16.mxu0 0
      %3265 = vmatmul.mubr.bf16.gmra.mrb[0].mxu0 %v3056
      %v3266 = vpop.f32.mrb[0].mxu0
      %v3267 = vadd.f32 0.0, %v3266
      %v3268 = vpop.f32.mrb[0].mxu0
      %v3269 = vpop.f32.mrb[0].mxu0
      %v3270 = vadd.f32 0.0, %v3269
      %v3271 = vpop.f32.mrb[0].mxu0
      %3272 = vmatprep.mubr.bf16.mxu0 0
      %3273 = vmatmul.mubr.bf16.gmra.mrb[0].mxu0 %v3057
      %v3274 = vpop.f32.mrb[0].mxu0
      %v3275 = vadd.f32 0.0, %v3274
      %v3276 = vpop.f32.mrb[0].mxu0
      %v3277 = vpop.f32.mrb[0].mxu0
      %v3278 = vadd.f32 0.0, %v3277
      %v3279 = vpop.f32.mrb[0].mxu0
      %3280 = vmatprep.mubr.bf16.mxu0 0
      %3281 = vmatmul.mubr.bf16.gmra.mrb[0].mxu0 %v3058
      %v3282 = vpop.f32.mrb[0].mxu0
      %v3283 = vadd.f32 0.0, %v3282
      %v3284 = vpop.f32.mrb[0].mxu0
      %v3285 = vpop.f32.mrb[0].mxu0
      %v3286 = vadd.f32 0.0, %v3285
      %v3287 = vpop.f32.mrb[0].mxu0
      %3288 = vmatprep.mubr.bf16.mxu0 0
      %3289 = vmatmul.mubr.bf16.gmra.mrb[0].mxu0 %v3059
      %v3290 = vpop.f32.mrb[0].mxu0
      %v3291 = vadd.f32 0.0, %v3290
      %v3292 = vpop.f32.mrb[0].mxu0
      %v3293 = vpop.f32.mrb[0].mxu0
      %v3294 = vadd.f32 0.0, %v3293
      %v3295 = vpop.f32.mrb[0].mxu0
      %3296 = vmatprep.mubr.bf16.mxu0 0
      %3297 = vmatmul.mubr.bf16.gmra.mrb[0].mxu0 %v3060
      %v3298 = vpop.f32.mrb[0].mxu0
      %v3299 = vadd.f32 0.0, %v3298
      %v3300 = vpop.f32.mrb[0].mxu0
      %v3301 = vpop.f32.mrb[0].mxu0
      %v3302 = vadd.f32 0.0, %v3301
      %v3303 = vpop.f32.mrb[0].mxu0
      %3304 = vmatprep.mubr.bf16.mxu0 0
      %3305 = vmatmul.mubr.bf16.gmra.mrb[0].mxu0 %v3061
      %v3306 = vpop.f32.mrb[0].mxu0
      %v3307 = vadd.f32 0.0, %v3306
      %v3308 = vpop.f32.mrb[0].mxu0
      %v3309 = vpop.f32.mrb[0].mxu0
      %v3310 = vadd.f32 0.0, %v3309
      %v3311 = vpop.f32.mrb[0].mxu0
      %3312 = vmatprep.mubr.bf16.mxu0 0
      %3313 = vmatmul.mubr.bf16.gmra.mrb[0].mxu0 %v3062
      %v3314 = vpop.f32.mrb[0].mxu0
      %v3315 = vadd.f32 0.0, %v3314
      %v3316 = vpop.f32.mrb[0].mxu0
      %v3317 = vpop.f32.mrb[0].mxu0
      %v3318 = vadd.f32 0.0, %v3317
      %v3319 = vpop.f32.mrb[0].mxu0
      %3320 = vdwg.mxu0
      %v3321 = vadd.f32 %v3063, %v3195
      %v3322 = vadd.f32 %v3064, %v3198
      %v3323 = vadd.f32 %v3065, %v3203
      %v3324 = vadd.f32 %v3066, %v3206
      %v3325 = vadd.f32 %v3067, %v3211
      %v3326 = vadd.f32 %v3068, %v3214
      %v3327 = vadd.f32 %v3069, %v3219
      %v3328 = vadd.f32 %v3070, %v3222
      %v3329 = vadd.f32 %v3071, %v3227
      %v3330 = vadd.f32 %v3072, %v3230
      %v3331 = vadd.f32 %v3073, %v3235
      %v3332 = vadd.f32 %v3074, %v3238
      %v3333 = vadd.f32 %v3075, %v3243
      %v3334 = vadd.f32 %v3076, %v3246
      %v3335 = vadd.f32 %v3077, %v3251
      %v3336 = vadd.f32 %v3078, %v3254
      %v3337 = vadd.f32 %v3079, %v3259
      %v3338 = vadd.f32 %v3080, %v3262
      %v3339 = vadd.f32 %v3081, %v3267
      %v3340 = vadd.f32 %v3082, %v3270
      %v3341 = vadd.f32 %v3083, %v3275
      %v3342 = vadd.f32 %v3084, %v3278
      %v3343 = vadd.f32 %v3085, %v3283
      %v3344 = vadd.f32 %v3086, %v3286
      %v3345 = vadd.f32 %v3087, %v3291
      %v3346 = vadd.f32 %v3088, %v3294
      %v3347 = vadd.f32 %v3089, %v3299
      %v3348 = vadd.f32 %v3090, %v3302
      %v3349 = vadd.f32 %v3091, %v3307
      %v3350 = vadd.f32 %v3092, %v3310
      %v3351 = vadd.f32 %v3093, %v3315
      %v3352 = vadd.f32 %v3094, %v3318
      %3353 = vst [vmem:[#allocation3] sm:$0xff] %v3321
      %3354 = vst [vmem:[#allocation3 + $0x8] sm:$0xff] %v3322
      %3355 = vst [vmem:[#allocation3 + $0x10] sm:$0xff] %v3323
      %3356 = vst [vmem:[#allocation3 + $0x18] sm:$0xff] %v3324
      %3357 = vst [vmem:[#allocation3 + $0x20] sm:$0xff] %v3325
      %3358 = vst [vmem:[#allocation3 + $0x28] sm:$0xff] %v3326
      %3359 = vst [vmem:[#allocation3 + $0x30] sm:$0xff] %v3327
      %3360 = vst [vmem:[#allocation3 + $0x38] sm:$0xff] %v3328
      %3361 = vst [vmem:[#allocation3 + $0x40] sm:$0xff] %v3329
      %3362 = vst [vmem:[#allocation3 + $0x48] sm:$0xff] %v3330
      %3363 = vst [vmem:[#allocation3 + $0x50] sm:$0xff] %v3331
      %3364 = vst [vmem:[#allocation3 + $0x58] sm:$0xff] %v3332
      %3365 = vst [vmem:[#allocation3 + $0x60] sm:$0xff] %v3333
      %3366 = vst [vmem:[#allocation3 + $0x68] sm:$0xff] %v3334
      %3367 = vst [vmem:[#allocation3 + $0x70] sm:$0xff] %v3335
      %3368 = vst [vmem:[#allocation3 + $0x78] sm:$0xff] %v3336
      %3369 = vst [vmem:[#allocation3 + $0x80] sm:$0xff] %v3337
      %3370 = vst [vmem:[#allocation3 + $0x88] sm:$0xff] %v3338
      %3371 = vst [vmem:[#allocation3 + $0x90] sm:$0xff] %v3339
      %3372 = vst [vmem:[#allocation3 + $0x98] sm:$0xff] %v3340
      %3373 = vst [vmem:[#allocation3 + $0xa0] sm:$0xff] %v3341
      %3374 = vst [vmem:[#allocation3 + $0xa8] sm:$0xff] %v3342
      %3375 = vst [vmem:[#allocation3 + $0xb0] sm:$0xff] %v3343
      %3376 = vst [vmem:[#allocation3 + $0xb8] sm:$0xff] %v3344
      %3377 = vst [vmem:[#allocation3 + $0xc0] sm:$0xff] %v3345
      %3378 = vst [vmem:[#allocation3 + $0xc8] sm:$0xff] %v3346
      %3379 = vst [vmem:[#allocation3 + $0xd0] sm:$0xff] %v3347
      %3380 = vst [vmem:[#allocation3 + $0xd8] sm:$0xff] %v3348
      %3381 = vst [vmem:[#allocation3 + $0xe0] sm:$0xff] %v3349
      %3382 = vst [vmem:[#allocation3 + $0xe8] sm:$0xff] %v3350
      %3383 = vst [vmem:[#allocation3 + $0xf0] sm:$0xff] %v3351
      %3384 = vst [vmem:[#allocation3 + $0xf8] sm:$0xff] %v3352
      %v3385 = vld [vmem:[%s2644 + $0x2] sm:$0xff]
      %v3386 = vld [vmem:[%s2644 + $0xa] sm:$0xff]
      %v3387 = vld [vmem:[%s2644 + $0x1a] sm:$0xff]
      %v3388 = vld [vmem:[%s2644 + $0x22] sm:$0xff]
      %v3389 = vld [vmem:[%s2644 + $0x32] sm:$0xff]
      %v3390 = vld [vmem:[%s2644 + $0x3a] sm:$0xff]
      %v3391 = vld [vmem:[%s2644 + $0x4a] sm:$0xff]
      %v3392 = vld [vmem:[%s2644 + $0x52] sm:$0xff]
      %v3393 = vld [vmem:[%s2644 + $0x62] sm:$0xff]
      %v3394 = vld [vmem:[%s2644 + $0x6a] sm:$0xff]
      %v3395 = vld [vmem:[%s2644 + $0x7a] sm:$0xff]
      %v3396 = vld [vmem:[%s2644 + $0x82] sm:$0xff]
      %v3397 = vld [vmem:[%s2644 + $0x92] sm:$0xff]
      %v3398 = vld [vmem:[%s2644 + $0x9a] sm:$0xff]
      %v3399 = vld [vmem:[%s2644 + $0xaa] sm:$0xff]
      %v3400 = vld [vmem:[%s2644 + $0xb2] sm:$0xff]
      %v3401 = vld [vmem:[%s2644 + $0xc2] sm:$0xff]
      %v3402 = vld [vmem:[%s2644 + $0xca] sm:$0xff]
      %v3403 = vld [vmem:[%s2644 + $0xda] sm:$0xff]
      %v3404 = vld [vmem:[%s2644 + $0xe2] sm:$0xff]
      %v3405 = vld [vmem:[%s2644 + $0xf2] sm:$0xff]
      %v3406 = vld [vmem:[%s2644 + $0xfa] sm:$0xff]
      %v3407 = vld [vmem:[%s2644 + $0x10a] sm:$0xff]
      %v3408 = vld [vmem:[%s2644 + $0x112] sm:$0xff]
      %v3409 = vld [vmem:[%s2644 + $0x122] sm:$0xff]
      %v3410 = vld [vmem:[%s2644 + $0x12a] sm:$0xff]
      %v3411 = vld [vmem:[%s2644 + $0x13a] sm:$0xff]
      %v3412 = vld [vmem:[%s2644 + $0x142] sm:$0xff]
      %v3413 = vld [vmem:[%s2644 + $0x152] sm:$0xff]
      %v3414 = vld [vmem:[%s2644 + $0x15a] sm:$0xff]
      %v3415 = vld [vmem:[%s2644 + $0x16a] sm:$0xff]
      %v3416 = vld [vmem:[%s2644 + $0x172] sm:$0xff]
      %v3417 = vpack.c.bf16 %v3386, %v3385
      %v3418 = vpack.c.bf16 %v3388, %v3387
      %v3419 = vpack.c.bf16 %v3390, %v3389
      %v3420 = vpack.c.bf16 %v3392, %v3391
      %v3421 = vpack.c.bf16 %v3394, %v3393
      %v3422 = vpack.c.bf16 %v3396, %v3395
      %v3423 = vpack.c.bf16 %v3398, %v3397
      %v3424 = vpack.c.bf16 %v3400, %v3399
      %v3425 = vpack.c.bf16 %v3402, %v3401
      %v3426 = vpack.c.bf16 %v3404, %v3403
      %v3427 = vpack.c.bf16 %v3406, %v3405
      %v3428 = vpack.c.bf16 %v3408, %v3407
      %v3429 = vpack.c.bf16 %v3410, %v3409
      %v3430 = vpack.c.bf16 %v3412, %v3411
      %v3431 = vpack.c.bf16 %v3414, %v3413
      %v3432 = vpack.c.bf16 %v3416, %v3415
      %v3433 = vld [vmem:[#allocation3] sm:$0xff]
      %v3434 = vld [vmem:[#allocation3 + $0x8] sm:$0xff]
      %v3435 = vld [vmem:[#allocation3 + $0x10] sm:$0xff]
      %v3436 = vld [vmem:[#allocation3 + $0x18] sm:$0xff]
      %v3437 = vld [vmem:[#allocation3 + $0x20] sm:$0xff]
      %v3438 = vld [vmem:[#allocation3 + $0x28] sm:$0xff]
      %v3439 = vld [vmem:[#allocation3 + $0x30] sm:$0xff]
      %v3440 = vld [vmem:[#allocation3 + $0x38] sm:$0xff]
      %v3441 = vld [vmem:[#allocation3 + $0x40] sm:$0xff]
      %v3442 = vld [vmem:[#allocation3 + $0x48] sm:$0xff]
      %v3443 = vld [vmem:[#allocation3 + $0x50] sm:$0xff]
      %v3444 = vld [vmem:[#allocation3 + $0x58] sm:$0xff]
      %v3445 = vld [vmem:[#allocation3 + $0x60] sm:$0xff]
      %v3446 = vld [vmem:[#allocation3 + $0x68] sm:$0xff]
      %v3447 = vld [vmem:[#allocation3 + $0x70] sm:$0xff]
      %v3448 = vld [vmem:[#allocation3 + $0x78] sm:$0xff]
      %v3449 = vld [vmem:[#allocation3 + $0x80] sm:$0xff]
      %v3450 = vld [vmem:[#allocation3 + $0x88] sm:$0xff]
      %v3451 = vld [vmem:[#allocation3 + $0x90] sm:$0xff]
      %v3452 = vld [vmem:[#allocation3 + $0x98] sm:$0xff]
      %v3453 = vld [vmem:[#allocation3 + $0xa0] sm:$0xff]
      %v3454 = vld [vmem:[#allocation3 + $0xa8] sm:$0xff]
      %v3455 = vld [vmem:[#allocation3 + $0xb0] sm:$0xff]
      %v3456 = vld [vmem:[#allocation3 + $0xb8] sm:$0xff]
      %v3457 = vld [vmem:[#allocation3 + $0xc0] sm:$0xff]
      %v3458 = vld [vmem:[#allocation3 + $0xc8] sm:$0xff]
      %v3459 = vld [vmem:[#allocation3 + $0xd0] sm:$0xff]
      %v3460 = vld [vmem:[#allocation3 + $0xd8] sm:$0xff]
      %v3461 = vld [vmem:[#allocation3 + $0xe0] sm:$0xff]
      %v3462 = vld [vmem:[#allocation3 + $0xe8] sm:$0xff]
      %v3463 = vld [vmem:[#allocation3 + $0xf0] sm:$0xff]
      %v3464 = vld [vmem:[#allocation3 + $0xf8] sm:$0xff]
      %s3465 = scalar_lea.vmem %s1, 512
      %v3466 = vld [vmem:[%s3465] sm:$0xf]
      %v3467 = vld [vmem:[%s3465 + $0x4] sm:$0xf]
      %v3468 = vld [vmem:[%s3465 + $0x8] sm:$0xf]
      %v3469 = vld [vmem:[%s3465 + $0xc] sm:$0xf]
      %v3470 = vld [vmem:[%s3465 + $0x10] sm:$0xf]
      %v3471 = vld [vmem:[%s3465 + $0x14] sm:$0xf]
      %v3472 = vld [vmem:[%s3465 + $0x18] sm:$0xf]
      %v3473 = vld [vmem:[%s3465 + $0x1c] sm:$0xf]
      %v3474 = vld [vmem:[%s3465 + $0x20] sm:$0xf]
      %v3475 = vld [vmem:[%s3465 + $0x24] sm:$0xf]
      %v3476 = vld [vmem:[%s3465 + $0x28] sm:$0xf]
      %v3477 = vld [vmem:[%s3465 + $0x2c] sm:$0xf]
      %v3478 = vld [vmem:[%s3465 + $0x30] sm:$0xf]
      %v3479 = vld [vmem:[%s3465 + $0x34] sm:$0xf]
      %v3480 = vld [vmem:[%s3465 + $0x38] sm:$0xf]
      %v3481 = vld [vmem:[%s3465 + $0x3c] sm:$0xf]
      %v3498 = vunpack.c.l.b16 %v3466
      %v3499 = vunpack.c.l.b16 %v3467
      %v3500 = vunpack.c.l.b16 %v3468
      %v3501 = vunpack.c.l.b16 %v3469
      %v3502 = vunpack.c.l.b16 %v3470
      %v3503 = vunpack.c.l.b16 %v3471
      %v3504 = vunpack.c.l.b16 %v3472
      %v3505 = vunpack.c.l.b16 %v3473
      %v3506 = vunpack.c.l.b16 %v3474
      %v3507 = vunpack.c.l.b16 %v3475
      %v3508 = vunpack.c.l.b16 %v3476
      %v3509 = vunpack.c.l.b16 %v3477
      %v3510 = vunpack.c.l.b16 %v3478
      %v3511 = vunpack.c.l.b16 %v3479
      %v3512 = vunpack.c.l.b16 %v3480
      %v3513 = vunpack.c.l.b16 %v3481
      %v3514 = vpack.c.b16 %v3499, %v3498
      %v3515 = vpack.c.b16 %v3501, %v3500
      %v3516 = vpack.c.b16 %v3503, %v3502
      %v3517 = vpack.c.b16 %v3505, %v3504
      %v3518 = vpack.c.b16 %v3507, %v3506
      %v3519 = vpack.c.b16 %v3509, %v3508
      %v3520 = vpack.c.b16 %v3511, %v3510
      %v3521 = vpack.c.b16 %v3513, %v3512
      %3530 = vmatprep.subr.bf16.mxu0 0
      %3531 = vmatpush1.bf16.msra.mxu0 %v3514
      %3532 = vmatprep.subr.bf16.mxu0 0
      %3533 = vmatpush1.bf16.msra.mxu0 %v3515
      %3534 = vmatprep.subr.bf16.mxu0 0
      %3535 = vmatpush1.bf16.msra.mxu0 %v3516
      %3536 = vmatprep.subr.bf16.mxu0 0
      %3537 = vmatpush1.bf16.msra.mxu0 %v3517
      %3538 = vmatprep.subr.bf16.mxu0 0
      %3539 = vmatpush1.bf16.msra.mxu0 %v3518
      %3540 = vmatprep.subr.bf16.mxu0 0
      %3541 = vmatpush1.bf16.msra.mxu0 %v3519
      %3542 = vmatprep.subr.bf16.mxu0 0
      %3543 = vmatpush1.bf16.msra.mxu0 %v3520
      %3544 = vmatprep.subr.bf16.mxu0 0
      %3545 = vmatpush1.bf16.msra.mxu0 %v3521
      %3546 = vmatprep.subr.bf16.mxu0 0
      %3547 = vmatpush1.bf16.msra.mxu0 0
      %3548 = vmatprep.subr.bf16.mxu0 0
      %3549 = vmatpush1.bf16.msra.mxu0 0
      %3550 = vmatprep.subr.bf16.mxu0 0
      %3551 = vmatpush1.bf16.msra.mxu0 0
      %3552 = vmatprep.subr.bf16.mxu0 0
      %3553 = vmatpush1.bf16.msra.mxu0 0
      %3554 = vmatprep.subr.bf16.mxu0 0
      %3555 = vmatpush1.bf16.msra.mxu0 0
      %3556 = vmatprep.subr.bf16.mxu0 0
      %3557 = vmatpush1.bf16.msra.mxu0 0
      %3558 = vmatprep.subr.bf16.mxu0 0
      %3559 = vmatpush1.bf16.msra.mxu0 0
      %3560 = vmatprep.subr.bf16.mxu0 0
      %3561 = vmatpush1.bf16.msra.mxu0 0
      %3562 = vmatprep.mubr.bf16.mxu0 0
      %3563 = vmatmul.mubr.bf16.gmra.mrb[0].mxu0 %v3417
      %v3564 = vpop.f32.mrb[0].mxu0
      %v3565 = vadd.f32 0.0, %v3564
      %v3566 = vpop.f32.mrb[0].mxu0
      %v3567 = vpop.f32.mrb[0].mxu0
      %v3568 = vadd.f32 0.0, %v3567
      %v3569 = vpop.f32.mrb[0].mxu0
      %3570 = vmatprep.mubr.bf16.mxu0 0
      %3571 = vmatmul.mubr.bf16.gmra.mrb[0].mxu0 %v3418
      %v3572 = vpop.f32.mrb[0].mxu0
      %v3573 = vadd.f32 0.0, %v3572
      %v3574 = vpop.f32.mrb[0].mxu0
      %v3575 = vpop.f32.mrb[0].mxu0
      %v3576 = vadd.f32 0.0, %v3575
      %v3577 = vpop.f32.mrb[0].mxu0
      %3578 = vmatprep.mubr.bf16.mxu0 0
      %3579 = vmatmul.mubr.bf16.gmra.mrb[0].mxu0 %v3419
      %v3580 = vpop.f32.mrb[0].mxu0
      %v3581 = vadd.f32 0.0, %v3580
      %v3582 = vpop.f32.mrb[0].mxu0
      %v3583 = vpop.f32.mrb[0].mxu0
      %v3584 = vadd.f32 0.0, %v3583
      %v3585 = vpop.f32.mrb[0].mxu0
      %3586 = vmatprep.mubr.bf16.mxu0 0
      %3587 = vmatmul.mubr.bf16.gmra.mrb[0].mxu0 %v3420
      %v3588 = vpop.f32.mrb[0].mxu0
      %v3589 = vadd.f32 0.0, %v3588
      %v3590 = vpop.f32.mrb[0].mxu0
      %v3591 = vpop.f32.mrb[0].mxu0
      %v3592 = vadd.f32 0.0, %v3591
      %v3593 = vpop.f32.mrb[0].mxu0
      %3594 = vmatprep.mubr.bf16.mxu0 0
      %3595 = vmatmul.mubr.bf16.gmra.mrb[0].mxu0 %v3421
      %v3596 = vpop.f32.mrb[0].mxu0
      %v3597 = vadd.f32 0.0, %v3596
      %v3598 = vpop.f32.mrb[0].mxu0
      %v3599 = vpop.f32.mrb[0].mxu0
      %v3600 = vadd.f32 0.0, %v3599
      %v3601 = vpop.f32.mrb[0].mxu0
      %3602 = vmatprep.mubr.bf16.mxu0 0
      %3603 = vmatmul.mubr.bf16.gmra.mrb[0].mxu0 %v3422
      %v3604 = vpop.f32.mrb[0].mxu0
      %v3605 = vadd.f32 0.0, %v3604
      %v3606 = vpop.f32.mrb[0].mxu0
      %v3607 = vpop.f32.mrb[0].mxu0
      %v3608 = vadd.f32 0.0, %v3607
      %v3609 = vpop.f32.mrb[0].mxu0
      %3610 = vmatprep.mubr.bf16.mxu0 0
      %3611 = vmatmul.mubr.bf16.gmra.mrb[0].mxu0 %v3423
      %v3612 = vpop.f32.mrb[0].mxu0
      %v3613 = vadd.f32 0.0, %v3612
      %v3614 = vpop.f32.mrb[0].mxu0
      %v3615 = vpop.f32.mrb[0].mxu0
      %v3616 = vadd.f32 0.0, %v3615
      %v3617 = vpop.f32.mrb[0].mxu0
      %3618 = vmatprep.mubr.bf16.mxu0 0
      %3619 = vmatmul.mubr.bf16.gmra.mrb[0].mxu0 %v3424
      %v3620 = vpop.f32.mrb[0].mxu0
      %v3621 = vadd.f32 0.0, %v3620
      %v3622 = vpop.f32.mrb[0].mxu0
      %v3623 = vpop.f32.mrb[0].mxu0
      %v3624 = vadd.f32 0.0, %v3623
      %v3625 = vpop.f32.mrb[0].mxu0
      %3626 = vmatprep.mubr.bf16.mxu0 0
      %3627 = vmatmul.mubr.bf16.gmra.mrb[0].mxu0 %v3425
      %v3628 = vpop.f32.mrb[0].mxu0
      %v3629 = vadd.f32 0.0, %v3628
      %v3630 = vpop.f32.mrb[0].mxu0
      %v3631 = vpop.f32.mrb[0].mxu0
      %v3632 = vadd.f32 0.0, %v3631
      %v3633 = vpop.f32.mrb[0].mxu0
      %3634 = vmatprep.mubr.bf16.mxu0 0
      %3635 = vmatmul.mubr.bf16.gmra.mrb[0].mxu0 %v3426
      %v3636 = vpop.f32.mrb[0].mxu0
      %v3637 = vadd.f32 0.0, %v3636
      %v3638 = vpop.f32.mrb[0].mxu0
      %v3639 = vpop.f32.mrb[0].mxu0
      %v3640 = vadd.f32 0.0, %v3639
      %v3641 = vpop.f32.mrb[0].mxu0
      %3642 = vmatprep.mubr.bf16.mxu0 0
      %3643 = vmatmul.mubr.bf16.gmra.mrb[0].mxu0 %v3427
      %v3644 = vpop.f32.mrb[0].mxu0
      %v3645 = vadd.f32 0.0, %v3644
      %v3646 = vpop.f32.mrb[0].mxu0
      %v3647 = vpop.f32.mrb[0].mxu0
      %v3648 = vadd.f32 0.0, %v3647
      %v3649 = vpop.f32.mrb[0].mxu0
      %3650 = vmatprep.mubr.bf16.mxu0 0
      %3651 = vmatmul.mubr.bf16.gmra.mrb[0].mxu0 %v3428
      %v3652 = vpop.f32.mrb[0].mxu0
      %v3653 = vadd.f32 0.0, %v3652
      %v3654 = vpop.f32.mrb[0].mxu0
      %v3655 = vpop.f32.mrb[0].mxu0
      %v3656 = vadd.f32 0.0, %v3655
      %v3657 = vpop.f32.mrb[0].mxu0
      %3658 = vmatprep.mubr.bf16.mxu0 0
      %3659 = vmatmul.mubr.bf16.gmra.mrb[0].mxu0 %v3429
      %v3660 = vpop.f32.mrb[0].mxu0
      %v3661 = vadd.f32 0.0, %v3660
      %v3662 = vpop.f32.mrb[0].mxu0
      %v3663 = vpop.f32.mrb[0].mxu0
      %v3664 = vadd.f32 0.0, %v3663
      %v3665 = vpop.f32.mrb[0].mxu0
      %3666 = vmatprep.mubr.bf16.mxu0 0
      %3667 = vmatmul.mubr.bf16.gmra.mrb[0].mxu0 %v3430
      %v3668 = vpop.f32.mrb[0].mxu0
      %v3669 = vadd.f32 0.0, %v3668
      %v3670 = vpop.f32.mrb[0].mxu0
      %v3671 = vpop.f32.mrb[0].mxu0
      %v3672 = vadd.f32 0.0, %v3671
      %v3673 = vpop.f32.mrb[0].mxu0
      %3674 = vmatprep.mubr.bf16.mxu0 0
      %3675 = vmatmul.mubr.bf16.gmra.mrb[0].mxu0 %v3431
      %v3676 = vpop.f32.mrb[0].mxu0
      %v3677 = vadd.f32 0.0, %v3676
      %v3678 = vpop.f32.mrb[0].mxu0
      %v3679 = vpop.f32.mrb[0].mxu0
      %v3680 = vadd.f32 0.0, %v3679
      %v3681 = vpop.f32.mrb[0].mxu0
      %3682 = vmatprep.mubr.bf16.mxu0 0
      %3683 = vmatmul.mubr.bf16.gmra.mrb[0].mxu0 %v3432
      %v3684 = vpop.f32.mrb[0].mxu0
      %v3685 = vadd.f32 0.0, %v3684
      %v3686 = vpop.f32.mrb[0].mxu0
      %v3687 = vpop.f32.mrb[0].mxu0
      %v3688 = vadd.f32 0.0, %v3687
      %v3689 = vpop.f32.mrb[0].mxu0
      %3690 = vdwg.mxu0
      %v3691 = vadd.f32 %v3433, %v3565
      %v3692 = vadd.f32 %v3434, %v3568
      %v3693 = vadd.f32 %v3435, %v3573
      %v3694 = vadd.f32 %v3436, %v3576
      %v3695 = vadd.f32 %v3437, %v3581
      %v3696 = vadd.f32 %v3438, %v3584
      %v3697 = vadd.f32 %v3439, %v3589
      %v3698 = vadd.f32 %v3440, %v3592
      %v3699 = vadd.f32 %v3441, %v3597
      %v3700 = vadd.f32 %v3442, %v3600
      %v3701 = vadd.f32 %v3443, %v3605
      %v3702 = vadd.f32 %v3444, %v3608
      %v3703 = vadd.f32 %v3445, %v3613
      %v3704 = vadd.f32 %v3446, %v3616
      %v3705 = vadd.f32 %v3447, %v3621
      %v3706 = vadd.f32 %v3448, %v3624
      %v3707 = vadd.f32 %v3449, %v3629
      %v3708 = vadd.f32 %v3450, %v3632
      %v3709 = vadd.f32 %v3451, %v3637
      %v3710 = vadd.f32 %v3452, %v3640
      %v3711 = vadd.f32 %v3453, %v3645
      %v3712 = vadd.f32 %v3454, %v3648
      %v3713 = vadd.f32 %v3455, %v3653
      %v3714 = vadd.f32 %v3456, %v3656
      %v3715 = vadd.f32 %v3457, %v3661
      %v3716 = vadd.f32 %v3458, %v3664
      %v3717 = vadd.f32 %v3459, %v3669
      %v3718 = vadd.f32 %v3460, %v3672
      %v3719 = vadd.f32 %v3461, %v3677
      %v3720 = vadd.f32 %v3462, %v3680
      %v3721 = vadd.f32 %v3463, %v3685
      %v3722 = vadd.f32 %v3464, %v3688
      %3723 = vst [vmem:[#allocation3] sm:$0xff] %v3691
      %3724 = vst [vmem:[#allocation3 + $0x8] sm:$0xff] %v3692
      %3725 = vst [vmem:[#allocation3 + $0x10] sm:$0xff] %v3693
      %3726 = vst [vmem:[#allocation3 + $0x18] sm:$0xff] %v3694
      %3727 = vst [vmem:[#allocation3 + $0x20] sm:$0xff] %v3695
      %3728 = vst [vmem:[#allocation3 + $0x28] sm:$0xff] %v3696
      %3729 = vst [vmem:[#allocation3 + $0x30] sm:$0xff] %v3697
      %3730 = vst [vmem:[#allocation3 + $0x38] sm:$0xff] %v3698
      %3731 = vst [vmem:[#allocation3 + $0x40] sm:$0xff] %v3699
      %3732 = vst [vmem:[#allocation3 + $0x48] sm:$0xff] %v3700
      %3733 = vst [vmem:[#allocation3 + $0x50] sm:$0xff] %v3701
      %3734 = vst [vmem:[#allocation3 + $0x58] sm:$0xff] %v3702
      %3735 = vst [vmem:[#allocation3 + $0x60] sm:$0xff] %v3703
      %3736 = vst [vmem:[#allocation3 + $0x68] sm:$0xff] %v3704
      %3737 = vst [vmem:[#allocation3 + $0x70] sm:$0xff] %v3705
      %3738 = vst [vmem:[#allocation3 + $0x78] sm:$0xff] %v3706
      %3739 = vst [vmem:[#allocation3 + $0x80] sm:$0xff] %v3707
      %3740 = vst [vmem:[#allocation3 + $0x88] sm:$0xff] %v3708
      %3741 = vst [vmem:[#allocation3 + $0x90] sm:$0xff] %v3709
      %3742 = vst [vmem:[#allocation3 + $0x98] sm:$0xff] %v3710
      %3743 = vst [vmem:[#allocation3 + $0xa0] sm:$0xff] %v3711
      %3744 = vst [vmem:[#allocation3 + $0xa8] sm:$0xff] %v3712
      %3745 = vst [vmem:[#allocation3 + $0xb0] sm:$0xff] %v3713
      %3746 = vst [vmem:[#allocation3 + $0xb8] sm:$0xff] %v3714
      %3747 = vst [vmem:[#allocation3 + $0xc0] sm:$0xff] %v3715
      %3748 = vst [vmem:[#allocation3 + $0xc8] sm:$0xff] %v3716
      %3749 = vst [vmem:[#allocation3 + $0xd0] sm:$0xff] %v3717
      %3750 = vst [vmem:[#allocation3 + $0xd8] sm:$0xff] %v3718
      %3751 = vst [vmem:[#allocation3 + $0xe0] sm:$0xff] %v3719
      %3752 = vst [vmem:[#allocation3 + $0xe8] sm:$0xff] %v3720
      %3753 = vst [vmem:[#allocation3 + $0xf0] sm:$0xff] %v3721
      %3754 = vst [vmem:[#allocation3 + $0xf8] sm:$0xff] %v3722
      %v3755 = vld [vmem:[#allocation3] sm:$0xff]
      %v3756 = vld [vmem:[#allocation3 + $0x8] sm:$0xff]
      %v3757 = vld [vmem:[#allocation3 + $0x10] sm:$0xff]
      %v3758 = vld [vmem:[#allocation3 + $0x18] sm:$0xff]
      %v3759 = vld [vmem:[#allocation3 + $0x20] sm:$0xff]
      %v3760 = vld [vmem:[#allocation3 + $0x28] sm:$0xff]
      %v3761 = vld [vmem:[#allocation3 + $0x30] sm:$0xff]
      %v3762 = vld [vmem:[#allocation3 + $0x38] sm:$0xff]
      %v3763 = vld [vmem:[#allocation3 + $0x40] sm:$0xff]
      %v3764 = vld [vmem:[#allocation3 + $0x48] sm:$0xff]
      %v3765 = vld [vmem:[#allocation3 + $0x50] sm:$0xff]
      %v3766 = vld [vmem:[#allocation3 + $0x58] sm:$0xff]
      %v3767 = vld [vmem:[#allocation3 + $0x60] sm:$0xff]
      %v3768 = vld [vmem:[#allocation3 + $0x68] sm:$0xff]
      %v3769 = vld [vmem:[#allocation3 + $0x70] sm:$0xff]
      %v3770 = vld [vmem:[#allocation3 + $0x78] sm:$0xff]
      %v3771 = vld [vmem:[#allocation3 + $0x80] sm:$0xff]
      %v3772 = vld [vmem:[#allocation3 + $0x88] sm:$0xff]
      %v3773 = vld [vmem:[#allocation3 + $0x90] sm:$0xff]
      %v3774 = vld [vmem:[#allocation3 + $0x98] sm:$0xff]
      %v3775 = vld [vmem:[#allocation3 + $0xa0] sm:$0xff]
      %v3776 = vld [vmem:[#allocation3 + $0xa8] sm:$0xff]
      %v3777 = vld [vmem:[#allocation3 + $0xb0] sm:$0xff]
      %v3778 = vld [vmem:[#allocation3 + $0xb8] sm:$0xff]
      %v3779 = vld [vmem:[#allocation3 + $0xc0] sm:$0xff]
      %v3780 = vld [vmem:[#allocation3 + $0xc8] sm:$0xff]
      %v3781 = vld [vmem:[#allocation3 + $0xd0] sm:$0xff]
      %v3782 = vld [vmem:[#allocation3 + $0xd8] sm:$0xff]
      %v3783 = vld [vmem:[#allocation3 + $0xe0] sm:$0xff]
      %v3784 = vld [vmem:[#allocation3 + $0xe8] sm:$0xff]
      %v3785 = vld [vmem:[#allocation3 + $0xf0] sm:$0xff]
      %v3786 = vld [vmem:[#allocation3 + $0xf8] sm:$0xff]
      %3787 = vst [vmem:[%s255] sm:$0xff] %v3755
      %3788 = vst [vmem:[%s255 + $0x8] sm:$0xff] %v3756
      %3789 = vst [vmem:[%s255 + $0x10] sm:$0xff] %v3757
      %3790 = vst [vmem:[%s255 + $0x18] sm:$0xff] %v3758
      %3791 = vst [vmem:[%s255 + $0x20] sm:$0xff] %v3759
      %3792 = vst [vmem:[%s255 + $0x28] sm:$0xff] %v3760
      %3793 = vst [vmem:[%s255 + $0x30] sm:$0xff] %v3761
      %3794 = vst [vmem:[%s255 + $0x38] sm:$0xff] %v3762
      %3795 = vst [vmem:[%s255 + $0x40] sm:$0xff] %v3763
      %3796 = vst [vmem:[%s255 + $0x48] sm:$0xff] %v3764
      %3797 = vst [vmem:[%s255 + $0x50] sm:$0xff] %v3765
      %3798 = vst [vmem:[%s255 + $0x58] sm:$0xff] %v3766
      %3799 = vst [vmem:[%s255 + $0x60] sm:$0xff] %v3767
      %3800 = vst [vmem:[%s255 + $0x68] sm:$0xff] %v3768
      %3801 = vst [vmem:[%s255 + $0x70] sm:$0xff] %v3769
      %3802 = vst [vmem:[%s255 + $0x78] sm:$0xff] %v3770
      %3803 = vst [vmem:[%s255 + $0x80] sm:$0xff] %v3771
      %3804 = vst [vmem:[%s255 + $0x88] sm:$0xff] %v3772
      %3805 = vst [vmem:[%s255 + $0x90] sm:$0xff] %v3773
      %3806 = vst [vmem:[%s255 + $0x98] sm:$0xff] %v3774
      %3807 = vst [vmem:[%s255 + $0xa0] sm:$0xff] %v3775
      %3808 = vst [vmem:[%s255 + $0xa8] sm:$0xff] %v3776
      %3809 = vst [vmem:[%s255 + $0xb0] sm:$0xff] %v3777
      %3810 = vst [vmem:[%s255 + $0xb8] sm:$0xff] %v3778
      %3811 = vst [vmem:[%s255 + $0xc0] sm:$0xff] %v3779
      %3812 = vst [vmem:[%s255 + $0xc8] sm:$0xff] %v3780
      %3813 = vst [vmem:[%s255 + $0xd0] sm:$0xff] %v3781
      %3814 = vst [vmem:[%s255 + $0xd8] sm:$0xff] %v3782
      %3815 = vst [vmem:[%s255 + $0xe0] sm:$0xff] %v3783
      %3816 = vst [vmem:[%s255 + $0xe8] sm:$0xff] %v3784
      %3817 = vst [vmem:[%s255 + $0xf0] sm:$0xff] %v3785
      %3818 = vst [vmem:[%s255 + $0xf8] sm:$0xff] %v3786
      // Predicated region
      $region41: #{basic_block_forward.3} parent=35 // pred_check
        %p3819 = pneg %p262
      $region42: #{basic_block_forward.3} parent=35 // pred_check_branch
        %3821 = sbr.rel (%p3819) target = $region44
      $region43: #{basic_block_forward.3} parent=35 // pred_region
        %3822 = vst [vmem:[%s260] sm:$0x3] 0.0
      $region44: #{basic_block_forward.3} parent=35 // pred_fallthru
        _
      %v3823 = vld [vmem:[%s260] sm:$0x1]
      %v3824 = vadd.f32 %v3755, %v3756
      %v3825 = vadd.f32 %v3824, %v3757
      %v3826 = vadd.f32 %v3825, %v3758
      %v3827 = vadd.f32 %v3826, %v3759
      %v3828 = vadd.f32 %v3827, %v3760
      %v3829 = vadd.f32 %v3828, %v3761
      %v3830 = vadd.f32 %v3829, %v3762
      %v3831 = vadd.f32 %v3830, %v3763
      %v3832 = vadd.f32 %v3831, %v3764
      %v3833 = vadd.f32 %v3832, %v3765
      %v3834 = vadd.f32 %v3833, %v3766
      %v3835 = vadd.f32 %v3834, %v3767
      %v3836 = vadd.f32 %v3835, %v3768
      %v3837 = vadd.f32 %v3836, %v3769
      %v3838 = vadd.f32 %v3837, %v3770
      %v3839 = vadd.f32 %v3838, %v3771
      %v3840 = vadd.f32 %v3839, %v3772
      %v3841 = vadd.f32 %v3840, %v3773
      %v3842 = vadd.f32 %v3841, %v3774
      %v3843 = vadd.f32 %v3842, %v3775
      %v3844 = vadd.f32 %v3843, %v3776
      %v3845 = vadd.f32 %v3844, %v3777
      %v3846 = vadd.f32 %v3845, %v3778
      %v3847 = vadd.f32 %v3846, %v3779
      %v3848 = vadd.f32 %v3847, %v3780
      %v3849 = vadd.f32 %v3848, %v3781
      %v3850 = vadd.f32 %v3849, %v3782
      %v3851 = vadd.f32 %v3850, %v3783
      %v3852 = vadd.f32 %v3851, %v3784
      %v3853 = vadd.f32 %v3852, %v3785
      %v3854 = vadd.f32 %v3853, %v3786
      %v3855 = vrot.slane %v3854, 4
      %v3856 = vadd.f32 %v3854, %v3855
      %v3857 = vrot.slane %v3856, 2
      %v3858 = vadd.f32 %v3856, %v3857
      %v3859 = vrot.slane %v3858, 1
      %v3860 = vadd.f32 %v3858, %v3859
      %v3861 = vadd.f32 %v3823, %v3860
      %3862 = vst [vmem:[%s260] sm:$0x1] %v3861
      %v3863 = vld [vmem:[%s260 + $0x1] sm:$0x1]
      %v3864 = vmul.f32 %v3755, %v3755
      %v3865 = vmul.f32 %v3756, %v3756
      %v3866 = vmul.f32 %v3757, %v3757
      %v3867 = vmul.f32 %v3758, %v3758
      %v3868 = vmul.f32 %v3759, %v3759
      %v3869 = vmul.f32 %v3760, %v3760
      %v3870 = vmul.f32 %v3761, %v3761
      %v3871 = vmul.f32 %v3762, %v3762
      %v3872 = vmul.f32 %v3763, %v3763
      %v3873 = vmul.f32 %v3764, %v3764
      %v3874 = vmul.f32 %v3765, %v3765
      %v3875 = vmul.f32 %v3766, %v3766
      %v3876 = vmul.f32 %v3767, %v3767
      %v3877 = vmul.f32 %v3768, %v3768
      %v3878 = vmul.f32 %v3769, %v3769
      %v3879 = vmul.f32 %v3770, %v3770
      %v3880 = vmul.f32 %v3771, %v3771
      %v3881 = vmul.f32 %v3772, %v3772
      %v3882 = vmul.f32 %v3773, %v3773
      %v3883 = vmul.f32 %v3774, %v3774
      %v3884 = vmul.f32 %v3775, %v3775
      %v3885 = vmul.f32 %v3776, %v3776
      %v3886 = vmul.f32 %v3777, %v3777
      %v3887 = vmul.f32 %v3778, %v3778
      %v3888 = vmul.f32 %v3779, %v3779
      %v3889 = vmul.f32 %v3780, %v3780
      %v3890 = vmul.f32 %v3781, %v3781
      %v3891 = vmul.f32 %v3782, %v3782
      %v3892 = vmul.f32 %v3783, %v3783
      %v3893 = vmul.f32 %v3784, %v3784
      %v3894 = vmul.f32 %v3785, %v3785
      %v3895 = vmul.f32 %v3786, %v3786
      %v3896 = vadd.f32 %v3864, %v3865
      %v3897 = vadd.f32 %v3896, %v3866
      %v3898 = vadd.f32 %v3897, %v3867
      %v3899 = vadd.f32 %v3898, %v3868
      %v3900 = vadd.f32 %v3899, %v3869
      %v3901 = vadd.f32 %v3900, %v3870
      %v3902 = vadd.f32 %v3901, %v3871
      %v3903 = vadd.f32 %v3902, %v3872
      %v3904 = vadd.f32 %v3903, %v3873
      %v3905 = vadd.f32 %v3904, %v3874
      %v3906 = vadd.f32 %v3905, %v3875
      %v3907 = vadd.f32 %v3906, %v3876
      %v3908 = vadd.f32 %v3907, %v3877
      %v3909 = vadd.f32 %v3908, %v3878
      %v3910 = vadd.f32 %v3909, %v3879
      %v3911 = vadd.f32 %v3910, %v3880
      %v3912 = vadd.f32 %v3911, %v3881
      %v3913 = vadd.f32 %v3912, %v3882
      %v3914 = vadd.f32 %v3913, %v3883
      %v3915 = vadd.f32 %v3914, %v3884
      %v3916 = vadd.f32 %v3915, %v3885
      %v3917 = vadd.f32 %v3916, %v3886
      %v3918 = vadd.f32 %v3917, %v3887
      %v3919 = vadd.f32 %v3918, %v3888
      %v3920 = vadd.f32 %v3919, %v3889
      %v3921 = vadd.f32 %v3920, %v3890
      %v3922 = vadd.f32 %v3921, %v3891
      %v3923 = vadd.f32 %v3922, %v3892
      %v3924 = vadd.f32 %v3923, %v3893
      %v3925 = vadd.f32 %v3924, %v3894
      %v3926 = vadd.f32 %v3925, %v3895
      %v3927 = vrot.slane %v3926, 4
      %v3928 = vadd.f32 %v3926, %v3927
      %v3929 = vrot.slane %v3928, 2
      %v3930 = vadd.f32 %v3928, %v3929
      %v3931 = vrot.slane %v3930, 1
      %v3932 = vadd.f32 %v3930, %v3931
      %v3933 = vadd.f32 %v3863, %v3932
      %3934 = vst [vmem:[%s260 + $0x1] sm:$0x1] %v3933
      %s3935 = smul.u32 16, %s22
      %p3936 = scmp.lt.s32.totalorder %s21, 1
      %s3937 = scalar_select %p3936, %s21, 1
      %p3938 = scmp.lt.s32.totalorder %s3935, 15
      %s3939 = scalar_select %p3938, %s3935, 15
      %s3940 = smul.addr %s3939, 2
      %s3941 = smul.addr %s3937, 32
      %s3942 = sadd.s32 %s3940, %s3941
      %s3943 = smul.addr %s3942, 8
      %s3944 = scalar_lea.vmem %s4, %s3943
      %p3945 = scmp.lt.s32.totalorder %s21, 1
      %s3946 = scalar_select %p3945, %s21, 1
      %s3947 = smul.addr %s3946, 2
      %s3948 = scalar_lea.vmem %s5, %s3947
      // Predicated region
      $region45: #{basic_block_forward.3} parent=35 // pred_check
        %p3949 = pneg %p138
      $region46: #{basic_block_forward.3} parent=35 // pred_check_branch
        %3951 = sbr.rel (%p3949) target = $region48
      $region47: #{basic_block_forward.3} parent=35 // pred_region
        %s3952 = smul.u32 16, %s22
      $region48: #{basic_block_forward.3} parent=35 // pred_fallthru
        _
      // Predicated region
      $region49: #{basic_block_forward.3} parent=35 // pred_check
        %p3953 = pneg %p164
      $region50: #{basic_block_forward.3} parent=35 // pred_check_branch
        %3955 = sbr.rel (%p3953) target = $region52
      $region51: #{basic_block_forward.3} parent=35 // pred_region
        _
      $region52: #{basic_block_forward.3} parent=35 // pred_fallthru
        _
    $region36: #{basic_block_forward.3} parent=5 // pred_fallthru
      _
    %p3956 = scmp.le.s32.totalorder 2, %s12
    // Predicated region
    $region53: #{basic_block_forward.3} parent=5 // pred_check
      %p3957 = pneg %p3956
    $region54: #{basic_block_forward.3} parent=5 // pred_check_branch
      %3959 = sbr.rel (%p3957) target = $region56
    $region55: #{basic_block_forward.3} parent=5 // pred_region
      %s3960 = ssub.s32 %s12, 2
      // Predicated region
      $region57: #{basic_block_forward.3} parent=55 // pred_check
        %p3961 = pneg %p144
      $region58: #{basic_block_forward.3} parent=55 // pred_check_branch
        %3963 = sbr.rel (%p3961) target = $region60
      $region59: #{basic_block_forward.3} parent=55 // pred_region
        %s3964 = smul.u32 16, %s24
        %p3965 = scmp.lt.s32.totalorder %s23, 1
        %s3966 = scalar_select %p3965, %s23, 1
        %p3967 = scmp.lt.s32.totalorder %s3964, 15
        %s3968 = scalar_select %p3967, %s3964, 15
        %s3969 = smul.addr %s3968, 2
        %s3970 = smul.addr %s3966, 32
        %s3971 = sadd.s32 %s3969, %s3970
        %s3972 = smul.addr %s3971, 8
        %s3973 = scalar_lea.vmem %s4, %s3972
      $region60: #{basic_block_forward.3} parent=55 // pred_fallthru
        _
      // Predicated region
      $region61: #{basic_block_forward.3} parent=55 // pred_check
        %p3974 = pneg %p170
      $region62: #{basic_block_forward.3} parent=55 // pred_check_branch
        %3976 = sbr.rel (%p3974) target = $region64
      $region63: #{basic_block_forward.3} parent=55 // pred_region
        %p3977 = scmp.lt.s32.totalorder %s23, 1
        %s3978 = scalar_select %p3977, %s23, 1
        %s3979 = smul.addr %s3978, 2
        %s3980 = scalar_lea.vmem %s5, %s3979
      $region64: #{basic_block_forward.3} parent=55 // pred_fallthru
        _
    $region56: #{basic_block_forward.3} parent=5 // pred_fallthru
      _
  $region6: #{basic_block_forward.3} parent=0 // loop_footer
    %s16 = sadd.s32 1, %s12
  $region7: #{basic_block_forward.3} parent=0 // loop_footer_branch
    %11 = sbr.rel target = $region3
  $region8: #{basic_block_forward.3} parent=0 // loop_exit
    _

// kernel: basic_block_forward.4
$region0: #{basic_block_forward.4}
  #allocation0 [shape = 'u32[]', space=smem, size = 0x4, offset = 0x4, fixed_abs, tag = 'smem constant byte address 0x4 - core index']
  #allocation1 [shape = 'u32[144,128]{1,0:T(1,128)}', space=vmem, size = 0x12000, scoped, tag = 'internal scratch']
  #allocation2 [shape = 'f32[18,18,128]{2,1,0:T(8,128)}', space=vmem, size = 0x36000, scoped, tag = 'scratch operand']
  #allocation3 [shape = 'f32[256,128]{1,0:T(8,128)}', space=vmem, size = 0x20000, scoped, tag = 'scratch operand']
  %s0 = inlined_call_operand.vmem [shape: f32[2,16,16,128], index: 0, kind: input, shape index: {}]
  %s1 = inlined_call_operand.vmem [shape: bf16[3,3,128,128], index: 1, kind: input, shape index: {}]
  %s2 = inlined_call_operand.vmem [shape: f32[1,128], index: 2, kind: input, shape index: {}]
  %s3 = inlined_call_operand.vmem [shape: f32[1,128], index: 3, kind: input, shape index: {}]
  %s4 = inlined_call_operand.vmem [shape: f32[2,16,16,128], index: 4, kind: output, shape index: {0}]
  %s5 = inlined_call_operand.vmem [shape: f32[2,2,128], index: 5, kind: output, shape index: {1}]
  %6 = xla_tuple %s4, %s5
  %s7 = sld [smem:[#allocation0]]
  $region65: #{basic_block_forward.4} parent=0
    _
  %s9 = ssub.s32 1, %s7
  %s10 = scalar_select 0, %s9, %s7
  loop: start=0, step=1, limit=4
  $region2: #{basic_block_forward.4} parent=0 // loop_pre_header
    _
  $region3: #{basic_block_forward.4} parent=0 // loop_header
    %s12 = sphi 0, %s16
    %p13 = scmp.ge.s32.totalorder %s12, 4
    %s19 = sphi 0, %s31
    %s20 = sphi 0, %s27
    %s21 = sphi 0, %s19
    %s22 = sphi 0, %s20
    %s23 = sphi 0, %s21
    %s24 = sphi 0, %s22
    %s34 = sphi 0, %s36
    %s37 = sphi 0, %s34
    %s38 = sphi 0, %s37
    %s54 = sphi 0, %s38
    %s58 = sphi 0, %s58
    %s60 = sphi 0, %s58
    %s61 = sphi 0, %s60
    %s75 = sphi 0, %s61
    %s79 = sphi 0, %s79
    %s81 = sphi 0, %s79
    %s82 = sphi 0, %s81
    %s96 = sphi 0, %s82
    %s100 = sphi 0, %s100
    %s102 = sphi 0, %s100
    %s103 = sphi 0, %s102
    %s117 = sphi 0, %s103
    %s125 = sphi 0, %s127
    %s128 = sphi 0, %s125
    %s129 = sphi 0, %s128
    %s145 = sphi 0, %s129
    %s151 = sphi 0, %s153
    %s154 = sphi 0, %s151
    %s155 = sphi 0, %s154
    %s171 = sphi 0, %s155
  $region4: #{basic_block_forward.4} parent=0 // loop_header_branch
    %15 = sbr.rel (%p13) target = $region8
  $region5: #{basic_block_forward.4} parent=0 // loop_body
    %s17 = ssub.s32 %s12, 1
    %s18 = ssub.s32 %s12, 2
    %s25 = sadd.s32 1, %s20
    %p26 = scmp.ge.s32.totalorder %s25, 1
    %s27 = scalar_select %p26, 0, %s25
    %s28 = sadd.s32 1, %s19
    %s29 = scalar_select %p26, %s28, %s19
    %p30 = scmp.ge.s32.totalorder %s29, 2
    %s31 = scalar_select %p30, 0, %s29
    %s32 = ssub.s32 %s19, %s31
    %p33 = scmp.eq.s32.totalorder %s32, 0
    %s35 = sadd.s32 %s34, 1
    %s36 = scalar_select %p33, %s34, %s35
    %p39 = pneg %p33
    %p40 = scmp.eq.s32.totalorder %s12, 1
    %p41 = por %p39, %p40
    %p42 = scmp.ne.s32.totalorder %s34, %s37
    %p43 = scmp.eq.s32.totalorder %s12, 0
    %p44 = por %p42, %p43
    %p45 = scmp.ne.s32.totalorder %s34, %s37
    %p46 = scmp.eq.s32.totalorder %s17, 1
    %p47 = por %p45, %p46
    %p48 = scmp.ne.s32.totalorder %s37, %s38
    %p49 = scmp.eq.s32.totalorder %s17, 0
    %p50 = por %p48, %p49
    %p51 = scmp.ne.s32.totalorder %s37, %s38
    %p52 = scmp.eq.s32.totalorder %s18, 1
    %p53 = por %p51, %p52
    %p55 = scmp.ne.s32.totalorder %s38, %s54
    %p56 = scmp.eq.s32.totalorder %s18, 0
    %p57 = por %p55, %p56
    %s59 = sadd.s32 %s58, 1
    %p62 = scmp.eq.s32.totalorder %s12, 1
    %p63 = scmp.ne.s32.totalorder %s58, %s60
    %p64 = scmp.eq.s32.totalorder %s12, 0
    %p65 = por %p63, %p64
    %p66 = scmp.ne.s32.totalorder %s58, %s60
    %p67 = scmp.eq.s32.totalorder %s17, 1
    %p68 = por %p66, %p67
    %p69 = scmp.ne.s32.totalorder %s60, %s61
    %p70 = scmp.eq.s32.totalorder %s17, 0
    %p71 = por %p69, %p70
    %p72 = scmp.ne.s32.totalorder %s60, %s61
    %p73 = scmp.eq.s32.totalorder %s18, 1
    %p74 = por %p72, %p73
    %p76 = scmp.ne.s32.totalorder %s61, %s75
    %p77 = scmp.eq.s32.totalorder %s18, 0
    %p78 = por %p76, %p77
    %s80 = sadd.s32 %s79, 1
    %p83 = scmp.eq.s32.totalorder %s12, 1
    %p84 = scmp.ne.s32.totalorder %s79, %s81
    %p85 = scmp.eq.s32.totalorder %s12, 0
    %p86 = por %p84, %p85
    %p87 = scmp.ne.s32.totalorder %s79, %s81
    %p88 = scmp.eq.s32.totalorder %s17, 1
    %p89 = por %p87, %p88
    %p90 = scmp.ne.s32.totalorder %s81, %s82
    %p91 = scmp.eq.s32.totalorder %s17, 0
    %p92 = por %p90, %p91
    %p93 = scmp.ne.s32.totalorder %s81, %s82
    %p94 = scmp.eq.s32.totalorder %s18, 1
    %p95 = por %p93, %p94
    %p97 = scmp.ne.s32.totalorder %s82, %s96
    %p98 = scmp.eq.s32.totalorder %s18, 0
    %p99 = por %p97, %p98
    %s101 = sadd.s32 %s100, 1
    %p104 = scmp.eq.s32.totalorder %s12, 1
    %p105 = scmp.ne.s32.totalorder %s100, %s102
    %p106 = scmp.eq.s32.totalorder %s12, 0
    %p107 = por %p105, %p106
    %p108 = scmp.ne.s32.totalorder %s100, %s102
    %p109 = scmp.eq.s32.totalorder %s17, 1
    %p110 = por %p108, %p109
    %p111 = scmp.ne.s32.totalorder %s102, %s103
    %p112 = scmp.eq.s32.totalorder %s17, 0
    %p113 = por %p111, %p112
    %p114 = scmp.ne.s32.totalorder %s102, %s103
    %p115 = scmp.eq.s32.totalorder %s18, 1
    %p116 = por %p114, %p115
    %p118 = scmp.ne.s32.totalorder %s103, %s117
    %p119 = scmp.eq.s32.totalorder %s18, 0
    %p120 = por %p118, %p119
    %s121 = ssub.s32 %s19, %s31
    %s122 = ssub.s32 %s20, %s27
    %s123 = sor.u32 %s121, %s122
    %p124 = scmp.eq.s32.totalorder %s123, 0
    %s126 = sadd.s32 %s125, 1
    %s127 = scalar_select %p124, %s125, %s126
    %p130 = pneg %p124
    %p131 = scmp.eq.s32.totalorder %s12, 1
    %p132 = por %p130, %p131
    %p133 = scmp.ne.s32.totalorder %s125, %s128
    %p134 = scmp.eq.s32.totalorder %s12, 0
    %p135 = por %p133, %p134
    %p136 = scmp.ne.s32.totalorder %s125, %s128
    %p137 = scmp.eq.s32.totalorder %s17, 1
    %p138 = por %p136, %p137
    %p139 = scmp.ne.s32.totalorder %s128, %s129
    %p140 = scmp.eq.s32.totalorder %s17, 0
    %p141 = por %p139, %p140
    %p142 = scmp.ne.s32.totalorder %s128, %s129
    %p143 = scmp.eq.s32.totalorder %s18, 1
    %p144 = por %p142, %p143
    %p146 = scmp.ne.s32.totalorder %s129, %s145
    %p147 = scmp.eq.s32.totalorder %s18, 0
    %p148 = por %p146, %p147
    %s149 = ssub.s32 %s19, %s31
    %p150 = scmp.eq.s32.totalorder %s149, 0
    %s152 = sadd.s32 %s151, 1
    %s153 = scalar_select %p150, %s151, %s152
    %p156 = pneg %p150
    %p157 = scmp.eq.s32.totalorder %s12, 1
    %p158 = por %p156, %p157
    %p159 = scmp.ne.s32.totalorder %s151, %s154
    %p160 = scmp.eq.s32.totalorder %s12, 0
    %p161 = por %p159, %p160
    %p162 = scmp.ne.s32.totalorder %s151, %s154
    %p163 = scmp.eq.s32.totalorder %s17, 1
    %p164 = por %p162, %p163
    %p165 = scmp.ne.s32.totalorder %s154, %s155
    %p166 = scmp.eq.s32.totalorder %s17, 0
    %p167 = por %p165, %p166
    %p168 = scmp.ne.s32.totalorder %s154, %s155
    %p169 = scmp.eq.s32.totalorder %s18, 1
    %p170 = por %p168, %p169
    %p172 = scmp.ne.s32.totalorder %s155, %s171
    %p173 = scmp.eq.s32.totalorder %s18, 0
    %p174 = por %p172, %p173
    %p175 = scmp.le.s32.totalorder 1, %s12
    %p176 = scmp.lt.s32.totalorder %s12, 3
    %p177 = pnand %p175, %p176
    %p178 = pneg %p177
    // Predicated region
    $region9: #{basic_block_forward.4} parent=5 // pred_check
      _
    $region10: #{basic_block_forward.4} parent=5 // pred_check_branch
      %180 = sbr.rel (%p177) target = $region12
    $region11: #{basic_block_forward.4} parent=5 // pred_region
      %s181 = ssub.s32 %s12, 1
      // Predicated region
      $region13: #{basic_block_forward.4} parent=11 // pred_check
        %p182 = pneg %p71
      $region14: #{basic_block_forward.4} parent=11 // pred_check_branch
        %184 = sbr.rel (%p182) target = $region16
      $region15: #{basic_block_forward.4} parent=11 // pred_region
        _
      $region16: #{basic_block_forward.4} parent=11 // pred_fallthru
        _
      // Predicated region
      $region17: #{basic_block_forward.4} parent=11 // pred_check
        %p185 = pneg %p92
      $region18: #{basic_block_forward.4} parent=11 // pred_check_branch
        %187 = sbr.rel (%p185) target = $region20
      $region19: #{basic_block_forward.4} parent=11 // pred_region
        _
      $region20: #{basic_block_forward.4} parent=11 // pred_fallthru
        _
      // Predicated region
      $region21: #{basic_block_forward.4} parent=11 // pred_check
        %p188 = pneg %p113
      $region22: #{basic_block_forward.4} parent=11 // pred_check_branch
        %190 = sbr.rel (%p188) target = $region24
      $region23: #{basic_block_forward.4} parent=11 // pred_region
        _
      $region24: #{basic_block_forward.4} parent=11 // pred_fallthru
        _
    $region12: #{basic_block_forward.4} parent=5 // pred_fallthru
      _
    %p191 = scmp.lt.s32.totalorder %s12, 2
    // Predicated region
    $region25: #{basic_block_forward.4} parent=5 // pred_check
      %p192 = pneg %p191
    $region26: #{basic_block_forward.4} parent=5 // pred_check_branch
      %194 = sbr.rel (%p192) target = $region28
    $region27: #{basic_block_forward.4} parent=5 // pred_region
      // Predicated region
      $region29: #{basic_block_forward.4} parent=27 // pred_check
        %p195 = pneg %p44
      $region30: #{basic_block_forward.4} parent=27 // pred_check_branch
        %197 = sbr.rel (%p195) target = $region32
      $region31: #{basic_block_forward.4} parent=27 // pred_region
        %p198 = scmp.lt.s32.totalorder %s19, 1
        %s199 = scalar_select %p198, %s19, 1
        %s200 = smul.addr %s199, 32
        %s201 = smul.addr %s200, 8
        %s202 = scalar_lea.vmem %s0, %s201
      $region32: #{basic_block_forward.4} parent=27 // pred_fallthru
        _
    $region28: #{basic_block_forward.4} parent=5 // pred_fallthru
      _
    %p203 = scmp.le.s32.totalorder 1, %s12
    %p204 = scmp.lt.s32.totalorder %s12, 3
    %p205 = pnand %p203, %p204
    %p206 = pneg %p205
    // Predicated region
    $region33: #{basic_block_forward.4} parent=5 // pred_check
      _
    $region34: #{basic_block_forward.4} parent=5 // pred_check_branch
      %208 = sbr.rel (%p205) target = $region36
    $region35: #{basic_block_forward.4} parent=5 // pred_region
      %s209 = ssub.s32 %s12, 1
      %p210 = scmp.lt.s32.totalorder %s21, 1
      %s211 = scalar_select %p210, %s21, 1
      %s212 = smul.addr %s211, 32
      %s213 = smul.addr %s212, 8
      %s214 = scalar_lea.vmem %s0, %s213
      %p215 = pneg %p50
      %p216 = pneg %p47
      %p217 = pneg %p71
      %p218 = pneg %p68
      %p219 = pneg %p92
      %p220 = pneg %p89
      %p221 = pneg %p113
      %p222 = pneg %p110
      %p223 = pneg %p141
      %p224 = pneg %p138
      %s225 = smul.u32 16, %s22
      %p226 = scmp.lt.s32.totalorder %s21, 1
      %s227 = scalar_select %p226, %s21, 1
      %p228 = scmp.lt.s32.totalorder %s225, 15
      %s229 = scalar_select %p228, %s225, 15
      %s230 = smul.addr %s229, 2
      %s231 = smul.addr %s227, 32
      %s232 = sadd.s32 %s230, %s231
      %s233 = smul.addr %s232, 8
      %s234 = scalar_lea.vmem %s4, %s233
      %p235 = pneg %p167
      %p236 = pneg %p164
      %p237 = scmp.lt.s32.totalorder %s21, 1
      %s238 = scalar_select %p237, %s21, 1
      %s239 = smul.addr %s238, 2
      %s240 = scalar_lea.vmem %s5, %s239
      %p241 = scmp.lt.s32.totalorder %s21, 1
      %s242 = scalar_select %p241, %s21, 1
      %s243 = smul.addr %s242, 32
      %s244 = smul.addr %s243, 8
      %s245 = scalar_lea.vmem %s0, %s244
      %s246 = smul.u32 16, %s22
      %p247 = scmp.lt.s32.totalorder %s21, 1
      %s248 = scalar_select %p247, %s21, 1
      %p249 = scmp.lt.s32.totalorder %s246, 15
      %s250 = scalar_select %p249, %s246, 15
      %s251 = smul.addr %s250, 2
      %s252 = smul.addr %s248, 32
      %s253 = sadd.s32 %s251, %s252
      %s254 = smul.addr %s253, 8
      %s255 = scalar_lea.vmem %s4, %s254
      %s256 = smul.u32 16, %s22
      %p257 = scmp.lt.s32.totalorder %s21, 1
      %s258 = scalar_select %p257, %s21, 1
      %s259 = smul.addr %s258, 2
      %s260 = scalar_lea.vmem %s5, %s259
      %p262 = scmp.eq.s32.totalorder %s22, 0
      // Predicated region
      $region37: #{basic_block_forward.4} parent=35 // pred_check
        %p263 = pneg %p262
      $region38: #{basic_block_forward.4} parent=35 // pred_check_branch
        %265 = sbr.rel (%p263) target = $region40
      $region39: #{basic_block_forward.4} parent=35 // pred_region
        %v266 = vld [vmem:[%s245] sm:$0xff]
        %v267 = vld [vmem:[%s245 + $0x8] sm:$0xff]
        %v268 = vld [vmem:[%s245 + $0x10] sm:$0xff]
        %v269 = vld [vmem:[%s245 + $0x18] sm:$0xff]
        %v270 = vld [vmem:[%s245 + $0x20] sm:$0xff]
        %v271 = vld [vmem:[%s245 + $0x28] sm:$0xff]
        %v272 = vld [vmem:[%s245 + $0x30] sm:$0xff]
        %v273 = vld [vmem:[%s245 + $0x38] sm:$0xff]
        %v274 = vld [vmem:[%s245 + $0x40] sm:$0xff]
        %v275 = vld [vmem:[%s245 + $0x48] sm:$0xff]
        %v276 = vld [vmem:[%s245 + $0x50] sm:$0xff]
        %v277 = vld [vmem:[%s245 + $0x58] sm:$0xff]
        %v278 = vld [vmem:[%s245 + $0x60] sm:$0xff]
        %v279 = vld [vmem:[%s245 + $0x68] sm:$0xff]
        %v280 = vld [vmem:[%s245 + $0x70] sm:$0xff]
        %v281 = vld [vmem:[%s245 + $0x78] sm:$0xff]
        %v282 = vld [vmem:[%s245 + $0x80] sm:$0xff]
        %v283 = vld [vmem:[%s245 + $0x88] sm:$0xff]
        %v284 = vld [vmem:[%s245 + $0x90] sm:$0xff]
        %v285 = vld [vmem:[%s245 + $0x98] sm:$0xff]
        %v286 = vld [vmem:[%s245 + $0xa0] sm:$0xff]
        %v287 = vld [vmem:[%s245 + $0xa8] sm:$0xff]
        %v288 = vld [vmem:[%s245 + $0xb0] sm:$0xff]
        %v289 = vld [vmem:[%s245 + $0xb8] sm:$0xff]
        %v290 = vld [vmem:[%s245 + $0xc0] sm:$0xff]
        %v291 = vld [vmem:[%s245 + $0xc8] sm:$0xff]
        %v292 = vld [vmem:[%s245 + $0xd0] sm:$0xff]
        %v293 = vld [vmem:[%s245 + $0xd8] sm:$0xff]
        %v294 = vld [vmem:[%s245 + $0xe0] sm:$0xff]
        %v295 = vld [vmem:[%s245 + $0xe8] sm:$0xff]
        %v296 = vld [vmem:[%s245 + $0xf0] sm:$0xff]
        %v297 = vld [vmem:[%s245 + $0xf8] sm:$0xff]
        %v298 = vld [vmem:[%s2] sm:$0x1]
        %v300 = vlaneseq
        %v301 = vshrl.u32 %v300, 7
        %v302 = vsub.s32 0, %v301
        %v303 = vrot.slane %v298, %v302
        %v305 = vmul.f32 %v266, %v303
        %v306 = vmul.f32 %v267, %v303
        %v307 = vmul.f32 %v268, %v303
        %v308 = vmul.f32 %v269, %v303
        %v309 = vmul.f32 %v270, %v303
        %v310 = vmul.f32 %v271, %v303
        %v311 = vmul.f32 %v272, %v303
        %v312 = vmul.f32 %v273, %v303
        %v313 = vmul.f32 %v274, %v303
        %v314 = vmul.f32 %v275, %v303
        %v315 = vmul.f32 %v276, %v303
        %v316 = vmul.f32 %v277, %v303
        %v317 = vmul.f32 %v278, %v303
        %v318 = vmul.f32 %v279, %v303
        %v319 = vmul.f32 %v280, %v303
        %v320 = vmul.f32 %v281, %v303
        %v321 = vmul.f32 %v282, %v303
        %v322 = vmul.f32 %v283, %v303
        %v323 = vmul.f32 %v284, %v303
        %v324 = vmul.f32 %v285, %v303
        %v325 = vmul.f32 %v286, %v303
        %v326 = vmul.f32 %v287, %v303
        %v327 = vmul.f32 %v288, %v303
        %v328 = vmul.f32 %v289, %v303
        %v329 = vmul.f32 %v290, %v303
        %v330 = vmul.f32 %v291, %v303
        %v331 = vmul.f32 %v292, %v303
        %v332 = vmul.f32 %v293, %v303
        %v333 = vmul.f32 %v294, %v303
        %v334 = vmul.f32 %v295, %v303
        %v335 = vmul.f32 %v296, %v303
        %v336 = vmul.f32 %v297, %v303
        %v337 = vld [vmem:[%s3] sm:$0x1]
        %v339 = vlaneseq
        %v340 = vshrl.u32 %v339, 7
        %v341 = vsub.s32 0, %v340
        %v342 = vrot.slane %v337, %v341
        %v344 = vadd.f32 %v305, %v342
        %v345 = vadd.f32 %v306, %v342
        %v346 = vadd.f32 %v307, %v342
        %v347 = vadd.f32 %v308, %v342
        %v348 = vadd.f32 %v309, %v342
        %v349 = vadd.f32 %v310, %v342
        %v350 = vadd.f32 %v311, %v342
        %v351 = vadd.f32 %v312, %v342
        %v352 = vadd.f32 %v313, %v342
        %v353 = vadd.f32 %v314, %v342
        %v354 = vadd.f32 %v315, %v342
        %v355 = vadd.f32 %v316, %v342
        %v356 = vadd.f32 %v317, %v342
        %v357 = vadd.f32 %v318, %v342
        %v358 = vadd.f32 %v319, %v342
        %v359 = vadd.f32 %v320, %v342
        %v360 = vadd.f32 %v321, %v342
        %v361 = vadd.f32 %v322, %v342
        %v362 = vadd.f32 %v323, %v342
        %v363 = vadd.f32 %v324, %v342
        %v364 = vadd.f32 %v325, %v342
        %v365 = vadd.f32 %v326, %v342
        %v366 = vadd.f32 %v327, %v342
        %v367 = vadd.f32 %v328, %v342
        %v368 = vadd.f32 %v329, %v342
        %v369 = vadd.f32 %v330, %v342
        %v370 = vadd.f32 %v331, %v342
        %v371 = vadd.f32 %v332, %v342
        %v372 = vadd.f32 %v333, %v342
        %v373 = vadd.f32 %v334, %v342
        %v374 = vadd.f32 %v335, %v342
        %v375 = vadd.f32 %v336, %v342
        %v376 = vmax.f32 %v344, 0.0
        %v377 = vmax.f32 %v345, 0.0
        %v378 = vmax.f32 %v346, 0.0
        %v379 = vmax.f32 %v347, 0.0
        %v380 = vmax.f32 %v348, 0.0
        %v381 = vmax.f32 %v349, 0.0
        %v382 = vmax.f32 %v350, 0.0
        %v383 = vmax.f32 %v351, 0.0
        %v384 = vmax.f32 %v352, 0.0
        %v385 = vmax.f32 %v353, 0.0
        %v386 = vmax.f32 %v354, 0.0
        %v387 = vmax.f32 %v355, 0.0
        %v388 = vmax.f32 %v356, 0.0
        %v389 = vmax.f32 %v357, 0.0
        %v390 = vmax.f32 %v358, 0.0
        %v391 = vmax.f32 %v359, 0.0
        %v392 = vmax.f32 %v360, 0.0
        %v393 = vmax.f32 %v361, 0.0
        %v394 = vmax.f32 %v362, 0.0
        %v395 = vmax.f32 %v363, 0.0
        %v396 = vmax.f32 %v364, 0.0
        %v397 = vmax.f32 %v365, 0.0
        %v398 = vmax.f32 %v366, 0.0
        %v399 = vmax.f32 %v367, 0.0
        %v400 = vmax.f32 %v368, 0.0
        %v401 = vmax.f32 %v369, 0.0
        %v402 = vmax.f32 %v370, 0.0
        %v403 = vmax.f32 %v371, 0.0
        %v404 = vmax.f32 %v372, 0.0
        %v405 = vmax.f32 %v373, 0.0
        %v406 = vmax.f32 %v374, 0.0
        %v407 = vmax.f32 %v375, 0.0
        %408 = vst [vmem:[#allocation2] sm:$0xff] 0.0
        %409 = vst [vmem:[#allocation2 + $0x8] sm:$0xff] 0.0
        %410 = vst [vmem:[#allocation2 + $0x10] sm:$0x3] 0.0
        %411 = vst [vmem:[#allocation2 + $0x18] sm:$0xff] 0.0
        %412 = vst [vmem:[#allocation2 + $0x20] sm:$0xff] 0.0
        %413 = vst [vmem:[#allocation2 + $0x28] sm:$0x3] 0.0
        %414 = vst [vmem:[#allocation2 + $0x30] sm:$0xff] 0.0
        %415 = vst [vmem:[#allocation2 + $0x38] sm:$0xff] 0.0
        %416 = vst [vmem:[#allocation2 + $0x40] sm:$0x3] 0.0
        %417 = vst [vmem:[#allocation2 + $0x48] sm:$0xff] 0.0
        %418 = vst [vmem:[#allocation2 + $0x50] sm:$0xff] 0.0
        %419 = vst [vmem:[#allocation2 + $0x58] sm:$0x3] 0.0
        %420 = vst [vmem:[#allocation2 + $0x60] sm:$0xff] 0.0
        %421 = vst [vmem:[#allocation2 + $0x68] sm:$0xff] 0.0
        %422 = vst [vmem:[#allocation2 + $0x70] sm:$0x3] 0.0
        %423 = vst [vmem:[#allocation2 + $0x78] sm:$0xff] 0.0
        %424 = vst [vmem:[#allocation2 + $0x80] sm:$0xff] 0.0
        %425 = vst [vmem:[#allocation2 + $0x88] sm:$0x3] 0.0
        %426 = vst [vmem:[#allocation2 + $0x90] sm:$0xff] 0.0
        %427 = vst [vmem:[#allocation2 + $0x98] sm:$0xff] 0.0
        %428 = vst [vmem:[#allocation2 + $0xa0] sm:$0x3] 0.0
        %429 = vst [vmem:[#allocation2 + $0xa8] sm:$0xff] 0.0
        %430 = vst [vmem:[#allocation2 + $0xb0] sm:$0xff] 0.0
        %431 = vst [vmem:[#allocation2 + $0xb8] sm:$0x3] 0.0
        %432 = vst [vmem:[#allocation2 + $0xc0] sm:$0xff] 0.0
        %433 = vst [vmem:[#allocation2 + $0xc8] sm:$0xff] 0.0
        %434 = vst [vmem:[#allocation2 + $0xd0] sm:$0x3] 0.0
        %435 = vst [vmem:[#allocation2 + $0xd8] sm:$0xff] 0.0
        %436 = vst [vmem:[#allocation2 + $0xe0] sm:$0xff] 0.0
        %437 = vst [vmem:[#allocation2 + $0xe8] sm:$0x3] 0.0
        %438 = vst [vmem:[#allocation2 + $0xf0] sm:$0xff] 0.0
        %439 = vst [vmem:[#allocation2 + $0xf8] sm:$0xff] 0.0
        %440 = vst [vmem:[#allocation2 + $0x100] sm:$0x3] 0.0
        %441 = vst [vmem:[#allocation2 + $0x108] sm:$0xff] 0.0
        %442 = vst [vmem:[#allocation2 + $0x110] sm:$0xff] 0.0
        %443 = vst [vmem:[#allocation2 + $0x118] sm:$0x3] 0.0
        %444 = vst [vmem:[#allocation2 + $0x120] sm:$0xff] 0.0
        %445 = vst [vmem:[#allocation2 + $0x128] sm:$0xff] 0.0
        %446 = vst [vmem:[#allocation2 + $0x130] sm:$0x3] 0.0
        %447 = vst [vmem:[#allocation2 + $0x138] sm:$0xff] 0.0
        %448 = vst [vmem:[#allocation2 + $0x140] sm:$0xff] 0.0
        %449 = vst [vmem:[#allocation2 + $0x148] sm:$0x3] 0.0
        %450 = vst [vmem:[#allocation2 + $0x150] sm:$0xff] 0.0
        %451 = vst [vmem:[#allocation2 + $0x158] sm:$0xff] 0.0
        %452 = vst [vmem:[#allocation2 + $0x160] sm:$0x3] 0.0
        %453 = vst [vmem:[#allocation2 + $0x168] sm:$0xff] 0.0
        %454 = vst [vmem:[#allocation2 + $0x170] sm:$0xff] 0.0
        %455 = vst [vmem:[#allocation2 + $0x178] sm:$0x3] 0.0
        %456 = vst [vmem:[#allocation2 + $0x180] sm:$0xff] 0.0
        %457 = vst [vmem:[#allocation2 + $0x188] sm:$0xff] 0.0
        %458 = vst [vmem:[#allocation2 + $0x190] sm:$0x3] 0.0
        %459 = vst [vmem:[#allocation2 + $0x198] sm:$0xff] 0.0
        %460 = vst [vmem:[#allocation2 + $0x1a0] sm:$0xff] 0.0
        %461 = vst [vmem:[#allocation2 + $0x1a8] sm:$0x3] 0.0
        %s462 = scalar_lea.vmem [#allocation2], 24
        %463 = vst [vmem:[%s462 + $0x1] sm:$0xff] %v376
        %464 = vst [vmem:[%s462 + $0x9] sm:$0xff] %v377
        %465 = vst [vmem:[%s462 + $0x19] sm:$0xff] %v378
        %466 = vst [vmem:[%s462 + $0x21] sm:$0xff] %v379
        %467 = vst [vmem:[%s462 + $0x31] sm:$0xff] %v380
        %468 = vst [vmem:[%s462 + $0x39] sm:$0xff] %v381
        %469 = vst [vmem:[%s462 + $0x49] sm:$0xff] %v382
        %470 = vst [vmem:[%s462 + $0x51] sm:$0xff] %v383
        %471 = vst [vmem:[%s462 + $0x61] sm:$0xff] %v384
        %472 = vst [vmem:[%s462 + $0x69] sm:$0xff] %v385
        %473 = vst [vmem:[%s462 + $0x79] sm:$0xff] %v386
        %474 = vst [vmem:[%s462 + $0x81] sm:$0xff] %v387
        %475 = vst [vmem:[%s462 + $0x91] sm:$0xff] %v388
        %476 = vst [vmem:[%s462 + $0x99] sm:$0xff] %v389
        %477 = vst [vmem:[%s462 + $0xa9] sm:$0xff] %v390
        %478 = vst [vmem:[%s462 + $0xb1] sm:$0xff] %v391
        %479 = vst [vmem:[%s462 + $0xc1] sm:$0xff] %v392
        %480 = vst [vmem:[%s462 + $0xc9] sm:$0xff] %v393
        %481 = vst [vmem:[%s462 + $0xd9] sm:$0xff] %v394
        %482 = vst [vmem:[%s462 + $0xe1] sm:$0xff] %v395
        %483 = vst [vmem:[%s462 + $0xf1] sm:$0xff] %v396
        %484 = vst [vmem:[%s462 + $0xf9] sm:$0xff] %v397
        %485 = vst [vmem:[%s462 + $0x109] sm:$0xff] %v398
        %486 = vst [vmem:[%s462 + $0x111] sm:$0xff] %v399
        %487 = vst [vmem:[%s462 + $0x121] sm:$0xff] %v400
        %488 = vst [vmem:[%s462 + $0x129] sm:$0xff] %v401
        %489 = vst [vmem:[%s462 + $0x139] sm:$0xff] %v402
        %490 = vst [vmem:[%s462 + $0x141] sm:$0xff] %v403
        %491 = vst [vmem:[%s462 + $0x151] sm:$0xff] %v404
        %492 = vst [vmem:[%s462 + $0x159] sm:$0xff] %v405
        %493 = vst [vmem:[%s462 + $0x169] sm:$0xff] %v406
        %494 = vst [vmem:[%s462 + $0x171] sm:$0xff] %v407
      $region40: #{basic_block_forward.4} parent=35 // pred_fallthru
        _
      %495 = vst [vmem:[#allocation3] sm:$0xff] 0.0
      %496 = vst [vmem:[#allocation3 + $0x8] sm:$0xff] 0.0
      %497 = vst [vmem:[#allocation3 + $0x10] sm:$0xff] 0.0
      %498 = vst [vmem:[#allocation3 + $0x18] sm:$0xff] 0.0
      %499 = vst [vmem:[#allocation3 + $0x20] sm:$0xff] 0.0
      %500 = vst [vmem:[#allocation3 + $0x28] sm:$0xff] 0.0
      %501 = vst [vmem:[#allocation3 + $0x30] sm:$0xff] 0.0
      %502 = vst [vmem:[#allocation3 + $0x38] sm:$0xff] 0.0
      %503 = vst [vmem:[#allocation3 + $0x40] sm:$0xff] 0.0
      %504 = vst [vmem:[#allocation3 + $0x48] sm:$0xff] 0.0
      %505 = vst [vmem:[#allocation3 + $0x50] sm:$0xff] 0.0
      %506 = vst [vmem:[#allocation3 + $0x58] sm:$0xff] 0.0
      %507 = vst [vmem:[#allocation3 + $0x60] sm:$0xff] 0.0
      %508 = vst [vmem:[#allocation3 + $0x68] sm:$0xff] 0.0
      %509 = vst [vmem:[#allocation3 + $0x70] sm:$0xff] 0.0
      %510 = vst [vmem:[#allocation3 + $0x78] sm:$0xff] 0.0
      %511 = vst [vmem:[#allocation3 + $0x80] sm:$0xff] 0.0
      %512 = vst [vmem:[#allocation3 + $0x88] sm:$0xff] 0.0
      %513 = vst [vmem:[#allocation3 + $0x90] sm:$0xff] 0.0
      %514 = vst [vmem:[#allocation3 + $0x98] sm:$0xff] 0.0
      %515 = vst [vmem:[#allocation3 + $0xa0] sm:$0xff] 0.0
      %516 = vst [vmem:[#allocation3 + $0xa8] sm:$0xff] 0.0
      %517 = vst [vmem:[#allocation3 + $0xb0] sm:$0xff] 0.0
      %518 = vst [vmem:[#allocation3 + $0xb8] sm:$0xff] 0.0
      %519 = vst [vmem:[#allocation3 + $0xc0] sm:$0xff] 0.0
      %520 = vst [vmem:[#allocation3 + $0xc8] sm:$0xff] 0.0
      %521 = vst [vmem:[#allocation3 + $0xd0] sm:$0xff] 0.0
      %522 = vst [vmem:[#allocation3 + $0xd8] sm:$0xff] 0.0
      %523 = vst [vmem:[#allocation3 + $0xe0] sm:$0xff] 0.0
      %524 = vst [vmem:[#allocation3 + $0xe8] sm:$0xff] 0.0
      %525 = vst [vmem:[#allocation3 + $0xf0] sm:$0xff] 0.0
      %526 = vst [vmem:[#allocation3 + $0xf8] sm:$0xff] 0.0
      %s527 = smul.u32 %s22, 16
      %s528 = smul.u32 %s527, 24
      %s529 = scalar_lea.vmem [#allocation2], %s528
      %v530 = vld [vmem:[%s529] sm:$0xff]
      %v531 = vld [vmem:[%s529 + $0x8] sm:$0xff]
      %v532 = vld [vmem:[%s529 + $0x18] sm:$0xff]
      %v533 = vld [vmem:[%s529 + $0x20] sm:$0xff]
      %v534 = vld [vmem:[%s529 + $0x30] sm:$0xff]
      %v535 = vld [vmem:[%s529 + $0x38] sm:$0xff]
      %v536 = vld [vmem:[%s529 + $0x48] sm:$0xff]
      %v537 = vld [vmem:[%s529 + $0x50] sm:$0xff]
      %v538 = vld [vmem:[%s529 + $0x60] sm:$0xff]
      %v539 = vld [vmem:[%s529 + $0x68] sm:$0xff]
      %v540 = vld [vmem:[%s529 + $0x78] sm:$0xff]
      %v541 = vld [vmem:[%s529 + $0x80] sm:$0xff]
      %v542 = vld [vmem:[%s529 + $0x90] sm:$0xff]
      %v543 = vld [vmem:[%s529 + $0x98] sm:$0xff]
      %v544 = vld [vmem:[%s529 + $0xa8] sm:$0xff]
      %v545 = vld [vmem:[%s529 + $0xb0] sm:$0xff]
      %v546 = vld [vmem:[%s529 + $0xc0] sm:$0xff]
      %v547 = vld [vmem:[%s529 + $0xc8] sm:$0xff]
      %v548 = vld [vmem:[%s529 + $0xd8] sm:$0xff]
      %v549 = vld [vmem:[%s529 + $0xe0] sm:$0xff]
      %v550 = vld [vmem:[%s529 + $0xf0] sm:$0xff]
      %v551 = vld [vmem:[%s529 + $0xf8] sm:$0xff]
      %v552 = vld [vmem:[%s529 + $0x108] sm:$0xff]
      %v553 = vld [vmem:[%s529 + $0x110] sm:$0xff]
      %v554 = vld [vmem:[%s529 + $0x120] sm:$0xff]
      %v555 = vld [vmem:[%s529 + $0x128] sm:$0xff]
      %v556 = vld [vmem:[%s529 + $0x138] sm:$0xff]
      %v557 = vld [vmem:[%s529 + $0x140] sm:$0xff]
      %v558 = vld [vmem:[%s529 + $0x150] sm:$0xff]
      %v559 = vld [vmem:[%s529 + $0x158] sm:$0xff]
      %v560 = vld [vmem:[%s529 + $0x168] sm:$0xff]
      %v561 = vld [vmem:[%s529 + $0x170] sm:$0xff]
      %v562 = vpack.c.bf16 %v531, %v530
      %v563 = vpack.c.bf16 %v533, %v532
      %v564 = vpack.c.bf16 %v535, %v534
      %v565 = vpack.c.bf16 %v537, %v536
      %v566 = vpack.c.bf16 %v539, %v538
      %v567 = vpack.c.bf16 %v541, %v540
      %v568 = vpack.c.bf16 %v543, %v542
      %v569 = vpack.c.bf16 %v545, %v544
      %v570 = vpack.c.bf16 %v547, %v546
      %v571 = vpack.c.bf16 %v549, %v548
      %v572 = vpack.c.bf16 %v551, %v550
      %v573 = vpack.c.bf16 %v553, %v552
      %v574 = vpack.c.bf16 %v555, %v554
      %v575 = vpack.c.bf16 %v557, %v556
      %v576 = vpack.c.bf16 %v559, %v558
      %v577 = vpack.c.bf16 %v561, %v560
      %v578 = vld [vmem:[#allocation3] sm:$0xff]
      %v579 = vld [vmem:[#allocation3 + $0x8] sm:$0xff]
      %v580 = vld [vmem:[#allocation3 + $0x10] sm:$0xff]
      %v581 = vld [vmem:[#allocation3 + $0x18] sm:$0xff]
      %v582 = vld [vmem:[#allocation3 + $0x20] sm:$0xff]
      %v583 = vld [vmem:[#allocation3 + $0x28] sm:$0xff]
      %v584 = vld [vmem:[#allocation3 + $0x30] sm:$0xff]
      %v585 = vld [vmem:[#allocation3 + $0x38] sm:$0xff]
      %v586 = vld [vmem:[#allocation3 + $0x40] sm:$0xff]
      %v587 = vld [vmem:[#allocation3 + $0x48] sm:$0xff]
      %v588 = vld [vmem:[#allocation3 + $0x50] sm:$0xff]
      %v589 = vld [vmem:[#allocation3 + $0x58] sm:$0xff]
      %v590 = vld [vmem:[#allocation3 + $0x60] sm:$0xff]
      %v591 = vld [vmem:[#allocation3 + $0x68] sm:$0xff]
      %v592 = vld [vmem:[#allocation3 + $0x70] sm:$0xff]
      %v593 = vld [vmem:[#allocation3 + $0x78] sm:$0xff]
      %v594 = vld [vmem:[#allocation3 + $0x80] sm:$0xff]
      %v595 = vld [vmem:[#allocation3 + $0x88] sm:$0xff]
      %v596 = vld [vmem:[#allocation3 + $0x90] sm:$0xff]
      %v597 = vld [vmem:[#allocation3 + $0x98] sm:$0xff]
      %v598 = vld [vmem:[#allocation3 + $0xa0] sm:$0xff]
      %v599 = vld [vmem:[#allocation3 + $0xa8] sm:$0xff]
      %v600 = vld [vmem:[#allocation3 + $0xb0] sm:$0xff]
      %v601 = vld [vmem:[#allocation3 + $0xb8] sm:$0xff]
      %v602 = vld [vmem:[#allocation3 + $0xc0] sm:$0xff]
      %v603 = vld [vmem:[#allocation3 + $0xc8] sm:$0xff]
      %v604 = vld [vmem:[#allocation3 + $0xd0] sm:$0xff]
      %v605 = vld [vmem:[#allocation3 + $0xd8] sm:$0xff]
      %v606 = vld [vmem:[#allocation3 + $0xe0] sm:$0xff]
      %v607 = vld [vmem:[#allocation3 + $0xe8] sm:$0xff]
      %v608 = vld [vmem:[#allocation3 + $0xf0] sm:$0xff]
      %v609 = vld [vmem:[#allocation3 + $0xf8] sm:$0xff]
      %v610 = vld [vmem:[%s1] sm:$0xf]
      %v611 = vld [vmem:[%s1 + $0x4] sm:$0xf]
      %v612 = vld [vmem:[%s1 + $0x8] sm:$0xf]
      %v613 = vld [vmem:[%s1 + $0xc] sm:$0xf]
      %v614 = vld [vmem:[%s1 + $0x10] sm:$0xf]
      %v615 = vld [vmem:[%s1 + $0x14] sm:$0xf]
      %v616 = vld [vmem:[%s1 + $0x18] sm:$0xf]
      %v617 = vld [vmem:[%s1 + $0x1c] sm:$0xf]
      %v618 = vld [vmem:[%s1 + $0x20] sm:$0xf]
      %v619 = vld [vmem:[%s1 + $0x24] sm:$0xf]
      %v620 = vld [vmem:[%s1 + $0x28] sm:$0xf]
      %v621 = vld [vmem:[%s1 + $0x2c] sm:$0xf]
      %v622 = vld [vmem:[%s1 + $0x30] sm:$0xf]
      %v623 = vld [vmem:[%s1 + $0x34] sm:$0xf]
      %v624 = vld [vmem:[%s1 + $0x38] sm:$0xf]
      %v625 = vld [vmem:[%s1 + $0x3c] sm:$0xf]
      %v642 = vunpack.c.l.b16 %v610
      %v643 = vunpack.c.l.b16 %v611
      %v644 = vunpack.c.l.b16 %v612
      %v645 = vunpack.c.l.b16 %v613
      %v646 = vunpack.c.l.b16 %v614
      %v647 = vunpack.c.l.b16 %v615
      %v648 = vunpack.c.l.b16 %v616
      %v649 = vunpack.c.l.b16 %v617
      %v650 = vunpack.c.l.b16 %v618
      %v651 = vunpack.c.l.b16 %v619
      %v652 = vunpack.c.l.b16 %v620
      %v653 = vunpack.c.l.b16 %v621
      %v654 = vunpack.c.l.b16 %v622
      %v655 = vunpack.c.l.b16 %v623
      %v656 = vunpack.c.l.b16 %v624
      %v657 = vunpack.c.l.b16 %v625
      %v658 = vpack.c.b16 %v643, %v642
      %v659 = vpack.c.b16 %v645, %v644
      %v660 = vpack.c.b16 %v647, %v646
      %v661 = vpack.c.b16 %v649, %v648
      %v662 = vpack.c.b16 %v651, %v650
      %v663 = vpack.c.b16 %v653, %v652
      %v664 = vpack.c.b16 %v655, %v654
      %v665 = vpack.c.b16 %v657, %v656
      %674 = vmatprep.subr.bf16.mxu0 0
      %675 = vmatpush1.bf16.msra.mxu0 %v658
      %676 = vmatprep.subr.bf16.mxu0 0
      %677 = vmatpush1.bf16.msra.mxu0 %v659
      %678 = vmatprep.subr.bf16.mxu0 0
      %679 = vmatpush1.bf16.msra.mxu0 %v660
      %680 = vmatprep.subr.bf16.mxu0 0
      %681 = vmatpush1.bf16.msra.mxu0 %v661
      %682 = vmatprep.subr.bf16.mxu0 0
      %683 = vmatpush1.bf16.msra.mxu0 %v662
      %684 = vmatprep.subr.bf16.mxu0 0
      %685 = vmatpush1.bf16.msra.mxu0 %v663
      %686 = vmatprep.subr.bf16.mxu0 0
      %687 = vmatpush1.bf16.msra.mxu0 %v664
      %688 = vmatprep.subr.bf16.mxu0 0
      %689 = vmatpush1.bf16.msra.mxu0 %v665
      %690 = vmatprep.subr.bf16.mxu0 0
      %691 = vmatpush1.bf16.msra.mxu0 0
      %692 = vmatprep.subr.bf16.mxu0 0
      %693 = vmatpush1.bf16.msra.mxu0 0
      %694 = vmatprep.subr.bf16.mxu0 0
      %695 = vmatpush1.bf16.msra.mxu0 0
      %696 = vmatprep.subr.bf16.mxu0 0
      %697 = vmatpush1.bf16.msra.mxu0 0
      %698 = vmatprep.subr.bf16.mxu0 0
      %699 = vmatpush1.bf16.msra.mxu0 0
      %700 = vmatprep.subr.bf16.mxu0 0
      %701 = vmatpush1.bf16.msra.mxu0 0
      %702 = vmatprep.subr.bf16.mxu0 0
      %703 = vmatpush1.bf16.msra.mxu0 0
      %704 = vmatprep.subr.bf16.mxu0 0
      %705 = vmatpush1.bf16.msra.mxu0 0
      %706 = vmatprep.mubr.bf16.mxu0 0
      %707 = vmatmul.mubr.bf16.gmra.mrb[0].mxu0 %v562
      %v708 = vpop.f32.mrb[0].mxu0
      %v709 = vadd.f32 0.0, %v708
      %v710 = vpop.f32.mrb[0].mxu0
      %v711 = vpop.f32.mrb[0].mxu0
      %v712 = vadd.f32 0.0, %v711
      %v713 = vpop.f32.mrb[0].mxu0
      %714 = vmatprep.mubr.bf16.mxu0 0
      %715 = vmatmul.mubr.bf16.gmra.mrb[0].mxu0 %v563
      %v716 = vpop.f32.mrb[0].mxu0
      %v717 = vadd.f32 0.0, %v716
      %v718 = vpop.f32.mrb[0].mxu0
      %v719 = vpop.f32.mrb[0].mxu0
      %v720 = vadd.f32 0.0, %v719
      %v721 = vpop.f32.mrb[0].mxu0
      %722 = vmatprep.mubr.bf16.mxu0 0
      %723 = vmatmul.mubr.bf16.gmra.mrb[0].mxu0 %v564
      %v724 = vpop.f32.mrb[0].mxu0
      %v725 = vadd.f32 0.0, %v724
      %v726 = vpop.f32.mrb[0].mxu0
      %v727 = vpop.f32.mrb[0].mxu0
      %v728 = vadd.f32 0.0, %v727
      %v729 = vpop.f32.mrb[0].mxu0
      %730 = vmatprep.mubr.bf16.mxu0 0
      %731 = vmatmul.mubr.bf16.gmra.mrb[0].mxu0 %v565
      %v732 = vpop.f32.mrb[0].mxu0
      %v733 = vadd.f32 0.0, %v732
      %v734 = vpop.f32.mrb[0].mxu0
      %v735 = vpop.f32.mrb[0].mxu0
      %v736 = vadd.f32 0.0, %v735
      %v737 = vpop.f32.mrb[0].mxu0
      %738 = vmatprep.mubr.bf16.mxu0 0
      %739 = vmatmul.mubr.bf16.gmra.mrb[0].mxu0 %v566
      %v740 = vpop.f32.mrb[0].mxu0
      %v741 = vadd.f32 0.0, %v740
      %v742 = vpop.f32.mrb[0].mxu0
      %v743 = vpop.f32.mrb[0].mxu0
      %v744 = vadd.f32 0.0, %v743
      %v745 = vpop.f32.mrb[0].mxu0
      %746 = vmatprep.mubr.bf16.mxu0 0
      %747 = vmatmul.mubr.bf16.gmra.mrb[0].mxu0 %v567
      %v748 = vpop.f32.mrb[0].mxu0
      %v749 = vadd.f32 0.0, %v748
      %v750 = vpop.f32.mrb[0].mxu0
      %v751 = vpop.f32.mrb[0].mxu0
      %v752 = vadd.f32 0.0, %v751
      %v753 = vpop.f32.mrb[0].mxu0
      %754 = vmatprep.mubr.bf16.mxu0 0
      %755 = vmatmul.mubr.bf16.gmra.mrb[0].mxu0 %v568
      %v756 = vpop.f32.mrb[0].mxu0
      %v757 = vadd.f32 0.0, %v756
      %v758 = vpop.f32.mrb[0].mxu0
      %v759 = vpop.f32.mrb[0].mxu0
      %v760 = vadd.f32 0.0, %v759
      %v761 = vpop.f32.mrb[0].mxu0
      %762 = vmatprep.mubr.bf16.mxu0 0
      %763 = vmatmul.mubr.bf16.gmra.mrb[0].mxu0 %v569
      %v764 = vpop.f32.mrb[0].mxu0
      %v765 = vadd.f32 0.0, %v764
      %v766 = vpop.f32.mrb[0].mxu0
      %v767 = vpop.f32.mrb[0].mxu0
      %v768 = vadd.f32 0.0, %v767
      %v769 = vpop.f32.mrb[0].mxu0
      %770 = vmatprep.mubr.bf16.mxu0 0
      %771 = vmatmul.mubr.bf16.gmra.mrb[0].mxu0 %v570
      %v772 = vpop.f32.mrb[0].mxu0
      %v773 = vadd.f32 0.0, %v772
      %v774 = vpop.f32.mrb[0].mxu0
      %v775 = vpop.f32.mrb[0].mxu0
      %v776 = vadd.f32 0.0, %v775
      %v777 = vpop.f32.mrb[0].mxu0
      %778 = vmatprep.mubr.bf16.mxu0 0
      %779 = vmatmul.mubr.bf16.gmra.mrb[0].mxu0 %v571
      %v780 = vpop.f32.mrb[0].mxu0
      %v781 = vadd.f32 0.0, %v780
      %v782 = vpop.f32.mrb[0].mxu0
      %v783 = vpop.f32.mrb[0].mxu0
      %v784 = vadd.f32 0.0, %v783
      %v785 = vpop.f32.mrb[0].mxu0
      %786 = vmatprep.mubr.bf16.mxu0 0
      %787 = vmatmul.mubr.bf16.gmra.mrb[0].mxu0 %v572
      %v788 = vpop.f32.mrb[0].mxu0
      %v789 = vadd.f32 0.0, %v788
      %v790 = vpop.f32.mrb[0].mxu0
      %v791 = vpop.f32.mrb[0].mxu0
      %v792 = vadd.f32 0.0, %v791
      %v793 = vpop.f32.mrb[0].mxu0
      %794 = vmatprep.mubr.bf16.mxu0 0
      %795 = vmatmul.mubr.bf16.gmra.mrb[0].mxu0 %v573
      %v796 = vpop.f32.mrb[0].mxu0
      %v797 = vadd.f32 0.0, %v796
      %v798 = vpop.f32.mrb[0].mxu0
      %v799 = vpop.f32.mrb[0].mxu0
      %v800 = vadd.f32 0.0, %v799
      %v801 = vpop.f32.mrb[0].mxu0
      %802 = vmatprep.mubr.bf16.mxu0 0
      %803 = vmatmul.mubr.bf16.gmra.mrb[0].mxu0 %v574
      %v804 = vpop.f32.mrb[0].mxu0
      %v805 = vadd.f32 0.0, %v804
      %v806 = vpop.f32.mrb[0].mxu0
      %v807 = vpop.f32.mrb[0].mxu0
      %v808 = vadd.f32 0.0, %v807
      %v809 = vpop.f32.mrb[0].mxu0
      %810 = vmatprep.mubr.bf16.mxu0 0
      %811 = vmatmul.mubr.bf16.gmra.mrb[0].mxu0 %v575
      %v812 = vpop.f32.mrb[0].mxu0
      %v813 = vadd.f32 0.0, %v812
      %v814 = vpop.f32.mrb[0].mxu0
      %v815 = vpop.f32.mrb[0].mxu0
      %v816 = vadd.f32 0.0, %v815
      %v817 = vpop.f32.mrb[0].mxu0
      %818 = vmatprep.mubr.bf16.mxu0 0
      %819 = vmatmul.mubr.bf16.gmra.mrb[0].mxu0 %v576
      %v820 = vpop.f32.mrb[0].mxu0
      %v821 = vadd.f32 0.0, %v820
      %v822 = vpop.f32.mrb[0].mxu0
      %v823 = vpop.f32.mrb[0].mxu0
      %v824 = vadd.f32 0.0, %v823
      %v825 = vpop.f32.mrb[0].mxu0
      %826 = vmatprep.mubr.bf16.mxu0 0
      %827 = vmatmul.mubr.bf16.gmra.mrb[0].mxu0 %v577
      %v828 = vpop.f32.mrb[0].mxu0
      %v829 = vadd.f32 0.0, %v828
      %v830 = vpop.f32.mrb[0].mxu0
      %v831 = vpop.f32.mrb[0].mxu0
      %v832 = vadd.f32 0.0, %v831
      %v833 = vpop.f32.mrb[0].mxu0
      %834 = vdwg.mxu0
      %v835 = vadd.f32 %v578, %v709
      %v836 = vadd.f32 %v579, %v712
      %v837 = vadd.f32 %v580, %v717
      %v838 = vadd.f32 %v581, %v720
      %v839 = vadd.f32 %v582, %v725
      %v840 = vadd.f32 %v583, %v728
      %v841 = vadd.f32 %v584, %v733
      %v842 = vadd.f32 %v585, %v736
      %v843 = vadd.f32 %v586, %v741
      %v844 = vadd.f32 %v587, %v744
      %v845 = vadd.f32 %v588, %v749
      %v846 = vadd.f32 %v589, %v752
      %v847 = vadd.f32 %v590, %v757
      %v848 = vadd.f32 %v591, %v760
      %v849 = vadd.f32 %v592, %v765
      %v850 = vadd.f32 %v593, %v768
      %v851 = vadd.f32 %v594, %v773
      %v852 = vadd.f32 %v595, %v776
      %v853 = vadd.f32 %v596, %v781
      %v854 = vadd.f32 %v597, %v784
      %v855 = vadd.f32 %v598, %v789
      %v856 = vadd.f32 %v599, %v792
      %v857 = vadd.f32 %v600, %v797
      %v858 = vadd.f32 %v601, %v800
      %v859 = vadd.f32 %v602, %v805
      %v860 = vadd.f32 %v603, %v808
      %v861 = vadd.f32 %v604, %v813
      %v862 = vadd.f32 %v605, %v816
      %v863 = vadd.f32 %v606, %v821
      %v864 = vadd.f32 %v607, %v824
      %v865 = vadd.f32 %v608, %v829
      %v866 = vadd.f32 %v609, %v832
      %867 = vst [vmem:[#allocation3] sm:$0xff] %v835
      %868 = vst [vmem:[#allocation3 + $0x8] sm:$0xff] %v836
      %869 = vst [vmem:[#allocation3 + $0x10] sm:$0xff] %v837
      %870 = vst [vmem:[#allocation3 + $0x18] sm:$0xff] %v838
      %871 = vst [vmem:[#allocation3 + $0x20] sm:$0xff] %v839
      %872 = vst [vmem:[#allocation3 + $0x28] sm:$0xff] %v840
      %873 = vst [vmem:[#allocation3 + $0x30] sm:$0xff] %v841
      %874 = vst [vmem:[#allocation3 + $0x38] sm:$0xff] %v842
      %875 = vst [vmem:[#allocation3 + $0x40] sm:$0xff] %v843
      %876 = vst [vmem:[#allocation3 + $0x48] sm:$0xff] %v844
      %877 = vst [vmem:[#allocation3 + $0x50] sm:$0xff] %v845
      %878 = vst [vmem:[#allocation3 + $0x58] sm:$0xff] %v846
      %879 = vst [vmem:[#allocation3 + $0x60] sm:$0xff] %v847
      %880 = vst [vmem:[#allocation3 + $0x68] sm:$0xff] %v848
      %881 = vst [vmem:[#allocation3 + $0x70] sm:$0xff] %v849
      %882 = vst [vmem:[#allocation3 + $0x78] sm:$0xff] %v850
      %883 = vst [vmem:[#allocation3 + $0x80] sm:$0xff] %v851
      %884 = vst [vmem:[#allocation3 + $0x88] sm:$0xff] %v852
      %885 = vst [vmem:[#allocation3 + $0x90] sm:$0xff] %v853
      %886 = vst [vmem:[#allocation3 + $0x98] sm:$0xff] %v854
      %887 = vst [vmem:[#allocation3 + $0xa0] sm:$0xff] %v855
      %888 = vst [vmem:[#allocation3 + $0xa8] sm:$0xff] %v856
      %889 = vst [vmem:[#allocation3 + $0xb0] sm:$0xff] %v857
      %890 = vst [vmem:[#allocation3 + $0xb8] sm:$0xff] %v858
      %891 = vst [vmem:[#allocation3 + $0xc0] sm:$0xff] %v859
      %892 = vst [vmem:[#allocation3 + $0xc8] sm:$0xff] %v860
      %893 = vst [vmem:[#allocation3 + $0xd0] sm:$0xff] %v861
      %894 = vst [vmem:[#allocation3 + $0xd8] sm:$0xff] %v862
      %895 = vst [vmem:[#allocation3 + $0xe0] sm:$0xff] %v863
      %896 = vst [vmem:[#allocation3 + $0xe8] sm:$0xff] %v864
      %897 = vst [vmem:[#allocation3 + $0xf0] sm:$0xff] %v865
      %898 = vst [vmem:[#allocation3 + $0xf8] sm:$0xff] %v866
      %v899 = vld [vmem:[%s529 + $0x1] sm:$0xff]
      %v900 = vld [vmem:[%s529 + $0x9] sm:$0xff]
      %v901 = vld [vmem:[%s529 + $0x19] sm:$0xff]
      %v902 = vld [vmem:[%s529 + $0x21] sm:$0xff]
      %v903 = vld [vmem:[%s529 + $0x31] sm:$0xff]
      %v904 = vld [vmem:[%s529 + $0x39] sm:$0xff]
      %v905 = vld [vmem:[%s529 + $0x49] sm:$0xff]
      %v906 = vld [vmem:[%s529 + $0x51] sm:$0xff]
      %v907 = vld [vmem:[%s529 + $0x61] sm:$0xff]
      %v908 = vld [vmem:[%s529 + $0x69] sm:$0xff]
      %v909 = vld [vmem:[%s529 + $0x79] sm:$0xff]
      %v910 = vld [vmem:[%s529 + $0x81] sm:$0xff]
      %v911 = vld [vmem:[%s529 + $0x91] sm:$0xff]
      %v912 = vld [vmem:[%s529 + $0x99] sm:$0xff]
      %v913 = vld [vmem:[%s529 + $0xa9] sm:$0xff]
      %v914 = vld [vmem:[%s529 + $0xb1] sm:$0xff]
      %v915 = vld [vmem:[%s529 + $0xc1] sm:$0xff]
      %v916 = vld [vmem:[%s529 + $0xc9] sm:$0xff]
      %v917 = vld [vmem:[%s529 + $0xd9] sm:$0xff]
      %v918 = vld [vmem:[%s529 + $0xe1] sm:$0xff]
      %v919 = vld [vmem:[%s529 + $0xf1] sm:$0xff]
      %v920 = vld [vmem:[%s529 + $0xf9] sm:$0xff]
      %v921 = vld [vmem:[%s529 + $0x109] sm:$0xff]
      %v922 = vld [vmem:[%s529 + $0x111] sm:$0xff]
      %v923 = vld [vmem:[%s529 + $0x121] sm:$0xff]
      %v924 = vld [vmem:[%s529 + $0x129] sm:$0xff]
      %v925 = vld [vmem:[%s529 + $0x139] sm:$0xff]
      %v926 = vld [vmem:[%s529 + $0x141] sm:$0xff]
      %v927 = vld [vmem:[%s529 + $0x151] sm:$0xff]
      %v928 = vld [vmem:[%s529 + $0x159] sm:$0xff]
      %v929 = vld [vmem:[%s529 + $0x169] sm:$0xff]
      %v930 = vld [vmem:[%s529 + $0x171] sm:$0xff]
      %v931 = vpack.c.bf16 %v900, %v899
      %v932 = vpack.c.bf16 %v902, %v901
      %v933 = vpack.c.bf16 %v904, %v903
      %v934 = vpack.c.bf16 %v906, %v905
      %v935 = vpack.c.bf16 %v908, %v907
      %v936 = vpack.c.bf16 %v910, %v909
      %v937 = vpack.c.bf16 %v912, %v911
      %v938 = vpack.c.bf16 %v914, %v913
      %v939 = vpack.c.bf16 %v916, %v915
      %v940 = vpack.c.bf16 %v918, %v917
      %v941 = vpack.c.bf16 %v920, %v919
      %v942 = vpack.c.bf16 %v922, %v921
      %v943 = vpack.c.bf16 %v924, %v923
      %v944 = vpack.c.bf16 %v926, %v925
      %v945 = vpack.c.bf16 %v928, %v927
      %v946 = vpack.c.bf16 %v930, %v929
      %v947 = vld [vmem:[#allocation3] sm:$0xff]
      %v948 = vld [vmem:[#allocation3 + $0x8] sm:$0xff]
      %v949 = vld [vmem:[#allocation3 + $0x10] sm:$0xff]
      %v950 = vld [vmem:[#allocation3 + $0x18] sm:$0xff]
      %v951 = vld [vmem:[#allocation3 + $0x20] sm:$0xff]
      %v952 = vld [vmem:[#allocation3 + $0x28] sm:$0xff]
      %v953 = vld [vmem:[#allocation3 + $0x30] sm:$0xff]
      %v954 = vld [vmem:[#allocation3 + $0x38] sm:$0xff]
      %v955 = vld [vmem:[#allocation3 + $0x40] sm:$0xff]
      %v956 = vld [vmem:[#allocation3 + $0x48] sm:$0xff]
      %v957 = vld [vmem:[#allocation3 + $0x50] sm:$0xff]
      %v958 = vld [vmem:[#allocation3 + $0x58] sm:$0xff]
      %v959 = vld [vmem:[#allocation3 + $0x60] sm:$0xff]
      %v960 = vld [vmem:[#allocation3 + $0x68] sm:$0xff]
      %v961 = vld [vmem:[#allocation3 + $0x70] sm:$0xff]
      %v962 = vld [vmem:[#allocation3 + $0x78] sm:$0xff]
      %v963 = vld [vmem:[#allocation3 + $0x80] sm:$0xff]
      %v964 = vld [vmem:[#allocation3 + $0x88] sm:$0xff]
      %v965 = vld [vmem:[#allocation3 + $0x90] sm:$0xff]
      %v966 = vld [vmem:[#allocation3 + $0x98] sm:$0xff]
      %v967 = vld [vmem:[#allocation3 + $0xa0] sm:$0xff]
      %v968 = vld [vmem:[#allocation3 + $0xa8] sm:$0xff]
      %v969 = vld [vmem:[#allocation3 + $0xb0] sm:$0xff]
      %v970 = vld [vmem:[#allocation3 + $0xb8] sm:$0xff]
      %v971 = vld [vmem:[#allocation3 + $0xc0] sm:$0xff]
      %v972 = vld [vmem:[#allocation3 + $0xc8] sm:$0xff]
      %v973 = vld [vmem:[#allocation3 + $0xd0] sm:$0xff]
      %v974 = vld [vmem:[#allocation3 + $0xd8] sm:$0xff]
      %v975 = vld [vmem:[#allocation3 + $0xe0] sm:$0xff]
      %v976 = vld [vmem:[#allocation3 + $0xe8] sm:$0xff]
      %v977 = vld [vmem:[#allocation3 + $0xf0] sm:$0xff]
      %v978 = vld [vmem:[#allocation3 + $0xf8] sm:$0xff]
      %s979 = scalar_lea.vmem %s1, 64
      %v980 = vld [vmem:[%s979] sm:$0xf]
      %v981 = vld [vmem:[%s979 + $0x4] sm:$0xf]
      %v982 = vld [vmem:[%s979 + $0x8] sm:$0xf]
      %v983 = vld [vmem:[%s979 + $0xc] sm:$0xf]
      %v984 = vld [vmem:[%s979 + $0x10] sm:$0xf]
      %v985 = vld [vmem:[%s979 + $0x14] sm:$0xf]
      %v986 = vld [vmem:[%s979 + $0x18] sm:$0xf]
      %v987 = vld [vmem:[%s979 + $0x1c] sm:$0xf]
      %v988 = vld [vmem:[%s979 + $0x20] sm:$0xf]
      %v989 = vld [vmem:[%s979 + $0x24] sm:$0xf]
      %v990 = vld [vmem:[%s979 + $0x28] sm:$0xf]
      %v991 = vld [vmem:[%s979 + $0x2c] sm:$0xf]
      %v992 = vld [vmem:[%s979 + $0x30] sm:$0xf]
      %v993 = vld [vmem:[%s979 + $0x34] sm:$0xf]
      %v994 = vld [vmem:[%s979 + $0x38] sm:$0xf]
      %v995 = vld [vmem:[%s979 + $0x3c] sm:$0xf]
      %v1012 = vunpack.c.l.b16 %v980
      %v1013 = vunpack.c.l.b16 %v981
      %v1014 = vunpack.c.l.b16 %v982
      %v1015 = vunpack.c.l.b16 %v983
      %v1016 = vunpack.c.l.b16 %v984
      %v1017 = vunpack.c.l.b16 %v985
      %v1018 = vunpack.c.l.b16 %v986
      %v1019 = vunpack.c.l.b16 %v987
      %v1020 = vunpack.c.l.b16 %v988
      %v1021 = vunpack.c.l.b16 %v989
      %v1022 = vunpack.c.l.b16 %v990
      %v1023 = vunpack.c.l.b16 %v991
      %v1024 = vunpack.c.l.b16 %v992
      %v1025 = vunpack.c.l.b16 %v993
      %v1026 = vunpack.c.l.b16 %v994
      %v1027 = vunpack.c.l.b16 %v995
      %v1028 = vpack.c.b16 %v1013, %v1012
      %v1029 = vpack.c.b16 %v1015, %v1014
      %v1030 = vpack.c.b16 %v1017, %v1016
      %v1031 = vpack.c.b16 %v1019, %v1018
      %v1032 = vpack.c.b16 %v1021, %v1020
      %v1033 = vpack.c.b16 %v1023, %v1022
      %v1034 = vpack.c.b16 %v1025, %v1024
      %v1035 = vpack.c.b16 %v1027, %v1026
      %1044 = vmatprep.subr.bf16.mxu0 0
      %1045 = vmatpush1.bf16.msra.mxu0 %v1028
      %1046 = vmatprep.subr.bf16.mxu0 0
      %1047 = vmatpush1.bf16.msra.mxu0 %v1029
      %1048 = vmatprep.subr.bf16.mxu0 0
      %1049 = vmatpush1.bf16.msra.mxu0 %v1030
      %1050 = vmatprep.subr.bf16.mxu0 0
      %1051 = vmatpush1.bf16.msra.mxu0 %v1031
      %1052 = vmatprep.subr.bf16.mxu0 0
      %1053 = vmatpush1.bf16.msra.mxu0 %v1032
      %1054 = vmatprep.subr.bf16.mxu0 0
      %1055 = vmatpush1.bf16.msra.mxu0 %v1033
      %1056 = vmatprep.subr.bf16.mxu0 0
      %1057 = vmatpush1.bf16.msra.mxu0 %v1034
      %1058 = vmatprep.subr.bf16.mxu0 0
      %1059 = vmatpush1.bf16.msra.mxu0 %v1035
      %1060 = vmatprep.subr.bf16.mxu0 0
      %1061 = vmatpush1.bf16.msra.mxu0 0
      %1062 = vmatprep.subr.bf16.mxu0 0
      %1063 = vmatpush1.bf16.msra.mxu0 0
      %1064 = vmatprep.subr.bf16.mxu0 0
      %1065 = vmatpush1.bf16.msra.mxu0 0
      %1066 = vmatprep.subr.bf16.mxu0 0
      %1067 = vmatpush1.bf16.msra.mxu0 0
      %1068 = vmatprep.subr.bf16.mxu0 0
      %1069 = vmatpush1.bf16.msra.mxu0 0
      %1070 = vmatprep.subr.bf16.mxu0 0
      %1071 = vmatpush1.bf16.msra.mxu0 0
      %1072 = vmatprep.subr.bf16.mxu0 0
      %1073 = vmatpush1.bf16.msra.mxu0 0
      %1074 = vmatprep.subr.bf16.mxu0 0
      %1075 = vmatpush1.bf16.msra.mxu0 0
      %1076 = vmatprep.mubr.bf16.mxu0 0
      %1077 = vmatmul.mubr.bf16.gmra.mrb[0].mxu0 %v931
      %v1078 = vpop.f32.mrb[0].mxu0
      %v1079 = vadd.f32 0.0, %v1078
      %v1080 = vpop.f32.mrb[0].mxu0
      %v1081 = vpop.f32.mrb[0].mxu0
      %v1082 = vadd.f32 0.0, %v1081
      %v1083 = vpop.f32.mrb[0].mxu0
      %1084 = vmatprep.mubr.bf16.mxu0 0
      %1085 = vmatmul.mubr.bf16.gmra.mrb[0].mxu0 %v932
      %v1086 = vpop.f32.mrb[0].mxu0
      %v1087 = vadd.f32 0.0, %v1086
      %v1088 = vpop.f32.mrb[0].mxu0
      %v1089 = vpop.f32.mrb[0].mxu0
      %v1090 = vadd.f32 0.0, %v1089
      %v1091 = vpop.f32.mrb[0].mxu0
      %1092 = vmatprep.mubr.bf16.mxu0 0
      %1093 = vmatmul.mubr.bf16.gmra.mrb[0].mxu0 %v933
      %v1094 = vpop.f32.mrb[0].mxu0
      %v1095 = vadd.f32 0.0, %v1094
      %v1096 = vpop.f32.mrb[0].mxu0
      %v1097 = vpop.f32.mrb[0].mxu0
      %v1098 = vadd.f32 0.0, %v1097
      %v1099 = vpop.f32.mrb[0].mxu0
      %1100 = vmatprep.mubr.bf16.mxu0 0
      %1101 = vmatmul.mubr.bf16.gmra.mrb[0].mxu0 %v934
      %v1102 = vpop.f32.mrb[0].mxu0
      %v1103 = vadd.f32 0.0, %v1102
      %v1104 = vpop.f32.mrb[0].mxu0
      %v1105 = vpop.f32.mrb[0].mxu0
      %v1106 = vadd.f32 0.0, %v1105
      %v1107 = vpop.f32.mrb[0].mxu0
      %1108 = vmatprep.mubr.bf16.mxu0 0
      %1109 = vmatmul.mubr.bf16.gmra.mrb[0].mxu0 %v935
      %v1110 = vpop.f32.mrb[0].mxu0
      %v1111 = vadd.f32 0.0, %v1110
      %v1112 = vpop.f32.mrb[0].mxu0
      %v1113 = vpop.f32.mrb[0].mxu0
      %v1114 = vadd.f32 0.0, %v1113
      %v1115 = vpop.f32.mrb[0].mxu0
      %1116 = vmatprep.mubr.bf16.mxu0 0
      %1117 = vmatmul.mubr.bf16.gmra.mrb[0].mxu0 %v936
      %v1118 = vpop.f32.mrb[0].mxu0
      %v1119 = vadd.f32 0.0, %v1118
      %v1120 = vpop.f32.mrb[0].mxu0
      %v1121 = vpop.f32.mrb[0].mxu0
      %v1122 = vadd.f32 0.0, %v1121
      %v1123 = vpop.f32.mrb[0].mxu0
      %1124 = vmatprep.mubr.bf16.mxu0 0
      %1125 = vmatmul.mubr.bf16.gmra.mrb[0].mxu0 %v937
      %v1126 = vpop.f32.mrb[0].mxu0
      %v1127 = vadd.f32 0.0, %v1126
      %v1128 = vpop.f32.mrb[0].mxu0
      %v1129 = vpop.f32.mrb[0].mxu0
      %v1130 = vadd.f32 0.0, %v1129
      %v1131 = vpop.f32.mrb[0].mxu0
      %1132 = vmatprep.mubr.bf16.mxu0 0
      %1133 = vmatmul.mubr.bf16.gmra.mrb[0].mxu0 %v938
      %v1134 = vpop.f32.mrb[0].mxu0
      %v1135 = vadd.f32 0.0, %v1134
      %v1136 = vpop.f32.mrb[0].mxu0
      %v1137 = vpop.f32.mrb[0].mxu0
      %v1138 = vadd.f32 0.0, %v1137
      %v1139 = vpop.f32.mrb[0].mxu0
      %1140 = vmatprep.mubr.bf16.mxu0 0
      %1141 = vmatmul.mubr.bf16.gmra.mrb[0].mxu0 %v939
      %v1142 = vpop.f32.mrb[0].mxu0
      %v1143 = vadd.f32 0.0, %v1142
      %v1144 = vpop.f32.mrb[0].mxu0
      %v1145 = vpop.f32.mrb[0].mxu0
      %v1146 = vadd.f32 0.0, %v1145
      %v1147 = vpop.f32.mrb[0].mxu0
      %1148 = vmatprep.mubr.bf16.mxu0 0
      %1149 = vmatmul.mubr.bf16.gmra.mrb[0].mxu0 %v940
      %v1150 = vpop.f32.mrb[0].mxu0
      %v1151 = vadd.f32 0.0, %v1150
      %v1152 = vpop.f32.mrb[0].mxu0
      %v1153 = vpop.f32.mrb[0].mxu0
      %v1154 = vadd.f32 0.0, %v1153
      %v1155 = vpop.f32.mrb[0].mxu0
      %1156 = vmatprep.mubr.bf16.mxu0 0
      %1157 = vmatmul.mubr.bf16.gmra.mrb[0].mxu0 %v941
      %v1158 = vpop.f32.mrb[0].mxu0
      %v1159 = vadd.f32 0.0, %v1158
      %v1160 = vpop.f32.mrb[0].mxu0
      %v1161 = vpop.f32.mrb[0].mxu0
      %v1162 = vadd.f32 0.0, %v1161
      %v1163 = vpop.f32.mrb[0].mxu0
      %1164 = vmatprep.mubr.bf16.mxu0 0
      %1165 = vmatmul.mubr.bf16.gmra.mrb[0].mxu0 %v942
      %v1166 = vpop.f32.mrb[0].mxu0
      %v1167 = vadd.f32 0.0, %v1166
      %v1168 = vpop.f32.mrb[0].mxu0
      %v1169 = vpop.f32.mrb[0].mxu0
      %v1170 = vadd.f32 0.0, %v1169
      %v1171 = vpop.f32.mrb[0].mxu0
      %1172 = vmatprep.mubr.bf16.mxu0 0
      %1173 = vmatmul.mubr.bf16.gmra.mrb[0].mxu0 %v943
      %v1174 = vpop.f32.mrb[0].mxu0
      %v1175 = vadd.f32 0.0, %v1174
      %v1176 = vpop.f32.mrb[0].mxu0
      %v1177 = vpop.f32.mrb[0].mxu0
      %v1178 = vadd.f32 0.0, %v1177
      %v1179 = vpop.f32.mrb[0].mxu0
      %1180 = vmatprep.mubr.bf16.mxu0 0
      %1181 = vmatmul.mubr.bf16.gmra.mrb[0].mxu0 %v944
      %v1182 = vpop.f32.mrb[0].mxu0
      %v1183 = vadd.f32 0.0, %v1182
      %v1184 = vpop.f32.mrb[0].mxu0
      %v1185 = vpop.f32.mrb[0].mxu0
      %v1186 = vadd.f32 0.0, %v1185
      %v1187 = vpop.f32.mrb[0].mxu0
      %1188 = vmatprep.mubr.bf16.mxu0 0
      %1189 = vmatmul.mubr.bf16.gmra.mrb[0].mxu0 %v945
      %v1190 = vpop.f32.mrb[0].mxu0
      %v1191 = vadd.f32 0.0, %v1190
      %v1192 = vpop.f32.mrb[0].mxu0
      %v1193 = vpop.f32.mrb[0].mxu0
      %v1194 = vadd.f32 0.0, %v1193
      %v1195 = vpop.f32.mrb[0].mxu0
      %1196 = vmatprep.mubr.bf16.mxu0 0
      %1197 = vmatmul.mubr.bf16.gmra.mrb[0].mxu0 %v946
      %v1198 = vpop.f32.mrb[0].mxu0
      %v1199 = vadd.f32 0.0, %v1198
      %v1200 = vpop.f32.mrb[0].mxu0
      %v1201 = vpop.f32.mrb[0].mxu0
      %v1202 = vadd.f32 0.0, %v1201
      %v1203 = vpop.f32.mrb[0].mxu0
      %1204 = vdwg.mxu0
      %v1205 = vadd.f32 %v947, %v1079
      %v1206 = vadd.f32 %v948, %v1082
      %v1207 = vadd.f32 %v949, %v1087
      %v1208 = vadd.f32 %v950, %v1090
      %v1209 = vadd.f32 %v951, %v1095
      %v1210 = vadd.f32 %v952, %v1098
      %v1211 = vadd.f32 %v953, %v1103
      %v1212 = vadd.f32 %v954, %v1106
      %v1213 = vadd.f32 %v955, %v1111
      %v1214 = vadd.f32 %v956, %v1114
      %v1215 = vadd.f32 %v957, %v1119
      %v1216 = vadd.f32 %v958, %v1122
      %v1217 = vadd.f32 %v959, %v1127
      %v1218 = vadd.f32 %v960, %v1130
      %v1219 = vadd.f32 %v961, %v1135
      %v1220 = vadd.f32 %v962, %v1138
      %v1221 = vadd.f32 %v963, %v1143
      %v1222 = vadd.f32 %v964, %v1146
      %v1223 = vadd.f32 %v965, %v1151
      %v1224 = vadd.f32 %v966, %v1154
      %v1225 = vadd.f32 %v967, %v1159
      %v1226 = vadd.f32 %v968, %v1162
      %v1227 = vadd.f32 %v969, %v1167
      %v1228 = vadd.f32 %v970, %v1170
      %v1229 = vadd.f32 %v971, %v1175
      %v1230 = vadd.f32 %v972, %v1178
      %v1231 = vadd.f32 %v973, %v1183
      %v1232 = vadd.f32 %v974, %v1186
      %v1233 = vadd.f32 %v975, %v1191
      %v1234 = vadd.f32 %v976, %v1194
      %v1235 = vadd.f32 %v977, %v1199
      %v1236 = vadd.f32 %v978, %v1202
      %1237 = vst [vmem:[#allocation3] sm:$0xff] %v1205
      %1238 = vst [vmem:[#allocation3 + $0x8] sm:$0xff] %v1206
      %1239 = vst [vmem:[#allocation3 + $0x10] sm:$0xff] %v1207
      %1240 = vst [vmem:[#allocation3 + $0x18] sm:$0xff] %v1208
      %1241 = vst [vmem:[#allocation3 + $0x20] sm:$0xff] %v1209
      %1242 = vst [vmem:[#allocation3 + $0x28] sm:$0xff] %v1210
      %1243 = vst [vmem:[#allocation3 + $0x30] sm:$0xff] %v1211
      %1244 = vst [vmem:[#allocation3 + $0x38] sm:$0xff] %v1212
      %1245 = vst [vmem:[#allocation3 + $0x40] sm:$0xff] %v1213
      %1246 = vst [vmem:[#allocation3 + $0x48] sm:$0xff] %v1214
      %1247 = vst [vmem:[#allocation3 + $0x50] sm:$0xff] %v1215
      %1248 = vst [vmem:[#allocation3 + $0x58] sm:$0xff] %v1216
      %1249 = vst [vmem:[#allocation3 + $0x60] sm:$0xff] %v1217
      %1250 = vst [vmem:[#allocation3 + $0x68] sm:$0xff] %v1218
      %1251 = vst [vmem:[#allocation3 + $0x70] sm:$0xff] %v1219
      %1252 = vst [vmem:[#allocation3 + $0x78] sm:$0xff] %v1220
      %1253 = vst [vmem:[#allocation3 + $0x80] sm:$0xff] %v1221
      %1254 = vst [vmem:[#allocation3 + $0x88] sm:$0xff] %v1222
      %1255 = vst [vmem:[#allocation3 + $0x90] sm:$0xff] %v1223
      %1256 = vst [vmem:[#allocation3 + $0x98] sm:$0xff] %v1224
      %1257 = vst [vmem:[#allocation3 + $0xa0] sm:$0xff] %v1225
      %1258 = vst [vmem:[#allocation3 + $0xa8] sm:$0xff] %v1226
      %1259 = vst [vmem:[#allocation3 + $0xb0] sm:$0xff] %v1227
      %1260 = vst [vmem:[#allocation3 + $0xb8] sm:$0xff] %v1228
      %1261 = vst [vmem:[#allocation3 + $0xc0] sm:$0xff] %v1229
      %1262 = vst [vmem:[#allocation3 + $0xc8] sm:$0xff] %v1230
      %1263 = vst [vmem:[#allocation3 + $0xd0] sm:$0xff] %v1231
      %1264 = vst [vmem:[#allocation3 + $0xd8] sm:$0xff] %v1232
      %1265 = vst [vmem:[#allocation3 + $0xe0] sm:$0xff] %v1233
      %1266 = vst [vmem:[#allocation3 + $0xe8] sm:$0xff] %v1234
      %1267 = vst [vmem:[#allocation3 + $0xf0] sm:$0xff] %v1235
      %1268 = vst [vmem:[#allocation3 + $0xf8] sm:$0xff] %v1236
      %v1269 = vld [vmem:[%s529 + $0x2] sm:$0xff]
      %v1270 = vld [vmem:[%s529 + $0xa] sm:$0xff]
      %v1271 = vld [vmem:[%s529 + $0x1a] sm:$0xff]
      %v1272 = vld [vmem:[%s529 + $0x22] sm:$0xff]
      %v1273 = vld [vmem:[%s529 + $0x32] sm:$0xff]
      %v1274 = vld [vmem:[%s529 + $0x3a] sm:$0xff]
      %v1275 = vld [vmem:[%s529 + $0x4a] sm:$0xff]
      %v1276 = vld [vmem:[%s529 + $0x52] sm:$0xff]
      %v1277 = vld [vmem:[%s529 + $0x62] sm:$0xff]
      %v1278 = vld [vmem:[%s529 + $0x6a] sm:$0xff]
      %v1279 = vld [vmem:[%s529 + $0x7a] sm:$0xff]
      %v1280 = vld [vmem:[%s529 + $0x82] sm:$0xff]
      %v1281 = vld [vmem:[%s529 + $0x92] sm:$0xff]
      %v1282 = vld [vmem:[%s529 + $0x9a] sm:$0xff]
      %v1283 = vld [vmem:[%s529 + $0xaa] sm:$0xff]
      %v1284 = vld [vmem:[%s529 + $0xb2] sm:$0xff]
      %v1285 = vld [vmem:[%s529 + $0xc2] sm:$0xff]
      %v1286 = vld [vmem:[%s529 + $0xca] sm:$0xff]
      %v1287 = vld [vmem:[%s529 + $0xda] sm:$0xff]
      %v1288 = vld [vmem:[%s529 + $0xe2] sm:$0xff]
      %v1289 = vld [vmem:[%s529 + $0xf2] sm:$0xff]
      %v1290 = vld [vmem:[%s529 + $0xfa] sm:$0xff]
      %v1291 = vld [vmem:[%s529 + $0x10a] sm:$0xff]
      %v1292 = vld [vmem:[%s529 + $0x112] sm:$0xff]
      %v1293 = vld [vmem:[%s529 + $0x122] sm:$0xff]
      %v1294 = vld [vmem:[%s529 + $0x12a] sm:$0xff]
      %v1295 = vld [vmem:[%s529 + $0x13a] sm:$0xff]
      %v1296 = vld [vmem:[%s529 + $0x142] sm:$0xff]
      %v1297 = vld [vmem:[%s529 + $0x152] sm:$0xff]
      %v1298 = vld [vmem:[%s529 + $0x15a] sm:$0xff]
      %v1299 = vld [vmem:[%s529 + $0x16a] sm:$0xff]
      %v1300 = vld [vmem:[%s529 + $0x172] sm:$0xff]
      %v1301 = vpack.c.bf16 %v1270, %v1269
      %v1302 = vpack.c.bf16 %v1272, %v1271
      %v1303 = vpack.c.bf16 %v1274, %v1273
      %v1304 = vpack.c.bf16 %v1276, %v1275
      %v1305 = vpack.c.bf16 %v1278, %v1277
      %v1306 = vpack.c.bf16 %v1280, %v1279
      %v1307 = vpack.c.bf16 %v1282, %v1281
      %v1308 = vpack.c.bf16 %v1284, %v1283
      %v1309 = vpack.c.bf16 %v1286, %v1285
      %v1310 = vpack.c.bf16 %v1288, %v1287
      %v1311 = vpack.c.bf16 %v1290, %v1289
      %v1312 = vpack.c.bf16 %v1292, %v1291
      %v1313 = vpack.c.bf16 %v1294, %v1293
      %v1314 = vpack.c.bf16 %v1296, %v1295
      %v1315 = vpack.c.bf16 %v1298, %v1297
      %v1316 = vpack.c.bf16 %v1300, %v1299
      %v1317 = vld [vmem:[#allocation3] sm:$0xff]
      %v1318 = vld [vmem:[#allocation3 + $0x8] sm:$0xff]
      %v1319 = vld [vmem:[#allocation3 + $0x10] sm:$0xff]
      %v1320 = vld [vmem:[#allocation3 + $0x18] sm:$0xff]
      %v1321 = vld [vmem:[#allocation3 + $0x20] sm:$0xff]
      %v1322 = vld [vmem:[#allocation3 + $0x28] sm:$0xff]
      %v1323 = vld [vmem:[#allocation3 + $0x30] sm:$0xff]
      %v1324 = vld [vmem:[#allocation3 + $0x38] sm:$0xff]
      %v1325 = vld [vmem:[#allocation3 + $0x40] sm:$0xff]
      %v1326 = vld [vmem:[#allocation3 + $0x48] sm:$0xff]
      %v1327 = vld [vmem:[#allocation3 + $0x50] sm:$0xff]
      %v1328 = vld [vmem:[#allocation3 + $0x58] sm:$0xff]
      %v1329 = vld [vmem:[#allocation3 + $0x60] sm:$0xff]
      %v1330 = vld [vmem:[#allocation3 + $0x68] sm:$0xff]
      %v1331 = vld [vmem:[#allocation3 + $0x70] sm:$0xff]
      %v1332 = vld [vmem:[#allocation3 + $0x78] sm:$0xff]
      %v1333 = vld [vmem:[#allocation3 + $0x80] sm:$0xff]
      %v1334 = vld [vmem:[#allocation3 + $0x88] sm:$0xff]
      %v1335 = vld [vmem:[#allocation3 + $0x90] sm:$0xff]
      %v1336 = vld [vmem:[#allocation3 + $0x98] sm:$0xff]
      %v1337 = vld [vmem:[#allocation3 + $0xa0] sm:$0xff]
      %v1338 = vld [vmem:[#allocation3 + $0xa8] sm:$0xff]
      %v1339 = vld [vmem:[#allocation3 + $0xb0] sm:$0xff]
      %v1340 = vld [vmem:[#allocation3 + $0xb8] sm:$0xff]
      %v1341 = vld [vmem:[#allocation3 + $0xc0] sm:$0xff]
      %v1342 = vld [vmem:[#allocation3 + $0xc8] sm:$0xff]
      %v1343 = vld [vmem:[#allocation3 + $0xd0] sm:$0xff]
      %v1344 = vld [vmem:[#allocation3 + $0xd8] sm:$0xff]
      %v1345 = vld [vmem:[#allocation3 + $0xe0] sm:$0xff]
      %v1346 = vld [vmem:[#allocation3 + $0xe8] sm:$0xff]
      %v1347 = vld [vmem:[#allocation3 + $0xf0] sm:$0xff]
      %v1348 = vld [vmem:[#allocation3 + $0xf8] sm:$0xff]
      %s1349 = scalar_lea.vmem %s1, 128
      %v1350 = vld [vmem:[%s1349] sm:$0xf]
      %v1351 = vld [vmem:[%s1349 + $0x4] sm:$0xf]
      %v1352 = vld [vmem:[%s1349 + $0x8] sm:$0xf]
      %v1353 = vld [vmem:[%s1349 + $0xc] sm:$0xf]
      %v1354 = vld [vmem:[%s1349 + $0x10] sm:$0xf]
      %v1355 = vld [vmem:[%s1349 + $0x14] sm:$0xf]
      %v1356 = vld [vmem:[%s1349 + $0x18] sm:$0xf]
      %v1357 = vld [vmem:[%s1349 + $0x1c] sm:$0xf]
      %v1358 = vld [vmem:[%s1349 + $0x20] sm:$0xf]
      %v1359 = vld [vmem:[%s1349 + $0x24] sm:$0xf]
      %v1360 = vld [vmem:[%s1349 + $0x28] sm:$0xf]
      %v1361 = vld [vmem:[%s1349 + $0x2c] sm:$0xf]
      %v1362 = vld [vmem:[%s1349 + $0x30] sm:$0xf]
      %v1363 = vld [vmem:[%s1349 + $0x34] sm:$0xf]
      %v1364 = vld [vmem:[%s1349 + $0x38] sm:$0xf]
      %v1365 = vld [vmem:[%s1349 + $0x3c] sm:$0xf]
      %v1382 = vunpack.c.l.b16 %v1350
      %v1383 = vunpack.c.l.b16 %v1351
      %v1384 = vunpack.c.l.b16 %v1352
      %v1385 = vunpack.c.l.b16 %v1353
      %v1386 = vunpack.c.l.b16 %v1354
      %v1387 = vunpack.c.l.b16 %v1355
      %v1388 = vunpack.c.l.b16 %v1356
      %v1389 = vunpack.c.l.b16 %v1357
      %v1390 = vunpack.c.l.b16 %v1358
      %v1391 = vunpack.c.l.b16 %v1359
      %v1392 = vunpack.c.l.b16 %v1360
      %v1393 = vunpack.c.l.b16 %v1361
      %v1394 = vunpack.c.l.b16 %v1362
      %v1395 = vunpack.c.l.b16 %v1363
      %v1396 = vunpack.c.l.b16 %v1364
      %v1397 = vunpack.c.l.b16 %v1365
      %v1398 = vpack.c.b16 %v1383, %v1382
      %v1399 = vpack.c.b16 %v1385, %v1384
      %v1400 = vpack.c.b16 %v1387, %v1386
      %v1401 = vpack.c.b16 %v1389, %v1388
      %v1402 = vpack.c.b16 %v1391, %v1390
      %v1403 = vpack.c.b16 %v1393, %v1392
      %v1404 = vpack.c.b16 %v1395, %v1394
      %v1405 = vpack.c.b16 %v1397, %v1396
      %1414 = vmatprep.subr.bf16.mxu0 0
      %1415 = vmatpush1.bf16.msra.mxu0 %v1398
      %1416 = vmatprep.subr.bf16.mxu0 0
      %1417 = vmatpush1.bf16.msra.mxu0 %v1399
      %1418 = vmatprep.subr.bf16.mxu0 0
      %1419 = vmatpush1.bf16.msra.mxu0 %v1400
      %1420 = vmatprep.subr.bf16.mxu0 0
      %1421 = vmatpush1.bf16.msra.mxu0 %v1401
      %1422 = vmatprep.subr.bf16.mxu0 0
      %1423 = vmatpush1.bf16.msra.mxu0 %v1402
      %1424 = vmatprep.subr.bf16.mxu0 0
      %1425 = vmatpush1.bf16.msra.mxu0 %v1403
      %1426 = vmatprep.subr.bf16.mxu0 0
      %1427 = vmatpush1.bf16.msra.mxu0 %v1404
      %1428 = vmatprep.subr.bf16.mxu0 0
      %1429 = vmatpush1.bf16.msra.mxu0 %v1405
      %1430 = vmatprep.subr.bf16.mxu0 0
      %1431 = vmatpush1.bf16.msra.mxu0 0
      %1432 = vmatprep.subr.bf16.mxu0 0
      %1433 = vmatpush1.bf16.msra.mxu0 0
      %1434 = vmatprep.subr.bf16.mxu0 0
      %1435 = vmatpush1.bf16.msra.mxu0 0
      %1436 = vmatprep.subr.bf16.mxu0 0
      %1437 = vmatpush1.bf16.msra.mxu0 0
      %1438 = vmatprep.subr.bf16.mxu0 0
      %1439 = vmatpush1.bf16.msra.mxu0 0
      %1440 = vmatprep.subr.bf16.mxu0 0
      %1441 = vmatpush1.bf16.msra.mxu0 0
      %1442 = vmatprep.subr.bf16.mxu0 0
      %1443 = vmatpush1.bf16.msra.mxu0 0
      %1444 = vmatprep.subr.bf16.mxu0 0
      %1445 = vmatpush1.bf16.msra.mxu0 0
      %1446 = vmatprep.mubr.bf16.mxu0 0
      %1447 = vmatmul.mubr.bf16.gmra.mrb[0].mxu0 %v1301
      %v1448 = vpop.f32.mrb[0].mxu0
      %v1449 = vadd.f32 0.0, %v1448
      %v1450 = vpop.f32.mrb[0].mxu0
      %v1451 = vpop.f32.mrb[0].mxu0
      %v1452 = vadd.f32 0.0, %v1451
      %v1453 = vpop.f32.mrb[0].mxu0
      %1454 = vmatprep.mubr.bf16.mxu0 0
      %1455 = vmatmul.mubr.bf16.gmra.mrb[0].mxu0 %v1302
      %v1456 = vpop.f32.mrb[0].mxu0
      %v1457 = vadd.f32 0.0, %v1456
      %v1458 = vpop.f32.mrb[0].mxu0
      %v1459 = vpop.f32.mrb[0].mxu0
      %v1460 = vadd.f32 0.0, %v1459
      %v1461 = vpop.f32.mrb[0].mxu0
      %1462 = vmatprep.mubr.bf16.mxu0 0
      %1463 = vmatmul.mubr.bf16.gmra.mrb[0].mxu0 %v1303
      %v1464 = vpop.f32.mrb[0].mxu0
      %v1465 = vadd.f32 0.0, %v1464
      %v1466 = vpop.f32.mrb[0].mxu0
      %v1467 = vpop.f32.mrb[0].mxu0
      %v1468 = vadd.f32 0.0, %v1467
      %v1469 = vpop.f32.mrb[0].mxu0
      %1470 = vmatprep.mubr.bf16.mxu0 0
      %1471 = vmatmul.mubr.bf16.gmra.mrb[0].mxu0 %v1304
      %v1472 = vpop.f32.mrb[0].mxu0
      %v1473 = vadd.f32 0.0, %v1472
      %v1474 = vpop.f32.mrb[0].mxu0
      %v1475 = vpop.f32.mrb[0].mxu0
      %v1476 = vadd.f32 0.0, %v1475
      %v1477 = vpop.f32.mrb[0].mxu0
      %1478 = vmatprep.mubr.bf16.mxu0 0
      %1479 = vmatmul.mubr.bf16.gmra.mrb[0].mxu0 %v1305
      %v1480 = vpop.f32.mrb[0].mxu0
      %v1481 = vadd.f32 0.0, %v1480
      %v1482 = vpop.f32.mrb[0].mxu0
      %v1483 = vpop.f32.mrb[0].mxu0
      %v1484 = vadd.f32 0.0, %v1483
      %v1485 = vpop.f32.mrb[0].mxu0
      %1486 = vmatprep.mubr.bf16.mxu0 0
      %1487 = vmatmul.mubr.bf16.gmra.mrb[0].mxu0 %v1306
      %v1488 = vpop.f32.mrb[0].mxu0
      %v1489 = vadd.f32 0.0, %v1488
      %v1490 = vpop.f32.mrb[0].mxu0
      %v1491 = vpop.f32.mrb[0].mxu0
      %v1492 = vadd.f32 0.0, %v1491
      %v1493 = vpop.f32.mrb[0].mxu0
      %1494 = vmatprep.mubr.bf16.mxu0 0
      %1495 = vmatmul.mubr.bf16.gmra.mrb[0].mxu0 %v1307
      %v1496 = vpop.f32.mrb[0].mxu0
      %v1497 = vadd.f32 0.0, %v1496
      %v1498 = vpop.f32.mrb[0].mxu0
      %v1499 = vpop.f32.mrb[0].mxu0
      %v1500 = vadd.f32 0.0, %v1499
      %v1501 = vpop.f32.mrb[0].mxu0
      %1502 = vmatprep.mubr.bf16.mxu0 0
      %1503 = vmatmul.mubr.bf16.gmra.mrb[0].mxu0 %v1308
      %v1504 = vpop.f32.mrb[0].mxu0
      %v1505 = vadd.f32 0.0, %v1504
      %v1506 = vpop.f32.mrb[0].mxu0
      %v1507 = vpop.f32.mrb[0].mxu0
      %v1508 = vadd.f32 0.0, %v1507
      %v1509 = vpop.f32.mrb[0].mxu0
      %1510 = vmatprep.mubr.bf16.mxu0 0
      %1511 = vmatmul.mubr.bf16.gmra.mrb[0].mxu0 %v1309
      %v1512 = vpop.f32.mrb[0].mxu0
      %v1513 = vadd.f32 0.0, %v1512
      %v1514 = vpop.f32.mrb[0].mxu0
      %v1515 = vpop.f32.mrb[0].mxu0
      %v1516 = vadd.f32 0.0, %v1515
      %v1517 = vpop.f32.mrb[0].mxu0
      %1518 = vmatprep.mubr.bf16.mxu0 0
      %1519 = vmatmul.mubr.bf16.gmra.mrb[0].mxu0 %v1310
      %v1520 = vpop.f32.mrb[0].mxu0
      %v1521 = vadd.f32 0.0, %v1520
      %v1522 = vpop.f32.mrb[0].mxu0
      %v1523 = vpop.f32.mrb[0].mxu0
      %v1524 = vadd.f32 0.0, %v1523
      %v1525 = vpop.f32.mrb[0].mxu0
      %1526 = vmatprep.mubr.bf16.mxu0 0
      %1527 = vmatmul.mubr.bf16.gmra.mrb[0].mxu0 %v1311
      %v1528 = vpop.f32.mrb[0].mxu0
      %v1529 = vadd.f32 0.0, %v1528
      %v1530 = vpop.f32.mrb[0].mxu0
      %v1531 = vpop.f32.mrb[0].mxu0
      %v1532 = vadd.f32 0.0, %v1531
      %v1533 = vpop.f32.mrb[0].mxu0
      %1534 = vmatprep.mubr.bf16.mxu0 0
      %1535 = vmatmul.mubr.bf16.gmra.mrb[0].mxu0 %v1312
      %v1536 = vpop.f32.mrb[0].mxu0
      %v1537 = vadd.f32 0.0, %v1536
      %v1538 = vpop.f32.mrb[0].mxu0
      %v1539 = vpop.f32.mrb[0].mxu0
      %v1540 = vadd.f32 0.0, %v1539
      %v1541 = vpop.f32.mrb[0].mxu0
      %1542 = vmatprep.mubr.bf16.mxu0 0
      %1543 = vmatmul.mubr.bf16.gmra.mrb[0].mxu0 %v1313
      %v1544 = vpop.f32.mrb[0].mxu0
      %v1545 = vadd.f32 0.0, %v1544
      %v1546 = vpop.f32.mrb[0].mxu0
      %v1547 = vpop.f32.mrb[0].mxu0
      %v1548 = vadd.f32 0.0, %v1547
      %v1549 = vpop.f32.mrb[0].mxu0
      %1550 = vmatprep.mubr.bf16.mxu0 0
      %1551 = vmatmul.mubr.bf16.gmra.mrb[0].mxu0 %v1314
      %v1552 = vpop.f32.mrb[0].mxu0
      %v1553 = vadd.f32 0.0, %v1552
      %v1554 = vpop.f32.mrb[0].mxu0
      %v1555 = vpop.f32.mrb[0].mxu0
      %v1556 = vadd.f32 0.0, %v1555
      %v1557 = vpop.f32.mrb[0].mxu0
      %1558 = vmatprep.mubr.bf16.mxu0 0
      %1559 = vmatmul.mubr.bf16.gmra.mrb[0].mxu0 %v1315
      %v1560 = vpop.f32.mrb[0].mxu0
      %v1561 = vadd.f32 0.0, %v1560
      %v1562 = vpop.f32.mrb[0].mxu0
      %v1563 = vpop.f32.mrb[0].mxu0
      %v1564 = vadd.f32 0.0, %v1563
      %v1565 = vpop.f32.mrb[0].mxu0
      %1566 = vmatprep.mubr.bf16.mxu0 0
      %1567 = vmatmul.mubr.bf16.gmra.mrb[0].mxu0 %v1316
      %v1568 = vpop.f32.mrb[0].mxu0
      %v1569 = vadd.f32 0.0, %v1568
      %v1570 = vpop.f32.mrb[0].mxu0
      %v1571 = vpop.f32.mrb[0].mxu0
      %v1572 = vadd.f32 0.0, %v1571
      %v1573 = vpop.f32.mrb[0].mxu0
      %1574 = vdwg.mxu0
      %v1575 = vadd.f32 %v1317, %v1449
      %v1576 = vadd.f32 %v1318, %v1452
      %v1577 = vadd.f32 %v1319, %v1457
      %v1578 = vadd.f32 %v1320, %v1460
      %v1579 = vadd.f32 %v1321, %v1465
      %v1580 = vadd.f32 %v1322, %v1468
      %v1581 = vadd.f32 %v1323, %v1473
      %v1582 = vadd.f32 %v1324, %v1476
      %v1583 = vadd.f32 %v1325, %v1481
      %v1584 = vadd.f32 %v1326, %v1484
      %v1585 = vadd.f32 %v1327, %v1489
      %v1586 = vadd.f32 %v1328, %v1492
      %v1587 = vadd.f32 %v1329, %v1497
      %v1588 = vadd.f32 %v1330, %v1500
      %v1589 = vadd.f32 %v1331, %v1505
      %v1590 = vadd.f32 %v1332, %v1508
      %v1591 = vadd.f32 %v1333, %v1513
      %v1592 = vadd.f32 %v1334, %v1516
      %v1593 = vadd.f32 %v1335, %v1521
      %v1594 = vadd.f32 %v1336, %v1524
      %v1595 = vadd.f32 %v1337, %v1529
      %v1596 = vadd.f32 %v1338, %v1532
      %v1597 = vadd.f32 %v1339, %v1537
      %v1598 = vadd.f32 %v1340, %v1540
      %v1599 = vadd.f32 %v1341, %v1545
      %v1600 = vadd.f32 %v1342, %v1548
      %v1601 = vadd.f32 %v1343, %v1553
      %v1602 = vadd.f32 %v1344, %v1556
      %v1603 = vadd.f32 %v1345, %v1561
      %v1604 = vadd.f32 %v1346, %v1564
      %v1605 = vadd.f32 %v1347, %v1569
      %v1606 = vadd.f32 %v1348, %v1572
      %1607 = vst [vmem:[#allocation3] sm:$0xff] %v1575
      %1608 = vst [vmem:[#allocation3 + $0x8] sm:$0xff] %v1576
      %1609 = vst [vmem:[#allocation3 + $0x10] sm:$0xff] %v1577
      %1610 = vst [vmem:[#allocation3 + $0x18] sm:$0xff] %v1578
      %1611 = vst [vmem:[#allocation3 + $0x20] sm:$0xff] %v1579
      %1612 = vst [vmem:[#allocation3 + $0x28] sm:$0xff] %v1580
      %1613 = vst [vmem:[#allocation3 + $0x30] sm:$0xff] %v1581
      %1614 = vst [vmem:[#allocation3 + $0x38] sm:$0xff] %v1582
      %1615 = vst [vmem:[#allocation3 + $0x40] sm:$0xff] %v1583
      %1616 = vst [vmem:[#allocation3 + $0x48] sm:$0xff] %v1584
      %1617 = vst [vmem:[#allocation3 + $0x50] sm:$0xff] %v1585
      %1618 = vst [vmem:[#allocation3 + $0x58] sm:$0xff] %v1586
      %1619 = vst [vmem:[#allocation3 + $0x60] sm:$0xff] %v1587
      %1620 = vst [vmem:[#allocation3 + $0x68] sm:$0xff] %v1588
      %1621 = vst [vmem:[#allocation3 + $0x70] sm:$0xff] %v1589
      %1622 = vst [vmem:[#allocation3 + $0x78] sm:$0xff] %v1590
      %1623 = vst [vmem:[#allocation3 + $0x80] sm:$0xff] %v1591
      %1624 = vst [vmem:[#allocation3 + $0x88] sm:$0xff] %v1592
      %1625 = vst [vmem:[#allocation3 + $0x90] sm:$0xff] %v1593
      %1626 = vst [vmem:[#allocation3 + $0x98] sm:$0xff] %v1594
      %1627 = vst [vmem:[#allocation3 + $0xa0] sm:$0xff] %v1595
      %1628 = vst [vmem:[#allocation3 + $0xa8] sm:$0xff] %v1596
      %1629 = vst [vmem:[#allocation3 + $0xb0] sm:$0xff] %v1597
      %1630 = vst [vmem:[#allocation3 + $0xb8] sm:$0xff] %v1598
      %1631 = vst [vmem:[#allocation3 + $0xc0] sm:$0xff] %v1599
      %1632 = vst [vmem:[#allocation3 + $0xc8] sm:$0xff] %v1600
      %1633 = vst [vmem:[#allocation3 + $0xd0] sm:$0xff] %v1601
      %1634 = vst [vmem:[#allocation3 + $0xd8] sm:$0xff] %v1602
      %1635 = vst [vmem:[#allocation3 + $0xe0] sm:$0xff] %v1603
      %1636 = vst [vmem:[#allocation3 + $0xe8] sm:$0xff] %v1604
      %1637 = vst [vmem:[#allocation3 + $0xf0] sm:$0xff] %v1605
      %1638 = vst [vmem:[#allocation3 + $0xf8] sm:$0xff] %v1606
      %s1639 = sadd.s32 %s527, 1
      %s1640 = smul.u32 %s1639, 24
      %s1641 = scalar_lea.vmem [#allocation2], %s1640
      %v1642 = vld [vmem:[%s1641] sm:$0xff]
      %v1643 = vld [vmem:[%s1641 + $0x8] sm:$0xff]
      %v1644 = vld [vmem:[%s1641 + $0x18] sm:$0xff]
      %v1645 = vld [vmem:[%s1641 + $0x20] sm:$0xff]
      %v1646 = vld [vmem:[%s1641 + $0x30] sm:$0xff]
      %v1647 = vld [vmem:[%s1641 + $0x38] sm:$0xff]
      %v1648 = vld [vmem:[%s1641 + $0x48] sm:$0xff]
      %v1649 = vld [vmem:[%s1641 + $0x50] sm:$0xff]
      %v1650 = vld [vmem:[%s1641 + $0x60] sm:$0xff]
      %v1651 = vld [vmem:[%s1641 + $0x68] sm:$0xff]
      %v1652 = vld [vmem:[%s1641 + $0x78] sm:$0xff]
      %v1653 = vld [vmem:[%s1641 + $0x80] sm:$0xff]
      %v1654 = vld [vmem:[%s1641 + $0x90] sm:$0xff]
      %v1655 = vld [vmem:[%s1641 + $0x98] sm:$0xff]
      %v1656 = vld [vmem:[%s1641 + $0xa8] sm:$0xff]
      %v1657 = vld [vmem:[%s1641 + $0xb0] sm:$0xff]
      %v1658 = vld [vmem:[%s1641 + $0xc0] sm:$0xff]
      %v1659 = vld [vmem:[%s1641 + $0xc8] sm:$0xff]
      %v1660 = vld [vmem:[%s1641 + $0xd8] sm:$0xff]
      %v1661 = vld [vmem:[%s1641 + $0xe0] sm:$0xff]
      %v1662 = vld [vmem:[%s1641 + $0xf0] sm:$0xff]
      %v1663 = vld [vmem:[%s1641 + $0xf8] sm:$0xff]
      %v1664 = vld [vmem:[%s1641 + $0x108] sm:$0xff]
      %v1665 = vld [vmem:[%s1641 + $0x110] sm:$0xff]
      %v1666 = vld [vmem:[%s1641 + $0x120] sm:$0xff]
      %v1667 = vld [vmem:[%s1641 + $0x128] sm:$0xff]
      %v1668 = vld [vmem:[%s1641 + $0x138] sm:$0xff]
      %v1669 = vld [vmem:[%s1641 + $0x140] sm:$0xff]
      %v1670 = vld [vmem:[%s1641 + $0x150] sm:$0xff]
      %v1671 = vld [vmem:[%s1641 + $0x158] sm:$0xff]
      %v1672 = vld [vmem:[%s1641 + $0x168] sm:$0xff]
      %v1673 = vld [vmem:[%s1641 + $0x170] sm:$0xff]
      %v1674 = vpack.c.bf16 %v1643, %v1642
      %v1675 = vpack.c.bf16 %v1645, %v1644
      %v1676 = vpack.c.bf16 %v1647, %v1646
      %v1677 = vpack.c.bf16 %v1649, %v1648
      %v1678 = vpack.c.bf16 %v1651, %v1650
      %v1679 = vpack.c.bf16 %v1653, %v1652
      %v1680 = vpack.c.bf16 %v1655, %v1654
      %v1681 = vpack.c.bf16 %v1657, %v1656
      %v1682 = vpack.c.bf16 %v1659, %v1658
      %v1683 = vpack.c.bf16 %v1661, %v1660
      %v1684 = vpack.c.bf16 %v1663, %v1662
      %v1685 = vpack.c.bf16 %v1665, %v1664
      %v1686 = vpack.c.bf16 %v1667, %v1666
      %v1687 = vpack.c.bf16 %v1669, %v1668
      %v1688 = vpack.c.bf16 %v1671, %v1670
      %v1689 = vpack.c.bf16 %v1673, %v1672
      %v1690 = vld [vmem:[#allocation3] sm:$0xff]
      %v1691 = vld [vmem:[#allocation3 + $0x8] sm:$0xff]
      %v1692 = vld [vmem:[#allocation3 + $0x10] sm:$0xff]
      %v1693 = vld [vmem:[#allocation3 + $0x18] sm:$0xff]
      %v1694 = vld [vmem:[#allocation3 + $0x20] sm:$0xff]
      %v1695 = vld [vmem:[#allocation3 + $0x28] sm:$0xff]
      %v1696 = vld [vmem:[#allocation3 + $0x30] sm:$0xff]
      %v1697 = vld [vmem:[#allocation3 + $0x38] sm:$0xff]
      %v1698 = vld [vmem:[#allocation3 + $0x40] sm:$0xff]
      %v1699 = vld [vmem:[#allocation3 + $0x48] sm:$0xff]
      %v1700 = vld [vmem:[#allocation3 + $0x50] sm:$0xff]
      %v1701 = vld [vmem:[#allocation3 + $0x58] sm:$0xff]
      %v1702 = vld [vmem:[#allocation3 + $0x60] sm:$0xff]
      %v1703 = vld [vmem:[#allocation3 + $0x68] sm:$0xff]
      %v1704 = vld [vmem:[#allocation3 + $0x70] sm:$0xff]
      %v1705 = vld [vmem:[#allocation3 + $0x78] sm:$0xff]
      %v1706 = vld [vmem:[#allocation3 + $0x80] sm:$0xff]
      %v1707 = vld [vmem:[#allocation3 + $0x88] sm:$0xff]
      %v1708 = vld [vmem:[#allocation3 + $0x90] sm:$0xff]
      %v1709 = vld [vmem:[#allocation3 + $0x98] sm:$0xff]
      %v1710 = vld [vmem:[#allocation3 + $0xa0] sm:$0xff]
      %v1711 = vld [vmem:[#allocation3 + $0xa8] sm:$0xff]
      %v1712 = vld [vmem:[#allocation3 + $0xb0] sm:$0xff]
      %v1713 = vld [vmem:[#allocation3 + $0xb8] sm:$0xff]
      %v1714 = vld [vmem:[#allocation3 + $0xc0] sm:$0xff]
      %v1715 = vld [vmem:[#allocation3 + $0xc8] sm:$0xff]
      %v1716 = vld [vmem:[#allocation3 + $0xd0] sm:$0xff]
      %v1717 = vld [vmem:[#allocation3 + $0xd8] sm:$0xff]
      %v1718 = vld [vmem:[#allocation3 + $0xe0] sm:$0xff]
      %v1719 = vld [vmem:[#allocation3 + $0xe8] sm:$0xff]
      %v1720 = vld [vmem:[#allocation3 + $0xf0] sm:$0xff]
      %v1721 = vld [vmem:[#allocation3 + $0xf8] sm:$0xff]
      %s1722 = scalar_lea.vmem %s1, 192
      %v1723 = vld [vmem:[%s1722] sm:$0xf]
      %v1724 = vld [vmem:[%s1722 + $0x4] sm:$0xf]
      %v1725 = vld [vmem:[%s1722 + $0x8] sm:$0xf]
      %v1726 = vld [vmem:[%s1722 + $0xc] sm:$0xf]
      %v1727 = vld [vmem:[%s1722 + $0x10] sm:$0xf]
      %v1728 = vld [vmem:[%s1722 + $0x14] sm:$0xf]
      %v1729 = vld [vmem:[%s1722 + $0x18] sm:$0xf]
      %v1730 = vld [vmem:[%s1722 + $0x1c] sm:$0xf]
      %v1731 = vld [vmem:[%s1722 + $0x20] sm:$0xf]
      %v1732 = vld [vmem:[%s1722 + $0x24] sm:$0xf]
      %v1733 = vld [vmem:[%s1722 + $0x28] sm:$0xf]
      %v1734 = vld [vmem:[%s1722 + $0x2c] sm:$0xf]
      %v1735 = vld [vmem:[%s1722 + $0x30] sm:$0xf]
      %v1736 = vld [vmem:[%s1722 + $0x34] sm:$0xf]
      %v1737 = vld [vmem:[%s1722 + $0x38] sm:$0xf]
      %v1738 = vld [vmem:[%s1722 + $0x3c] sm:$0xf]
      %v1755 = vunpack.c.l.b16 %v1723
      %v1756 = vunpack.c.l.b16 %v1724
      %v1757 = vunpack.c.l.b16 %v1725
      %v1758 = vunpack.c.l.b16 %v1726
      %v1759 = vunpack.c.l.b16 %v1727
      %v1760 = vunpack.c.l.b16 %v1728
      %v1761 = vunpack.c.l.b16 %v1729
      %v1762 = vunpack.c.l.b16 %v1730
      %v1763 = vunpack.c.l.b16 %v1731
      %v1764 = vunpack.c.l.b16 %v1732
      %v1765 = vunpack.c.l.b16 %v1733
      %v1766 = vunpack.c.l.b16 %v1734
      %v1767 = vunpack.c.l.b16 %v1735
      %v1768 = vunpack.c.l.b16 %v1736
      %v1769 = vunpack.c.l.b16 %v1737
      %v1770 = vunpack.c.l.b16 %v1738
      %v1771 = vpack.c.b16 %v1756, %v1755
      %v1772 = vpack.c.b16 %v1758, %v1757
      %v1773 = vpack.c.b16 %v1760, %v1759
      %v1774 = vpack.c.b16 %v1762, %v1761
      %v1775 = vpack.c.b16 %v1764, %v1763
      %v1776 = vpack.c.b16 %v1766, %v1765
      %v1777 = vpack.c.b16 %v1768, %v1767
      %v1778 = vpack.c.b16 %v1770, %v1769
      %1787 = vmatprep.subr.bf16.mxu0 0
      %1788 = vmatpush1.bf16.msra.mxu0 %v1771
      %1789 = vmatprep.subr.bf16.mxu0 0
      %1790 = vmatpush1.bf16.msra.mxu0 %v1772
      %1791 = vmatprep.subr.bf16.mxu0 0
      %1792 = vmatpush1.bf16.msra.mxu0 %v1773
      %1793 = vmatprep.subr.bf16.mxu0 0
      %1794 = vmatpush1.bf16.msra.mxu0 %v1774
      %1795 = vmatprep.subr.bf16.mxu0 0
      %1796 = vmatpush1.bf16.msra.mxu0 %v1775
      %1797 = vmatprep.subr.bf16.mxu0 0
      %1798 = vmatpush1.bf16.msra.mxu0 %v1776
      %1799 = vmatprep.subr.bf16.mxu0 0
      %1800 = vmatpush1.bf16.msra.mxu0 %v1777
      %1801 = vmatprep.subr.bf16.mxu0 0
      %1802 = vmatpush1.bf16.msra.mxu0 %v1778
      %1803 = vmatprep.subr.bf16.mxu0 0
      %1804 = vmatpush1.bf16.msra.mxu0 0
      %1805 = vmatprep.subr.bf16.mxu0 0
      %1806 = vmatpush1.bf16.msra.mxu0 0
      %1807 = vmatprep.subr.bf16.mxu0 0
      %1808 = vmatpush1.bf16.msra.mxu0 0
      %1809 = vmatprep.subr.bf16.mxu0 0
      %1810 = vmatpush1.bf16.msra.mxu0 0
      %1811 = vmatprep.subr.bf16.mxu0 0
      %1812 = vmatpush1.bf16.msra.mxu0 0
      %1813 = vmatprep.subr.bf16.mxu0 0
      %1814 = vmatpush1.bf16.msra.mxu0 0
      %1815 = vmatprep.subr.bf16.mxu0 0
      %1816 = vmatpush1.bf16.msra.mxu0 0
      %1817 = vmatprep.subr.bf16.mxu0 0
      %1818 = vmatpush1.bf16.msra.mxu0 0
      %1819 = vmatprep.mubr.bf16.mxu0 0
      %1820 = vmatmul.mubr.bf16.gmra.mrb[0].mxu0 %v1674
      %v1821 = vpop.f32.mrb[0].mxu0
      %v1822 = vadd.f32 0.0, %v1821
      %v1823 = vpop.f32.mrb[0].mxu0
      %v1824 = vpop.f32.mrb[0].mxu0
      %v1825 = vadd.f32 0.0, %v1824
      %v1826 = vpop.f32.mrb[0].mxu0
      %1827 = vmatprep.mubr.bf16.mxu0 0
      %1828 = vmatmul.mubr.bf16.gmra.mrb[0].mxu0 %v1675
      %v1829 = vpop.f32.mrb[0].mxu0
      %v1830 = vadd.f32 0.0, %v1829
      %v1831 = vpop.f32.mrb[0].mxu0
      %v1832 = vpop.f32.mrb[0].mxu0
      %v1833 = vadd.f32 0.0, %v1832
      %v1834 = vpop.f32.mrb[0].mxu0
      %1835 = vmatprep.mubr.bf16.mxu0 0
      %1836 = vmatmul.mubr.bf16.gmra.mrb[0].mxu0 %v1676
      %v1837 = vpop.f32.mrb[0].mxu0
      %v1838 = vadd.f32 0.0, %v1837
      %v1839 = vpop.f32.mrb[0].mxu0
      %v1840 = vpop.f32.mrb[0].mxu0
      %v1841 = vadd.f32 0.0, %v1840
      %v1842 = vpop.f32.mrb[0].mxu0
      %1843 = vmatprep.mubr.bf16.mxu0 0
      %1844 = vmatmul.mubr.bf16.gmra.mrb[0].mxu0 %v1677
      %v1845 = vpop.f32.mrb[0].mxu0
      %v1846 = vadd.f32 0.0, %v1845
      %v1847 = vpop.f32.mrb[0].mxu0
      %v1848 = vpop.f32.mrb[0].mxu0
      %v1849 = vadd.f32 0.0, %v1848
      %v1850 = vpop.f32.mrb[0].mxu0
      %1851 = vmatprep.mubr.bf16.mxu0 0
      %1852 = vmatmul.mubr.bf16.gmra.mrb[0].mxu0 %v1678
      %v1853 = vpop.f32.mrb[0].mxu0
      %v1854 = vadd.f32 0.0, %v1853
      %v1855 = vpop.f32.mrb[0].mxu0
      %v1856 = vpop.f32.mrb[0].mxu0
      %v1857 = vadd.f32 0.0, %v1856
      %v1858 = vpop.f32.mrb[0].mxu0
      %1859 = vmatprep.mubr.bf16.mxu0 0
      %1860 = vmatmul.mubr.bf16.gmra.mrb[0].mxu0 %v1679
      %v1861 = vpop.f32.mrb[0].mxu0
      %v1862 = vadd.f32 0.0, %v1861
      %v1863 = vpop.f32.mrb[0].mxu0
      %v1864 = vpop.f32.mrb[0].mxu0
      %v1865 = vadd.f32 0.0, %v1864
      %v1866 = vpop.f32.mrb[0].mxu0
      %1867 = vmatprep.mubr.bf16.mxu0 0
      %1868 = vmatmul.mubr.bf16.gmra.mrb[0].mxu0 %v1680
      %v1869 = vpop.f32.mrb[0].mxu0
      %v1870 = vadd.f32 0.0, %v1869
      %v1871 = vpop.f32.mrb[0].mxu0
      %v1872 = vpop.f32.mrb[0].mxu0
      %v1873 = vadd.f32 0.0, %v1872
      %v1874 = vpop.f32.mrb[0].mxu0
      %1875 = vmatprep.mubr.bf16.mxu0 0
      %1876 = vmatmul.mubr.bf16.gmra.mrb[0].mxu0 %v1681
      %v1877 = vpop.f32.mrb[0].mxu0
      %v1878 = vadd.f32 0.0, %v1877
      %v1879 = vpop.f32.mrb[0].mxu0
      %v1880 = vpop.f32.mrb[0].mxu0
      %v1881 = vadd.f32 0.0, %v1880
      %v1882 = vpop.f32.mrb[0].mxu0
      %1883 = vmatprep.mubr.bf16.mxu0 0
      %1884 = vmatmul.mubr.bf16.gmra.mrb[0].mxu0 %v1682
      %v1885 = vpop.f32.mrb[0].mxu0
      %v1886 = vadd.f32 0.0, %v1885
      %v1887 = vpop.f32.mrb[0].mxu0
      %v1888 = vpop.f32.mrb[0].mxu0
      %v1889 = vadd.f32 0.0, %v1888
      %v1890 = vpop.f32.mrb[0].mxu0
      %1891 = vmatprep.mubr.bf16.mxu0 0
      %1892 = vmatmul.mubr.bf16.gmra.mrb[0].mxu0 %v1683
      %v1893 = vpop.f32.mrb[0].mxu0
      %v1894 = vadd.f32 0.0, %v1893
      %v1895 = vpop.f32.mrb[0].mxu0
      %v1896 = vpop.f32.mrb[0].mxu0
      %v1897 = vadd.f32 0.0, %v1896
      %v1898 = vpop.f32.mrb[0].mxu0
      %1899 = vmatprep.mubr.bf16.mxu0 0
      %1900 = vmatmul.mubr.bf16.gmra.mrb[0].mxu0 %v1684
      %v1901 = vpop.f32.mrb[0].mxu0
      %v1902 = vadd.f32 0.0, %v1901
      %v1903 = vpop.f32.mrb[0].mxu0
      %v1904 = vpop.f32.mrb[0].mxu0
      %v1905 = vadd.f32 0.0, %v1904
      %v1906 = vpop.f32.mrb[0].mxu0
      %1907 = vmatprep.mubr.bf16.mxu0 0
      %1908 = vmatmul.mubr.bf16.gmra.mrb[0].mxu0 %v1685
      %v1909 = vpop.f32.mrb[0].mxu0
      %v1910 = vadd.f32 0.0, %v1909
      %v1911 = vpop.f32.mrb[0].mxu0
      %v1912 = vpop.f32.mrb[0].mxu0
      %v1913 = vadd.f32 0.0, %v1912
      %v1914 = vpop.f32.mrb[0].mxu0
      %1915 = vmatprep.mubr.bf16.mxu0 0
      %1916 = vmatmul.mubr.bf16.gmra.mrb[0].mxu0 %v1686
      %v1917 = vpop.f32.mrb[0].mxu0
      %v1918 = vadd.f32 0.0, %v1917
      %v1919 = vpop.f32.mrb[0].mxu0
      %v1920 = vpop.f32.mrb[0].mxu0
      %v1921 = vadd.f32 0.0, %v1920
      %v1922 = vpop.f32.mrb[0].mxu0
      %1923 = vmatprep.mubr.bf16.mxu0 0
      %1924 = vmatmul.mubr.bf16.gmra.mrb[0].mxu0 %v1687
      %v1925 = vpop.f32.mrb[0].mxu0
      %v1926 = vadd.f32 0.0, %v1925
      %v1927 = vpop.f32.mrb[0].mxu0
      %v1928 = vpop.f32.mrb[0].mxu0
      %v1929 = vadd.f32 0.0, %v1928
      %v1930 = vpop.f32.mrb[0].mxu0
      %1931 = vmatprep.mubr.bf16.mxu0 0
      %1932 = vmatmul.mubr.bf16.gmra.mrb[0].mxu0 %v1688
      %v1933 = vpop.f32.mrb[0].mxu0
      %v1934 = vadd.f32 0.0, %v1933
      %v1935 = vpop.f32.mrb[0].mxu0
      %v1936 = vpop.f32.mrb[0].mxu0
      %v1937 = vadd.f32 0.0, %v1936
      %v1938 = vpop.f32.mrb[0].mxu0
      %1939 = vmatprep.mubr.bf16.mxu0 0
      %1940 = vmatmul.mubr.bf16.gmra.mrb[0].mxu0 %v1689
      %v1941 = vpop.f32.mrb[0].mxu0
      %v1942 = vadd.f32 0.0, %v1941
      %v1943 = vpop.f32.mrb[0].mxu0
      %v1944 = vpop.f32.mrb[0].mxu0
      %v1945 = vadd.f32 0.0, %v1944
      %v1946 = vpop.f32.mrb[0].mxu0
      %1947 = vdwg.mxu0
      %v1948 = vadd.f32 %v1690, %v1822
      %v1949 = vadd.f32 %v1691, %v1825
      %v1950 = vadd.f32 %v1692, %v1830
      %v1951 = vadd.f32 %v1693, %v1833
      %v1952 = vadd.f32 %v1694, %v1838
      %v1953 = vadd.f32 %v1695, %v1841
      %v1954 = vadd.f32 %v1696, %v1846
      %v1955 = vadd.f32 %v1697, %v1849
      %v1956 = vadd.f32 %v1698, %v1854
      %v1957 = vadd.f32 %v1699, %v1857
      %v1958 = vadd.f32 %v1700, %v1862
      %v1959 = vadd.f32 %v1701, %v1865
      %v1960 = vadd.f32 %v1702, %v1870
      %v1961 = vadd.f32 %v1703, %v1873
      %v1962 = vadd.f32 %v1704, %v1878
      %v1963 = vadd.f32 %v1705, %v1881
      %v1964 = vadd.f32 %v1706, %v1886
      %v1965 = vadd.f32 %v1707, %v1889
      %v1966 = vadd.f32 %v1708, %v1894
      %v1967 = vadd.f32 %v1709, %v1897
      %v1968 = vadd.f32 %v1710, %v1902
      %v1969 = vadd.f32 %v1711, %v1905
      %v1970 = vadd.f32 %v1712, %v1910
      %v1971 = vadd.f32 %v1713, %v1913
      %v1972 = vadd.f32 %v1714, %v1918
      %v1973 = vadd.f32 %v1715, %v1921
      %v1974 = vadd.f32 %v1716, %v1926
      %v1975 = vadd.f32 %v1717, %v1929
      %v1976 = vadd.f32 %v1718, %v1934
      %v1977 = vadd.f32 %v1719, %v1937
      %v1978 = vadd.f32 %v1720, %v1942
      %v1979 = vadd.f32 %v1721, %v1945
      %1980 = vst [vmem:[#allocation3] sm:$0xff] %v1948
      %1981 = vst [vmem:[#allocation3 + $0x8] sm:$0xff] %v1949
      %1982 = vst [vmem:[#allocation3 + $0x10] sm:$0xff] %v1950
      %1983 = vst [vmem:[#allocation3 + $0x18] sm:$0xff] %v1951
      %1984 = vst [vmem:[#allocation3 + $0x20] sm:$0xff] %v1952
      %1985 = vst [vmem:[#allocation3 + $0x28] sm:$0xff] %v1953
      %1986 = vst [vmem:[#allocation3 + $0x30] sm:$0xff] %v1954
      %1987 = vst [vmem:[#allocation3 + $0x38] sm:$0xff] %v1955
      %1988 = vst [vmem:[#allocation3 + $0x40] sm:$0xff] %v1956
      %1989 = vst [vmem:[#allocation3 + $0x48] sm:$0xff] %v1957
      %1990 = vst [vmem:[#allocation3 + $0x50] sm:$0xff] %v1958
      %1991 = vst [vmem:[#allocation3 + $0x58] sm:$0xff] %v1959
      %1992 = vst [vmem:[#allocation3 + $0x60] sm:$0xff] %v1960
      %1993 = vst [vmem:[#allocation3 + $0x68] sm:$0xff] %v1961
      %1994 = vst [vmem:[#allocation3 + $0x70] sm:$0xff] %v1962
      %1995 = vst [vmem:[#allocation3 + $0x78] sm:$0xff] %v1963
      %1996 = vst [vmem:[#allocation3 + $0x80] sm:$0xff] %v1964
      %1997 = vst [vmem:[#allocation3 + $0x88] sm:$0xff] %v1965
      %1998 = vst [vmem:[#allocation3 + $0x90] sm:$0xff] %v1966
      %1999 = vst [vmem:[#allocation3 + $0x98] sm:$0xff] %v1967
      %2000 = vst [vmem:[#allocation3 + $0xa0] sm:$0xff] %v1968
      %2001 = vst [vmem:[#allocation3 + $0xa8] sm:$0xff] %v1969
      %2002 = vst [vmem:[#allocation3 + $0xb0] sm:$0xff] %v1970
      %2003 = vst [vmem:[#allocation3 + $0xb8] sm:$0xff] %v1971
      %2004 = vst [vmem:[#allocation3 + $0xc0] sm:$0xff] %v1972
      %2005 = vst [vmem:[#allocation3 + $0xc8] sm:$0xff] %v1973
      %2006 = vst [vmem:[#allocation3 + $0xd0] sm:$0xff] %v1974
      %2007 = vst [vmem:[#allocation3 + $0xd8] sm:$0xff] %v1975
      %2008 = vst [vmem:[#allocation3 + $0xe0] sm:$0xff] %v1976
      %2009 = vst [vmem:[#allocation3 + $0xe8] sm:$0xff] %v1977
      %2010 = vst [vmem:[#allocation3 + $0xf0] sm:$0xff] %v1978
      %2011 = vst [vmem:[#allocation3 + $0xf8] sm:$0xff] %v1979
      %v2012 = vld [vmem:[%s1641 + $0x1] sm:$0xff]
      %v2013 = vld [vmem:[%s1641 + $0x9] sm:$0xff]
      %v2014 = vld [vmem:[%s1641 + $0x19] sm:$0xff]
      %v2015 = vld [vmem:[%s1641 + $0x21] sm:$0xff]
      %v2016 = vld [vmem:[%s1641 + $0x31] sm:$0xff]
      %v2017 = vld [vmem:[%s1641 + $0x39] sm:$0xff]
      %v2018 = vld [vmem:[%s1641 + $0x49] sm:$0xff]
      %v2019 = vld [vmem:[%s1641 + $0x51] sm:$0xff]
      %v2020 = vld [vmem:[%s1641 + $0x61] sm:$0xff]
      %v2021 = vld [vmem:[%s1641 + $0x69] sm:$0xff]
      %v2022 = vld [vmem:[%s1641 + $0x79] sm:$0xff]
      %v2023 = vld [vmem:[%s1641 + $0x81] sm:$0xff]
      %v2024 = vld [vmem:[%s1641 + $0x91] sm:$0xff]
      %v2025 = vld [vmem:[%s1641 + $0x99] sm:$0xff]
      %v2026 = vld [vmem:[%s1641 + $0xa9] sm:$0xff]
      %v2027 = vld [vmem:[%s1641 + $0xb1] sm:$0xff]
      %v2028 = vld [vmem:[%s1641 + $0xc1] sm:$0xff]
      %v2029 = vld [vmem:[%s1641 + $0xc9] sm:$0xff]
      %v2030 = vld [vmem:[%s1641 + $0xd9] sm:$0xff]
      %v2031 = vld [vmem:[%s1641 + $0xe1] sm:$0xff]
      %v2032 = vld [vmem:[%s1641 + $0xf1] sm:$0xff]
      %v2033 = vld [vmem:[%s1641 + $0xf9] sm:$0xff]
      %v2034 = vld [vmem:[%s1641 + $0x109] sm:$0xff]
      %v2035 = vld [vmem:[%s1641 + $0x111] sm:$0xff]
      %v2036 = vld [vmem:[%s1641 + $0x121] sm:$0xff]
      %v2037 = vld [vmem:[%s1641 + $0x129] sm:$0xff]
      %v2038 = vld [vmem:[%s1641 + $0x139] sm:$0xff]
      %v2039 = vld [vmem:[%s1641 + $0x141] sm:$0xff]
      %v2040 = vld [vmem:[%s1641 + $0x151] sm:$0xff]
      %v2041 = vld [vmem:[%s1641 + $0x159] sm:$0xff]
      %v2042 = vld [vmem:[%s1641 + $0x169] sm:$0xff]
      %v2043 = vld [vmem:[%s1641 + $0x171] sm:$0xff]
      %v2044 = vpack.c.bf16 %v2013, %v2012
      %v2045 = vpack.c.bf16 %v2015, %v2014
      %v2046 = vpack.c.bf16 %v2017, %v2016
      %v2047 = vpack.c.bf16 %v2019, %v2018
      %v2048 = vpack.c.bf16 %v2021, %v2020
      %v2049 = vpack.c.bf16 %v2023, %v2022
      %v2050 = vpack.c.bf16 %v2025, %v2024
      %v2051 = vpack.c.bf16 %v2027, %v2026
      %v2052 = vpack.c.bf16 %v2029, %v2028
      %v2053 = vpack.c.bf16 %v2031, %v2030
      %v2054 = vpack.c.bf16 %v2033, %v2032
      %v2055 = vpack.c.bf16 %v2035, %v2034
      %v2056 = vpack.c.bf16 %v2037, %v2036
      %v2057 = vpack.c.bf16 %v2039, %v2038
      %v2058 = vpack.c.bf16 %v2041, %v2040
      %v2059 = vpack.c.bf16 %v2043, %v2042
      %v2060 = vld [vmem:[#allocation3] sm:$0xff]
      %v2061 = vld [vmem:[#allocation3 + $0x8] sm:$0xff]
      %v2062 = vld [vmem:[#allocation3 + $0x10] sm:$0xff]
      %v2063 = vld [vmem:[#allocation3 + $0x18] sm:$0xff]
      %v2064 = vld [vmem:[#allocation3 + $0x20] sm:$0xff]
      %v2065 = vld [vmem:[#allocation3 + $0x28] sm:$0xff]
      %v2066 = vld [vmem:[#allocation3 + $0x30] sm:$0xff]
      %v2067 = vld [vmem:[#allocation3 + $0x38] sm:$0xff]
      %v2068 = vld [vmem:[#allocation3 + $0x40] sm:$0xff]
      %v2069 = vld [vmem:[#allocation3 + $0x48] sm:$0xff]
      %v2070 = vld [vmem:[#allocation3 + $0x50] sm:$0xff]
      %v2071 = vld [vmem:[#allocation3 + $0x58] sm:$0xff]
      %v2072 = vld [vmem:[#allocation3 + $0x60] sm:$0xff]
      %v2073 = vld [vmem:[#allocation3 + $0x68] sm:$0xff]
      %v2074 = vld [vmem:[#allocation3 + $0x70] sm:$0xff]
      %v2075 = vld [vmem:[#allocation3 + $0x78] sm:$0xff]
      %v2076 = vld [vmem:[#allocation3 + $0x80] sm:$0xff]
      %v2077 = vld [vmem:[#allocation3 + $0x88] sm:$0xff]
      %v2078 = vld [vmem:[#allocation3 + $0x90] sm:$0xff]
      %v2079 = vld [vmem:[#allocation3 + $0x98] sm:$0xff]
      %v2080 = vld [vmem:[#allocation3 + $0xa0] sm:$0xff]
      %v2081 = vld [vmem:[#allocation3 + $0xa8] sm:$0xff]
      %v2082 = vld [vmem:[#allocation3 + $0xb0] sm:$0xff]
      %v2083 = vld [vmem:[#allocation3 + $0xb8] sm:$0xff]
      %v2084 = vld [vmem:[#allocation3 + $0xc0] sm:$0xff]
      %v2085 = vld [vmem:[#allocation3 + $0xc8] sm:$0xff]
      %v2086 = vld [vmem:[#allocation3 + $0xd0] sm:$0xff]
      %v2087 = vld [vmem:[#allocation3 + $0xd8] sm:$0xff]
      %v2088 = vld [vmem:[#allocation3 + $0xe0] sm:$0xff]
      %v2089 = vld [vmem:[#allocation3 + $0xe8] sm:$0xff]
      %v2090 = vld [vmem:[#allocation3 + $0xf0] sm:$0xff]
      %v2091 = vld [vmem:[#allocation3 + $0xf8] sm:$0xff]
      %s2092 = scalar_lea.vmem %s1, 256
      %v2093 = vld [vmem:[%s2092] sm:$0xf]
      %v2094 = vld [vmem:[%s2092 + $0x4] sm:$0xf]
      %v2095 = vld [vmem:[%s2092 + $0x8] sm:$0xf]
      %v2096 = vld [vmem:[%s2092 + $0xc] sm:$0xf]
      %v2097 = vld [vmem:[%s2092 + $0x10] sm:$0xf]
      %v2098 = vld [vmem:[%s2092 + $0x14] sm:$0xf]
      %v2099 = vld [vmem:[%s2092 + $0x18] sm:$0xf]
      %v2100 = vld [vmem:[%s2092 + $0x1c] sm:$0xf]
      %v2101 = vld [vmem:[%s2092 + $0x20] sm:$0xf]
      %v2102 = vld [vmem:[%s2092 + $0x24] sm:$0xf]
      %v2103 = vld [vmem:[%s2092 + $0x28] sm:$0xf]
      %v2104 = vld [vmem:[%s2092 + $0x2c] sm:$0xf]
      %v2105 = vld [vmem:[%s2092 + $0x30] sm:$0xf]
      %v2106 = vld [vmem:[%s2092 + $0x34] sm:$0xf]
      %v2107 = vld [vmem:[%s2092 + $0x38] sm:$0xf]
      %v2108 = vld [vmem:[%s2092 + $0x3c] sm:$0xf]
      %v2125 = vunpack.c.l.b16 %v2093
      %v2126 = vunpack.c.l.b16 %v2094
      %v2127 = vunpack.c.l.b16 %v2095
      %v2128 = vunpack.c.l.b16 %v2096
      %v2129 = vunpack.c.l.b16 %v2097
      %v2130 = vunpack.c.l.b16 %v2098
      %v2131 = vunpack.c.l.b16 %v2099
      %v2132 = vunpack.c.l.b16 %v2100
      %v2133 = vunpack.c.l.b16 %v2101
      %v2134 = vunpack.c.l.b16 %v2102
      %v2135 = vunpack.c.l.b16 %v2103
      %v2136 = vunpack.c.l.b16 %v2104
      %v2137 = vunpack.c.l.b16 %v2105
      %v2138 = vunpack.c.l.b16 %v2106
      %v2139 = vunpack.c.l.b16 %v2107
      %v2140 = vunpack.c.l.b16 %v2108
      %v2141 = vpack.c.b16 %v2126, %v2125
      %v2142 = vpack.c.b16 %v2128, %v2127
      %v2143 = vpack.c.b16 %v2130, %v2129
      %v2144 = vpack.c.b16 %v2132, %v2131
      %v2145 = vpack.c.b16 %v2134, %v2133
      %v2146 = vpack.c.b16 %v2136, %v2135
      %v2147 = vpack.c.b16 %v2138, %v2137
      %v2148 = vpack.c.b16 %v2140, %v2139
      %2157 = vmatprep.subr.bf16.mxu0 0
      %2158 = vmatpush1.bf16.msra.mxu0 %v2141
      %2159 = vmatprep.subr.bf16.mxu0 0
      %2160 = vmatpush1.bf16.msra.mxu0 %v2142
      %2161 = vmatprep.subr.bf16.mxu0 0
      %2162 = vmatpush1.bf16.msra.mxu0 %v2143
      %2163 = vmatprep.subr.bf16.mxu0 0
      %2164 = vmatpush1.bf16.msra.mxu0 %v2144
      %2165 = vmatprep.subr.bf16.mxu0 0
      %2166 = vmatpush1.bf16.msra.mxu0 %v2145
      %2167 = vmatprep.subr.bf16.mxu0 0
      %2168 = vmatpush1.bf16.msra.mxu0 %v2146
      %2169 = vmatprep.subr.bf16.mxu0 0
      %2170 = vmatpush1.bf16.msra.mxu0 %v2147
      %2171 = vmatprep.subr.bf16.mxu0 0
      %2172 = vmatpush1.bf16.msra.mxu0 %v2148
      %2173 = vmatprep.subr.bf16.mxu0 0
      %2174 = vmatpush1.bf16.msra.mxu0 0
      %2175 = vmatprep.subr.bf16.mxu0 0
      %2176 = vmatpush1.bf16.msra.mxu0 0
      %2177 = vmatprep.subr.bf16.mxu0 0
      %2178 = vmatpush1.bf16.msra.mxu0 0
      %2179 = vmatprep.subr.bf16.mxu0 0
      %2180 = vmatpush1.bf16.msra.mxu0 0
      %2181 = vmatprep.subr.bf16.mxu0 0
      %2182 = vmatpush1.bf16.msra.mxu0 0
      %2183 = vmatprep.subr.bf16.mxu0 0
      %2184 = vmatpush1.bf16.msra.mxu0 0
      %2185 = vmatprep.subr.bf16.mxu0 0
      %2186 = vmatpush1.bf16.msra.mxu0 0
      %2187 = vmatprep.subr.bf16.mxu0 0
      %2188 = vmatpush1.bf16.msra.mxu0 0
      %2189 = vmatprep.mubr.bf16.mxu0 0
      %2190 = vmatmul.mubr.bf16.gmra.mrb[0].mxu0 %v2044
      %v2191 = vpop.f32.mrb[0].mxu0
      %v2192 = vadd.f32 0.0, %v2191
      %v2193 = vpop.f32.mrb[0].mxu0
      %v2194 = vpop.f32.mrb[0].mxu0
      %v2195 = vadd.f32 0.0, %v2194
      %v2196 = vpop.f32.mrb[0].mxu0
      %2197 = vmatprep.mubr.bf16.mxu0 0
      %2198 = vmatmul.mubr.bf16.gmra.mrb[0].mxu0 %v2045
      %v2199 = vpop.f32.mrb[0].mxu0
      %v2200 = vadd.f32 0.0, %v2199
      %v2201 = vpop.f32.mrb[0].mxu0
      %v2202 = vpop.f32.mrb[0].mxu0
      %v2203 = vadd.f32 0.0, %v2202
      %v2204 = vpop.f32.mrb[0].mxu0
      %2205 = vmatprep.mubr.bf16.mxu0 0
      %2206 = vmatmul.mubr.bf16.gmra.mrb[0].mxu0 %v2046
      %v2207 = vpop.f32.mrb[0].mxu0
      %v2208 = vadd.f32 0.0, %v2207
      %v2209 = vpop.f32.mrb[0].mxu0
      %v2210 = vpop.f32.mrb[0].mxu0
      %v2211 = vadd.f32 0.0, %v2210
      %v2212 = vpop.f32.mrb[0].mxu0
      %2213 = vmatprep.mubr.bf16.mxu0 0
      %2214 = vmatmul.mubr.bf16.gmra.mrb[0].mxu0 %v2047
      %v2215 = vpop.f32.mrb[0].mxu0
      %v2216 = vadd.f32 0.0, %v2215
      %v2217 = vpop.f32.mrb[0].mxu0
      %v2218 = vpop.f32.mrb[0].mxu0
      %v2219 = vadd.f32 0.0, %v2218
      %v2220 = vpop.f32.mrb[0].mxu0
      %2221 = vmatprep.mubr.bf16.mxu0 0
      %2222 = vmatmul.mubr.bf16.gmra.mrb[0].mxu0 %v2048
      %v2223 = vpop.f32.mrb[0].mxu0
      %v2224 = vadd.f32 0.0, %v2223
      %v2225 = vpop.f32.mrb[0].mxu0
      %v2226 = vpop.f32.mrb[0].mxu0
      %v2227 = vadd.f32 0.0, %v2226
      %v2228 = vpop.f32.mrb[0].mxu0
      %2229 = vmatprep.mubr.bf16.mxu0 0
      %2230 = vmatmul.mubr.bf16.gmra.mrb[0].mxu0 %v2049
      %v2231 = vpop.f32.mrb[0].mxu0
      %v2232 = vadd.f32 0.0, %v2231
      %v2233 = vpop.f32.mrb[0].mxu0
      %v2234 = vpop.f32.mrb[0].mxu0
      %v2235 = vadd.f32 0.0, %v2234
      %v2236 = vpop.f32.mrb[0].mxu0
      %2237 = vmatprep.mubr.bf16.mxu0 0
      %2238 = vmatmul.mubr.bf16.gmra.mrb[0].mxu0 %v2050
      %v2239 = vpop.f32.mrb[0].mxu0
      %v2240 = vadd.f32 0.0, %v2239
      %v2241 = vpop.f32.mrb[0].mxu0
      %v2242 = vpop.f32.mrb[0].mxu0
      %v2243 = vadd.f32 0.0, %v2242
      %v2244 = vpop.f32.mrb[0].mxu0
      %2245 = vmatprep.mubr.bf16.mxu0 0
      %2246 = vmatmul.mubr.bf16.gmra.mrb[0].mxu0 %v2051
      %v2247 = vpop.f32.mrb[0].mxu0
      %v2248 = vadd.f32 0.0, %v2247
      %v2249 = vpop.f32.mrb[0].mxu0
      %v2250 = vpop.f32.mrb[0].mxu0
      %v2251 = vadd.f32 0.0, %v2250
      %v2252 = vpop.f32.mrb[0].mxu0
      %2253 = vmatprep.mubr.bf16.mxu0 0
      %2254 = vmatmul.mubr.bf16.gmra.mrb[0].mxu0 %v2052
      %v2255 = vpop.f32.mrb[0].mxu0
      %v2256 = vadd.f32 0.0, %v2255
      %v2257 = vpop.f32.mrb[0].mxu0
      %v2258 = vpop.f32.mrb[0].mxu0
      %v2259 = vadd.f32 0.0, %v2258
      %v2260 = vpop.f32.mrb[0].mxu0
      %2261 = vmatprep.mubr.bf16.mxu0 0
      %2262 = vmatmul.mubr.bf16.gmra.mrb[0].mxu0 %v2053
      %v2263 = vpop.f32.mrb[0].mxu0
      %v2264 = vadd.f32 0.0, %v2263
      %v2265 = vpop.f32.mrb[0].mxu0
      %v2266 = vpop.f32.mrb[0].mxu0
      %v2267 = vadd.f32 0.0, %v2266
      %v2268 = vpop.f32.mrb[0].mxu0
      %2269 = vmatprep.mubr.bf16.mxu0 0
      %2270 = vmatmul.mubr.bf16.gmra.mrb[0].mxu0 %v2054
      %v2271 = vpop.f32.mrb[0].mxu0
      %v2272 = vadd.f32 0.0, %v2271
      %v2273 = vpop.f32.mrb[0].mxu0
      %v2274 = vpop.f32.mrb[0].mxu0
      %v2275 = vadd.f32 0.0, %v2274
      %v2276 = vpop.f32.mrb[0].mxu0
      %2277 = vmatprep.mubr.bf16.mxu0 0
      %2278 = vmatmul.mubr.bf16.gmra.mrb[0].mxu0 %v2055
      %v2279 = vpop.f32.mrb[0].mxu0
      %v2280 = vadd.f32 0.0, %v2279
      %v2281 = vpop.f32.mrb[0].mxu0
      %v2282 = vpop.f32.mrb[0].mxu0
      %v2283 = vadd.f32 0.0, %v2282
      %v2284 = vpop.f32.mrb[0].mxu0
      %2285 = vmatprep.mubr.bf16.mxu0 0
      %2286 = vmatmul.mubr.bf16.gmra.mrb[0].mxu0 %v2056
      %v2287 = vpop.f32.mrb[0].mxu0
      %v2288 = vadd.f32 0.0, %v2287
      %v2289 = vpop.f32.mrb[0].mxu0
      %v2290 = vpop.f32.mrb[0].mxu0
      %v2291 = vadd.f32 0.0, %v2290
      %v2292 = vpop.f32.mrb[0].mxu0
      %2293 = vmatprep.mubr.bf16.mxu0 0
      %2294 = vmatmul.mubr.bf16.gmra.mrb[0].mxu0 %v2057
      %v2295 = vpop.f32.mrb[0].mxu0
      %v2296 = vadd.f32 0.0, %v2295
      %v2297 = vpop.f32.mrb[0].mxu0
      %v2298 = vpop.f32.mrb[0].mxu0
      %v2299 = vadd.f32 0.0, %v2298
      %v2300 = vpop.f32.mrb[0].mxu0
      %2301 = vmatprep.mubr.bf16.mxu0 0
      %2302 = vmatmul.mubr.bf16.gmra.mrb[0].mxu0 %v2058
      %v2303 = vpop.f32.mrb[0].mxu0
      %v2304 = vadd.f32 0.0, %v2303
      %v2305 = vpop.f32.mrb[0].mxu0
      %v2306 = vpop.f32.mrb[0].mxu0
      %v2307 = vadd.f32 0.0, %v2306
      %v2308 = vpop.f32.mrb[0].mxu0
      %2309 = vmatprep.mubr.bf16.mxu0 0
      %2310 = vmatmul.mubr.bf16.gmra.mrb[0].mxu0 %v2059
      %v2311 = vpop.f32.mrb[0].mxu0
      %v2312 = vadd.f32 0.0, %v2311
      %v2313 = vpop.f32.mrb[0].mxu0
      %v2314 = vpop.f32.mrb[0].mxu0
      %v2315 = vadd.f32 0.0, %v2314
      %v2316 = vpop.f32.mrb[0].mxu0
      %2317 = vdwg.mxu0
      %v2318 = vadd.f32 %v2060, %v2192
      %v2319 = vadd.f32 %v2061, %v2195
      %v2320 = vadd.f32 %v2062, %v2200
      %v2321 = vadd.f32 %v2063, %v2203
      %v2322 = vadd.f32 %v2064, %v2208
      %v2323 = vadd.f32 %v2065, %v2211
      %v2324 = vadd.f32 %v2066, %v2216
      %v2325 = vadd.f32 %v2067, %v2219
      %v2326 = vadd.f32 %v2068, %v2224
      %v2327 = vadd.f32 %v2069, %v2227
      %v2328 = vadd.f32 %v2070, %v2232
      %v2329 = vadd.f32 %v2071, %v2235
      %v2330 = vadd.f32 %v2072, %v2240
      %v2331 = vadd.f32 %v2073, %v2243
      %v2332 = vadd.f32 %v2074, %v2248
      %v2333 = vadd.f32 %v2075, %v2251
      %v2334 = vadd.f32 %v2076, %v2256
      %v2335 = vadd.f32 %v2077, %v2259
      %v2336 = vadd.f32 %v2078, %v2264
      %v2337 = vadd.f32 %v2079, %v2267
      %v2338 = vadd.f32 %v2080, %v2272
      %v2339 = vadd.f32 %v2081, %v2275
      %v2340 = vadd.f32 %v2082, %v2280
      %v2341 = vadd.f32 %v2083, %v2283
      %v2342 = vadd.f32 %v2084, %v2288
      %v2343 = vadd.f32 %v2085, %v2291
      %v2344 = vadd.f32 %v2086, %v2296
      %v2345 = vadd.f32 %v2087, %v2299
      %v2346 = vadd.f32 %v2088, %v2304
      %v2347 = vadd.f32 %v2089, %v2307
      %v2348 = vadd.f32 %v2090, %v2312
      %v2349 = vadd.f32 %v2091, %v2315
      %2350 = vst [vmem:[#allocation3] sm:$0xff] %v2318
      %2351 = vst [vmem:[#allocation3 + $0x8] sm:$0xff] %v2319
      %2352 = vst [vmem:[#allocation3 + $0x10] sm:$0xff] %v2320
      %2353 = vst [vmem:[#allocation3 + $0x18] sm:$0xff] %v2321
      %2354 = vst [vmem:[#allocation3 + $0x20] sm:$0xff] %v2322
      %2355 = vst [vmem:[#allocation3 + $0x28] sm:$0xff] %v2323
      %2356 = vst [vmem:[#allocation3 + $0x30] sm:$0xff] %v2324
      %2357 = vst [vmem:[#allocation3 + $0x38] sm:$0xff] %v2325
      %2358 = vst [vmem:[#allocation3 + $0x40] sm:$0xff] %v2326
      %2359 = vst [vmem:[#allocation3 + $0x48] sm:$0xff] %v2327
      %2360 = vst [vmem:[#allocation3 + $0x50] sm:$0xff] %v2328
      %2361 = vst [vmem:[#allocation3 + $0x58] sm:$0xff] %v2329
      %2362 = vst [vmem:[#allocation3 + $0x60] sm:$0xff] %v2330
      %2363 = vst [vmem:[#allocation3 + $0x68] sm:$0xff] %v2331
      %2364 = vst [vmem:[#allocation3 + $0x70] sm:$0xff] %v2332
      %2365 = vst [vmem:[#allocation3 + $0x78] sm:$0xff] %v2333
      %2366 = vst [vmem:[#allocation3 + $0x80] sm:$0xff] %v2334
      %2367 = vst [vmem:[#allocation3 + $0x88] sm:$0xff] %v2335
      %2368 = vst [vmem:[#allocation3 + $0x90] sm:$0xff] %v2336
      %2369 = vst [vmem:[#allocation3 + $0x98] sm:$0xff] %v2337
      %2370 = vst [vmem:[#allocation3 + $0xa0] sm:$0xff] %v2338
      %2371 = vst [vmem:[#allocation3 + $0xa8] sm:$0xff] %v2339
      %2372 = vst [vmem:[#allocation3 + $0xb0] sm:$0xff] %v2340
      %2373 = vst [vmem:[#allocation3 + $0xb8] sm:$0xff] %v2341
      %2374 = vst [vmem:[#allocation3 + $0xc0] sm:$0xff] %v2342
      %2375 = vst [vmem:[#allocation3 + $0xc8] sm:$0xff] %v2343
      %2376 = vst [vmem:[#allocation3 + $0xd0] sm:$0xff] %v2344
      %2377 = vst [vmem:[#allocation3 + $0xd8] sm:$0xff] %v2345
      %2378 = vst [vmem:[#allocation3 + $0xe0] sm:$0xff] %v2346
      %2379 = vst [vmem:[#allocation3 + $0xe8] sm:$0xff] %v2347
      %2380 = vst [vmem:[#allocation3 + $0xf0] sm:$0xff] %v2348
      %2381 = vst [vmem:[#allocation3 + $0xf8] sm:$0xff] %v2349
      %v2382 = vld [vmem:[%s1641 + $0x2] sm:$0xff]
      %v2383 = vld [vmem:[%s1641 + $0xa] sm:$0xff]
      %v2384 = vld [vmem:[%s1641 + $0x1a] sm:$0xff]
      %v2385 = vld [vmem:[%s1641 + $0x22] sm:$0xff]
      %v2386 = vld [vmem:[%s1641 + $0x32] sm:$0xff]
      %v2387 = vld [vmem:[%s1641 + $0x3a] sm:$0xff]
      %v2388 = vld [vmem:[%s1641 + $0x4a] sm:$0xff]
      %v2389 = vld [vmem:[%s1641 + $0x52] sm:$0xff]
      %v2390 = vld [vmem:[%s1641 + $0x62] sm:$0xff]
      %v2391 = vld [vmem:[%s1641 + $0x6a] sm:$0xff]
      %v2392 = vld [vmem:[%s1641 + $0x7a] sm:$0xff]
      %v2393 = vld [vmem:[%s1641 + $0x82] sm:$0xff]
      %v2394 = vld [vmem:[%s1641 + $0x92] sm:$0xff]
      %v2395 = vld [vmem:[%s1641 + $0x9a] sm:$0xff]
      %v2396 = vld [vmem:[%s1641 + $0xaa] sm:$0xff]
      %v2397 = vld [vmem:[%s1641 + $0xb2] sm:$0xff]
      %v2398 = vld [vmem:[%s1641 + $0xc2] sm:$0xff]
      %v2399 = vld [vmem:[%s1641 + $0xca] sm:$0xff]
      %v2400 = vld [vmem:[%s1641 + $0xda] sm:$0xff]
      %v2401 = vld [vmem:[%s1641 + $0xe2] sm:$0xff]
      %v2402 = vld [vmem:[%s1641 + $0xf2] sm:$0xff]
      %v2403 = vld [vmem:[%s1641 + $0xfa] sm:$0xff]
      %v2404 = vld [vmem:[%s1641 + $0x10a] sm:$0xff]
      %v2405 = vld [vmem:[%s1641 + $0x112] sm:$0xff]
      %v2406 = vld [vmem:[%s1641 + $0x122] sm:$0xff]
      %v2407 = vld [vmem:[%s1641 + $0x12a] sm:$0xff]
      %v2408 = vld [vmem:[%s1641 + $0x13a] sm:$0xff]
      %v2409 = vld [vmem:[%s1641 + $0x142] sm:$0xff]
      %v2410 = vld [vmem:[%s1641 + $0x152] sm:$0xff]
      %v2411 = vld [vmem:[%s1641 + $0x15a] sm:$0xff]
      %v2412 = vld [vmem:[%s1641 + $0x16a] sm:$0xff]
      %v2413 = vld [vmem:[%s1641 + $0x172] sm:$0xff]
      %v2414 = vpack.c.bf16 %v2383, %v2382
      %v2415 = vpack.c.bf16 %v2385, %v2384
      %v2416 = vpack.c.bf16 %v2387, %v2386
      %v2417 = vpack.c.bf16 %v2389, %v2388
      %v2418 = vpack.c.bf16 %v2391, %v2390
      %v2419 = vpack.c.bf16 %v2393, %v2392
      %v2420 = vpack.c.bf16 %v2395, %v2394
      %v2421 = vpack.c.bf16 %v2397, %v2396
      %v2422 = vpack.c.bf16 %v2399, %v2398
      %v2423 = vpack.c.bf16 %v2401, %v2400
      %v2424 = vpack.c.bf16 %v2403, %v2402
      %v2425 = vpack.c.bf16 %v2405, %v2404
      %v2426 = vpack.c.bf16 %v2407, %v2406
      %v2427 = vpack.c.bf16 %v2409, %v2408
      %v2428 = vpack.c.bf16 %v2411, %v2410
      %v2429 = vpack.c.bf16 %v2413, %v2412
      %v2430 = vld [vmem:[#allocation3] sm:$0xff]
      %v2431 = vld [vmem:[#allocation3 + $0x8] sm:$0xff]
      %v2432 = vld [vmem:[#allocation3 + $0x10] sm:$0xff]
      %v2433 = vld [vmem:[#allocation3 + $0x18] sm:$0xff]
      %v2434 = vld [vmem:[#allocation3 + $0x20] sm:$0xff]
      %v2435 = vld [vmem:[#allocation3 + $0x28] sm:$0xff]
      %v2436 = vld [vmem:[#allocation3 + $0x30] sm:$0xff]
      %v2437 = vld [vmem:[#allocation3 + $0x38] sm:$0xff]
      %v2438 = vld [vmem:[#allocation3 + $0x40] sm:$0xff]
      %v2439 = vld [vmem:[#allocation3 + $0x48] sm:$0xff]
      %v2440 = vld [vmem:[#allocation3 + $0x50] sm:$0xff]
      %v2441 = vld [vmem:[#allocation3 + $0x58] sm:$0xff]
      %v2442 = vld [vmem:[#allocation3 + $0x60] sm:$0xff]
      %v2443 = vld [vmem:[#allocation3 + $0x68] sm:$0xff]
      %v2444 = vld [vmem:[#allocation3 + $0x70] sm:$0xff]
      %v2445 = vld [vmem:[#allocation3 + $0x78] sm:$0xff]
      %v2446 = vld [vmem:[#allocation3 + $0x80] sm:$0xff]
      %v2447 = vld [vmem:[#allocation3 + $0x88] sm:$0xff]
      %v2448 = vld [vmem:[#allocation3 + $0x90] sm:$0xff]
      %v2449 = vld [vmem:[#allocation3 + $0x98] sm:$0xff]
      %v2450 = vld [vmem:[#allocation3 + $0xa0] sm:$0xff]
      %v2451 = vld [vmem:[#allocation3 + $0xa8] sm:$0xff]
      %v2452 = vld [vmem:[#allocation3 + $0xb0] sm:$0xff]
      %v2453 = vld [vmem:[#allocation3 + $0xb8] sm:$0xff]
      %v2454 = vld [vmem:[#allocation3 + $0xc0] sm:$0xff]
      %v2455 = vld [vmem:[#allocation3 + $0xc8] sm:$0xff]
      %v2456 = vld [vmem:[#allocation3 + $0xd0] sm:$0xff]
      %v2457 = vld [vmem:[#allocation3 + $0xd8] sm:$0xff]
      %v2458 = vld [vmem:[#allocation3 + $0xe0] sm:$0xff]
      %v2459 = vld [vmem:[#allocation3 + $0xe8] sm:$0xff]
      %v2460 = vld [vmem:[#allocation3 + $0xf0] sm:$0xff]
      %v2461 = vld [vmem:[#allocation3 + $0xf8] sm:$0xff]
      %s2462 = scalar_lea.vmem %s1, 320
      %v2463 = vld [vmem:[%s2462] sm:$0xf]
      %v2464 = vld [vmem:[%s2462 + $0x4] sm:$0xf]
      %v2465 = vld [vmem:[%s2462 + $0x8] sm:$0xf]
      %v2466 = vld [vmem:[%s2462 + $0xc] sm:$0xf]
      %v2467 = vld [vmem:[%s2462 + $0x10] sm:$0xf]
      %v2468 = vld [vmem:[%s2462 + $0x14] sm:$0xf]
      %v2469 = vld [vmem:[%s2462 + $0x18] sm:$0xf]
      %v2470 = vld [vmem:[%s2462 + $0x1c] sm:$0xf]
      %v2471 = vld [vmem:[%s2462 + $0x20] sm:$0xf]
      %v2472 = vld [vmem:[%s2462 + $0x24] sm:$0xf]
      %v2473 = vld [vmem:[%s2462 + $0x28] sm:$0xf]
      %v2474 = vld [vmem:[%s2462 + $0x2c] sm:$0xf]
      %v2475 = vld [vmem:[%s2462 + $0x30] sm:$0xf]
      %v2476 = vld [vmem:[%s2462 + $0x34] sm:$0xf]
      %v2477 = vld [vmem:[%s2462 + $0x38] sm:$0xf]
      %v2478 = vld [vmem:[%s2462 + $0x3c] sm:$0xf]
      %v2495 = vunpack.c.l.b16 %v2463
      %v2496 = vunpack.c.l.b16 %v2464
      %v2497 = vunpack.c.l.b16 %v2465
      %v2498 = vunpack.c.l.b16 %v2466
      %v2499 = vunpack.c.l.b16 %v2467
      %v2500 = vunpack.c.l.b16 %v2468
      %v2501 = vunpack.c.l.b16 %v2469
      %v2502 = vunpack.c.l.b16 %v2470
      %v2503 = vunpack.c.l.b16 %v2471
      %v2504 = vunpack.c.l.b16 %v2472
      %v2505 = vunpack.c.l.b16 %v2473
      %v2506 = vunpack.c.l.b16 %v2474
      %v2507 = vunpack.c.l.b16 %v2475
      %v2508 = vunpack.c.l.b16 %v2476
      %v2509 = vunpack.c.l.b16 %v2477
      %v2510 = vunpack.c.l.b16 %v2478
      %v2511 = vpack.c.b16 %v2496, %v2495
      %v2512 = vpack.c.b16 %v2498, %v2497
      %v2513 = vpack.c.b16 %v2500, %v2499
      %v2514 = vpack.c.b16 %v2502, %v2501
      %v2515 = vpack.c.b16 %v2504, %v2503
      %v2516 = vpack.c.b16 %v2506, %v2505
      %v2517 = vpack.c.b16 %v2508, %v2507
      %v2518 = vpack.c.b16 %v2510, %v2509
      %2527 = vmatprep.subr.bf16.mxu0 0
      %2528 = vmatpush1.bf16.msra.mxu0 %v2511
      %2529 = vmatprep.subr.bf16.mxu0 0
      %2530 = vmatpush1.bf16.msra.mxu0 %v2512
      %2531 = vmatprep.subr.bf16.mxu0 0
      %2532 = vmatpush1.bf16.msra.mxu0 %v2513
      %2533 = vmatprep.subr.bf16.mxu0 0
      %2534 = vmatpush1.bf16.msra.mxu0 %v2514
      %2535 = vmatprep.subr.bf16.mxu0 0
      %2536 = vmatpush1.bf16.msra.mxu0 %v2515
      %2537 = vmatprep.subr.bf16.mxu0 0
      %2538 = vmatpush1.bf16.msra.mxu0 %v2516
      %2539 = vmatprep.subr.bf16.mxu0 0
      %2540 = vmatpush1.bf16.msra.mxu0 %v2517
      %2541 = vmatprep.subr.bf16.mxu0 0
      %2542 = vmatpush1.bf16.msra.mxu0 %v2518
      %2543 = vmatprep.subr.bf16.mxu0 0
      %2544 = vmatpush1.bf16.msra.mxu0 0
      %2545 = vmatprep.subr.bf16.mxu0 0
      %2546 = vmatpush1.bf16.msra.mxu0 0
      %2547 = vmatprep.subr.bf16.mxu0 0
      %2548 = vmatpush1.bf16.msra.mxu0 0
      %2549 = vmatprep.subr.bf16.mxu0 0
      %2550 = vmatpush1.bf16.msra.mxu0 0
      %2551 = vmatprep.subr.bf16.mxu0 0
      %2552 = vmatpush1.bf16.msra.mxu0 0
      %2553 = vmatprep.subr.bf16.mxu0 0
      %2554 = vmatpush1.bf16.msra.mxu0 0
      %2555 = vmatprep.subr.bf16.mxu0 0
      %2556 = vmatpush1.bf16.msra.mxu0 0
      %2557 = vmatprep.subr.bf16.mxu0 0
      %2558 = vmatpush1.bf16.msra.mxu0 0
      %2559 = vmatprep.mubr.bf16.mxu0 0
      %2560 = vmatmul.mubr.bf16.gmra.mrb[0].mxu0 %v2414
      %v2561 = vpop.f32.mrb[0].mxu0
      %v2562 = vadd.f32 0.0, %v2561
      %v2563 = vpop.f32.mrb[0].mxu0
      %v2564 = vpop.f32.mrb[0].mxu0
      %v2565 = vadd.f32 0.0, %v2564
      %v2566 = vpop.f32.mrb[0].mxu0
      %2567 = vmatprep.mubr.bf16.mxu0 0
      %2568 = vmatmul.mubr.bf16.gmra.mrb[0].mxu0 %v2415
      %v2569 = vpop.f32.mrb[0].mxu0
      %v2570 = vadd.f32 0.0, %v2569
      %v2571 = vpop.f32.mrb[0].mxu0
      %v2572 = vpop.f32.mrb[0].mxu0
      %v2573 = vadd.f32 0.0, %v2572
      %v2574 = vpop.f32.mrb[0].mxu0
      %2575 = vmatprep.mubr.bf16.mxu0 0
      %2576 = vmatmul.mubr.bf16.gmra.mrb[0].mxu0 %v2416
      %v2577 = vpop.f32.mrb[0].mxu0
      %v2578 = vadd.f32 0.0, %v2577
      %v2579 = vpop.f32.mrb[0].mxu0
      %v2580 = vpop.f32.mrb[0].mxu0
      %v2581 = vadd.f32 0.0, %v2580
      %v2582 = vpop.f32.mrb[0].mxu0
      %2583 = vmatprep.mubr.bf16.mxu0 0
      %2584 = vmatmul.mubr.bf16.gmra.mrb[0].mxu0 %v2417
      %v2585 = vpop.f32.mrb[0].mxu0
      %v2586 = vadd.f32 0.0, %v2585
      %v2587 = vpop.f32.mrb[0].mxu0
      %v2588 = vpop.f32.mrb[0].mxu0
      %v2589 = vadd.f32 0.0, %v2588
      %v2590 = vpop.f32.mrb[0].mxu0
      %2591 = vmatprep.mubr.bf16.mxu0 0
      %2592 = vmatmul.mubr.bf16.gmra.mrb[0].mxu0 %v2418
      %v2593 = vpop.f32.mrb[0].mxu0
      %v2594 = vadd.f32 0.0, %v2593
      %v2595 = vpop.f32.mrb[0].mxu0
      %v2596 = vpop.f32.mrb[0].mxu0
      %v2597 = vadd.f32 0.0, %v2596
      %v2598 = vpop.f32.mrb[0].mxu0
      %2599 = vmatprep.mubr.bf16.mxu0 0
      %2600 = vmatmul.mubr.bf16.gmra.mrb[0].mxu0 %v2419
      %v2601 = vpop.f32.mrb[0].mxu0
      %v2602 = vadd.f32 0.0, %v2601
      %v2603 = vpop.f32.mrb[0].mxu0
      %v2604 = vpop.f32.mrb[0].mxu0
      %v2605 = vadd.f32 0.0, %v2604
      %v2606 = vpop.f32.mrb[0].mxu0
      %2607 = vmatprep.mubr.bf16.mxu0 0
      %2608 = vmatmul.mubr.bf16.gmra.mrb[0].mxu0 %v2420
      %v2609 = vpop.f32.mrb[0].mxu0
      %v2610 = vadd.f32 0.0, %v2609
      %v2611 = vpop.f32.mrb[0].mxu0
      %v2612 = vpop.f32.mrb[0].mxu0
      %v2613 = vadd.f32 0.0, %v2612
      %v2614 = vpop.f32.mrb[0].mxu0
      %2615 = vmatprep.mubr.bf16.mxu0 0
      %2616 = vmatmul.mubr.bf16.gmra.mrb[0].mxu0 %v2421
      %v2617 = vpop.f32.mrb[0].mxu0
      %v2618 = vadd.f32 0.0, %v2617
      %v2619 = vpop.f32.mrb[0].mxu0
      %v2620 = vpop.f32.mrb[0].mxu0
      %v2621 = vadd.f32 0.0, %v2620
      %v2622 = vpop.f32.mrb[0].mxu0
      %2623 = vmatprep.mubr.bf16.mxu0 0
      %2624 = vmatmul.mubr.bf16.gmra.mrb[0].mxu0 %v2422
      %v2625 = vpop.f32.mrb[0].mxu0
      %v2626 = vadd.f32 0.0, %v2625
      %v2627 = vpop.f32.mrb[0].mxu0
      %v2628 = vpop.f32.mrb[0].mxu0
      %v2629 = vadd.f32 0.0, %v2628
      %v2630 = vpop.f32.mrb[0].mxu0
      %2631 = vmatprep.mubr.bf16.mxu0 0
      %2632 = vmatmul.mubr.bf16.gmra.mrb[0].mxu0 %v2423
      %v2633 = vpop.f32.mrb[0].mxu0
      %v2634 = vadd.f32 0.0, %v2633
      %v2635 = vpop.f32.mrb[0].mxu0
      %v2636 = vpop.f32.mrb[0].mxu0
      %v2637 = vadd.f32 0.0, %v2636
      %v2638 = vpop.f32.mrb[0].mxu0
      %2639 = vmatprep.mubr.bf16.mxu0 0
      %2640 = vmatmul.mubr.bf16.gmra.mrb[0].mxu0 %v2424
      %v2641 = vpop.f32.mrb[0].mxu0
      %v2642 = vadd.f32 0.0, %v2641
      %v2643 = vpop.f32.mrb[0].mxu0
      %v2644 = vpop.f32.mrb[0].mxu0
      %v2645 = vadd.f32 0.0, %v2644
      %v2646 = vpop.f32.mrb[0].mxu0
      %2647 = vmatprep.mubr.bf16.mxu0 0
      %2648 = vmatmul.mubr.bf16.gmra.mrb[0].mxu0 %v2425
      %v2649 = vpop.f32.mrb[0].mxu0
      %v2650 = vadd.f32 0.0, %v2649
      %v2651 = vpop.f32.mrb[0].mxu0
      %v2652 = vpop.f32.mrb[0].mxu0
      %v2653 = vadd.f32 0.0, %v2652
      %v2654 = vpop.f32.mrb[0].mxu0
      %2655 = vmatprep.mubr.bf16.mxu0 0
      %2656 = vmatmul.mubr.bf16.gmra.mrb[0].mxu0 %v2426
      %v2657 = vpop.f32.mrb[0].mxu0
      %v2658 = vadd.f32 0.0, %v2657
      %v2659 = vpop.f32.mrb[0].mxu0
      %v2660 = vpop.f32.mrb[0].mxu0
      %v2661 = vadd.f32 0.0, %v2660
      %v2662 = vpop.f32.mrb[0].mxu0
      %2663 = vmatprep.mubr.bf16.mxu0 0
      %2664 = vmatmul.mubr.bf16.gmra.mrb[0].mxu0 %v2427
      %v2665 = vpop.f32.mrb[0].mxu0
      %v2666 = vadd.f32 0.0, %v2665
      %v2667 = vpop.f32.mrb[0].mxu0
      %v2668 = vpop.f32.mrb[0].mxu0
      %v2669 = vadd.f32 0.0, %v2668
      %v2670 = vpop.f32.mrb[0].mxu0
      %2671 = vmatprep.mubr.bf16.mxu0 0
      %2672 = vmatmul.mubr.bf16.gmra.mrb[0].mxu0 %v2428
      %v2673 = vpop.f32.mrb[0].mxu0
      %v2674 = vadd.f32 0.0, %v2673
      %v2675 = vpop.f32.mrb[0].mxu0
      %v2676 = vpop.f32.mrb[0].mxu0
      %v2677 = vadd.f32 0.0, %v2676
      %v2678 = vpop.f32.mrb[0].mxu0
      %2679 = vmatprep.mubr.bf16.mxu0 0
      %2680 = vmatmul.mubr.bf16.gmra.mrb[0].mxu0 %v2429
      %v2681 = vpop.f32.mrb[0].mxu0
      %v2682 = vadd.f32 0.0, %v2681
      %v2683 = vpop.f32.mrb[0].mxu0
      %v2684 = vpop.f32.mrb[0].mxu0
      %v2685 = vadd.f32 0.0, %v2684
      %v2686 = vpop.f32.mrb[0].mxu0
      %2687 = vdwg.mxu0
      %v2688 = vadd.f32 %v2430, %v2562
      %v2689 = vadd.f32 %v2431, %v2565
      %v2690 = vadd.f32 %v2432, %v2570
      %v2691 = vadd.f32 %v2433, %v2573
      %v2692 = vadd.f32 %v2434, %v2578
      %v2693 = vadd.f32 %v2435, %v2581
      %v2694 = vadd.f32 %v2436, %v2586
      %v2695 = vadd.f32 %v2437, %v2589
      %v2696 = vadd.f32 %v2438, %v2594
      %v2697 = vadd.f32 %v2439, %v2597
      %v2698 = vadd.f32 %v2440, %v2602
      %v2699 = vadd.f32 %v2441, %v2605
      %v2700 = vadd.f32 %v2442, %v2610
      %v2701 = vadd.f32 %v2443, %v2613
      %v2702 = vadd.f32 %v2444, %v2618
      %v2703 = vadd.f32 %v2445, %v2621
      %v2704 = vadd.f32 %v2446, %v2626
      %v2705 = vadd.f32 %v2447, %v2629
      %v2706 = vadd.f32 %v2448, %v2634
      %v2707 = vadd.f32 %v2449, %v2637
      %v2708 = vadd.f32 %v2450, %v2642
      %v2709 = vadd.f32 %v2451, %v2645
      %v2710 = vadd.f32 %v2452, %v2650
      %v2711 = vadd.f32 %v2453, %v2653
      %v2712 = vadd.f32 %v2454, %v2658
      %v2713 = vadd.f32 %v2455, %v2661
      %v2714 = vadd.f32 %v2456, %v2666
      %v2715 = vadd.f32 %v2457, %v2669
      %v2716 = vadd.f32 %v2458, %v2674
      %v2717 = vadd.f32 %v2459, %v2677
      %v2718 = vadd.f32 %v2460, %v2682
      %v2719 = vadd.f32 %v2461, %v2685
      %2720 = vst [vmem:[#allocation3] sm:$0xff] %v2688
      %2721 = vst [vmem:[#allocation3 + $0x8] sm:$0xff] %v2689
      %2722 = vst [vmem:[#allocation3 + $0x10] sm:$0xff] %v2690
      %2723 = vst [vmem:[#allocation3 + $0x18] sm:$0xff] %v2691
      %2724 = vst [vmem:[#allocation3 + $0x20] sm:$0xff] %v2692
      %2725 = vst [vmem:[#allocation3 + $0x28] sm:$0xff] %v2693
      %2726 = vst [vmem:[#allocation3 + $0x30] sm:$0xff] %v2694
      %2727 = vst [vmem:[#allocation3 + $0x38] sm:$0xff] %v2695
      %2728 = vst [vmem:[#allocation3 + $0x40] sm:$0xff] %v2696
      %2729 = vst [vmem:[#allocation3 + $0x48] sm:$0xff] %v2697
      %2730 = vst [vmem:[#allocation3 + $0x50] sm:$0xff] %v2698
      %2731 = vst [vmem:[#allocation3 + $0x58] sm:$0xff] %v2699
      %2732 = vst [vmem:[#allocation3 + $0x60] sm:$0xff] %v2700
      %2733 = vst [vmem:[#allocation3 + $0x68] sm:$0xff] %v2701
      %2734 = vst [vmem:[#allocation3 + $0x70] sm:$0xff] %v2702
      %2735 = vst [vmem:[#allocation3 + $0x78] sm:$0xff] %v2703
      %2736 = vst [vmem:[#allocation3 + $0x80] sm:$0xff] %v2704
      %2737 = vst [vmem:[#allocation3 + $0x88] sm:$0xff] %v2705
      %2738 = vst [vmem:[#allocation3 + $0x90] sm:$0xff] %v2706
      %2739 = vst [vmem:[#allocation3 + $0x98] sm:$0xff] %v2707
      %2740 = vst [vmem:[#allocation3 + $0xa0] sm:$0xff] %v2708
      %2741 = vst [vmem:[#allocation3 + $0xa8] sm:$0xff] %v2709
      %2742 = vst [vmem:[#allocation3 + $0xb0] sm:$0xff] %v2710
      %2743 = vst [vmem:[#allocation3 + $0xb8] sm:$0xff] %v2711
      %2744 = vst [vmem:[#allocation3 + $0xc0] sm:$0xff] %v2712
      %2745 = vst [vmem:[#allocation3 + $0xc8] sm:$0xff] %v2713
      %2746 = vst [vmem:[#allocation3 + $0xd0] sm:$0xff] %v2714
      %2747 = vst [vmem:[#allocation3 + $0xd8] sm:$0xff] %v2715
      %2748 = vst [vmem:[#allocation3 + $0xe0] sm:$0xff] %v2716
      %2749 = vst [vmem:[#allocation3 + $0xe8] sm:$0xff] %v2717
      %2750 = vst [vmem:[#allocation3 + $0xf0] sm:$0xff] %v2718
      %2751 = vst [vmem:[#allocation3 + $0xf8] sm:$0xff] %v2719
      %s2752 = sadd.s32 %s527, 2
      %s2753 = smul.u32 %s2752, 24
      %s2754 = scalar_lea.vmem [#allocation2], %s2753
      %v2755 = vld [vmem:[%s2754] sm:$0xff]
      %v2756 = vld [vmem:[%s2754 + $0x8] sm:$0xff]
      %v2757 = vld [vmem:[%s2754 + $0x18] sm:$0xff]
      %v2758 = vld [vmem:[%s2754 + $0x20] sm:$0xff]
      %v2759 = vld [vmem:[%s2754 + $0x30] sm:$0xff]
      %v2760 = vld [vmem:[%s2754 + $0x38] sm:$0xff]
      %v2761 = vld [vmem:[%s2754 + $0x48] sm:$0xff]
      %v2762 = vld [vmem:[%s2754 + $0x50] sm:$0xff]
      %v2763 = vld [vmem:[%s2754 + $0x60] sm:$0xff]
      %v2764 = vld [vmem:[%s2754 + $0x68] sm:$0xff]
      %v2765 = vld [vmem:[%s2754 + $0x78] sm:$0xff]
      %v2766 = vld [vmem:[%s2754 + $0x80] sm:$0xff]
      %v2767 = vld [vmem:[%s2754 + $0x90] sm:$0xff]
      %v2768 = vld [vmem:[%s2754 + $0x98] sm:$0xff]
      %v2769 = vld [vmem:[%s2754 + $0xa8] sm:$0xff]
      %v2770 = vld [vmem:[%s2754 + $0xb0] sm:$0xff]
      %v2771 = vld [vmem:[%s2754 + $0xc0] sm:$0xff]
      %v2772 = vld [vmem:[%s2754 + $0xc8] sm:$0xff]
      %v2773 = vld [vmem:[%s2754 + $0xd8] sm:$0xff]
      %v2774 = vld [vmem:[%s2754 + $0xe0] sm:$0xff]
      %v2775 = vld [vmem:[%s2754 + $0xf0] sm:$0xff]
      %v2776 = vld [vmem:[%s2754 + $0xf8] sm:$0xff]
      %v2777 = vld [vmem:[%s2754 + $0x108] sm:$0xff]
      %v2778 = vld [vmem:[%s2754 + $0x110] sm:$0xff]
      %v2779 = vld [vmem:[%s2754 + $0x120] sm:$0xff]
      %v2780 = vld [vmem:[%s2754 + $0x128] sm:$0xff]
      %v2781 = vld [vmem:[%s2754 + $0x138] sm:$0xff]
      %v2782 = vld [vmem:[%s2754 + $0x140] sm:$0xff]
      %v2783 = vld [vmem:[%s2754 + $0x150] sm:$0xff]
      %v2784 = vld [vmem:[%s2754 + $0x158] sm:$0xff]
      %v2785 = vld [vmem:[%s2754 + $0x168] sm:$0xff]
      %v2786 = vld [vmem:[%s2754 + $0x170] sm:$0xff]
      %v2787 = vpack.c.bf16 %v2756, %v2755
      %v2788 = vpack.c.bf16 %v2758, %v2757
      %v2789 = vpack.c.bf16 %v2760, %v2759
      %v2790 = vpack.c.bf16 %v2762, %v2761
      %v2791 = vpack.c.bf16 %v2764, %v2763
      %v2792 = vpack.c.bf16 %v2766, %v2765
      %v2793 = vpack.c.bf16 %v2768, %v2767
      %v2794 = vpack.c.bf16 %v2770, %v2769
      %v2795 = vpack.c.bf16 %v2772, %v2771
      %v2796 = vpack.c.bf16 %v2774, %v2773
      %v2797 = vpack.c.bf16 %v2776, %v2775
      %v2798 = vpack.c.bf16 %v2778, %v2777
      %v2799 = vpack.c.bf16 %v2780, %v2779
      %v2800 = vpack.c.bf16 %v2782, %v2781
      %v2801 = vpack.c.bf16 %v2784, %v2783
      %v2802 = vpack.c.bf16 %v2786, %v2785
      %v2803 = vld [vmem:[#allocation3] sm:$0xff]
      %v2804 = vld [vmem:[#allocation3 + $0x8] sm:$0xff]
      %v2805 = vld [vmem:[#allocation3 + $0x10] sm:$0xff]
      %v2806 = vld [vmem:[#allocation3 + $0x18] sm:$0xff]
      %v2807 = vld [vmem:[#allocation3 + $0x20] sm:$0xff]
      %v2808 = vld [vmem:[#allocation3 + $0x28] sm:$0xff]
      %v2809 = vld [vmem:[#allocation3 + $0x30] sm:$0xff]
      %v2810 = vld [vmem:[#allocation3 + $0x38] sm:$0xff]
      %v2811 = vld [vmem:[#allocation3 + $0x40] sm:$0xff]
      %v2812 = vld [vmem:[#allocation3 + $0x48] sm:$0xff]
      %v2813 = vld [vmem:[#allocation3 + $0x50] sm:$0xff]
      %v2814 = vld [vmem:[#allocation3 + $0x58] sm:$0xff]
      %v2815 = vld [vmem:[#allocation3 + $0x60] sm:$0xff]
      %v2816 = vld [vmem:[#allocation3 + $0x68] sm:$0xff]
      %v2817 = vld [vmem:[#allocation3 + $0x70] sm:$0xff]
      %v2818 = vld [vmem:[#allocation3 + $0x78] sm:$0xff]
      %v2819 = vld [vmem:[#allocation3 + $0x80] sm:$0xff]
      %v2820 = vld [vmem:[#allocation3 + $0x88] sm:$0xff]
      %v2821 = vld [vmem:[#allocation3 + $0x90] sm:$0xff]
      %v2822 = vld [vmem:[#allocation3 + $0x98] sm:$0xff]
      %v2823 = vld [vmem:[#allocation3 + $0xa0] sm:$0xff]
      %v2824 = vld [vmem:[#allocation3 + $0xa8] sm:$0xff]
      %v2825 = vld [vmem:[#allocation3 + $0xb0] sm:$0xff]
      %v2826 = vld [vmem:[#allocation3 + $0xb8] sm:$0xff]
      %v2827 = vld [vmem:[#allocation3 + $0xc0] sm:$0xff]
      %v2828 = vld [vmem:[#allocation3 + $0xc8] sm:$0xff]
      %v2829 = vld [vmem:[#allocation3 + $0xd0] sm:$0xff]
      %v2830 = vld [vmem:[#allocation3 + $0xd8] sm:$0xff]
      %v2831 = vld [vmem:[#allocation3 + $0xe0] sm:$0xff]
      %v2832 = vld [vmem:[#allocation3 + $0xe8] sm:$0xff]
      %v2833 = vld [vmem:[#allocation3 + $0xf0] sm:$0xff]
      %v2834 = vld [vmem:[#allocation3 + $0xf8] sm:$0xff]
      %s2835 = scalar_lea.vmem %s1, 384
      %v2836 = vld [vmem:[%s2835] sm:$0xf]
      %v2837 = vld [vmem:[%s2835 + $0x4] sm:$0xf]
      %v2838 = vld [vmem:[%s2835 + $0x8] sm:$0xf]
      %v2839 = vld [vmem:[%s2835 + $0xc] sm:$0xf]
      %v2840 = vld [vmem:[%s2835 + $0x10] sm:$0xf]
      %v2841 = vld [vmem:[%s2835 + $0x14] sm:$0xf]
      %v2842 = vld [vmem:[%s2835 + $0x18] sm:$0xf]
      %v2843 = vld [vmem:[%s2835 + $0x1c] sm:$0xf]
      %v2844 = vld [vmem:[%s2835 + $0x20] sm:$0xf]
      %v2845 = vld [vmem:[%s2835 + $0x24] sm:$0xf]
      %v2846 = vld [vmem:[%s2835 + $0x28] sm:$0xf]
      %v2847 = vld [vmem:[%s2835 + $0x2c] sm:$0xf]
      %v2848 = vld [vmem:[%s2835 + $0x30] sm:$0xf]
      %v2849 = vld [vmem:[%s2835 + $0x34] sm:$0xf]
      %v2850 = vld [vmem:[%s2835 + $0x38] sm:$0xf]
      %v2851 = vld [vmem:[%s2835 + $0x3c] sm:$0xf]
      %v2868 = vunpack.c.l.b16 %v2836
      %v2869 = vunpack.c.l.b16 %v2837
      %v2870 = vunpack.c.l.b16 %v2838
      %v2871 = vunpack.c.l.b16 %v2839
      %v2872 = vunpack.c.l.b16 %v2840
      %v2873 = vunpack.c.l.b16 %v2841
      %v2874 = vunpack.c.l.b16 %v2842
      %v2875 = vunpack.c.l.b16 %v2843
      %v2876 = vunpack.c.l.b16 %v2844
      %v2877 = vunpack.c.l.b16 %v2845
      %v2878 = vunpack.c.l.b16 %v2846
      %v2879 = vunpack.c.l.b16 %v2847
      %v2880 = vunpack.c.l.b16 %v2848
      %v2881 = vunpack.c.l.b16 %v2849
      %v2882 = vunpack.c.l.b16 %v2850
      %v2883 = vunpack.c.l.b16 %v2851
      %v2884 = vpack.c.b16 %v2869, %v2868
      %v2885 = vpack.c.b16 %v2871, %v2870
      %v2886 = vpack.c.b16 %v2873, %v2872
      %v2887 = vpack.c.b16 %v2875, %v2874
      %v2888 = vpack.c.b16 %v2877, %v2876
      %v2889 = vpack.c.b16 %v2879, %v2878
      %v2890 = vpack.c.b16 %v2881, %v2880
      %v2891 = vpack.c.b16 %v2883, %v2882
      %2900 = vmatprep.subr.bf16.mxu0 0
      %2901 = vmatpush1.bf16.msra.mxu0 %v2884
      %2902 = vmatprep.subr.bf16.mxu0 0
      %2903 = vmatpush1.bf16.msra.mxu0 %v2885
      %2904 = vmatprep.subr.bf16.mxu0 0
      %2905 = vmatpush1.bf16.msra.mxu0 %v2886
      %2906 = vmatprep.subr.bf16.mxu0 0
      %2907 = vmatpush1.bf16.msra.mxu0 %v2887
      %2908 = vmatprep.subr.bf16.mxu0 0
      %2909 = vmatpush1.bf16.msra.mxu0 %v2888
      %2910 = vmatprep.subr.bf16.mxu0 0
      %2911 = vmatpush1.bf16.msra.mxu0 %v2889
      %2912 = vmatprep.subr.bf16.mxu0 0
      %2913 = vmatpush1.bf16.msra.mxu0 %v2890
      %2914 = vmatprep.subr.bf16.mxu0 0
      %2915 = vmatpush1.bf16.msra.mxu0 %v2891
      %2916 = vmatprep.subr.bf16.mxu0 0
      %2917 = vmatpush1.bf16.msra.mxu0 0
      %2918 = vmatprep.subr.bf16.mxu0 0
      %2919 = vmatpush1.bf16.msra.mxu0 0
      %2920 = vmatprep.subr.bf16.mxu0 0
      %2921 = vmatpush1.bf16.msra.mxu0 0
      %2922 = vmatprep.subr.bf16.mxu0 0
      %2923 = vmatpush1.bf16.msra.mxu0 0
      %2924 = vmatprep.subr.bf16.mxu0 0
      %2925 = vmatpush1.bf16.msra.mxu0 0
      %2926 = vmatprep.subr.bf16.mxu0 0
      %2927 = vmatpush1.bf16.msra.mxu0 0
      %2928 = vmatprep.subr.bf16.mxu0 0
      %2929 = vmatpush1.bf16.msra.mxu0 0
      %2930 = vmatprep.subr.bf16.mxu0 0
      %2931 = vmatpush1.bf16.msra.mxu0 0
      %2932 = vmatprep.mubr.bf16.mxu0 0
      %2933 = vmatmul.mubr.bf16.gmra.mrb[0].mxu0 %v2787
      %v2934 = vpop.f32.mrb[0].mxu0
      %v2935 = vadd.f32 0.0, %v2934
      %v2936 = vpop.f32.mrb[0].mxu0
      %v2937 = vpop.f32.mrb[0].mxu0
      %v2938 = vadd.f32 0.0, %v2937
      %v2939 = vpop.f32.mrb[0].mxu0
      %2940 = vmatprep.mubr.bf16.mxu0 0
      %2941 = vmatmul.mubr.bf16.gmra.mrb[0].mxu0 %v2788
      %v2942 = vpop.f32.mrb[0].mxu0
      %v2943 = vadd.f32 0.0, %v2942
      %v2944 = vpop.f32.mrb[0].mxu0
      %v2945 = vpop.f32.mrb[0].mxu0
      %v2946 = vadd.f32 0.0, %v2945
      %v2947 = vpop.f32.mrb[0].mxu0
      %2948 = vmatprep.mubr.bf16.mxu0 0
      %2949 = vmatmul.mubr.bf16.gmra.mrb[0].mxu0 %v2789
      %v2950 = vpop.f32.mrb[0].mxu0
      %v2951 = vadd.f32 0.0, %v2950
      %v2952 = vpop.f32.mrb[0].mxu0
      %v2953 = vpop.f32.mrb[0].mxu0
      %v2954 = vadd.f32 0.0, %v2953
      %v2955 = vpop.f32.mrb[0].mxu0
      %2956 = vmatprep.mubr.bf16.mxu0 0
      %2957 = vmatmul.mubr.bf16.gmra.mrb[0].mxu0 %v2790
      %v2958 = vpop.f32.mrb[0].mxu0
      %v2959 = vadd.f32 0.0, %v2958
      %v2960 = vpop.f32.mrb[0].mxu0
      %v2961 = vpop.f32.mrb[0].mxu0
      %v2962 = vadd.f32 0.0, %v2961
      %v2963 = vpop.f32.mrb[0].mxu0
      %2964 = vmatprep.mubr.bf16.mxu0 0
      %2965 = vmatmul.mubr.bf16.gmra.mrb[0].mxu0 %v2791
      %v2966 = vpop.f32.mrb[0].mxu0
      %v2967 = vadd.f32 0.0, %v2966
      %v2968 = vpop.f32.mrb[0].mxu0
      %v2969 = vpop.f32.mrb[0].mxu0
      %v2970 = vadd.f32 0.0, %v2969
      %v2971 = vpop.f32.mrb[0].mxu0
      %2972 = vmatprep.mubr.bf16.mxu0 0
      %2973 = vmatmul.mubr.bf16.gmra.mrb[0].mxu0 %v2792
      %v2974 = vpop.f32.mrb[0].mxu0
      %v2975 = vadd.f32 0.0, %v2974
      %v2976 = vpop.f32.mrb[0].mxu0
      %v2977 = vpop.f32.mrb[0].mxu0
      %v2978 = vadd.f32 0.0, %v2977
      %v2979 = vpop.f32.mrb[0].mxu0
      %2980 = vmatprep.mubr.bf16.mxu0 0
      %2981 = vmatmul.mubr.bf16.gmra.mrb[0].mxu0 %v2793
      %v2982 = vpop.f32.mrb[0].mxu0
      %v2983 = vadd.f32 0.0, %v2982
      %v2984 = vpop.f32.mrb[0].mxu0
      %v2985 = vpop.f32.mrb[0].mxu0
      %v2986 = vadd.f32 0.0, %v2985
      %v2987 = vpop.f32.mrb[0].mxu0
      %2988 = vmatprep.mubr.bf16.mxu0 0
      %2989 = vmatmul.mubr.bf16.gmra.mrb[0].mxu0 %v2794
      %v2990 = vpop.f32.mrb[0].mxu0
      %v2991 = vadd.f32 0.0, %v2990
      %v2992 = vpop.f32.mrb[0].mxu0
      %v2993 = vpop.f32.mrb[0].mxu0
      %v2994 = vadd.f32 0.0, %v2993
      %v2995 = vpop.f32.mrb[0].mxu0
      %2996 = vmatprep.mubr.bf16.mxu0 0
      %2997 = vmatmul.mubr.bf16.gmra.mrb[0].mxu0 %v2795
      %v2998 = vpop.f32.mrb[0].mxu0
      %v2999 = vadd.f32 0.0, %v2998
      %v3000 = vpop.f32.mrb[0].mxu0
      %v3001 = vpop.f32.mrb[0].mxu0
      %v3002 = vadd.f32 0.0, %v3001
      %v3003 = vpop.f32.mrb[0].mxu0
      %3004 = vmatprep.mubr.bf16.mxu0 0
      %3005 = vmatmul.mubr.bf16.gmra.mrb[0].mxu0 %v2796
      %v3006 = vpop.f32.mrb[0].mxu0
      %v3007 = vadd.f32 0.0, %v3006
      %v3008 = vpop.f32.mrb[0].mxu0
      %v3009 = vpop.f32.mrb[0].mxu0
      %v3010 = vadd.f32 0.0, %v3009
      %v3011 = vpop.f32.mrb[0].mxu0
      %3012 = vmatprep.mubr.bf16.mxu0 0
      %3013 = vmatmul.mubr.bf16.gmra.mrb[0].mxu0 %v2797
      %v3014 = vpop.f32.mrb[0].mxu0
      %v3015 = vadd.f32 0.0, %v3014
      %v3016 = vpop.f32.mrb[0].mxu0
      %v3017 = vpop.f32.mrb[0].mxu0
      %v3018 = vadd.f32 0.0, %v3017
      %v3019 = vpop.f32.mrb[0].mxu0
      %3020 = vmatprep.mubr.bf16.mxu0 0
      %3021 = vmatmul.mubr.bf16.gmra.mrb[0].mxu0 %v2798
      %v3022 = vpop.f32.mrb[0].mxu0
      %v3023 = vadd.f32 0.0, %v3022
      %v3024 = vpop.f32.mrb[0].mxu0
      %v3025 = vpop.f32.mrb[0].mxu0
      %v3026 = vadd.f32 0.0, %v3025
      %v3027 = vpop.f32.mrb[0].mxu0
      %3028 = vmatprep.mubr.bf16.mxu0 0
      %3029 = vmatmul.mubr.bf16.gmra.mrb[0].mxu0 %v2799
      %v3030 = vpop.f32.mrb[0].mxu0
      %v3031 = vadd.f32 0.0, %v3030
      %v3032 = vpop.f32.mrb[0].mxu0
      %v3033 = vpop.f32.mrb[0].mxu0
      %v3034 = vadd.f32 0.0, %v3033
      %v3035 = vpop.f32.mrb[0].mxu0
      %3036 = vmatprep.mubr.bf16.mxu0 0
      %3037 = vmatmul.mubr.bf16.gmra.mrb[0].mxu0 %v2800
      %v3038 = vpop.f32.mrb[0].mxu0
      %v3039 = vadd.f32 0.0, %v3038
      %v3040 = vpop.f32.mrb[0].mxu0
      %v3041 = vpop.f32.mrb[0].mxu0
      %v3042 = vadd.f32 0.0, %v3041
      %v3043 = vpop.f32.mrb[0].mxu0
      %3044 = vmatprep.mubr.bf16.mxu0 0
      %3045 = vmatmul.mubr.bf16.gmra.mrb[0].mxu0 %v2801
      %v3046 = vpop.f32.mrb[0].mxu0
      %v3047 = vadd.f32 0.0, %v3046
      %v3048 = vpop.f32.mrb[0].mxu0
      %v3049 = vpop.f32.mrb[0].mxu0
      %v3050 = vadd.f32 0.0, %v3049
      %v3051 = vpop.f32.mrb[0].mxu0
      %3052 = vmatprep.mubr.bf16.mxu0 0
      %3053 = vmatmul.mubr.bf16.gmra.mrb[0].mxu0 %v2802
      %v3054 = vpop.f32.mrb[0].mxu0
      %v3055 = vadd.f32 0.0, %v3054
      %v3056 = vpop.f32.mrb[0].mxu0
      %v3057 = vpop.f32.mrb[0].mxu0
      %v3058 = vadd.f32 0.0, %v3057
      %v3059 = vpop.f32.mrb[0].mxu0
      %3060 = vdwg.mxu0
      %v3061 = vadd.f32 %v2803, %v2935
      %v3062 = vadd.f32 %v2804, %v2938
      %v3063 = vadd.f32 %v2805, %v2943
      %v3064 = vadd.f32 %v2806, %v2946
      %v3065 = vadd.f32 %v2807, %v2951
      %v3066 = vadd.f32 %v2808, %v2954
      %v3067 = vadd.f32 %v2809, %v2959
      %v3068 = vadd.f32 %v2810, %v2962
      %v3069 = vadd.f32 %v2811, %v2967
      %v3070 = vadd.f32 %v2812, %v2970
      %v3071 = vadd.f32 %v2813, %v2975
      %v3072 = vadd.f32 %v2814, %v2978
      %v3073 = vadd.f32 %v2815, %v2983
      %v3074 = vadd.f32 %v2816, %v2986
      %v3075 = vadd.f32 %v2817, %v2991
      %v3076 = vadd.f32 %v2818, %v2994
      %v3077 = vadd.f32 %v2819, %v2999
      %v3078 = vadd.f32 %v2820, %v3002
      %v3079 = vadd.f32 %v2821, %v3007
      %v3080 = vadd.f32 %v2822, %v3010
      %v3081 = vadd.f32 %v2823, %v3015
      %v3082 = vadd.f32 %v2824, %v3018
      %v3083 = vadd.f32 %v2825, %v3023
      %v3084 = vadd.f32 %v2826, %v3026
      %v3085 = vadd.f32 %v2827, %v3031
      %v3086 = vadd.f32 %v2828, %v3034
      %v3087 = vadd.f32 %v2829, %v3039
      %v3088 = vadd.f32 %v2830, %v3042
      %v3089 = vadd.f32 %v2831, %v3047
      %v3090 = vadd.f32 %v2832, %v3050
      %v3091 = vadd.f32 %v2833, %v3055
      %v3092 = vadd.f32 %v2834, %v3058
      %3093 = vst [vmem:[#allocation3] sm:$0xff] %v3061
      %3094 = vst [vmem:[#allocation3 + $0x8] sm:$0xff] %v3062
      %3095 = vst [vmem:[#allocation3 + $0x10] sm:$0xff] %v3063
      %3096 = vst [vmem:[#allocation3 + $0x18] sm:$0xff] %v3064
      %3097 = vst [vmem:[#allocation3 + $0x20] sm:$0xff] %v3065
      %3098 = vst [vmem:[#allocation3 + $0x28] sm:$0xff] %v3066
      %3099 = vst [vmem:[#allocation3 + $0x30] sm:$0xff] %v3067
      %3100 = vst [vmem:[#allocation3 + $0x38] sm:$0xff] %v3068
      %3101 = vst [vmem:[#allocation3 + $0x40] sm:$0xff] %v3069
      %3102 = vst [vmem:[#allocation3 + $0x48] sm:$0xff] %v3070
      %3103 = vst [vmem:[#allocation3 + $0x50] sm:$0xff] %v3071
      %3104 = vst [vmem:[#allocation3 + $0x58] sm:$0xff] %v3072
      %3105 = vst [vmem:[#allocation3 + $0x60] sm:$0xff] %v3073
      %3106 = vst [vmem:[#allocation3 + $0x68] sm:$0xff] %v3074
      %3107 = vst [vmem:[#allocation3 + $0x70] sm:$0xff] %v3075
      %3108 = vst [vmem:[#allocation3 + $0x78] sm:$0xff] %v3076
      %3109 = vst [vmem:[#allocation3 + $0x80] sm:$0xff] %v3077
      %3110 = vst [vmem:[#allocation3 + $0x88] sm:$0xff] %v3078
      %3111 = vst [vmem:[#allocation3 + $0x90] sm:$0xff] %v3079
      %3112 = vst [vmem:[#allocation3 + $0x98] sm:$0xff] %v3080
      %3113 = vst [vmem:[#allocation3 + $0xa0] sm:$0xff] %v3081
      %3114 = vst [vmem:[#allocation3 + $0xa8] sm:$0xff] %v3082
      %3115 = vst [vmem:[#allocation3 + $0xb0] sm:$0xff] %v3083
      %3116 = vst [vmem:[#allocation3 + $0xb8] sm:$0xff] %v3084
      %3117 = vst [vmem:[#allocation3 + $0xc0] sm:$0xff] %v3085
      %3118 = vst [vmem:[#allocation3 + $0xc8] sm:$0xff] %v3086
      %3119 = vst [vmem:[#allocation3 + $0xd0] sm:$0xff] %v3087
      %3120 = vst [vmem:[#allocation3 + $0xd8] sm:$0xff] %v3088
      %3121 = vst [vmem:[#allocation3 + $0xe0] sm:$0xff] %v3089
      %3122 = vst [vmem:[#allocation3 + $0xe8] sm:$0xff] %v3090
      %3123 = vst [vmem:[#allocation3 + $0xf0] sm:$0xff] %v3091
      %3124 = vst [vmem:[#allocation3 + $0xf8] sm:$0xff] %v3092
      %v3125 = vld [vmem:[%s2754 + $0x1] sm:$0xff]
      %v3126 = vld [vmem:[%s2754 + $0x9] sm:$0xff]
      %v3127 = vld [vmem:[%s2754 + $0x19] sm:$0xff]
      %v3128 = vld [vmem:[%s2754 + $0x21] sm:$0xff]
      %v3129 = vld [vmem:[%s2754 + $0x31] sm:$0xff]
      %v3130 = vld [vmem:[%s2754 + $0x39] sm:$0xff]
      %v3131 = vld [vmem:[%s2754 + $0x49] sm:$0xff]
      %v3132 = vld [vmem:[%s2754 + $0x51] sm:$0xff]
      %v3133 = vld [vmem:[%s2754 + $0x61] sm:$0xff]
      %v3134 = vld [vmem:[%s2754 + $0x69] sm:$0xff]
      %v3135 = vld [vmem:[%s2754 + $0x79] sm:$0xff]
      %v3136 = vld [vmem:[%s2754 + $0x81] sm:$0xff]
      %v3137 = vld [vmem:[%s2754 + $0x91] sm:$0xff]
      %v3138 = vld [vmem:[%s2754 + $0x99] sm:$0xff]
      %v3139 = vld [vmem:[%s2754 + $0xa9] sm:$0xff]
      %v3140 = vld [vmem:[%s2754 + $0xb1] sm:$0xff]
      %v3141 = vld [vmem:[%s2754 + $0xc1] sm:$0xff]
      %v3142 = vld [vmem:[%s2754 + $0xc9] sm:$0xff]
      %v3143 = vld [vmem:[%s2754 + $0xd9] sm:$0xff]
      %v3144 = vld [vmem:[%s2754 + $0xe1] sm:$0xff]
      %v3145 = vld [vmem:[%s2754 + $0xf1] sm:$0xff]
      %v3146 = vld [vmem:[%s2754 + $0xf9] sm:$0xff]
      %v3147 = vld [vmem:[%s2754 + $0x109] sm:$0xff]
      %v3148 = vld [vmem:[%s2754 + $0x111] sm:$0xff]
      %v3149 = vld [vmem:[%s2754 + $0x121] sm:$0xff]
      %v3150 = vld [vmem:[%s2754 + $0x129] sm:$0xff]
      %v3151 = vld [vmem:[%s2754 + $0x139] sm:$0xff]
      %v3152 = vld [vmem:[%s2754 + $0x141] sm:$0xff]
      %v3153 = vld [vmem:[%s2754 + $0x151] sm:$0xff]
      %v3154 = vld [vmem:[%s2754 + $0x159] sm:$0xff]
      %v3155 = vld [vmem:[%s2754 + $0x169] sm:$0xff]
      %v3156 = vld [vmem:[%s2754 + $0x171] sm:$0xff]
      %v3157 = vpack.c.bf16 %v3126, %v3125
      %v3158 = vpack.c.bf16 %v3128, %v3127
      %v3159 = vpack.c.bf16 %v3130, %v3129
      %v3160 = vpack.c.bf16 %v3132, %v3131
      %v3161 = vpack.c.bf16 %v3134, %v3133
      %v3162 = vpack.c.bf16 %v3136, %v3135
      %v3163 = vpack.c.bf16 %v3138, %v3137
      %v3164 = vpack.c.bf16 %v3140, %v3139
      %v3165 = vpack.c.bf16 %v3142, %v3141
      %v3166 = vpack.c.bf16 %v3144, %v3143
      %v3167 = vpack.c.bf16 %v3146, %v3145
      %v3168 = vpack.c.bf16 %v3148, %v3147
      %v3169 = vpack.c.bf16 %v3150, %v3149
      %v3170 = vpack.c.bf16 %v3152, %v3151
      %v3171 = vpack.c.bf16 %v3154, %v3153
      %v3172 = vpack.c.bf16 %v3156, %v3155
      %v3173 = vld [vmem:[#allocation3] sm:$0xff]
      %v3174 = vld [vmem:[#allocation3 + $0x8] sm:$0xff]
      %v3175 = vld [vmem:[#allocation3 + $0x10] sm:$0xff]
      %v3176 = vld [vmem:[#allocation3 + $0x18] sm:$0xff]
      %v3177 = vld [vmem:[#allocation3 + $0x20] sm:$0xff]
      %v3178 = vld [vmem:[#allocation3 + $0x28] sm:$0xff]
      %v3179 = vld [vmem:[#allocation3 + $0x30] sm:$0xff]
      %v3180 = vld [vmem:[#allocation3 + $0x38] sm:$0xff]
      %v3181 = vld [vmem:[#allocation3 + $0x40] sm:$0xff]
      %v3182 = vld [vmem:[#allocation3 + $0x48] sm:$0xff]
      %v3183 = vld [vmem:[#allocation3 + $0x50] sm:$0xff]
      %v3184 = vld [vmem:[#allocation3 + $0x58] sm:$0xff]
      %v3185 = vld [vmem:[#allocation3 + $0x60] sm:$0xff]
      %v3186 = vld [vmem:[#allocation3 + $0x68] sm:$0xff]
      %v3187 = vld [vmem:[#allocation3 + $0x70] sm:$0xff]
      %v3188 = vld [vmem:[#allocation3 + $0x78] sm:$0xff]
      %v3189 = vld [vmem:[#allocation3 + $0x80] sm:$0xff]
      %v3190 = vld [vmem:[#allocation3 + $0x88] sm:$0xff]
      %v3191 = vld [vmem:[#allocation3 + $0x90] sm:$0xff]
      %v3192 = vld [vmem:[#allocation3 + $0x98] sm:$0xff]
      %v3193 = vld [vmem:[#allocation3 + $0xa0] sm:$0xff]
      %v3194 = vld [vmem:[#allocation3 + $0xa8] sm:$0xff]
      %v3195 = vld [vmem:[#allocation3 + $0xb0] sm:$0xff]
      %v3196 = vld [vmem:[#allocation3 + $0xb8] sm:$0xff]
      %v3197 = vld [vmem:[#allocation3 + $0xc0] sm:$0xff]
      %v3198 = vld [vmem:[#allocation3 + $0xc8] sm:$0xff]
      %v3199 = vld [vmem:[#allocation3 + $0xd0] sm:$0xff]
      %v3200 = vld [vmem:[#allocation3 + $0xd8] sm:$0xff]
      %v3201 = vld [vmem:[#allocation3 + $0xe0] sm:$0xff]
      %v3202 = vld [vmem:[#allocation3 + $0xe8] sm:$0xff]
      %v3203 = vld [vmem:[#allocation3 + $0xf0] sm:$0xff]
      %v3204 = vld [vmem:[#allocation3 + $0xf8] sm:$0xff]
      %s3205 = scalar_lea.vmem %s1, 448
      %v3206 = vld [vmem:[%s3205] sm:$0xf]
      %v3207 = vld [vmem:[%s3205 + $0x4] sm:$0xf]
      %v3208 = vld [vmem:[%s3205 + $0x8] sm:$0xf]
      %v3209 = vld [vmem:[%s3205 + $0xc] sm:$0xf]
      %v3210 = vld [vmem:[%s3205 + $0x10] sm:$0xf]
      %v3211 = vld [vmem:[%s3205 + $0x14] sm:$0xf]
      %v3212 = vld [vmem:[%s3205 + $0x18] sm:$0xf]
      %v3213 = vld [vmem:[%s3205 + $0x1c] sm:$0xf]
      %v3214 = vld [vmem:[%s3205 + $0x20] sm:$0xf]
      %v3215 = vld [vmem:[%s3205 + $0x24] sm:$0xf]
      %v3216 = vld [vmem:[%s3205 + $0x28] sm:$0xf]
      %v3217 = vld [vmem:[%s3205 + $0x2c] sm:$0xf]
      %v3218 = vld [vmem:[%s3205 + $0x30] sm:$0xf]
      %v3219 = vld [vmem:[%s3205 + $0x34] sm:$0xf]
      %v3220 = vld [vmem:[%s3205 + $0x38] sm:$0xf]
      %v3221 = vld [vmem:[%s3205 + $0x3c] sm:$0xf]
      %v3238 = vunpack.c.l.b16 %v3206
      %v3239 = vunpack.c.l.b16 %v3207
      %v3240 = vunpack.c.l.b16 %v3208
      %v3241 = vunpack.c.l.b16 %v3209
      %v3242 = vunpack.c.l.b16 %v3210
      %v3243 = vunpack.c.l.b16 %v3211
      %v3244 = vunpack.c.l.b16 %v3212
      %v3245 = vunpack.c.l.b16 %v3213
      %v3246 = vunpack.c.l.b16 %v3214
      %v3247 = vunpack.c.l.b16 %v3215
      %v3248 = vunpack.c.l.b16 %v3216
      %v3249 = vunpack.c.l.b16 %v3217
      %v3250 = vunpack.c.l.b16 %v3218
      %v3251 = vunpack.c.l.b16 %v3219
      %v3252 = vunpack.c.l.b16 %v3220
      %v3253 = vunpack.c.l.b16 %v3221
      %v3254 = vpack.c.b16 %v3239, %v3238
      %v3255 = vpack.c.b16 %v3241, %v3240
      %v3256 = vpack.c.b16 %v3243, %v3242
      %v3257 = vpack.c.b16 %v3245, %v3244
      %v3258 = vpack.c.b16 %v3247, %v3246
      %v3259 = vpack.c.b16 %v3249, %v3248
      %v3260 = vpack.c.b16 %v3251, %v3250
      %v3261 = vpack.c.b16 %v3253, %v3252
      %3270 = vmatprep.subr.bf16.mxu0 0
      %3271 = vmatpush1.bf16.msra.mxu0 %v3254
      %3272 = vmatprep.subr.bf16.mxu0 0
      %3273 = vmatpush1.bf16.msra.mxu0 %v3255
      %3274 = vmatprep.subr.bf16.mxu0 0
      %3275 = vmatpush1.bf16.msra.mxu0 %v3256
      %3276 = vmatprep.subr.bf16.mxu0 0
      %3277 = vmatpush1.bf16.msra.mxu0 %v3257
      %3278 = vmatprep.subr.bf16.mxu0 0
      %3279 = vmatpush1.bf16.msra.mxu0 %v3258
      %3280 = vmatprep.subr.bf16.mxu0 0
      %3281 = vmatpush1.bf16.msra.mxu0 %v3259
      %3282 = vmatprep.subr.bf16.mxu0 0
      %3283 = vmatpush1.bf16.msra.mxu0 %v3260
      %3284 = vmatprep.subr.bf16.mxu0 0
      %3285 = vmatpush1.bf16.msra.mxu0 %v3261
      %3286 = vmatprep.subr.bf16.mxu0 0
      %3287 = vmatpush1.bf16.msra.mxu0 0
      %3288 = vmatprep.subr.bf16.mxu0 0
      %3289 = vmatpush1.bf16.msra.mxu0 0
      %3290 = vmatprep.subr.bf16.mxu0 0
      %3291 = vmatpush1.bf16.msra.mxu0 0
      %3292 = vmatprep.subr.bf16.mxu0 0
      %3293 = vmatpush1.bf16.msra.mxu0 0
      %3294 = vmatprep.subr.bf16.mxu0 0
      %3295 = vmatpush1.bf16.msra.mxu0 0
      %3296 = vmatprep.subr.bf16.mxu0 0
      %3297 = vmatpush1.bf16.msra.mxu0 0
      %3298 = vmatprep.subr.bf16.mxu0 0
      %3299 = vmatpush1.bf16.msra.mxu0 0
      %3300 = vmatprep.subr.bf16.mxu0 0
      %3301 = vmatpush1.bf16.msra.mxu0 0
      %3302 = vmatprep.mubr.bf16.mxu0 0
      %3303 = vmatmul.mubr.bf16.gmra.mrb[0].mxu0 %v3157
      %v3304 = vpop.f32.mrb[0].mxu0
      %v3305 = vadd.f32 0.0, %v3304
      %v3306 = vpop.f32.mrb[0].mxu0
      %v3307 = vpop.f32.mrb[0].mxu0
      %v3308 = vadd.f32 0.0, %v3307
      %v3309 = vpop.f32.mrb[0].mxu0
      %3310 = vmatprep.mubr.bf16.mxu0 0
      %3311 = vmatmul.mubr.bf16.gmra.mrb[0].mxu0 %v3158
      %v3312 = vpop.f32.mrb[0].mxu0
      %v3313 = vadd.f32 0.0, %v3312
      %v3314 = vpop.f32.mrb[0].mxu0
      %v3315 = vpop.f32.mrb[0].mxu0
      %v3316 = vadd.f32 0.0, %v3315
      %v3317 = vpop.f32.mrb[0].mxu0
      %3318 = vmatprep.mubr.bf16.mxu0 0
      %3319 = vmatmul.mubr.bf16.gmra.mrb[0].mxu0 %v3159
      %v3320 = vpop.f32.mrb[0].mxu0
      %v3321 = vadd.f32 0.0, %v3320
      %v3322 = vpop.f32.mrb[0].mxu0
      %v3323 = vpop.f32.mrb[0].mxu0
      %v3324 = vadd.f32 0.0, %v3323
      %v3325 = vpop.f32.mrb[0].mxu0
      %3326 = vmatprep.mubr.bf16.mxu0 0
      %3327 = vmatmul.mubr.bf16.gmra.mrb[0].mxu0 %v3160
      %v3328 = vpop.f32.mrb[0].mxu0
      %v3329 = vadd.f32 0.0, %v3328
      %v3330 = vpop.f32.mrb[0].mxu0
      %v3331 = vpop.f32.mrb[0].mxu0
      %v3332 = vadd.f32 0.0, %v3331
      %v3333 = vpop.f32.mrb[0].mxu0
      %3334 = vmatprep.mubr.bf16.mxu0 0
      %3335 = vmatmul.mubr.bf16.gmra.mrb[0].mxu0 %v3161
      %v3336 = vpop.f32.mrb[0].mxu0
      %v3337 = vadd.f32 0.0, %v3336
      %v3338 = vpop.f32.mrb[0].mxu0
      %v3339 = vpop.f32.mrb[0].mxu0
      %v3340 = vadd.f32 0.0, %v3339
      %v3341 = vpop.f32.mrb[0].mxu0
      %3342 = vmatprep.mubr.bf16.mxu0 0
      %3343 = vmatmul.mubr.bf16.gmra.mrb[0].mxu0 %v3162
      %v3344 = vpop.f32.mrb[0].mxu0
      %v3345 = vadd.f32 0.0, %v3344
      %v3346 = vpop.f32.mrb[0].mxu0
      %v3347 = vpop.f32.mrb[0].mxu0
      %v3348 = vadd.f32 0.0, %v3347
      %v3349 = vpop.f32.mrb[0].mxu0
      %3350 = vmatprep.mubr.bf16.mxu0 0
      %3351 = vmatmul.mubr.bf16.gmra.mrb[0].mxu0 %v3163
      %v3352 = vpop.f32.mrb[0].mxu0
      %v3353 = vadd.f32 0.0, %v3352
      %v3354 = vpop.f32.mrb[0].mxu0
      %v3355 = vpop.f32.mrb[0].mxu0
      %v3356 = vadd.f32 0.0, %v3355
      %v3357 = vpop.f32.mrb[0].mxu0
      %3358 = vmatprep.mubr.bf16.mxu0 0
      %3359 = vmatmul.mubr.bf16.gmra.mrb[0].mxu0 %v3164
      %v3360 = vpop.f32.mrb[0].mxu0
      %v3361 = vadd.f32 0.0, %v3360
      %v3362 = vpop.f32.mrb[0].mxu0
      %v3363 = vpop.f32.mrb[0].mxu0
      %v3364 = vadd.f32 0.0, %v3363
      %v3365 = vpop.f32.mrb[0].mxu0
      %3366 = vmatprep.mubr.bf16.mxu0 0
      %3367 = vmatmul.mubr.bf16.gmra.mrb[0].mxu0 %v3165
      %v3368 = vpop.f32.mrb[0].mxu0
      %v3369 = vadd.f32 0.0, %v3368
      %v3370 = vpop.f32.mrb[0].mxu0
      %v3371 = vpop.f32.mrb[0].mxu0
      %v3372 = vadd.f32 0.0, %v3371
      %v3373 = vpop.f32.mrb[0].mxu0
      %3374 = vmatprep.mubr.bf16.mxu0 0
      %3375 = vmatmul.mubr.bf16.gmra.mrb[0].mxu0 %v3166
      %v3376 = vpop.f32.mrb[0].mxu0
      %v3377 = vadd.f32 0.0, %v3376
      %v3378 = vpop.f32.mrb[0].mxu0
      %v3379 = vpop.f32.mrb[0].mxu0
      %v3380 = vadd.f32 0.0, %v3379
      %v3381 = vpop.f32.mrb[0].mxu0
      %3382 = vmatprep.mubr.bf16.mxu0 0
      %3383 = vmatmul.mubr.bf16.gmra.mrb[0].mxu0 %v3167
      %v3384 = vpop.f32.mrb[0].mxu0
      %v3385 = vadd.f32 0.0, %v3384
      %v3386 = vpop.f32.mrb[0].mxu0
      %v3387 = vpop.f32.mrb[0].mxu0
      %v3388 = vadd.f32 0.0, %v3387
      %v3389 = vpop.f32.mrb[0].mxu0
      %3390 = vmatprep.mubr.bf16.mxu0 0
      %3391 = vmatmul.mubr.bf16.gmra.mrb[0].mxu0 %v3168
      %v3392 = vpop.f32.mrb[0].mxu0
      %v3393 = vadd.f32 0.0, %v3392
      %v3394 = vpop.f32.mrb[0].mxu0
      %v3395 = vpop.f32.mrb[0].mxu0
      %v3396 = vadd.f32 0.0, %v3395
      %v3397 = vpop.f32.mrb[0].mxu0
      %3398 = vmatprep.mubr.bf16.mxu0 0
      %3399 = vmatmul.mubr.bf16.gmra.mrb[0].mxu0 %v3169
      %v3400 = vpop.f32.mrb[0].mxu0
      %v3401 = vadd.f32 0.0, %v3400
      %v3402 = vpop.f32.mrb[0].mxu0
      %v3403 = vpop.f32.mrb[0].mxu0
      %v3404 = vadd.f32 0.0, %v3403
      %v3405 = vpop.f32.mrb[0].mxu0
      %3406 = vmatprep.mubr.bf16.mxu0 0
      %3407 = vmatmul.mubr.bf16.gmra.mrb[0].mxu0 %v3170
      %v3408 = vpop.f32.mrb[0].mxu0
      %v3409 = vadd.f32 0.0, %v3408
      %v3410 = vpop.f32.mrb[0].mxu0
      %v3411 = vpop.f32.mrb[0].mxu0
      %v3412 = vadd.f32 0.0, %v3411
      %v3413 = vpop.f32.mrb[0].mxu0
      %3414 = vmatprep.mubr.bf16.mxu0 0
      %3415 = vmatmul.mubr.bf16.gmra.mrb[0].mxu0 %v3171
      %v3416 = vpop.f32.mrb[0].mxu0
      %v3417 = vadd.f32 0.0, %v3416
      %v3418 = vpop.f32.mrb[0].mxu0
      %v3419 = vpop.f32.mrb[0].mxu0
      %v3420 = vadd.f32 0.0, %v3419
      %v3421 = vpop.f32.mrb[0].mxu0
      %3422 = vmatprep.mubr.bf16.mxu0 0
      %3423 = vmatmul.mubr.bf16.gmra.mrb[0].mxu0 %v3172
      %v3424 = vpop.f32.mrb[0].mxu0
      %v3425 = vadd.f32 0.0, %v3424
      %v3426 = vpop.f32.mrb[0].mxu0
      %v3427 = vpop.f32.mrb[0].mxu0
      %v3428 = vadd.f32 0.0, %v3427
      %v3429 = vpop.f32.mrb[0].mxu0
      %3430 = vdwg.mxu0
      %v3431 = vadd.f32 %v3173, %v3305
      %v3432 = vadd.f32 %v3174, %v3308
      %v3433 = vadd.f32 %v3175, %v3313
      %v3434 = vadd.f32 %v3176, %v3316
      %v3435 = vadd.f32 %v3177, %v3321
      %v3436 = vadd.f32 %v3178, %v3324
      %v3437 = vadd.f32 %v3179, %v3329
      %v3438 = vadd.f32 %v3180, %v3332
      %v3439 = vadd.f32 %v3181, %v3337
      %v3440 = vadd.f32 %v3182, %v3340
      %v3441 = vadd.f32 %v3183, %v3345
      %v3442 = vadd.f32 %v3184, %v3348
      %v3443 = vadd.f32 %v3185, %v3353
      %v3444 = vadd.f32 %v3186, %v3356
      %v3445 = vadd.f32 %v3187, %v3361
      %v3446 = vadd.f32 %v3188, %v3364
      %v3447 = vadd.f32 %v3189, %v3369
      %v3448 = vadd.f32 %v3190, %v3372
      %v3449 = vadd.f32 %v3191, %v3377
      %v3450 = vadd.f32 %v3192, %v3380
      %v3451 = vadd.f32 %v3193, %v3385
      %v3452 = vadd.f32 %v3194, %v3388
      %v3453 = vadd.f32 %v3195, %v3393
      %v3454 = vadd.f32 %v3196, %v3396
      %v3455 = vadd.f32 %v3197, %v3401
      %v3456 = vadd.f32 %v3198, %v3404
      %v3457 = vadd.f32 %v3199, %v3409
      %v3458 = vadd.f32 %v3200, %v3412
      %v3459 = vadd.f32 %v3201, %v3417
      %v3460 = vadd.f32 %v3202, %v3420
      %v3461 = vadd.f32 %v3203, %v3425
      %v3462 = vadd.f32 %v3204, %v3428
      %3463 = vst [vmem:[#allocation3] sm:$0xff] %v3431
      %3464 = vst [vmem:[#allocation3 + $0x8] sm:$0xff] %v3432
      %3465 = vst [vmem:[#allocation3 + $0x10] sm:$0xff] %v3433
      %3466 = vst [vmem:[#allocation3 + $0x18] sm:$0xff] %v3434
      %3467 = vst [vmem:[#allocation3 + $0x20] sm:$0xff] %v3435
      %3468 = vst [vmem:[#allocation3 + $0x28] sm:$0xff] %v3436
      %3469 = vst [vmem:[#allocation3 + $0x30] sm:$0xff] %v3437
      %3470 = vst [vmem:[#allocation3 + $0x38] sm:$0xff] %v3438
      %3471 = vst [vmem:[#allocation3 + $0x40] sm:$0xff] %v3439
      %3472 = vst [vmem:[#allocation3 + $0x48] sm:$0xff] %v3440
      %3473 = vst [vmem:[#allocation3 + $0x50] sm:$0xff] %v3441
      %3474 = vst [vmem:[#allocation3 + $0x58] sm:$0xff] %v3442
      %3475 = vst [vmem:[#allocation3 + $0x60] sm:$0xff] %v3443
      %3476 = vst [vmem:[#allocation3 + $0x68] sm:$0xff] %v3444
      %3477 = vst [vmem:[#allocation3 + $0x70] sm:$0xff] %v3445
      %3478 = vst [vmem:[#allocation3 + $0x78] sm:$0xff] %v3446
      %3479 = vst [vmem:[#allocation3 + $0x80] sm:$0xff] %v3447
      %3480 = vst [vmem:[#allocation3 + $0x88] sm:$0xff] %v3448
      %3481 = vst [vmem:[#allocation3 + $0x90] sm:$0xff] %v3449
      %3482 = vst [vmem:[#allocation3 + $0x98] sm:$0xff] %v3450
      %3483 = vst [vmem:[#allocation3 + $0xa0] sm:$0xff] %v3451
      %3484 = vst [vmem:[#allocation3 + $0xa8] sm:$0xff] %v3452
      %3485 = vst [vmem:[#allocation3 + $0xb0] sm:$0xff] %v3453
      %3486 = vst [vmem:[#allocation3 + $0xb8] sm:$0xff] %v3454
      %3487 = vst [vmem:[#allocation3 + $0xc0] sm:$0xff] %v3455
      %3488 = vst [vmem:[#allocation3 + $0xc8] sm:$0xff] %v3456
      %3489 = vst [vmem:[#allocation3 + $0xd0] sm:$0xff] %v3457
      %3490 = vst [vmem:[#allocation3 + $0xd8] sm:$0xff] %v3458
      %3491 = vst [vmem:[#allocation3 + $0xe0] sm:$0xff] %v3459
      %3492 = vst [vmem:[#allocation3 + $0xe8] sm:$0xff] %v3460
      %3493 = vst [vmem:[#allocation3 + $0xf0] sm:$0xff] %v3461
      %3494 = vst [vmem:[#allocation3 + $0xf8] sm:$0xff] %v3462
      %v3495 = vld [vmem:[%s2754 + $0x2] sm:$0xff]
      %v3496 = vld [vmem:[%s2754 + $0xa] sm:$0xff]
      %v3497 = vld [vmem:[%s2754 + $0x1a] sm:$0xff]
      %v3498 = vld [vmem:[%s2754 + $0x22] sm:$0xff]
      %v3499 = vld [vmem:[%s2754 + $0x32] sm:$0xff]
      %v3500 = vld [vmem:[%s2754 + $0x3a] sm:$0xff]
      %v3501 = vld [vmem:[%s2754 + $0x4a] sm:$0xff]
      %v3502 = vld [vmem:[%s2754 + $0x52] sm:$0xff]
      %v3503 = vld [vmem:[%s2754 + $0x62] sm:$0xff]
      %v3504 = vld [vmem:[%s2754 + $0x6a] sm:$0xff]
      %v3505 = vld [vmem:[%s2754 + $0x7a] sm:$0xff]
      %v3506 = vld [vmem:[%s2754 + $0x82] sm:$0xff]
      %v3507 = vld [vmem:[%s2754 + $0x92] sm:$0xff]
      %v3508 = vld [vmem:[%s2754 + $0x9a] sm:$0xff]
      %v3509 = vld [vmem:[%s2754 + $0xaa] sm:$0xff]
      %v3510 = vld [vmem:[%s2754 + $0xb2] sm:$0xff]
      %v3511 = vld [vmem:[%s2754 + $0xc2] sm:$0xff]
      %v3512 = vld [vmem:[%s2754 + $0xca] sm:$0xff]
      %v3513 = vld [vmem:[%s2754 + $0xda] sm:$0xff]
      %v3514 = vld [vmem:[%s2754 + $0xe2] sm:$0xff]
      %v3515 = vld [vmem:[%s2754 + $0xf2] sm:$0xff]
      %v3516 = vld [vmem:[%s2754 + $0xfa] sm:$0xff]
      %v3517 = vld [vmem:[%s2754 + $0x10a] sm:$0xff]
      %v3518 = vld [vmem:[%s2754 + $0x112] sm:$0xff]
      %v3519 = vld [vmem:[%s2754 + $0x122] sm:$0xff]
      %v3520 = vld [vmem:[%s2754 + $0x12a] sm:$0xff]
      %v3521 = vld [vmem:[%s2754 + $0x13a] sm:$0xff]
      %v3522 = vld [vmem:[%s2754 + $0x142] sm:$0xff]
      %v3523 = vld [vmem:[%s2754 + $0x152] sm:$0xff]
      %v3524 = vld [vmem:[%s2754 + $0x15a] sm:$0xff]
      %v3525 = vld [vmem:[%s2754 + $0x16a] sm:$0xff]
      %v3526 = vld [vmem:[%s2754 + $0x172] sm:$0xff]
      %v3527 = vpack.c.bf16 %v3496, %v3495
      %v3528 = vpack.c.bf16 %v3498, %v3497
      %v3529 = vpack.c.bf16 %v3500, %v3499
      %v3530 = vpack.c.bf16 %v3502, %v3501
      %v3531 = vpack.c.bf16 %v3504, %v3503
      %v3532 = vpack.c.bf16 %v3506, %v3505
      %v3533 = vpack.c.bf16 %v3508, %v3507
      %v3534 = vpack.c.bf16 %v3510, %v3509
      %v3535 = vpack.c.bf16 %v3512, %v3511
      %v3536 = vpack.c.bf16 %v3514, %v3513
      %v3537 = vpack.c.bf16 %v3516, %v3515
      %v3538 = vpack.c.bf16 %v3518, %v3517
      %v3539 = vpack.c.bf16 %v3520, %v3519
      %v3540 = vpack.c.bf16 %v3522, %v3521
      %v3541 = vpack.c.bf16 %v3524, %v3523
      %v3542 = vpack.c.bf16 %v3526, %v3525
      %v3543 = vld [vmem:[#allocation3] sm:$0xff]
      %v3544 = vld [vmem:[#allocation3 + $0x8] sm:$0xff]
      %v3545 = vld [vmem:[#allocation3 + $0x10] sm:$0xff]
      %v3546 = vld [vmem:[#allocation3 + $0x18] sm:$0xff]
      %v3547 = vld [vmem:[#allocation3 + $0x20] sm:$0xff]
      %v3548 = vld [vmem:[#allocation3 + $0x28] sm:$0xff]
      %v3549 = vld [vmem:[#allocation3 + $0x30] sm:$0xff]
      %v3550 = vld [vmem:[#allocation3 + $0x38] sm:$0xff]
      %v3551 = vld [vmem:[#allocation3 + $0x40] sm:$0xff]
      %v3552 = vld [vmem:[#allocation3 + $0x48] sm:$0xff]
      %v3553 = vld [vmem:[#allocation3 + $0x50] sm:$0xff]
      %v3554 = vld [vmem:[#allocation3 + $0x58] sm:$0xff]
      %v3555 = vld [vmem:[#allocation3 + $0x60] sm:$0xff]
      %v3556 = vld [vmem:[#allocation3 + $0x68] sm:$0xff]
      %v3557 = vld [vmem:[#allocation3 + $0x70] sm:$0xff]
      %v3558 = vld [vmem:[#allocation3 + $0x78] sm:$0xff]
      %v3559 = vld [vmem:[#allocation3 + $0x80] sm:$0xff]
      %v3560 = vld [vmem:[#allocation3 + $0x88] sm:$0xff]
      %v3561 = vld [vmem:[#allocation3 + $0x90] sm:$0xff]
      %v3562 = vld [vmem:[#allocation3 + $0x98] sm:$0xff]
      %v3563 = vld [vmem:[#allocation3 + $0xa0] sm:$0xff]
      %v3564 = vld [vmem:[#allocation3 + $0xa8] sm:$0xff]
      %v3565 = vld [vmem:[#allocation3 + $0xb0] sm:$0xff]
      %v3566 = vld [vmem:[#allocation3 + $0xb8] sm:$0xff]
      %v3567 = vld [vmem:[#allocation3 + $0xc0] sm:$0xff]
      %v3568 = vld [vmem:[#allocation3 + $0xc8] sm:$0xff]
      %v3569 = vld [vmem:[#allocation3 + $0xd0] sm:$0xff]
      %v3570 = vld [vmem:[#allocation3 + $0xd8] sm:$0xff]
      %v3571 = vld [vmem:[#allocation3 + $0xe0] sm:$0xff]
      %v3572 = vld [vmem:[#allocation3 + $0xe8] sm:$0xff]
      %v3573 = vld [vmem:[#allocation3 + $0xf0] sm:$0xff]
      %v3574 = vld [vmem:[#allocation3 + $0xf8] sm:$0xff]
      %s3575 = scalar_lea.vmem %s1, 512
      %v3576 = vld [vmem:[%s3575] sm:$0xf]
      %v3577 = vld [vmem:[%s3575 + $0x4] sm:$0xf]
      %v3578 = vld [vmem:[%s3575 + $0x8] sm:$0xf]
      %v3579 = vld [vmem:[%s3575 + $0xc] sm:$0xf]
      %v3580 = vld [vmem:[%s3575 + $0x10] sm:$0xf]
      %v3581 = vld [vmem:[%s3575 + $0x14] sm:$0xf]
      %v3582 = vld [vmem:[%s3575 + $0x18] sm:$0xf]
      %v3583 = vld [vmem:[%s3575 + $0x1c] sm:$0xf]
      %v3584 = vld [vmem:[%s3575 + $0x20] sm:$0xf]
      %v3585 = vld [vmem:[%s3575 + $0x24] sm:$0xf]
      %v3586 = vld [vmem:[%s3575 + $0x28] sm:$0xf]
      %v3587 = vld [vmem:[%s3575 + $0x2c] sm:$0xf]
      %v3588 = vld [vmem:[%s3575 + $0x30] sm:$0xf]
      %v3589 = vld [vmem:[%s3575 + $0x34] sm:$0xf]
      %v3590 = vld [vmem:[%s3575 + $0x38] sm:$0xf]
      %v3591 = vld [vmem:[%s3575 + $0x3c] sm:$0xf]
      %v3608 = vunpack.c.l.b16 %v3576
      %v3609 = vunpack.c.l.b16 %v3577
      %v3610 = vunpack.c.l.b16 %v3578
      %v3611 = vunpack.c.l.b16 %v3579
      %v3612 = vunpack.c.l.b16 %v3580
      %v3613 = vunpack.c.l.b16 %v3581
      %v3614 = vunpack.c.l.b16 %v3582
      %v3615 = vunpack.c.l.b16 %v3583
      %v3616 = vunpack.c.l.b16 %v3584
      %v3617 = vunpack.c.l.b16 %v3585
      %v3618 = vunpack.c.l.b16 %v3586
      %v3619 = vunpack.c.l.b16 %v3587
      %v3620 = vunpack.c.l.b16 %v3588
      %v3621 = vunpack.c.l.b16 %v3589
      %v3622 = vunpack.c.l.b16 %v3590
      %v3623 = vunpack.c.l.b16 %v3591
      %v3624 = vpack.c.b16 %v3609, %v3608
      %v3625 = vpack.c.b16 %v3611, %v3610
      %v3626 = vpack.c.b16 %v3613, %v3612
      %v3627 = vpack.c.b16 %v3615, %v3614
      %v3628 = vpack.c.b16 %v3617, %v3616
      %v3629 = vpack.c.b16 %v3619, %v3618
      %v3630 = vpack.c.b16 %v3621, %v3620
      %v3631 = vpack.c.b16 %v3623, %v3622
      %3640 = vmatprep.subr.bf16.mxu0 0
      %3641 = vmatpush1.bf16.msra.mxu0 %v3624
      %3642 = vmatprep.subr.bf16.mxu0 0
      %3643 = vmatpush1.bf16.msra.mxu0 %v3625
      %3644 = vmatprep.subr.bf16.mxu0 0
      %3645 = vmatpush1.bf16.msra.mxu0 %v3626
      %3646 = vmatprep.subr.bf16.mxu0 0
      %3647 = vmatpush1.bf16.msra.mxu0 %v3627
      %3648 = vmatprep.subr.bf16.mxu0 0
      %3649 = vmatpush1.bf16.msra.mxu0 %v3628
      %3650 = vmatprep.subr.bf16.mxu0 0
      %3651 = vmatpush1.bf16.msra.mxu0 %v3629
      %3652 = vmatprep.subr.bf16.mxu0 0
      %3653 = vmatpush1.bf16.msra.mxu0 %v3630
      %3654 = vmatprep.subr.bf16.mxu0 0
      %3655 = vmatpush1.bf16.msra.mxu0 %v3631
      %3656 = vmatprep.subr.bf16.mxu0 0
      %3657 = vmatpush1.bf16.msra.mxu0 0
      %3658 = vmatprep.subr.bf16.mxu0 0
      %3659 = vmatpush1.bf16.msra.mxu0 0
      %3660 = vmatprep.subr.bf16.mxu0 0
      %3661 = vmatpush1.bf16.msra.mxu0 0
      %3662 = vmatprep.subr.bf16.mxu0 0
      %3663 = vmatpush1.bf16.msra.mxu0 0
      %3664 = vmatprep.subr.bf16.mxu0 0
      %3665 = vmatpush1.bf16.msra.mxu0 0
      %3666 = vmatprep.subr.bf16.mxu0 0
      %3667 = vmatpush1.bf16.msra.mxu0 0
      %3668 = vmatprep.subr.bf16.mxu0 0
      %3669 = vmatpush1.bf16.msra.mxu0 0
      %3670 = vmatprep.subr.bf16.mxu0 0
      %3671 = vmatpush1.bf16.msra.mxu0 0
      %3672 = vmatprep.mubr.bf16.mxu0 0
      %3673 = vmatmul.mubr.bf16.gmra.mrb[0].mxu0 %v3527
      %v3674 = vpop.f32.mrb[0].mxu0
      %v3675 = vadd.f32 0.0, %v3674
      %v3676 = vpop.f32.mrb[0].mxu0
      %v3677 = vpop.f32.mrb[0].mxu0
      %v3678 = vadd.f32 0.0, %v3677
      %v3679 = vpop.f32.mrb[0].mxu0
      %3680 = vmatprep.mubr.bf16.mxu0 0
      %3681 = vmatmul.mubr.bf16.gmra.mrb[0].mxu0 %v3528
      %v3682 = vpop.f32.mrb[0].mxu0
      %v3683 = vadd.f32 0.0, %v3682
      %v3684 = vpop.f32.mrb[0].mxu0
      %v3685 = vpop.f32.mrb[0].mxu0
      %v3686 = vadd.f32 0.0, %v3685
      %v3687 = vpop.f32.mrb[0].mxu0
      %3688 = vmatprep.mubr.bf16.mxu0 0
      %3689 = vmatmul.mubr.bf16.gmra.mrb[0].mxu0 %v3529
      %v3690 = vpop.f32.mrb[0].mxu0
      %v3691 = vadd.f32 0.0, %v3690
      %v3692 = vpop.f32.mrb[0].mxu0
      %v3693 = vpop.f32.mrb[0].mxu0
      %v3694 = vadd.f32 0.0, %v3693
      %v3695 = vpop.f32.mrb[0].mxu0
      %3696 = vmatprep.mubr.bf16.mxu0 0
      %3697 = vmatmul.mubr.bf16.gmra.mrb[0].mxu0 %v3530
      %v3698 = vpop.f32.mrb[0].mxu0
      %v3699 = vadd.f32 0.0, %v3698
      %v3700 = vpop.f32.mrb[0].mxu0
      %v3701 = vpop.f32.mrb[0].mxu0
      %v3702 = vadd.f32 0.0, %v3701
      %v3703 = vpop.f32.mrb[0].mxu0
      %3704 = vmatprep.mubr.bf16.mxu0 0
      %3705 = vmatmul.mubr.bf16.gmra.mrb[0].mxu0 %v3531
      %v3706 = vpop.f32.mrb[0].mxu0
      %v3707 = vadd.f32 0.0, %v3706
      %v3708 = vpop.f32.mrb[0].mxu0
      %v3709 = vpop.f32.mrb[0].mxu0
      %v3710 = vadd.f32 0.0, %v3709
      %v3711 = vpop.f32.mrb[0].mxu0
      %3712 = vmatprep.mubr.bf16.mxu0 0
      %3713 = vmatmul.mubr.bf16.gmra.mrb[0].mxu0 %v3532
      %v3714 = vpop.f32.mrb[0].mxu0
      %v3715 = vadd.f32 0.0, %v3714
      %v3716 = vpop.f32.mrb[0].mxu0
      %v3717 = vpop.f32.mrb[0].mxu0
      %v3718 = vadd.f32 0.0, %v3717
      %v3719 = vpop.f32.mrb[0].mxu0
      %3720 = vmatprep.mubr.bf16.mxu0 0
      %3721 = vmatmul.mubr.bf16.gmra.mrb[0].mxu0 %v3533
      %v3722 = vpop.f32.mrb[0].mxu0
      %v3723 = vadd.f32 0.0, %v3722
      %v3724 = vpop.f32.mrb[0].mxu0
      %v3725 = vpop.f32.mrb[0].mxu0
      %v3726 = vadd.f32 0.0, %v3725
      %v3727 = vpop.f32.mrb[0].mxu0
      %3728 = vmatprep.mubr.bf16.mxu0 0
      %3729 = vmatmul.mubr.bf16.gmra.mrb[0].mxu0 %v3534
      %v3730 = vpop.f32.mrb[0].mxu0
      %v3731 = vadd.f32 0.0, %v3730
      %v3732 = vpop.f32.mrb[0].mxu0
      %v3733 = vpop.f32.mrb[0].mxu0
      %v3734 = vadd.f32 0.0, %v3733
      %v3735 = vpop.f32.mrb[0].mxu0
      %3736 = vmatprep.mubr.bf16.mxu0 0
      %3737 = vmatmul.mubr.bf16.gmra.mrb[0].mxu0 %v3535
      %v3738 = vpop.f32.mrb[0].mxu0
      %v3739 = vadd.f32 0.0, %v3738
      %v3740 = vpop.f32.mrb[0].mxu0
      %v3741 = vpop.f32.mrb[0].mxu0
      %v3742 = vadd.f32 0.0, %v3741
      %v3743 = vpop.f32.mrb[0].mxu0
      %3744 = vmatprep.mubr.bf16.mxu0 0
      %3745 = vmatmul.mubr.bf16.gmra.mrb[0].mxu0 %v3536
      %v3746 = vpop.f32.mrb[0].mxu0
      %v3747 = vadd.f32 0.0, %v3746
      %v3748 = vpop.f32.mrb[0].mxu0
      %v3749 = vpop.f32.mrb[0].mxu0
      %v3750 = vadd.f32 0.0, %v3749
      %v3751 = vpop.f32.mrb[0].mxu0
      %3752 = vmatprep.mubr.bf16.mxu0 0
      %3753 = vmatmul.mubr.bf16.gmra.mrb[0].mxu0 %v3537
      %v3754 = vpop.f32.mrb[0].mxu0
      %v3755 = vadd.f32 0.0, %v3754
      %v3756 = vpop.f32.mrb[0].mxu0
      %v3757 = vpop.f32.mrb[0].mxu0
      %v3758 = vadd.f32 0.0, %v3757
      %v3759 = vpop.f32.mrb[0].mxu0
      %3760 = vmatprep.mubr.bf16.mxu0 0
      %3761 = vmatmul.mubr.bf16.gmra.mrb[0].mxu0 %v3538
      %v3762 = vpop.f32.mrb[0].mxu0
      %v3763 = vadd.f32 0.0, %v3762
      %v3764 = vpop.f32.mrb[0].mxu0
      %v3765 = vpop.f32.mrb[0].mxu0
      %v3766 = vadd.f32 0.0, %v3765
      %v3767 = vpop.f32.mrb[0].mxu0
      %3768 = vmatprep.mubr.bf16.mxu0 0
      %3769 = vmatmul.mubr.bf16.gmra.mrb[0].mxu0 %v3539
      %v3770 = vpop.f32.mrb[0].mxu0
      %v3771 = vadd.f32 0.0, %v3770
      %v3772 = vpop.f32.mrb[0].mxu0
      %v3773 = vpop.f32.mrb[0].mxu0
      %v3774 = vadd.f32 0.0, %v3773
      %v3775 = vpop.f32.mrb[0].mxu0
      %3776 = vmatprep.mubr.bf16.mxu0 0
      %3777 = vmatmul.mubr.bf16.gmra.mrb[0].mxu0 %v3540
      %v3778 = vpop.f32.mrb[0].mxu0
      %v3779 = vadd.f32 0.0, %v3778
      %v3780 = vpop.f32.mrb[0].mxu0
      %v3781 = vpop.f32.mrb[0].mxu0
      %v3782 = vadd.f32 0.0, %v3781
      %v3783 = vpop.f32.mrb[0].mxu0
      %3784 = vmatprep.mubr.bf16.mxu0 0
      %3785 = vmatmul.mubr.bf16.gmra.mrb[0].mxu0 %v3541
      %v3786 = vpop.f32.mrb[0].mxu0
      %v3787 = vadd.f32 0.0, %v3786
      %v3788 = vpop.f32.mrb[0].mxu0
      %v3789 = vpop.f32.mrb[0].mxu0
      %v3790 = vadd.f32 0.0, %v3789
      %v3791 = vpop.f32.mrb[0].mxu0
      %3792 = vmatprep.mubr.bf16.mxu0 0
      %3793 = vmatmul.mubr.bf16.gmra.mrb[0].mxu0 %v3542
      %v3794 = vpop.f32.mrb[0].mxu0
      %v3795 = vadd.f32 0.0, %v3794
      %v3796 = vpop.f32.mrb[0].mxu0
      %v3797 = vpop.f32.mrb[0].mxu0
      %v3798 = vadd.f32 0.0, %v3797
      %v3799 = vpop.f32.mrb[0].mxu0
      %3800 = vdwg.mxu0
      %v3801 = vadd.f32 %v3543, %v3675
      %v3802 = vadd.f32 %v3544, %v3678
      %v3803 = vadd.f32 %v3545, %v3683
      %v3804 = vadd.f32 %v3546, %v3686
      %v3805 = vadd.f32 %v3547, %v3691
      %v3806 = vadd.f32 %v3548, %v3694
      %v3807 = vadd.f32 %v3549, %v3699
      %v3808 = vadd.f32 %v3550, %v3702
      %v3809 = vadd.f32 %v3551, %v3707
      %v3810 = vadd.f32 %v3552, %v3710
      %v3811 = vadd.f32 %v3553, %v3715
      %v3812 = vadd.f32 %v3554, %v3718
      %v3813 = vadd.f32 %v3555, %v3723
      %v3814 = vadd.f32 %v3556, %v3726
      %v3815 = vadd.f32 %v3557, %v3731
      %v3816 = vadd.f32 %v3558, %v3734
      %v3817 = vadd.f32 %v3559, %v3739
      %v3818 = vadd.f32 %v3560, %v3742
      %v3819 = vadd.f32 %v3561, %v3747
      %v3820 = vadd.f32 %v3562, %v3750
      %v3821 = vadd.f32 %v3563, %v3755
      %v3822 = vadd.f32 %v3564, %v3758
      %v3823 = vadd.f32 %v3565, %v3763
      %v3824 = vadd.f32 %v3566, %v3766
      %v3825 = vadd.f32 %v3567, %v3771
      %v3826 = vadd.f32 %v3568, %v3774
      %v3827 = vadd.f32 %v3569, %v3779
      %v3828 = vadd.f32 %v3570, %v3782
      %v3829 = vadd.f32 %v3571, %v3787
      %v3830 = vadd.f32 %v3572, %v3790
      %v3831 = vadd.f32 %v3573, %v3795
      %v3832 = vadd.f32 %v3574, %v3798
      %3833 = vst [vmem:[#allocation3] sm:$0xff] %v3801
      %3834 = vst [vmem:[#allocation3 + $0x8] sm:$0xff] %v3802
      %3835 = vst [vmem:[#allocation3 + $0x10] sm:$0xff] %v3803
      %3836 = vst [vmem:[#allocation3 + $0x18] sm:$0xff] %v3804
      %3837 = vst [vmem:[#allocation3 + $0x20] sm:$0xff] %v3805
      %3838 = vst [vmem:[#allocation3 + $0x28] sm:$0xff] %v3806
      %3839 = vst [vmem:[#allocation3 + $0x30] sm:$0xff] %v3807
      %3840 = vst [vmem:[#allocation3 + $0x38] sm:$0xff] %v3808
      %3841 = vst [vmem:[#allocation3 + $0x40] sm:$0xff] %v3809
      %3842 = vst [vmem:[#allocation3 + $0x48] sm:$0xff] %v3810
      %3843 = vst [vmem:[#allocation3 + $0x50] sm:$0xff] %v3811
      %3844 = vst [vmem:[#allocation3 + $0x58] sm:$0xff] %v3812
      %3845 = vst [vmem:[#allocation3 + $0x60] sm:$0xff] %v3813
      %3846 = vst [vmem:[#allocation3 + $0x68] sm:$0xff] %v3814
      %3847 = vst [vmem:[#allocation3 + $0x70] sm:$0xff] %v3815
      %3848 = vst [vmem:[#allocation3 + $0x78] sm:$0xff] %v3816
      %3849 = vst [vmem:[#allocation3 + $0x80] sm:$0xff] %v3817
      %3850 = vst [vmem:[#allocation3 + $0x88] sm:$0xff] %v3818
      %3851 = vst [vmem:[#allocation3 + $0x90] sm:$0xff] %v3819
      %3852 = vst [vmem:[#allocation3 + $0x98] sm:$0xff] %v3820
      %3853 = vst [vmem:[#allocation3 + $0xa0] sm:$0xff] %v3821
      %3854 = vst [vmem:[#allocation3 + $0xa8] sm:$0xff] %v3822
      %3855 = vst [vmem:[#allocation3 + $0xb0] sm:$0xff] %v3823
      %3856 = vst [vmem:[#allocation3 + $0xb8] sm:$0xff] %v3824
      %3857 = vst [vmem:[#allocation3 + $0xc0] sm:$0xff] %v3825
      %3858 = vst [vmem:[#allocation3 + $0xc8] sm:$0xff] %v3826
      %3859 = vst [vmem:[#allocation3 + $0xd0] sm:$0xff] %v3827
      %3860 = vst [vmem:[#allocation3 + $0xd8] sm:$0xff] %v3828
      %3861 = vst [vmem:[#allocation3 + $0xe0] sm:$0xff] %v3829
      %3862 = vst [vmem:[#allocation3 + $0xe8] sm:$0xff] %v3830
      %3863 = vst [vmem:[#allocation3 + $0xf0] sm:$0xff] %v3831
      %3864 = vst [vmem:[#allocation3 + $0xf8] sm:$0xff] %v3832
      %v3865 = vld [vmem:[#allocation3] sm:$0xff]
      %v3866 = vld [vmem:[#allocation3 + $0x8] sm:$0xff]
      %v3867 = vld [vmem:[#allocation3 + $0x10] sm:$0xff]
      %v3868 = vld [vmem:[#allocation3 + $0x18] sm:$0xff]
      %v3869 = vld [vmem:[#allocation3 + $0x20] sm:$0xff]
      %v3870 = vld [vmem:[#allocation3 + $0x28] sm:$0xff]
      %v3871 = vld [vmem:[#allocation3 + $0x30] sm:$0xff]
      %v3872 = vld [vmem:[#allocation3 + $0x38] sm:$0xff]
      %v3873 = vld [vmem:[#allocation3 + $0x40] sm:$0xff]
      %v3874 = vld [vmem:[#allocation3 + $0x48] sm:$0xff]
      %v3875 = vld [vmem:[#allocation3 + $0x50] sm:$0xff]
      %v3876 = vld [vmem:[#allocation3 + $0x58] sm:$0xff]
      %v3877 = vld [vmem:[#allocation3 + $0x60] sm:$0xff]
      %v3878 = vld [vmem:[#allocation3 + $0x68] sm:$0xff]
      %v3879 = vld [vmem:[#allocation3 + $0x70] sm:$0xff]
      %v3880 = vld [vmem:[#allocation3 + $0x78] sm:$0xff]
      %v3881 = vld [vmem:[#allocation3 + $0x80] sm:$0xff]
      %v3882 = vld [vmem:[#allocation3 + $0x88] sm:$0xff]
      %v3883 = vld [vmem:[#allocation3 + $0x90] sm:$0xff]
      %v3884 = vld [vmem:[#allocation3 + $0x98] sm:$0xff]
      %v3885 = vld [vmem:[#allocation3 + $0xa0] sm:$0xff]
      %v3886 = vld [vmem:[#allocation3 + $0xa8] sm:$0xff]
      %v3887 = vld [vmem:[#allocation3 + $0xb0] sm:$0xff]
      %v3888 = vld [vmem:[#allocation3 + $0xb8] sm:$0xff]
      %v3889 = vld [vmem:[#allocation3 + $0xc0] sm:$0xff]
      %v3890 = vld [vmem:[#allocation3 + $0xc8] sm:$0xff]
      %v3891 = vld [vmem:[#allocation3 + $0xd0] sm:$0xff]
      %v3892 = vld [vmem:[#allocation3 + $0xd8] sm:$0xff]
      %v3893 = vld [vmem:[#allocation3 + $0xe0] sm:$0xff]
      %v3894 = vld [vmem:[#allocation3 + $0xe8] sm:$0xff]
      %v3895 = vld [vmem:[#allocation3 + $0xf0] sm:$0xff]
      %v3896 = vld [vmem:[#allocation3 + $0xf8] sm:$0xff]
      %3897 = vst [vmem:[%s255] sm:$0xff] %v3865
      %3898 = vst [vmem:[%s255 + $0x8] sm:$0xff] %v3866
      %3899 = vst [vmem:[%s255 + $0x10] sm:$0xff] %v3867
      %3900 = vst [vmem:[%s255 + $0x18] sm:$0xff] %v3868
      %3901 = vst [vmem:[%s255 + $0x20] sm:$0xff] %v3869
      %3902 = vst [vmem:[%s255 + $0x28] sm:$0xff] %v3870
      %3903 = vst [vmem:[%s255 + $0x30] sm:$0xff] %v3871
      %3904 = vst [vmem:[%s255 + $0x38] sm:$0xff] %v3872
      %3905 = vst [vmem:[%s255 + $0x40] sm:$0xff] %v3873
      %3906 = vst [vmem:[%s255 + $0x48] sm:$0xff] %v3874
      %3907 = vst [vmem:[%s255 + $0x50] sm:$0xff] %v3875
      %3908 = vst [vmem:[%s255 + $0x58] sm:$0xff] %v3876
      %3909 = vst [vmem:[%s255 + $0x60] sm:$0xff] %v3877
      %3910 = vst [vmem:[%s255 + $0x68] sm:$0xff] %v3878
      %3911 = vst [vmem:[%s255 + $0x70] sm:$0xff] %v3879
      %3912 = vst [vmem:[%s255 + $0x78] sm:$0xff] %v3880
      %3913 = vst [vmem:[%s255 + $0x80] sm:$0xff] %v3881
      %3914 = vst [vmem:[%s255 + $0x88] sm:$0xff] %v3882
      %3915 = vst [vmem:[%s255 + $0x90] sm:$0xff] %v3883
      %3916 = vst [vmem:[%s255 + $0x98] sm:$0xff] %v3884
      %3917 = vst [vmem:[%s255 + $0xa0] sm:$0xff] %v3885
      %3918 = vst [vmem:[%s255 + $0xa8] sm:$0xff] %v3886
      %3919 = vst [vmem:[%s255 + $0xb0] sm:$0xff] %v3887
      %3920 = vst [vmem:[%s255 + $0xb8] sm:$0xff] %v3888
      %3921 = vst [vmem:[%s255 + $0xc0] sm:$0xff] %v3889
      %3922 = vst [vmem:[%s255 + $0xc8] sm:$0xff] %v3890
      %3923 = vst [vmem:[%s255 + $0xd0] sm:$0xff] %v3891
      %3924 = vst [vmem:[%s255 + $0xd8] sm:$0xff] %v3892
      %3925 = vst [vmem:[%s255 + $0xe0] sm:$0xff] %v3893
      %3926 = vst [vmem:[%s255 + $0xe8] sm:$0xff] %v3894
      %3927 = vst [vmem:[%s255 + $0xf0] sm:$0xff] %v3895
      %3928 = vst [vmem:[%s255 + $0xf8] sm:$0xff] %v3896
      // Predicated region
      $region41: #{basic_block_forward.4} parent=35 // pred_check
        %p3929 = pneg %p262
      $region42: #{basic_block_forward.4} parent=35 // pred_check_branch
        %3931 = sbr.rel (%p3929) target = $region44
      $region43: #{basic_block_forward.4} parent=35 // pred_region
        %3932 = vst [vmem:[%s260] sm:$0x3] 0.0
      $region44: #{basic_block_forward.4} parent=35 // pred_fallthru
        _
      %v3933 = vld [vmem:[%s260] sm:$0x1]
      %v3934 = vadd.f32 %v3865, %v3866
      %v3935 = vadd.f32 %v3934, %v3867
      %v3936 = vadd.f32 %v3935, %v3868
      %v3937 = vadd.f32 %v3936, %v3869
      %v3938 = vadd.f32 %v3937, %v3870
      %v3939 = vadd.f32 %v3938, %v3871
      %v3940 = vadd.f32 %v3939, %v3872
      %v3941 = vadd.f32 %v3940, %v3873
      %v3942 = vadd.f32 %v3941, %v3874
      %v3943 = vadd.f32 %v3942, %v3875
      %v3944 = vadd.f32 %v3943, %v3876
      %v3945 = vadd.f32 %v3944, %v3877
      %v3946 = vadd.f32 %v3945, %v3878
      %v3947 = vadd.f32 %v3946, %v3879
      %v3948 = vadd.f32 %v3947, %v3880
      %v3949 = vadd.f32 %v3948, %v3881
      %v3950 = vadd.f32 %v3949, %v3882
      %v3951 = vadd.f32 %v3950, %v3883
      %v3952 = vadd.f32 %v3951, %v3884
      %v3953 = vadd.f32 %v3952, %v3885
      %v3954 = vadd.f32 %v3953, %v3886
      %v3955 = vadd.f32 %v3954, %v3887
      %v3956 = vadd.f32 %v3955, %v3888
      %v3957 = vadd.f32 %v3956, %v3889
      %v3958 = vadd.f32 %v3957, %v3890
      %v3959 = vadd.f32 %v3958, %v3891
      %v3960 = vadd.f32 %v3959, %v3892
      %v3961 = vadd.f32 %v3960, %v3893
      %v3962 = vadd.f32 %v3961, %v3894
      %v3963 = vadd.f32 %v3962, %v3895
      %v3964 = vadd.f32 %v3963, %v3896
      %v3965 = vrot.slane %v3964, 4
      %v3966 = vadd.f32 %v3964, %v3965
      %v3967 = vrot.slane %v3966, 2
      %v3968 = vadd.f32 %v3966, %v3967
      %v3969 = vrot.slane %v3968, 1
      %v3970 = vadd.f32 %v3968, %v3969
      %v3971 = vadd.f32 %v3933, %v3970
      %3972 = vst [vmem:[%s260] sm:$0x1] %v3971
      %v3973 = vld [vmem:[%s260 + $0x1] sm:$0x1]
      %v3974 = vmul.f32 %v3865, %v3865
      %v3975 = vmul.f32 %v3866, %v3866
      %v3976 = vmul.f32 %v3867, %v3867
      %v3977 = vmul.f32 %v3868, %v3868
      %v3978 = vmul.f32 %v3869, %v3869
      %v3979 = vmul.f32 %v3870, %v3870
      %v3980 = vmul.f32 %v3871, %v3871
      %v3981 = vmul.f32 %v3872, %v3872
      %v3982 = vmul.f32 %v3873, %v3873
      %v3983 = vmul.f32 %v3874, %v3874
      %v3984 = vmul.f32 %v3875, %v3875
      %v3985 = vmul.f32 %v3876, %v3876
      %v3986 = vmul.f32 %v3877, %v3877
      %v3987 = vmul.f32 %v3878, %v3878
      %v3988 = vmul.f32 %v3879, %v3879
      %v3989 = vmul.f32 %v3880, %v3880
      %v3990 = vmul.f32 %v3881, %v3881
      %v3991 = vmul.f32 %v3882, %v3882
      %v3992 = vmul.f32 %v3883, %v3883
      %v3993 = vmul.f32 %v3884, %v3884
      %v3994 = vmul.f32 %v3885, %v3885
      %v3995 = vmul.f32 %v3886, %v3886
      %v3996 = vmul.f32 %v3887, %v3887
      %v3997 = vmul.f32 %v3888, %v3888
      %v3998 = vmul.f32 %v3889, %v3889
      %v3999 = vmul.f32 %v3890, %v3890
      %v4000 = vmul.f32 %v3891, %v3891
      %v4001 = vmul.f32 %v3892, %v3892
      %v4002 = vmul.f32 %v3893, %v3893
      %v4003 = vmul.f32 %v3894, %v3894
      %v4004 = vmul.f32 %v3895, %v3895
      %v4005 = vmul.f32 %v3896, %v3896
      %v4006 = vadd.f32 %v3974, %v3975
      %v4007 = vadd.f32 %v4006, %v3976
      %v4008 = vadd.f32 %v4007, %v3977
      %v4009 = vadd.f32 %v4008, %v3978
      %v4010 = vadd.f32 %v4009, %v3979
      %v4011 = vadd.f32 %v4010, %v3980
      %v4012 = vadd.f32 %v4011, %v3981
      %v4013 = vadd.f32 %v4012, %v3982
      %v4014 = vadd.f32 %v4013, %v3983
      %v4015 = vadd.f32 %v4014, %v3984
      %v4016 = vadd.f32 %v4015, %v3985
      %v4017 = vadd.f32 %v4016, %v3986
      %v4018 = vadd.f32 %v4017, %v3987
      %v4019 = vadd.f32 %v4018, %v3988
      %v4020 = vadd.f32 %v4019, %v3989
      %v4021 = vadd.f32 %v4020, %v3990
      %v4022 = vadd.f32 %v4021, %v3991
      %v4023 = vadd.f32 %v4022, %v3992
      %v4024 = vadd.f32 %v4023, %v3993
      %v4025 = vadd.f32 %v4024, %v3994
      %v4026 = vadd.f32 %v4025, %v3995
      %v4027 = vadd.f32 %v4026, %v3996
      %v4028 = vadd.f32 %v4027, %v3997
      %v4029 = vadd.f32 %v4028, %v3998
      %v4030 = vadd.f32 %v4029, %v3999
      %v4031 = vadd.f32 %v4030, %v4000
      %v4032 = vadd.f32 %v4031, %v4001
      %v4033 = vadd.f32 %v4032, %v4002
      %v4034 = vadd.f32 %v4033, %v4003
      %v4035 = vadd.f32 %v4034, %v4004
      %v4036 = vadd.f32 %v4035, %v4005
      %v4037 = vrot.slane %v4036, 4
      %v4038 = vadd.f32 %v4036, %v4037
      %v4039 = vrot.slane %v4038, 2
      %v4040 = vadd.f32 %v4038, %v4039
      %v4041 = vrot.slane %v4040, 1
      %v4042 = vadd.f32 %v4040, %v4041
      %v4043 = vadd.f32 %v3973, %v4042
      %4044 = vst [vmem:[%s260 + $0x1] sm:$0x1] %v4043
      %s4045 = smul.u32 16, %s22
      %p4046 = scmp.lt.s32.totalorder %s21, 1
      %s4047 = scalar_select %p4046, %s21, 1
      %p4048 = scmp.lt.s32.totalorder %s4045, 15
      %s4049 = scalar_select %p4048, %s4045, 15
      %s4050 = smul.addr %s4049, 2
      %s4051 = smul.addr %s4047, 32
      %s4052 = sadd.s32 %s4050, %s4051
      %s4053 = smul.addr %s4052, 8
      %s4054 = scalar_lea.vmem %s4, %s4053
      %p4055 = scmp.lt.s32.totalorder %s21, 1
      %s4056 = scalar_select %p4055, %s21, 1
      %s4057 = smul.addr %s4056, 2
      %s4058 = scalar_lea.vmem %s5, %s4057
      // Predicated region
      $region45: #{basic_block_forward.4} parent=35 // pred_check
        %p4059 = pneg %p138
      $region46: #{basic_block_forward.4} parent=35 // pred_check_branch
        %4061 = sbr.rel (%p4059) target = $region48
      $region47: #{basic_block_forward.4} parent=35 // pred_region
        %s4062 = smul.u32 16, %s22
      $region48: #{basic_block_forward.4} parent=35 // pred_fallthru
        _
      // Predicated region
      $region49: #{basic_block_forward.4} parent=35 // pred_check
        %p4063 = pneg %p164
      $region50: #{basic_block_forward.4} parent=35 // pred_check_branch
        %4065 = sbr.rel (%p4063) target = $region52
      $region51: #{basic_block_forward.4} parent=35 // pred_region
        _
      $region52: #{basic_block_forward.4} parent=35 // pred_fallthru
        _
    $region36: #{basic_block_forward.4} parent=5 // pred_fallthru
      _
    %p4066 = scmp.le.s32.totalorder 2, %s12
    // Predicated region
    $region53: #{basic_block_forward.4} parent=5 // pred_check
      %p4067 = pneg %p4066
    $region54: #{basic_block_forward.4} parent=5 // pred_check_branch
      %4069 = sbr.rel (%p4067) target = $region56
    $region55: #{basic_block_forward.4} parent=5 // pred_region
      %s4070 = ssub.s32 %s12, 2
      // Predicated region
      $region57: #{basic_block_forward.4} parent=55 // pred_check
        %p4071 = pneg %p144
      $region58: #{basic_block_forward.4} parent=55 // pred_check_branch
        %4073 = sbr.rel (%p4071) target = $region60
      $region59: #{basic_block_forward.4} parent=55 // pred_region
        %s4074 = smul.u32 16, %s24
        %p4075 = scmp.lt.s32.totalorder %s23, 1
        %s4076 = scalar_select %p4075, %s23, 1
        %p4077 = scmp.lt.s32.totalorder %s4074, 15
        %s4078 = scalar_select %p4077, %s4074, 15
        %s4079 = smul.addr %s4078, 2
        %s4080 = smul.addr %s4076, 32
        %s4081 = sadd.s32 %s4079, %s4080
        %s4082 = smul.addr %s4081, 8
        %s4083 = scalar_lea.vmem %s4, %s4082
      $region60: #{basic_block_forward.4} parent=55 // pred_fallthru
        _
      // Predicated region
      $region61: #{basic_block_forward.4} parent=55 // pred_check
        %p4084 = pneg %p170
      $region62: #{basic_block_forward.4} parent=55 // pred_check_branch
        %4086 = sbr.rel (%p4084) target = $region64
      $region63: #{basic_block_forward.4} parent=55 // pred_region
        %p4087 = scmp.lt.s32.totalorder %s23, 1
        %s4088 = scalar_select %p4087, %s23, 1
        %s4089 = smul.addr %s4088, 2
        %s4090 = scalar_lea.vmem %s5, %s4089
      $region64: #{basic_block_forward.4} parent=55 // pred_fallthru
        _
    $region56: #{basic_block_forward.4} parent=5 // pred_fallthru
      _
  $region6: #{basic_block_forward.4} parent=0 // loop_footer
    %s16 = sadd.s32 1, %s12
  $region7: #{basic_block_forward.4} parent=0 // loop_footer_branch
    %11 = sbr.rel target = $region3
  $region8: #{basic_block_forward.4} parent=0 // loop_exit
    _

</llo_original>
